<compile_context>
chip_gen: v7x
topology: tpu7x:2x2x1
jax: 0.10.0
libtpu: 0.0.40
codegen_flags: <defaults>
</compile_context>

<pallas_src>
import jax
import jax.numpy as jnp
from jax.experimental import pallas as pl
from jax.experimental.pallas import tpu as pltpu

IN_DIM = 28 * 28     # 784
HID = 1200
OUT = 10

# Lane-aligned (multiples of 128) padded dims. Zero padding preserves the math:
# padded input cols / weight rows contribute 0, padded hidden lanes are relu(0)=0,
# padded output lanes are sliced off in the wrapper.
IN_PAD = 896         # 7  * 128
HID_PAD = 1280       # 10 * 128
OUT_PAD = 128        # 1  * 128


def _round_up(n, m):
    return ((n + m - 1) // m) * m


def _mlp_kernel(x_ref, w1_ref, b1_ref, w2_ref, b2_ref, w3_ref, b3_ref, o_ref):
    # fc1 + ReLU  (bf16 x bf16 -> f32 accumulate on the MXU)
    h1 = jnp.dot(x_ref[...], w1_ref[...], preferred_element_type=jnp.float32)
    h1 = jnp.maximum(h1 + b1_ref[...], 0.0).astype(jnp.bfloat16)
    # fc2 + ReLU
    h2 = jnp.dot(h1, w2_ref[...], preferred_element_type=jnp.float32)
    h2 = jnp.maximum(h2 + b2_ref[...], 0.0).astype(jnp.bfloat16)
    # fc3 (no activation); lane-dense (TM, 128) store
    o = jnp.dot(h2, w3_ref[...], preferred_element_type=jnp.float32)
    o_ref[...] = (o + b3_ref[...]).astype(o_ref.dtype)


def init_params(key):
    """nn.Linear-style init: U(-1/sqrt(fan_in), +1/sqrt(fan_in)).
    Weights stored as [in, out] (transposed vs. PyTorch's [out, in])."""
    ks = jax.random.split(key, 6)

    def linear(kw, kb, fan_in, fan_out):
        bound = 1.0 / jnp.sqrt(fan_in)
        w = jax.random.uniform(kw, (fan_in, fan_out), jnp.float32, -bound, bound)
        b = jax.random.uniform(kb, (1, fan_out), jnp.float32, -bound, bound)
        return w, b

    w1, b1 = linear(ks[0], ks[1], IN_DIM, HID)
    w2, b2 = linear(ks[2], ks[3], HID, HID)
    w3, b3 = linear(ks[4], ks[5], HID, OUT)
    return (w1, b1, w2, b2, w3, b3)


def prepare_params(params):
    """One-time: zero-pad to lane-aligned shapes and cast weights to bf16."""
    # TODO(synk): for further HBM savings use int8 weights on v5e/v6e and fp8 on v7x.
    w1, b1, w2, b2, w3, b3 = params

    def pad(a, shape):
        return jnp.pad(a, [(0, s - d) for d, s in zip(a.shape, shape)])

    w1p = pad(w1, (IN_PAD, HID_PAD)).astype(jnp.bfloat16)
    w2p = pad(w2, (HID_PAD, HID_PAD)).astype(jnp.bfloat16)
    w3p = pad(w3, (HID_PAD, OUT_PAD)).astype(jnp.bfloat16)
    b1p = pad(b1, (1, HID_PAD)).astype(jnp.float32)
    b2p = pad(b2, (1, HID_PAD)).astype(jnp.float32)
    b3p = pad(b3, (1, OUT_PAD)).astype(jnp.float32)
    return (w1p, b1p, w2p, b2p, w3p, b3p)


def teacher_net_forward(x, prepared):
    """x: any shape whose trailing dims flatten to 784 (e.g. [B,1,28,28]).
    Returns logits [B, 10]."""
    w1, b1, w2, b2, w3, b3 = prepared
    x2d = x.reshape(-1, IN_DIM)
    batch = x2d.shape[0]

    # Batch tile size: up to 256 rows per grid step; pad batch to a tile multiple.
    tm = min(256, _round_up(batch, 8))
    bp = _round_up(batch, tm)

    xp = jnp.pad(x2d.astype(jnp.float32),
                 ((0, bp - batch), (0, IN_PAD - IN_DIM))).astype(jnp.bfloat16)

    out_padded = pl.pallas_call(
        _mlp_kernel,
        out_shape=jax.ShapeDtypeStruct((bp, OUT_PAD), jnp.float32),
        grid=(bp // tm,),
        in_specs=[
            # x tile: marches over the batch, double-buffered by the pipeline.
            pl.BlockSpec((tm, IN_PAD), lambda i: (i, 0)),
            # weights / biases: constant index_map -> stay resident in VMEM.
            pl.BlockSpec((IN_PAD, HID_PAD), lambda i: (0, 0)),
            pl.BlockSpec((1, HID_PAD), lambda i: (0, 0)),
            pl.BlockSpec((HID_PAD, HID_PAD), lambda i: (0, 0)),
            pl.BlockSpec((1, HID_PAD), lambda i: (0, 0)),
            pl.BlockSpec((HID_PAD, OUT_PAD), lambda i: (0, 0)),
            pl.BlockSpec((1, OUT_PAD), lambda i: (0, 0)),
        ],
        out_specs=pl.BlockSpec((tm, OUT_PAD), lambda i: (i, 0)),
        compiler_params=pltpu.CompilerParams(
            dimension_semantics=("parallel",)),
    )(xp, w1, b1, w2, b2, w3, b3)

    return out_padded[:batch, :OUT]


def _reference(x, prepared):
    """Pure-JAX reference applying the same bf16 quantization as the kernel."""
    w1, b1, w2, b2, w3, b3 = prepared
    x2d = x.reshape(-1, IN_DIM)
    xb = jnp.pad(x2d.astype(jnp.float32), ((0, 0), (0, IN_PAD - IN_DIM)))
    xb = xb.astype(jnp.bfloat16).astype(jnp.float32)
    h1 = jnp.maximum(xb @ w1.astype(jnp.float32) + b1, 0.0)
    h1 = h1.astype(jnp.bfloat16).astype(jnp.float32)
    h2 = jnp.maximum(h1 @ w2.astype(jnp.float32) + b2, 0.0)
    h2 = h2.astype(jnp.bfloat16).astype(jnp.float32)
    o = h2 @ w3.astype(jnp.float32) + b3
    return o[:, :OUT]


if __name__ == "__main__":
    key = jax.random.PRNGKey(0)
    kx, kp = jax.random.split(key)

    # MNIST-like input: batch=8, NCHW [8, 1, 28, 28]
    x = jax.random.normal(kx, (8, 1, 28, 28), dtype=jnp.float32)
    params = init_params(kp)
    prepared = prepare_params(params)

    out = teacher_net_forward(x, prepared)
    out = jax.block_until_ready(out)

    ref = _reference(x, prepared)
    assert out.shape == (8, OUT), out.shape
    assert jnp.allclose(out, ref, atol=1e-2, rtol=1e-2), "mismatch vs. JAX reference"

    print("KERNEL_OK")
</pallas_src>

<mosaic_0001>
module attributes {stable_mosaic.version = 11 : i64} {
  func.func @_mlp_kernel(%arg0: i32, %arg1: memref<8x896xbf16, #tpu.memory_space<vmem>>, %arg2: memref<896x1280xbf16, #tpu.memory_space<vmem>>, %arg3: memref<1x1280xf32, #tpu.memory_space<vmem>>, %arg4: memref<1280x1280xbf16, #tpu.memory_space<vmem>>, %arg5: memref<1x1280xf32, #tpu.memory_space<vmem>>, %arg6: memref<1280x128xbf16, #tpu.memory_space<vmem>>, %arg7: memref<1x128xf32, #tpu.memory_space<vmem>>, %arg8: memref<8x128xf32, #tpu.memory_space<vmem>>) attributes {dimension_semantics = [#tpu.dimension_semantics<parallel>], iteration_bounds = array<i64: 1>, scalar_prefetch = 0 : i64, scratch_operands = 0 : i64, tpu.core_type = #tpu.core_type<tc>, window_params = [{transform_indices = @transform_0, window_bounds = array<i64: 8, 896>}, {pipeline_mode = #tpu.pipeline_mode<synchronous>, transform_indices = @transform_1, window_bounds = array<i64: 896, 1280>}, {pipeline_mode = #tpu.pipeline_mode<synchronous>, transform_indices = @transform_2, window_bounds = array<i64: 1, 1280>}, {pipeline_mode = #tpu.pipeline_mode<synchronous>, transform_indices = @transform_3, window_bounds = array<i64: 1280, 1280>}, {pipeline_mode = #tpu.pipeline_mode<synchronous>, transform_indices = @transform_4, window_bounds = array<i64: 1, 1280>}, {pipeline_mode = #tpu.pipeline_mode<synchronous>, transform_indices = @transform_5, window_bounds = array<i64: 1280, 128>}, {pipeline_mode = #tpu.pipeline_mode<synchronous>, transform_indices = @transform_6, window_bounds = array<i64: 1, 128>}, {transform_indices = @transform_7, window_bounds = array<i64: 8, 128>}]} {
    %c0 = arith.constant 0 : index
    %c0_0 = arith.constant 0 : index
    %0 = vector.load %arg1[%c0, %c0_0] : memref<8x896xbf16, #tpu.memory_space<vmem>>, vector<8x896xbf16>
    %c0_1 = arith.constant 0 : index
    %c0_2 = arith.constant 0 : index
    %1 = vector.load %arg2[%c0_1, %c0_2] : memref<896x1280xbf16, #tpu.memory_space<vmem>>, vector<896x1280xbf16>
    %cst = arith.constant dense<0.000000e+00> : vector<8x1280xf32>
    %2 = tpu.matmul %0, %1, %cst {dimension_numbers = #tpu.dot_dimension_numbers<[1], [0], [0], [1], [0, 0, 1, 1], [], []>} : vector<8x896xbf16>, vector<896x1280xbf16>, vector<8x1280xf32> -> vector<8x1280xf32>
    %c0_3 = arith.constant 0 : index
    %c0_4 = arith.constant 0 : index
    %3 = vector.load %arg3[%c0_3, %c0_4] : memref<1x1280xf32, #tpu.memory_space<vmem>>, vector<1x1280xf32>
    %4 = vector.broadcast %3 : vector<1x1280xf32> to vector<8x1280xf32>
    %5 = arith.addf %2, %4 : vector<8x1280xf32>
    %cst_5 = arith.constant 0.000000e+00 : f32
    %6 = vector.broadcast %cst_5 : f32 to vector<8x1280xf32>
    %7 = arith.maximumf %5, %6 : vector<8x1280xf32>
    %8 = arith.truncf %7 : vector<8x1280xf32> to vector<8x1280xbf16>
    %c0_6 = arith.constant 0 : index
    %c0_7 = arith.constant 0 : index
    %9 = vector.load %arg4[%c0_6, %c0_7] : memref<1280x1280xbf16, #tpu.memory_space<vmem>>, vector<1280x1280xbf16>
    %cst_8 = arith.constant dense<0.000000e+00> : vector<8x1280xf32>
    %10 = tpu.matmul %8, %9, %cst_8 {dimension_numbers = #tpu.dot_dimension_numbers<[1], [0], [0], [1], [0, 0, 1, 1], [], []>} : vector<8x1280xbf16>, vector<1280x1280xbf16>, vector<8x1280xf32> -> vector<8x1280xf32>
    %c0_9 = arith.constant 0 : index
    %c0_10 = arith.constant 0 : index
    %11 = vector.load %arg5[%c0_9, %c0_10] : memref<1x1280xf32, #tpu.memory_space<vmem>>, vector<1x1280xf32>
    %12 = vector.broadcast %11 : vector<1x1280xf32> to vector<8x1280xf32>
    %13 = arith.addf %10, %12 : vector<8x1280xf32>
    %cst_11 = arith.constant 0.000000e+00 : f32
    %14 = vector.broadcast %cst_11 : f32 to vector<8x1280xf32>
    %15 = arith.maximumf %13, %14 : vector<8x1280xf32>
    %16 = arith.truncf %15 : vector<8x1280xf32> to vector<8x1280xbf16>
    %c0_12 = arith.constant 0 : index
    %c0_13 = arith.constant 0 : index
    %17 = vector.load %arg6[%c0_12, %c0_13] : memref<1280x128xbf16, #tpu.memory_space<vmem>>, vector<1280x128xbf16>
    %cst_14 = arith.constant dense<0.000000e+00> : vector<8x128xf32>
    %18 = tpu.matmul %16, %17, %cst_14 {dimension_numbers = #tpu.dot_dimension_numbers<[1], [0], [0], [1], [0, 0, 1, 1], [], []>} : vector<8x1280xbf16>, vector<1280x128xbf16>, vector<8x128xf32> -> vector<8x128xf32>
    %c0_15 = arith.constant 0 : index
    %c0_16 = arith.constant 0 : index
    %19 = vector.load %arg7[%c0_15, %c0_16] : memref<1x128xf32, #tpu.memory_space<vmem>>, vector<1x128xf32>
    %20 = vector.broadcast %19 : vector<1x128xf32> to vector<8x128xf32>
    %21 = arith.addf %18, %20 : vector<8x128xf32>
    %c0_17 = arith.constant 0 : index
    %c0_18 = arith.constant 0 : index
    %22 = vector.load %arg8[%c0_17, %c0_18] : memref<8x128xf32, #tpu.memory_space<vmem>>, vector<8x128xf32>
    tpu.vector_store %arg8[%c0_17, %c0_18], %21 {strides = array<i32>} : memref<8x128xf32, #tpu.memory_space<vmem>>, vector<8x128xf32>,
    return
  }
  func.func @transform_0(%arg0: i32) -> (i32, i32) {
    %c0_i32 = arith.constant 0 : i32
    %c0_i32_0 = arith.constant 0 : i32
    return %arg0, %c0_i32 : i32, i32
  }
  func.func @transform_1(%arg0: i32) -> (i32, i32) {
    %c0_i32 = arith.constant 0 : i32
    %c0_i32_0 = arith.constant 0 : i32
    %c0_i32_1 = arith.constant 0 : i32
    return %c0_i32, %c0_i32_0 : i32, i32
  }
  func.func @transform_2(%arg0: i32) -> (i32, i32) {
    %c0_i32 = arith.constant 0 : i32
    %c0_i32_0 = arith.constant 0 : i32
    %c0_i32_1 = arith.constant 0 : i32
    return %c0_i32, %c0_i32_0 : i32, i32
  }
  func.func @transform_3(%arg0: i32) -> (i32, i32) {
    %c0_i32 = arith.constant 0 : i32
    %c0_i32_0 = arith.constant 0 : i32
    %c0_i32_1 = arith.constant 0 : i32
    return %c0_i32, %c0_i32_0 : i32, i32
  }
  func.func @transform_4(%arg0: i32) -> (i32, i32) {
    %c0_i32 = arith.constant 0 : i32
    %c0_i32_0 = arith.constant 0 : i32
    %c0_i32_1 = arith.constant 0 : i32
    return %c0_i32, %c0_i32_0 : i32, i32
  }
  func.func @transform_5(%arg0: i32) -> (i32, i32) {
    %c0_i32 = arith.constant 0 : i32
    %c0_i32_0 = arith.constant 0 : i32
    %c0_i32_1 = arith.constant 0 : i32
    return %c0_i32, %c0_i32_0 : i32, i32
  }
  func.func @transform_6(%arg0: i32) -> (i32, i32) {
    %c0_i32 = arith.constant 0 : i32
    %c0_i32_0 = arith.constant 0 : i32
    %c0_i32_1 = arith.constant 0 : i32
    return %c0_i32, %c0_i32_0 : i32, i32
  }
  func.func @transform_7(%arg0: i32) -> (i32, i32) {
    %c0_i32 = arith.constant 0 : i32
    %c0_i32_0 = arith.constant 0 : i32
    return %arg0, %c0_i32 : i32, i32
  }
}

</mosaic_0001>

<llo_original>
// kernel: tpu_custom_call.1
$region0: #{tpu_custom_call.1}
  #allocation0 [shape = 'u32[]', space=smem, size = 0x4, offset = 0x4, fixed_abs, tag = 'smem constant byte address 0x4 - core index']
  #allocation1 [shape = 'u32[144,128]{1,0:T(1,128)}', space=vmem, size = 0x12000, scoped, tag = 'internal scratch']
  %s0 = inlined_call_operand.hbm [shape: bf16[8,896], index: 0, kind: input, shape index: {}]
  %s1 = inlined_call_operand.hbm [shape: bf16[896,1280], index: 1, kind: input, shape index: {}]
  %s2 = inlined_call_operand.hbm [shape: f32[1,1280], index: 2, kind: input, shape index: {}]
  %s3 = inlined_call_operand.hbm [shape: bf16[1280,1280], index: 3, kind: input, shape index: {}]
  %s4 = inlined_call_operand.hbm [shape: f32[1,1280], index: 4, kind: input, shape index: {}]
  %s5 = inlined_call_operand.hbm [shape: bf16[1280,128], index: 5, kind: input, shape index: {}]
  %s6 = inlined_call_operand.hbm [shape: f32[1,128], index: 6, kind: input, shape index: {}]
  %s7 = inlined_call_operand.hbm [shape: f32[8,128], index: 7, kind: output, shape index: {}]
  %s8 = sld [smem:[#allocation0]]
  $region66: #{tpu_custom_call.1} parent=0
    _
  %s10 = ssub.s32 1, %s8
  %s11 = scalar_select 0, %s10, %s8
  $region1: #{tpu_custom_call.1} parent=0
    #allocation2 [shape = 'u8[14336]{0}', space=vmem, size = 0x3800, scoped, tag = 'input window, operand 0, single buffered']
    #allocation3 [shape = 's32[1]{0}', space=sflag, size = 0x4, scoped, tag = 'scoped memory for tpu_custom_call.1']
    #allocation4 [shape = 's32[1]{0}', space=sflag, size = 0x4, scoped, tag = 'scoped memory for tpu_custom_call.1']
    #allocation5 [shape = 'u8[2293760]{0}', space=vmem, size = 0x230000, scoped, tag = 'input window, operand 1, single buffered']
    #allocation6 [shape = 's32[1]{0}', space=sflag, size = 0x4, scoped, tag = 'scoped memory for tpu_custom_call.1']
    #allocation7 [shape = 'u8[5120]{0}', space=vmem, size = 0x1400, scoped, tag = 'input window, operand 2, single buffered']
    #allocation8 [shape = 'u8[3276800]{0}', space=vmem, size = 0x320000, scoped, tag = 'input window, operand 3, single buffered']
    #allocation9 [shape = 's32[1]{0}', space=sflag, size = 0x4, scoped, tag = 'scoped memory for tpu_custom_call.1']
    #allocation10 [shape = 'u8[5120]{0}', space=vmem, size = 0x1400, scoped, tag = 'input window, operand 4, single buffered']
    #allocation11 [shape = 'u8[327680]{0}', space=vmem, size = 0x50000, scoped, tag = 'input window, operand 5, single buffered']
    #allocation12 [shape = 's32[1]{0}', space=sflag, size = 0x4, scoped, tag = 'scoped memory for tpu_custom_call.1']
    #allocation13 [shape = 'u8[512]{0}', space=vmem, size = 0x400, scoped, tag = 'input window, operand 6, single buffered']
    #allocation14 [shape = 'u8[4096]{0}', space=vmem, size = 0x1000, scoped, tag = 'output window, operand 0, single buffered']
    %12 = vsyncpa [#allocation3], 0
    %13 = vsyncpa [#allocation6], 0
    %14 = vsyncpa [#allocation9], 0
    %15 = vsyncpa [#allocation12], 0
    %16 = vsyncpa [#allocation4], 0
    // Predicated region
    $region2: #{tpu_custom_call.1} parent=1 // pred_check
      _
    $region3: #{tpu_custom_call.1} parent=1 // pred_check_branch
      %18 = sbr.rel (0) target = $region5
    $region4: #{tpu_custom_call.1} parent=1 // pred_region
      %s20 = ssub.s32 448, 448
      %21 = vsyncadd [#allocation3], %s20
      %s23 = sshll.u32 [#allocation2], 4
      %s24 = int_to_ptr.vmem [resolvable:$true] %s23
      %26 = dma.hbm_to_vmem [thread:$0]  %s0, 448, %s24, [#allocation3]
    $region5: #{tpu_custom_call.1} parent=1 // pred_fallthru
      _
    // Predicated region
    $region6: #{tpu_custom_call.1} parent=1 // pred_check
      _
    $region7: #{tpu_custom_call.1} parent=1 // pred_check_branch
      %28 = sbr.rel (0) target = $region9
    $region8: #{tpu_custom_call.1} parent=1 // pred_region
      %s30 = ssub.s32 71680, 71680
      %31 = vsyncadd [#allocation6], %s30
      %s32 = sshll.u32 [#allocation5], 4
      %s33 = int_to_ptr.vmem [resolvable:$true] %s32
      %38 = dma.hbm_to_vmem [thread:$0]  %s1, 71680, %s33, [#allocation6], 640, 640, 40
    $region9: #{tpu_custom_call.1} parent=1 // pred_fallthru
      _
    // Predicated region
    $region10: #{tpu_custom_call.1} parent=1 // pred_check
      _
    $region11: #{tpu_custom_call.1} parent=1 // pred_check_branch
      %40 = sbr.rel (0) target = $region13
    $region12: #{tpu_custom_call.1} parent=1 // pred_region
      %s42 = ssub.s32 160, 160
      %43 = vsyncadd [#allocation6], %s42
      %s45 = sshll.u32 [#allocation7], 4
      %s46 = int_to_ptr.vmem [resolvable:$true] %s45
      %48 = dma.hbm_to_vmem [thread:$0]  %s2, 160, %s46, [#allocation6]
    $region13: #{tpu_custom_call.1} parent=1 // pred_fallthru
      _
    // Predicated region
    $region14: #{tpu_custom_call.1} parent=1 // pred_check
      _
    $region15: #{tpu_custom_call.1} parent=1 // pred_check_branch
      %50 = sbr.rel (0) target = $region17
    $region16: #{tpu_custom_call.1} parent=1 // pred_region
      %s52 = ssub.s32 102400, 102400
      %53 = vsyncadd [#allocation9], %s52
      %s54 = sshll.u32 [#allocation8], 4
      %s55 = int_to_ptr.vmem [resolvable:$true] %s54
      %60 = dma.hbm_to_vmem [thread:$0]  %s3, 102400, %s55, [#allocation9], 640, 640, 40
    $region17: #{tpu_custom_call.1} parent=1 // pred_fallthru
      _
    // Predicated region
    $region18: #{tpu_custom_call.1} parent=1 // pred_check
      _
    $region19: #{tpu_custom_call.1} parent=1 // pred_check_branch
      %62 = sbr.rel (0) target = $region21
    $region20: #{tpu_custom_call.1} parent=1 // pred_region
      %s64 = ssub.s32 160, 160
      %65 = vsyncadd [#allocation9], %s64
      %s67 = sshll.u32 [#allocation10], 4
      %s68 = int_to_ptr.vmem [resolvable:$true] %s67
      %70 = dma.hbm_to_vmem [thread:$0]  %s4, 160, %s68, [#allocation9]
    $region21: #{tpu_custom_call.1} parent=1 // pred_fallthru
      _
    // Predicated region
    $region22: #{tpu_custom_call.1} parent=1 // pred_check
      _
    $region23: #{tpu_custom_call.1} parent=1 // pred_check_branch
      %72 = sbr.rel (0) target = $region25
    $region24: #{tpu_custom_call.1} parent=1 // pred_region
      %s74 = ssub.s32 10240, 10240
      %75 = vsyncadd [#allocation12], %s74
      %s76 = sshll.u32 [#allocation11], 4
      %s77 = int_to_ptr.vmem [resolvable:$true] %s76
      %82 = dma.hbm_to_vmem [thread:$0]  %s5, 10240, %s77, [#allocation12], 64, 64, 4
    $region25: #{tpu_custom_call.1} parent=1 // pred_fallthru
      _
    // Predicated region
    $region26: #{tpu_custom_call.1} parent=1 // pred_check
      _
    $region27: #{tpu_custom_call.1} parent=1 // pred_check_branch
      %84 = sbr.rel (0) target = $region29
    $region28: #{tpu_custom_call.1} parent=1 // pred_region
      %s86 = ssub.s32 16, 16
      %87 = vsyncadd [#allocation12], %s86
      %s89 = sshll.u32 [#allocation13], 4
      %s90 = int_to_ptr.vmem [resolvable:$true] %s89
      %92 = dma.hbm_to_vmem [thread:$0]  %s6, 16, %s90, [#allocation12]
    $region29: #{tpu_custom_call.1} parent=1 // pred_fallthru
      _
    // Predicated region
    $region30: #{tpu_custom_call.1} parent=1 // pred_check
      _
    $region31: #{tpu_custom_call.1} parent=1 // pred_check_branch
      %94 = sbr.rel (0) target = $region33
    $region32: #{tpu_custom_call.1} parent=1 // pred_region
      %95 = dma.done [#allocation3], 448
    $region33: #{tpu_custom_call.1} parent=1 // pred_fallthru
      _
    // Predicated region
    $region34: #{tpu_custom_call.1} parent=1 // pred_check
      _
    $region35: #{tpu_custom_call.1} parent=1 // pred_check_branch
      %97 = sbr.rel (0) target = $region37
    $region36: #{tpu_custom_call.1} parent=1 // pred_region
      %98 = dma.done [#allocation6], 71680
    $region37: #{tpu_custom_call.1} parent=1 // pred_fallthru
      _
    // Predicated region
    $region38: #{tpu_custom_call.1} parent=1 // pred_check
      _
    $region39: #{tpu_custom_call.1} parent=1 // pred_check_branch
      %100 = sbr.rel (0) target = $region41
    $region40: #{tpu_custom_call.1} parent=1 // pred_region
      %101 = dma.done [#allocation6], 160
    $region41: #{tpu_custom_call.1} parent=1 // pred_fallthru
      _
    // Predicated region
    $region42: #{tpu_custom_call.1} parent=1 // pred_check
      _
    $region43: #{tpu_custom_call.1} parent=1 // pred_check_branch
      %103 = sbr.rel (0) target = $region45
    $region44: #{tpu_custom_call.1} parent=1 // pred_region
      %104 = dma.done [#allocation9], 102400
    $region45: #{tpu_custom_call.1} parent=1 // pred_fallthru
      _
    // Predicated region
    $region46: #{tpu_custom_call.1} parent=1 // pred_check
      _
    $region47: #{tpu_custom_call.1} parent=1 // pred_check_branch
      %106 = sbr.rel (0) target = $region49
    $region48: #{tpu_custom_call.1} parent=1 // pred_region
      %107 = dma.done [#allocation9], 160
    $region49: #{tpu_custom_call.1} parent=1 // pred_fallthru
      _
    // Predicated region
    $region50: #{tpu_custom_call.1} parent=1 // pred_check
      _
    $region51: #{tpu_custom_call.1} parent=1 // pred_check_branch
      %109 = sbr.rel (0) target = $region53
    $region52: #{tpu_custom_call.1} parent=1 // pred_region
      %110 = dma.done [#allocation12], 10240
    $region53: #{tpu_custom_call.1} parent=1 // pred_fallthru
      _
    // Predicated region
    $region54: #{tpu_custom_call.1} parent=1 // pred_check
      _
    $region55: #{tpu_custom_call.1} parent=1 // pred_check_branch
      %112 = sbr.rel (0) target = $region57
    $region56: #{tpu_custom_call.1} parent=1 // pred_region
      %113 = dma.done [#allocation12], 16
    $region57: #{tpu_custom_call.1} parent=1 // pred_fallthru
      _
    %v115 = vld [vmem:[#allocation2] sm:$0xff]
    %v116 = vld [vmem:[#allocation2 + $0x8] sm:$0xff]
    %v117 = vld [vmem:[#allocation2 + $0x10] sm:$0xff]
    %v118 = vld [vmem:[#allocation2 + $0x18] sm:$0xf]
    %v119 = vld [vmem:[#allocation5] sm:$0xff]
    %v120 = vld [vmem:[#allocation5 + $0x8] sm:$0xff]
    %v121 = vld [vmem:[#allocation5 + $0x10] sm:$0xff]
    %v122 = vld [vmem:[#allocation5 + $0x18] sm:$0xff]
    %v123 = vld [vmem:[#allocation5 + $0x20] sm:$0xff]
    %v124 = vld [vmem:[#allocation5 + $0x28] sm:$0xff]
    %v125 = vld [vmem:[#allocation5 + $0x30] sm:$0xff]
    %v126 = vld [vmem:[#allocation5 + $0x38] sm:$0xff]
    %v127 = vld [vmem:[#allocation5 + $0x40] sm:$0xff]
    %v128 = vld [vmem:[#allocation5 + $0x48] sm:$0xff]
    %v129 = vld [vmem:[#allocation5 + $0x50] sm:$0xff]
    %v130 = vld [vmem:[#allocation5 + $0x58] sm:$0xff]
    %v131 = vld [vmem:[#allocation5 + $0x60] sm:$0xff]
    %v132 = vld [vmem:[#allocation5 + $0x68] sm:$0xff]
    %v133 = vld [vmem:[#allocation5 + $0x70] sm:$0xff]
    %v134 = vld [vmem:[#allocation5 + $0x78] sm:$0xff]
    %v135 = vld [vmem:[#allocation5 + $0x80] sm:$0xff]
    %v136 = vld [vmem:[#allocation5 + $0x88] sm:$0xff]
    %v137 = vld [vmem:[#allocation5 + $0x90] sm:$0xff]
    %v138 = vld [vmem:[#allocation5 + $0x98] sm:$0xff]
    %v139 = vld [vmem:[#allocation5 + $0xa0] sm:$0xff]
    %v140 = vld [vmem:[#allocation5 + $0xa8] sm:$0xff]
    %v141 = vld [vmem:[#allocation5 + $0xb0] sm:$0xff]
    %v142 = vld [vmem:[#allocation5 + $0xb8] sm:$0xff]
    %v143 = vld [vmem:[#allocation5 + $0xc0] sm:$0xff]
    %v144 = vld [vmem:[#allocation5 + $0xc8] sm:$0xff]
    %v145 = vld [vmem:[#allocation5 + $0xd0] sm:$0xff]
    %v146 = vld [vmem:[#allocation5 + $0xd8] sm:$0xff]
    %v147 = vld [vmem:[#allocation5 + $0xe0] sm:$0xff]
    %v148 = vld [vmem:[#allocation5 + $0xe8] sm:$0xff]
    %v149 = vld [vmem:[#allocation5 + $0xf0] sm:$0xff]
    %v150 = vld [vmem:[#allocation5 + $0xf8] sm:$0xff]
    %v151 = vld [vmem:[#allocation5 + $0x100] sm:$0xff]
    %v152 = vld [vmem:[#allocation5 + $0x108] sm:$0xff]
    %v153 = vld [vmem:[#allocation5 + $0x110] sm:$0xff]
    %v154 = vld [vmem:[#allocation5 + $0x118] sm:$0xff]
    %v155 = vld [vmem:[#allocation5 + $0x120] sm:$0xff]
    %v156 = vld [vmem:[#allocation5 + $0x128] sm:$0xff]
    %v157 = vld [vmem:[#allocation5 + $0x130] sm:$0xff]
    %v158 = vld [vmem:[#allocation5 + $0x138] sm:$0xff]
    %v159 = vld [vmem:[#allocation5 + $0x140] sm:$0xff]
    %v160 = vld [vmem:[#allocation5 + $0x148] sm:$0xff]
    %v161 = vld [vmem:[#allocation5 + $0x150] sm:$0xff]
    %v162 = vld [vmem:[#allocation5 + $0x158] sm:$0xff]
    %v163 = vld [vmem:[#allocation5 + $0x160] sm:$0xff]
    %v164 = vld [vmem:[#allocation5 + $0x168] sm:$0xff]
    %v165 = vld [vmem:[#allocation5 + $0x170] sm:$0xff]
    %v166 = vld [vmem:[#allocation5 + $0x178] sm:$0xff]
    %v167 = vld [vmem:[#allocation5 + $0x180] sm:$0xff]
    %v168 = vld [vmem:[#allocation5 + $0x188] sm:$0xff]
    %v169 = vld [vmem:[#allocation5 + $0x190] sm:$0xff]
    %v170 = vld [vmem:[#allocation5 + $0x198] sm:$0xff]
    %v171 = vld [vmem:[#allocation5 + $0x1a0] sm:$0xff]
    %v172 = vld [vmem:[#allocation5 + $0x1a8] sm:$0xff]
    %v173 = vld [vmem:[#allocation5 + $0x1b0] sm:$0xff]
    %v174 = vld [vmem:[#allocation5 + $0x1b8] sm:$0xff]
    %v175 = vld [vmem:[#allocation5 + $0x1c0] sm:$0xff]
    %v176 = vld [vmem:[#allocation5 + $0x1c8] sm:$0xff]
    %v177 = vld [vmem:[#allocation5 + $0x1d0] sm:$0xff]
    %v178 = vld [vmem:[#allocation5 + $0x1d8] sm:$0xff]
    %v179 = vld [vmem:[#allocation5 + $0x1e0] sm:$0xff]
    %v180 = vld [vmem:[#allocation5 + $0x1e8] sm:$0xff]
    %v181 = vld [vmem:[#allocation5 + $0x1f0] sm:$0xff]
    %v182 = vld [vmem:[#allocation5 + $0x1f8] sm:$0xff]
    %v183 = vld [vmem:[#allocation5 + $0x200] sm:$0xff]
    %v184 = vld [vmem:[#allocation5 + $0x208] sm:$0xff]
    %v185 = vld [vmem:[#allocation5 + $0x210] sm:$0xff]
    %v186 = vld [vmem:[#allocation5 + $0x218] sm:$0xff]
    %v187 = vld [vmem:[#allocation5 + $0x220] sm:$0xff]
    %v188 = vld [vmem:[#allocation5 + $0x228] sm:$0xff]
    %v189 = vld [vmem:[#allocation5 + $0x230] sm:$0xff]
    %v190 = vld [vmem:[#allocation5 + $0x238] sm:$0xff]
    %v191 = vld [vmem:[#allocation5 + $0x240] sm:$0xff]
    %v192 = vld [vmem:[#allocation5 + $0x248] sm:$0xff]
    %v193 = vld [vmem:[#allocation5 + $0x250] sm:$0xff]
    %v194 = vld [vmem:[#allocation5 + $0x258] sm:$0xff]
    %v195 = vld [vmem:[#allocation5 + $0x260] sm:$0xff]
    %v196 = vld [vmem:[#allocation5 + $0x268] sm:$0xff]
    %v197 = vld [vmem:[#allocation5 + $0x270] sm:$0xff]
    %v198 = vld [vmem:[#allocation5 + $0x278] sm:$0xff]
    %v199 = vld [vmem:[#allocation5 + $0x280] sm:$0xff]
    %v200 = vld [vmem:[#allocation5 + $0x288] sm:$0xff]
    %v201 = vld [vmem:[#allocation5 + $0x290] sm:$0xff]
    %v202 = vld [vmem:[#allocation5 + $0x298] sm:$0xff]
    %v203 = vld [vmem:[#allocation5 + $0x2a0] sm:$0xff]
    %v204 = vld [vmem:[#allocation5 + $0x2a8] sm:$0xff]
    %v205 = vld [vmem:[#allocation5 + $0x2b0] sm:$0xff]
    %v206 = vld [vmem:[#allocation5 + $0x2b8] sm:$0xff]
    %v207 = vld [vmem:[#allocation5 + $0x2c0] sm:$0xff]
    %v208 = vld [vmem:[#allocation5 + $0x2c8] sm:$0xff]
    %v209 = vld [vmem:[#allocation5 + $0x2d0] sm:$0xff]
    %v210 = vld [vmem:[#allocation5 + $0x2d8] sm:$0xff]
    %v211 = vld [vmem:[#allocation5 + $0x2e0] sm:$0xff]
    %v212 = vld [vmem:[#allocation5 + $0x2e8] sm:$0xff]
    %v213 = vld [vmem:[#allocation5 + $0x2f0] sm:$0xff]
    %v214 = vld [vmem:[#allocation5 + $0x2f8] sm:$0xff]
    %v215 = vld [vmem:[#allocation5 + $0x300] sm:$0xff]
    %v216 = vld [vmem:[#allocation5 + $0x308] sm:$0xff]
    %v217 = vld [vmem:[#allocation5 + $0x310] sm:$0xff]
    %v218 = vld [vmem:[#allocation5 + $0x318] sm:$0xff]
    %v219 = vld [vmem:[#allocation5 + $0x320] sm:$0xff]
    %v220 = vld [vmem:[#allocation5 + $0x328] sm:$0xff]
    %v221 = vld [vmem:[#allocation5 + $0x330] sm:$0xff]
    %v222 = vld [vmem:[#allocation5 + $0x338] sm:$0xff]
    %v223 = vld [vmem:[#allocation5 + $0x340] sm:$0xff]
    %v224 = vld [vmem:[#allocation5 + $0x348] sm:$0xff]
    %v225 = vld [vmem:[#allocation5 + $0x350] sm:$0xff]
    %v226 = vld [vmem:[#allocation5 + $0x358] sm:$0xff]
    %v227 = vld [vmem:[#allocation5 + $0x360] sm:$0xff]
    %v228 = vld [vmem:[#allocation5 + $0x368] sm:$0xff]
    %v229 = vld [vmem:[#allocation5 + $0x370] sm:$0xff]
    %v230 = vld [vmem:[#allocation5 + $0x378] sm:$0xff]
    %v231 = vld [vmem:[#allocation5 + $0x380] sm:$0xff]
    %v232 = vld [vmem:[#allocation5 + $0x388] sm:$0xff]
    %v233 = vld [vmem:[#allocation5 + $0x390] sm:$0xff]
    %v234 = vld [vmem:[#allocation5 + $0x398] sm:$0xff]
    %v235 = vld [vmem:[#allocation5 + $0x3a0] sm:$0xff]
    %v236 = vld [vmem:[#allocation5 + $0x3a8] sm:$0xff]
    %v237 = vld [vmem:[#allocation5 + $0x3b0] sm:$0xff]
    %v238 = vld [vmem:[#allocation5 + $0x3b8] sm:$0xff]
    %v239 = vld [vmem:[#allocation5 + $0x3c0] sm:$0xff]
    %v240 = vld [vmem:[#allocation5 + $0x3c8] sm:$0xff]
    %v241 = vld [vmem:[#allocation5 + $0x3d0] sm:$0xff]
    %v242 = vld [vmem:[#allocation5 + $0x3d8] sm:$0xff]
    %v243 = vld [vmem:[#allocation5 + $0x3e0] sm:$0xff]
    %v244 = vld [vmem:[#allocation5 + $0x3e8] sm:$0xff]
    %v245 = vld [vmem:[#allocation5 + $0x3f0] sm:$0xff]
    %v246 = vld [vmem:[#allocation5 + $0x3f8] sm:$0xff]
    %v247 = vld [vmem:[#allocation5 + $0x400] sm:$0xff]
    %v248 = vld [vmem:[#allocation5 + $0x408] sm:$0xff]
    %v249 = vld [vmem:[#allocation5 + $0x410] sm:$0xff]
    %v250 = vld [vmem:[#allocation5 + $0x418] sm:$0xff]
    %v251 = vld [vmem:[#allocation5 + $0x420] sm:$0xff]
    %v252 = vld [vmem:[#allocation5 + $0x428] sm:$0xff]
    %v253 = vld [vmem:[#allocation5 + $0x430] sm:$0xff]
    %v254 = vld [vmem:[#allocation5 + $0x438] sm:$0xff]
    %v255 = vld [vmem:[#allocation5 + $0x440] sm:$0xff]
    %v256 = vld [vmem:[#allocation5 + $0x448] sm:$0xff]
    %v257 = vld [vmem:[#allocation5 + $0x450] sm:$0xff]
    %v258 = vld [vmem:[#allocation5 + $0x458] sm:$0xff]
    %v259 = vld [vmem:[#allocation5 + $0x460] sm:$0xff]
    %v260 = vld [vmem:[#allocation5 + $0x468] sm:$0xff]
    %v261 = vld [vmem:[#allocation5 + $0x470] sm:$0xff]
    %v262 = vld [vmem:[#allocation5 + $0x478] sm:$0xff]
    %v263 = vld [vmem:[#allocation5 + $0x480] sm:$0xff]
    %v264 = vld [vmem:[#allocation5 + $0x488] sm:$0xff]
    %v265 = vld [vmem:[#allocation5 + $0x490] sm:$0xff]
    %v266 = vld [vmem:[#allocation5 + $0x498] sm:$0xff]
    %v267 = vld [vmem:[#allocation5 + $0x4a0] sm:$0xff]
    %v268 = vld [vmem:[#allocation5 + $0x4a8] sm:$0xff]
    %v269 = vld [vmem:[#allocation5 + $0x4b0] sm:$0xff]
    %v270 = vld [vmem:[#allocation5 + $0x4b8] sm:$0xff]
    %v271 = vld [vmem:[#allocation5 + $0x4c0] sm:$0xff]
    %v272 = vld [vmem:[#allocation5 + $0x4c8] sm:$0xff]
    %v273 = vld [vmem:[#allocation5 + $0x4d0] sm:$0xff]
    %v274 = vld [vmem:[#allocation5 + $0x4d8] sm:$0xff]
    %v275 = vld [vmem:[#allocation5 + $0x4e0] sm:$0xff]
    %v276 = vld [vmem:[#allocation5 + $0x4e8] sm:$0xff]
    %v277 = vld [vmem:[#allocation5 + $0x4f0] sm:$0xff]
    %v278 = vld [vmem:[#allocation5 + $0x4f8] sm:$0xff]
    %v279 = vld [vmem:[#allocation5 + $0x500] sm:$0xff]
    %v280 = vld [vmem:[#allocation5 + $0x508] sm:$0xff]
    %v281 = vld [vmem:[#allocation5 + $0x510] sm:$0xff]
    %v282 = vld [vmem:[#allocation5 + $0x518] sm:$0xff]
    %v283 = vld [vmem:[#allocation5 + $0x520] sm:$0xff]
    %v284 = vld [vmem:[#allocation5 + $0x528] sm:$0xff]
    %v285 = vld [vmem:[#allocation5 + $0x530] sm:$0xff]
    %v286 = vld [vmem:[#allocation5 + $0x538] sm:$0xff]
    %v287 = vld [vmem:[#allocation5 + $0x540] sm:$0xff]
    %v288 = vld [vmem:[#allocation5 + $0x548] sm:$0xff]
    %v289 = vld [vmem:[#allocation5 + $0x550] sm:$0xff]
    %v290 = vld [vmem:[#allocation5 + $0x558] sm:$0xff]
    %v291 = vld [vmem:[#allocation5 + $0x560] sm:$0xff]
    %v292 = vld [vmem:[#allocation5 + $0x568] sm:$0xff]
    %v293 = vld [vmem:[#allocation5 + $0x570] sm:$0xff]
    %v294 = vld [vmem:[#allocation5 + $0x578] sm:$0xff]
    %v295 = vld [vmem:[#allocation5 + $0x580] sm:$0xff]
    %v296 = vld [vmem:[#allocation5 + $0x588] sm:$0xff]
    %v297 = vld [vmem:[#allocation5 + $0x590] sm:$0xff]
    %v298 = vld [vmem:[#allocation5 + $0x598] sm:$0xff]
    %v299 = vld [vmem:[#allocation5 + $0x5a0] sm:$0xff]
    %v300 = vld [vmem:[#allocation5 + $0x5a8] sm:$0xff]
    %v301 = vld [vmem:[#allocation5 + $0x5b0] sm:$0xff]
    %v302 = vld [vmem:[#allocation5 + $0x5b8] sm:$0xff]
    %v303 = vld [vmem:[#allocation5 + $0x5c0] sm:$0xff]
    %v304 = vld [vmem:[#allocation5 + $0x5c8] sm:$0xff]
    %v305 = vld [vmem:[#allocation5 + $0x5d0] sm:$0xff]
    %v306 = vld [vmem:[#allocation5 + $0x5d8] sm:$0xff]
    %v307 = vld [vmem:[#allocation5 + $0x5e0] sm:$0xff]
    %v308 = vld [vmem:[#allocation5 + $0x5e8] sm:$0xff]
    %v309 = vld [vmem:[#allocation5 + $0x5f0] sm:$0xff]
    %v310 = vld [vmem:[#allocation5 + $0x5f8] sm:$0xff]
    %v311 = vld [vmem:[#allocation5 + $0x600] sm:$0xff]
    %v312 = vld [vmem:[#allocation5 + $0x608] sm:$0xff]
    %v313 = vld [vmem:[#allocation5 + $0x610] sm:$0xff]
    %v314 = vld [vmem:[#allocation5 + $0x618] sm:$0xff]
    %v315 = vld [vmem:[#allocation5 + $0x620] sm:$0xff]
    %v316 = vld [vmem:[#allocation5 + $0x628] sm:$0xff]
    %v317 = vld [vmem:[#allocation5 + $0x630] sm:$0xff]
    %v318 = vld [vmem:[#allocation5 + $0x638] sm:$0xff]
    %v319 = vld [vmem:[#allocation5 + $0x640] sm:$0xff]
    %v320 = vld [vmem:[#allocation5 + $0x648] sm:$0xff]
    %v321 = vld [vmem:[#allocation5 + $0x650] sm:$0xff]
    %v322 = vld [vmem:[#allocation5 + $0x658] sm:$0xff]
    %v323 = vld [vmem:[#allocation5 + $0x660] sm:$0xff]
    %v324 = vld [vmem:[#allocation5 + $0x668] sm:$0xff]
    %v325 = vld [vmem:[#allocation5 + $0x670] sm:$0xff]
    %v326 = vld [vmem:[#allocation5 + $0x678] sm:$0xff]
    %v327 = vld [vmem:[#allocation5 + $0x680] sm:$0xff]
    %v328 = vld [vmem:[#allocation5 + $0x688] sm:$0xff]
    %v329 = vld [vmem:[#allocation5 + $0x690] sm:$0xff]
    %v330 = vld [vmem:[#allocation5 + $0x698] sm:$0xff]
    %v331 = vld [vmem:[#allocation5 + $0x6a0] sm:$0xff]
    %v332 = vld [vmem:[#allocation5 + $0x6a8] sm:$0xff]
    %v333 = vld [vmem:[#allocation5 + $0x6b0] sm:$0xff]
    %v334 = vld [vmem:[#allocation5 + $0x6b8] sm:$0xff]
    %v335 = vld [vmem:[#allocation5 + $0x6c0] sm:$0xff]
    %v336 = vld [vmem:[#allocation5 + $0x6c8] sm:$0xff]
    %v337 = vld [vmem:[#allocation5 + $0x6d0] sm:$0xff]
    %v338 = vld [vmem:[#allocation5 + $0x6d8] sm:$0xff]
    %v339 = vld [vmem:[#allocation5 + $0x6e0] sm:$0xff]
    %v340 = vld [vmem:[#allocation5 + $0x6e8] sm:$0xff]
    %v341 = vld [vmem:[#allocation5 + $0x6f0] sm:$0xff]
    %v342 = vld [vmem:[#allocation5 + $0x6f8] sm:$0xff]
    %v343 = vld [vmem:[#allocation5 + $0x700] sm:$0xff]
    %v344 = vld [vmem:[#allocation5 + $0x708] sm:$0xff]
    %v345 = vld [vmem:[#allocation5 + $0x710] sm:$0xff]
    %v346 = vld [vmem:[#allocation5 + $0x718] sm:$0xff]
    %v347 = vld [vmem:[#allocation5 + $0x720] sm:$0xff]
    %v348 = vld [vmem:[#allocation5 + $0x728] sm:$0xff]
    %v349 = vld [vmem:[#allocation5 + $0x730] sm:$0xff]
    %v350 = vld [vmem:[#allocation5 + $0x738] sm:$0xff]
    %v351 = vld [vmem:[#allocation5 + $0x740] sm:$0xff]
    %v352 = vld [vmem:[#allocation5 + $0x748] sm:$0xff]
    %v353 = vld [vmem:[#allocation5 + $0x750] sm:$0xff]
    %v354 = vld [vmem:[#allocation5 + $0x758] sm:$0xff]
    %v355 = vld [vmem:[#allocation5 + $0x760] sm:$0xff]
    %v356 = vld [vmem:[#allocation5 + $0x768] sm:$0xff]
    %v357 = vld [vmem:[#allocation5 + $0x770] sm:$0xff]
    %v358 = vld [vmem:[#allocation5 + $0x778] sm:$0xff]
    %v359 = vld [vmem:[#allocation5 + $0x780] sm:$0xff]
    %v360 = vld [vmem:[#allocation5 + $0x788] sm:$0xff]
    %v361 = vld [vmem:[#allocation5 + $0x790] sm:$0xff]
    %v362 = vld [vmem:[#allocation5 + $0x798] sm:$0xff]
    %v363 = vld [vmem:[#allocation5 + $0x7a0] sm:$0xff]
    %v364 = vld [vmem:[#allocation5 + $0x7a8] sm:$0xff]
    %v365 = vld [vmem:[#allocation5 + $0x7b0] sm:$0xff]
    %v366 = vld [vmem:[#allocation5 + $0x7b8] sm:$0xff]
    %v367 = vld [vmem:[#allocation5 + $0x7c0] sm:$0xff]
    %v368 = vld [vmem:[#allocation5 + $0x7c8] sm:$0xff]
    %v369 = vld [vmem:[#allocation5 + $0x7d0] sm:$0xff]
    %v370 = vld [vmem:[#allocation5 + $0x7d8] sm:$0xff]
    %v371 = vld [vmem:[#allocation5 + $0x7e0] sm:$0xff]
    %v372 = vld [vmem:[#allocation5 + $0x7e8] sm:$0xff]
    %v373 = vld [vmem:[#allocation5 + $0x7f0] sm:$0xff]
    %v374 = vld [vmem:[#allocation5 + $0x7f8] sm:$0xff]
    %v375 = vld [vmem:[#allocation5 + $0x800] sm:$0xff]
    %v376 = vld [vmem:[#allocation5 + $0x808] sm:$0xff]
    %v377 = vld [vmem:[#allocation5 + $0x810] sm:$0xff]
    %v378 = vld [vmem:[#allocation5 + $0x818] sm:$0xff]
    %v379 = vld [vmem:[#allocation5 + $0x820] sm:$0xff]
    %v380 = vld [vmem:[#allocation5 + $0x828] sm:$0xff]
    %v381 = vld [vmem:[#allocation5 + $0x830] sm:$0xff]
    %v382 = vld [vmem:[#allocation5 + $0x838] sm:$0xff]
    %v383 = vld [vmem:[#allocation5 + $0x840] sm:$0xff]
    %v384 = vld [vmem:[#allocation5 + $0x848] sm:$0xff]
    %v385 = vld [vmem:[#allocation5 + $0x850] sm:$0xff]
    %v386 = vld [vmem:[#allocation5 + $0x858] sm:$0xff]
    %v387 = vld [vmem:[#allocation5 + $0x860] sm:$0xff]
    %v388 = vld [vmem:[#allocation5 + $0x868] sm:$0xff]
    %v389 = vld [vmem:[#allocation5 + $0x870] sm:$0xff]
    %v390 = vld [vmem:[#allocation5 + $0x878] sm:$0xff]
    %v391 = vld [vmem:[#allocation5 + $0x880] sm:$0xff]
    %v392 = vld [vmem:[#allocation5 + $0x888] sm:$0xff]
    %v393 = vld [vmem:[#allocation5 + $0x890] sm:$0xff]
    %v394 = vld [vmem:[#allocation5 + $0x898] sm:$0xff]
    %v395 = vld [vmem:[#allocation5 + $0x8a0] sm:$0xff]
    %v396 = vld [vmem:[#allocation5 + $0x8a8] sm:$0xff]
    %v397 = vld [vmem:[#allocation5 + $0x8b0] sm:$0xff]
    %v398 = vld [vmem:[#allocation5 + $0x8b8] sm:$0xff]
    %v399 = vld [vmem:[#allocation5 + $0x8c0] sm:$0xff]
    %v400 = vld [vmem:[#allocation5 + $0x8c8] sm:$0xff]
    %v401 = vld [vmem:[#allocation5 + $0x8d0] sm:$0xff]
    %v402 = vld [vmem:[#allocation5 + $0x8d8] sm:$0xff]
    %v403 = vld [vmem:[#allocation5 + $0x8e0] sm:$0xff]
    %v404 = vld [vmem:[#allocation5 + $0x8e8] sm:$0xff]
    %v405 = vld [vmem:[#allocation5 + $0x8f0] sm:$0xff]
    %v406 = vld [vmem:[#allocation5 + $0x8f8] sm:$0xff]
    %v407 = vld [vmem:[#allocation5 + $0x900] sm:$0xff]
    %v408 = vld [vmem:[#allocation5 + $0x908] sm:$0xff]
    %v409 = vld [vmem:[#allocation5 + $0x910] sm:$0xff]
    %v410 = vld [vmem:[#allocation5 + $0x918] sm:$0xff]
    %v411 = vld [vmem:[#allocation5 + $0x920] sm:$0xff]
    %v412 = vld [vmem:[#allocation5 + $0x928] sm:$0xff]
    %v413 = vld [vmem:[#allocation5 + $0x930] sm:$0xff]
    %v414 = vld [vmem:[#allocation5 + $0x938] sm:$0xff]
    %v415 = vld [vmem:[#allocation5 + $0x940] sm:$0xff]
    %v416 = vld [vmem:[#allocation5 + $0x948] sm:$0xff]
    %v417 = vld [vmem:[#allocation5 + $0x950] sm:$0xff]
    %v418 = vld [vmem:[#allocation5 + $0x958] sm:$0xff]
    %v419 = vld [vmem:[#allocation5 + $0x960] sm:$0xff]
    %v420 = vld [vmem:[#allocation5 + $0x968] sm:$0xff]
    %v421 = vld [vmem:[#allocation5 + $0x970] sm:$0xff]
    %v422 = vld [vmem:[#allocation5 + $0x978] sm:$0xff]
    %v423 = vld [vmem:[#allocation5 + $0x980] sm:$0xff]
    %v424 = vld [vmem:[#allocation5 + $0x988] sm:$0xff]
    %v425 = vld [vmem:[#allocation5 + $0x990] sm:$0xff]
    %v426 = vld [vmem:[#allocation5 + $0x998] sm:$0xff]
    %v427 = vld [vmem:[#allocation5 + $0x9a0] sm:$0xff]
    %v428 = vld [vmem:[#allocation5 + $0x9a8] sm:$0xff]
    %v429 = vld [vmem:[#allocation5 + $0x9b0] sm:$0xff]
    %v430 = vld [vmem:[#allocation5 + $0x9b8] sm:$0xff]
    %v431 = vld [vmem:[#allocation5 + $0x9c0] sm:$0xff]
    %v432 = vld [vmem:[#allocation5 + $0x9c8] sm:$0xff]
    %v433 = vld [vmem:[#allocation5 + $0x9d0] sm:$0xff]
    %v434 = vld [vmem:[#allocation5 + $0x9d8] sm:$0xff]
    %v435 = vld [vmem:[#allocation5 + $0x9e0] sm:$0xff]
    %v436 = vld [vmem:[#allocation5 + $0x9e8] sm:$0xff]
    %v437 = vld [vmem:[#allocation5 + $0x9f0] sm:$0xff]
    %v438 = vld [vmem:[#allocation5 + $0x9f8] sm:$0xff]
    %v439 = vld [vmem:[#allocation5 + $0xa00] sm:$0xff]
    %v440 = vld [vmem:[#allocation5 + $0xa08] sm:$0xff]
    %v441 = vld [vmem:[#allocation5 + $0xa10] sm:$0xff]
    %v442 = vld [vmem:[#allocation5 + $0xa18] sm:$0xff]
    %v443 = vld [vmem:[#allocation5 + $0xa20] sm:$0xff]
    %v444 = vld [vmem:[#allocation5 + $0xa28] sm:$0xff]
    %v445 = vld [vmem:[#allocation5 + $0xa30] sm:$0xff]
    %v446 = vld [vmem:[#allocation5 + $0xa38] sm:$0xff]
    %v447 = vld [vmem:[#allocation5 + $0xa40] sm:$0xff]
    %v448 = vld [vmem:[#allocation5 + $0xa48] sm:$0xff]
    %v449 = vld [vmem:[#allocation5 + $0xa50] sm:$0xff]
    %v450 = vld [vmem:[#allocation5 + $0xa58] sm:$0xff]
    %v451 = vld [vmem:[#allocation5 + $0xa60] sm:$0xff]
    %v452 = vld [vmem:[#allocation5 + $0xa68] sm:$0xff]
    %v453 = vld [vmem:[#allocation5 + $0xa70] sm:$0xff]
    %v454 = vld [vmem:[#allocation5 + $0xa78] sm:$0xff]
    %v455 = vld [vmem:[#allocation5 + $0xa80] sm:$0xff]
    %v456 = vld [vmem:[#allocation5 + $0xa88] sm:$0xff]
    %v457 = vld [vmem:[#allocation5 + $0xa90] sm:$0xff]
    %v458 = vld [vmem:[#allocation5 + $0xa98] sm:$0xff]
    %v459 = vld [vmem:[#allocation5 + $0xaa0] sm:$0xff]
    %v460 = vld [vmem:[#allocation5 + $0xaa8] sm:$0xff]
    %v461 = vld [vmem:[#allocation5 + $0xab0] sm:$0xff]
    %v462 = vld [vmem:[#allocation5 + $0xab8] sm:$0xff]
    %v463 = vld [vmem:[#allocation5 + $0xac0] sm:$0xff]
    %v464 = vld [vmem:[#allocation5 + $0xac8] sm:$0xff]
    %v465 = vld [vmem:[#allocation5 + $0xad0] sm:$0xff]
    %v466 = vld [vmem:[#allocation5 + $0xad8] sm:$0xff]
    %v467 = vld [vmem:[#allocation5 + $0xae0] sm:$0xff]
    %v468 = vld [vmem:[#allocation5 + $0xae8] sm:$0xff]
    %v469 = vld [vmem:[#allocation5 + $0xaf0] sm:$0xff]
    %v470 = vld [vmem:[#allocation5 + $0xaf8] sm:$0xff]
    %v471 = vld [vmem:[#allocation5 + $0xb00] sm:$0xff]
    %v472 = vld [vmem:[#allocation5 + $0xb08] sm:$0xff]
    %v473 = vld [vmem:[#allocation5 + $0xb10] sm:$0xff]
    %v474 = vld [vmem:[#allocation5 + $0xb18] sm:$0xff]
    %v475 = vld [vmem:[#allocation5 + $0xb20] sm:$0xff]
    %v476 = vld [vmem:[#allocation5 + $0xb28] sm:$0xff]
    %v477 = vld [vmem:[#allocation5 + $0xb30] sm:$0xff]
    %v478 = vld [vmem:[#allocation5 + $0xb38] sm:$0xff]
    %v479 = vld [vmem:[#allocation5 + $0xb40] sm:$0xff]
    %v480 = vld [vmem:[#allocation5 + $0xb48] sm:$0xff]
    %v481 = vld [vmem:[#allocation5 + $0xb50] sm:$0xff]
    %v482 = vld [vmem:[#allocation5 + $0xb58] sm:$0xff]
    %v483 = vld [vmem:[#allocation5 + $0xb60] sm:$0xff]
    %v484 = vld [vmem:[#allocation5 + $0xb68] sm:$0xff]
    %v485 = vld [vmem:[#allocation5 + $0xb70] sm:$0xff]
    %v486 = vld [vmem:[#allocation5 + $0xb78] sm:$0xff]
    %v487 = vld [vmem:[#allocation5 + $0xb80] sm:$0xff]
    %v488 = vld [vmem:[#allocation5 + $0xb88] sm:$0xff]
    %v489 = vld [vmem:[#allocation5 + $0xb90] sm:$0xff]
    %v490 = vld [vmem:[#allocation5 + $0xb98] sm:$0xff]
    %v491 = vld [vmem:[#allocation5 + $0xba0] sm:$0xff]
    %v492 = vld [vmem:[#allocation5 + $0xba8] sm:$0xff]
    %v493 = vld [vmem:[#allocation5 + $0xbb0] sm:$0xff]
    %v494 = vld [vmem:[#allocation5 + $0xbb8] sm:$0xff]
    %v495 = vld [vmem:[#allocation5 + $0xbc0] sm:$0xff]
    %v496 = vld [vmem:[#allocation5 + $0xbc8] sm:$0xff]
    %v497 = vld [vmem:[#allocation5 + $0xbd0] sm:$0xff]
    %v498 = vld [vmem:[#allocation5 + $0xbd8] sm:$0xff]
    %v499 = vld [vmem:[#allocation5 + $0xbe0] sm:$0xff]
    %v500 = vld [vmem:[#allocation5 + $0xbe8] sm:$0xff]
    %v501 = vld [vmem:[#allocation5 + $0xbf0] sm:$0xff]
    %v502 = vld [vmem:[#allocation5 + $0xbf8] sm:$0xff]
    %v503 = vld [vmem:[#allocation5 + $0xc00] sm:$0xff]
    %v504 = vld [vmem:[#allocation5 + $0xc08] sm:$0xff]
    %v505 = vld [vmem:[#allocation5 + $0xc10] sm:$0xff]
    %v506 = vld [vmem:[#allocation5 + $0xc18] sm:$0xff]
    %v507 = vld [vmem:[#allocation5 + $0xc20] sm:$0xff]
    %v508 = vld [vmem:[#allocation5 + $0xc28] sm:$0xff]
    %v509 = vld [vmem:[#allocation5 + $0xc30] sm:$0xff]
    %v510 = vld [vmem:[#allocation5 + $0xc38] sm:$0xff]
    %v511 = vld [vmem:[#allocation5 + $0xc40] sm:$0xff]
    %v512 = vld [vmem:[#allocation5 + $0xc48] sm:$0xff]
    %v513 = vld [vmem:[#allocation5 + $0xc50] sm:$0xff]
    %v514 = vld [vmem:[#allocation5 + $0xc58] sm:$0xff]
    %v515 = vld [vmem:[#allocation5 + $0xc60] sm:$0xff]
    %v516 = vld [vmem:[#allocation5 + $0xc68] sm:$0xff]
    %v517 = vld [vmem:[#allocation5 + $0xc70] sm:$0xff]
    %v518 = vld [vmem:[#allocation5 + $0xc78] sm:$0xff]
    %v519 = vld [vmem:[#allocation5 + $0xc80] sm:$0xff]
    %v520 = vld [vmem:[#allocation5 + $0xc88] sm:$0xff]
    %v521 = vld [vmem:[#allocation5 + $0xc90] sm:$0xff]
    %v522 = vld [vmem:[#allocation5 + $0xc98] sm:$0xff]
    %v523 = vld [vmem:[#allocation5 + $0xca0] sm:$0xff]
    %v524 = vld [vmem:[#allocation5 + $0xca8] sm:$0xff]
    %v525 = vld [vmem:[#allocation5 + $0xcb0] sm:$0xff]
    %v526 = vld [vmem:[#allocation5 + $0xcb8] sm:$0xff]
    %v527 = vld [vmem:[#allocation5 + $0xcc0] sm:$0xff]
    %v528 = vld [vmem:[#allocation5 + $0xcc8] sm:$0xff]
    %v529 = vld [vmem:[#allocation5 + $0xcd0] sm:$0xff]
    %v530 = vld [vmem:[#allocation5 + $0xcd8] sm:$0xff]
    %v531 = vld [vmem:[#allocation5 + $0xce0] sm:$0xff]
    %v532 = vld [vmem:[#allocation5 + $0xce8] sm:$0xff]
    %v533 = vld [vmem:[#allocation5 + $0xcf0] sm:$0xff]
    %v534 = vld [vmem:[#allocation5 + $0xcf8] sm:$0xff]
    %v535 = vld [vmem:[#allocation5 + $0xd00] sm:$0xff]
    %v536 = vld [vmem:[#allocation5 + $0xd08] sm:$0xff]
    %v537 = vld [vmem:[#allocation5 + $0xd10] sm:$0xff]
    %v538 = vld [vmem:[#allocation5 + $0xd18] sm:$0xff]
    %v539 = vld [vmem:[#allocation5 + $0xd20] sm:$0xff]
    %v540 = vld [vmem:[#allocation5 + $0xd28] sm:$0xff]
    %v541 = vld [vmem:[#allocation5 + $0xd30] sm:$0xff]
    %v542 = vld [vmem:[#allocation5 + $0xd38] sm:$0xff]
    %v543 = vld [vmem:[#allocation5 + $0xd40] sm:$0xff]
    %v544 = vld [vmem:[#allocation5 + $0xd48] sm:$0xff]
    %v545 = vld [vmem:[#allocation5 + $0xd50] sm:$0xff]
    %v546 = vld [vmem:[#allocation5 + $0xd58] sm:$0xff]
    %v547 = vld [vmem:[#allocation5 + $0xd60] sm:$0xff]
    %v548 = vld [vmem:[#allocation5 + $0xd68] sm:$0xff]
    %v549 = vld [vmem:[#allocation5 + $0xd70] sm:$0xff]
    %v550 = vld [vmem:[#allocation5 + $0xd78] sm:$0xff]
    %v551 = vld [vmem:[#allocation5 + $0xd80] sm:$0xff]
    %v552 = vld [vmem:[#allocation5 + $0xd88] sm:$0xff]
    %v553 = vld [vmem:[#allocation5 + $0xd90] sm:$0xff]
    %v554 = vld [vmem:[#allocation5 + $0xd98] sm:$0xff]
    %v555 = vld [vmem:[#allocation5 + $0xda0] sm:$0xff]
    %v556 = vld [vmem:[#allocation5 + $0xda8] sm:$0xff]
    %v557 = vld [vmem:[#allocation5 + $0xdb0] sm:$0xff]
    %v558 = vld [vmem:[#allocation5 + $0xdb8] sm:$0xff]
    %v559 = vld [vmem:[#allocation5 + $0xdc0] sm:$0xff]
    %v560 = vld [vmem:[#allocation5 + $0xdc8] sm:$0xff]
    %v561 = vld [vmem:[#allocation5 + $0xdd0] sm:$0xff]
    %v562 = vld [vmem:[#allocation5 + $0xdd8] sm:$0xff]
    %v563 = vld [vmem:[#allocation5 + $0xde0] sm:$0xff]
    %v564 = vld [vmem:[#allocation5 + $0xde8] sm:$0xff]
    %v565 = vld [vmem:[#allocation5 + $0xdf0] sm:$0xff]
    %v566 = vld [vmem:[#allocation5 + $0xdf8] sm:$0xff]
    %v567 = vld [vmem:[#allocation5 + $0xe00] sm:$0xff]
    %v568 = vld [vmem:[#allocation5 + $0xe08] sm:$0xff]
    %v569 = vld [vmem:[#allocation5 + $0xe10] sm:$0xff]
    %v570 = vld [vmem:[#allocation5 + $0xe18] sm:$0xff]
    %v571 = vld [vmem:[#allocation5 + $0xe20] sm:$0xff]
    %v572 = vld [vmem:[#allocation5 + $0xe28] sm:$0xff]
    %v573 = vld [vmem:[#allocation5 + $0xe30] sm:$0xff]
    %v574 = vld [vmem:[#allocation5 + $0xe38] sm:$0xff]
    %v575 = vld [vmem:[#allocation5 + $0xe40] sm:$0xff]
    %v576 = vld [vmem:[#allocation5 + $0xe48] sm:$0xff]
    %v577 = vld [vmem:[#allocation5 + $0xe50] sm:$0xff]
    %v578 = vld [vmem:[#allocation5 + $0xe58] sm:$0xff]
    %v579 = vld [vmem:[#allocation5 + $0xe60] sm:$0xff]
    %v580 = vld [vmem:[#allocation5 + $0xe68] sm:$0xff]
    %v581 = vld [vmem:[#allocation5 + $0xe70] sm:$0xff]
    %v582 = vld [vmem:[#allocation5 + $0xe78] sm:$0xff]
    %v583 = vld [vmem:[#allocation5 + $0xe80] sm:$0xff]
    %v584 = vld [vmem:[#allocation5 + $0xe88] sm:$0xff]
    %v585 = vld [vmem:[#allocation5 + $0xe90] sm:$0xff]
    %v586 = vld [vmem:[#allocation5 + $0xe98] sm:$0xff]
    %v587 = vld [vmem:[#allocation5 + $0xea0] sm:$0xff]
    %v588 = vld [vmem:[#allocation5 + $0xea8] sm:$0xff]
    %v589 = vld [vmem:[#allocation5 + $0xeb0] sm:$0xff]
    %v590 = vld [vmem:[#allocation5 + $0xeb8] sm:$0xff]
    %v591 = vld [vmem:[#allocation5 + $0xec0] sm:$0xff]
    %v592 = vld [vmem:[#allocation5 + $0xec8] sm:$0xff]
    %v593 = vld [vmem:[#allocation5 + $0xed0] sm:$0xff]
    %v594 = vld [vmem:[#allocation5 + $0xed8] sm:$0xff]
    %v595 = vld [vmem:[#allocation5 + $0xee0] sm:$0xff]
    %v596 = vld [vmem:[#allocation5 + $0xee8] sm:$0xff]
    %v597 = vld [vmem:[#allocation5 + $0xef0] sm:$0xff]
    %v598 = vld [vmem:[#allocation5 + $0xef8] sm:$0xff]
    %v599 = vld [vmem:[#allocation5 + $0xf00] sm:$0xff]
    %v600 = vld [vmem:[#allocation5 + $0xf08] sm:$0xff]
    %v601 = vld [vmem:[#allocation5 + $0xf10] sm:$0xff]
    %v602 = vld [vmem:[#allocation5 + $0xf18] sm:$0xff]
    %v603 = vld [vmem:[#allocation5 + $0xf20] sm:$0xff]
    %v604 = vld [vmem:[#allocation5 + $0xf28] sm:$0xff]
    %v605 = vld [vmem:[#allocation5 + $0xf30] sm:$0xff]
    %v606 = vld [vmem:[#allocation5 + $0xf38] sm:$0xff]
    %v607 = vld [vmem:[#allocation5 + $0xf40] sm:$0xff]
    %v608 = vld [vmem:[#allocation5 + $0xf48] sm:$0xff]
    %v609 = vld [vmem:[#allocation5 + $0xf50] sm:$0xff]
    %v610 = vld [vmem:[#allocation5 + $0xf58] sm:$0xff]
    %v611 = vld [vmem:[#allocation5 + $0xf60] sm:$0xff]
    %v612 = vld [vmem:[#allocation5 + $0xf68] sm:$0xff]
    %v613 = vld [vmem:[#allocation5 + $0xf70] sm:$0xff]
    %v614 = vld [vmem:[#allocation5 + $0xf78] sm:$0xff]
    %v615 = vld [vmem:[#allocation5 + $0xf80] sm:$0xff]
    %v616 = vld [vmem:[#allocation5 + $0xf88] sm:$0xff]
    %v617 = vld [vmem:[#allocation5 + $0xf90] sm:$0xff]
    %v618 = vld [vmem:[#allocation5 + $0xf98] sm:$0xff]
    %v619 = vld [vmem:[#allocation5 + $0xfa0] sm:$0xff]
    %v620 = vld [vmem:[#allocation5 + $0xfa8] sm:$0xff]
    %v621 = vld [vmem:[#allocation5 + $0xfb0] sm:$0xff]
    %v622 = vld [vmem:[#allocation5 + $0xfb8] sm:$0xff]
    %v623 = vld [vmem:[#allocation5 + $0xfc0] sm:$0xff]
    %v624 = vld [vmem:[#allocation5 + $0xfc8] sm:$0xff]
    %v625 = vld [vmem:[#allocation5 + $0xfd0] sm:$0xff]
    %v626 = vld [vmem:[#allocation5 + $0xfd8] sm:$0xff]
    %v627 = vld [vmem:[#allocation5 + $0xfe0] sm:$0xff]
    %v628 = vld [vmem:[#allocation5 + $0xfe8] sm:$0xff]
    %v629 = vld [vmem:[#allocation5 + $0xff0] sm:$0xff]
    %v630 = vld [vmem:[#allocation5 + $0xff8] sm:$0xff]
    %v631 = vld [vmem:[#allocation5 + $0x1000] sm:$0xff]
    %v632 = vld [vmem:[#allocation5 + $0x1008] sm:$0xff]
    %v633 = vld [vmem:[#allocation5 + $0x1010] sm:$0xff]
    %v634 = vld [vmem:[#allocation5 + $0x1018] sm:$0xff]
    %v635 = vld [vmem:[#allocation5 + $0x1020] sm:$0xff]
    %v636 = vld [vmem:[#allocation5 + $0x1028] sm:$0xff]
    %v637 = vld [vmem:[#allocation5 + $0x1030] sm:$0xff]
    %v638 = vld [vmem:[#allocation5 + $0x1038] sm:$0xff]
    %v639 = vld [vmem:[#allocation5 + $0x1040] sm:$0xff]
    %v640 = vld [vmem:[#allocation5 + $0x1048] sm:$0xff]
    %v641 = vld [vmem:[#allocation5 + $0x1050] sm:$0xff]
    %v642 = vld [vmem:[#allocation5 + $0x1058] sm:$0xff]
    %v643 = vld [vmem:[#allocation5 + $0x1060] sm:$0xff]
    %v644 = vld [vmem:[#allocation5 + $0x1068] sm:$0xff]
    %v645 = vld [vmem:[#allocation5 + $0x1070] sm:$0xff]
    %v646 = vld [vmem:[#allocation5 + $0x1078] sm:$0xff]
    %v647 = vld [vmem:[#allocation5 + $0x1080] sm:$0xff]
    %v648 = vld [vmem:[#allocation5 + $0x1088] sm:$0xff]
    %v649 = vld [vmem:[#allocation5 + $0x1090] sm:$0xff]
    %v650 = vld [vmem:[#allocation5 + $0x1098] sm:$0xff]
    %v651 = vld [vmem:[#allocation5 + $0x10a0] sm:$0xff]
    %v652 = vld [vmem:[#allocation5 + $0x10a8] sm:$0xff]
    %v653 = vld [vmem:[#allocation5 + $0x10b0] sm:$0xff]
    %v654 = vld [vmem:[#allocation5 + $0x10b8] sm:$0xff]
    %v655 = vld [vmem:[#allocation5 + $0x10c0] sm:$0xff]
    %v656 = vld [vmem:[#allocation5 + $0x10c8] sm:$0xff]
    %v657 = vld [vmem:[#allocation5 + $0x10d0] sm:$0xff]
    %v658 = vld [vmem:[#allocation5 + $0x10d8] sm:$0xff]
    %v659 = vld [vmem:[#allocation5 + $0x10e0] sm:$0xff]
    %v660 = vld [vmem:[#allocation5 + $0x10e8] sm:$0xff]
    %v661 = vld [vmem:[#allocation5 + $0x10f0] sm:$0xff]
    %v662 = vld [vmem:[#allocation5 + $0x10f8] sm:$0xff]
    %v663 = vld [vmem:[#allocation5 + $0x1100] sm:$0xff]
    %v664 = vld [vmem:[#allocation5 + $0x1108] sm:$0xff]
    %v665 = vld [vmem:[#allocation5 + $0x1110] sm:$0xff]
    %v666 = vld [vmem:[#allocation5 + $0x1118] sm:$0xff]
    %v667 = vld [vmem:[#allocation5 + $0x1120] sm:$0xff]
    %v668 = vld [vmem:[#allocation5 + $0x1128] sm:$0xff]
    %v669 = vld [vmem:[#allocation5 + $0x1130] sm:$0xff]
    %v670 = vld [vmem:[#allocation5 + $0x1138] sm:$0xff]
    %v671 = vld [vmem:[#allocation5 + $0x1140] sm:$0xff]
    %v672 = vld [vmem:[#allocation5 + $0x1148] sm:$0xff]
    %v673 = vld [vmem:[#allocation5 + $0x1150] sm:$0xff]
    %v674 = vld [vmem:[#allocation5 + $0x1158] sm:$0xff]
    %v675 = vld [vmem:[#allocation5 + $0x1160] sm:$0xff]
    %v676 = vld [vmem:[#allocation5 + $0x1168] sm:$0xff]
    %v677 = vld [vmem:[#allocation5 + $0x1170] sm:$0xff]
    %v678 = vld [vmem:[#allocation5 + $0x1178] sm:$0xff]
    %v679 = vld [vmem:[#allocation7] sm:$0xff]
    %v680 = vld [vmem:[#allocation7 + $0x8] sm:$0x3]
    %v683 = vlaneseq
    %v684 = vshrl.u32 %v683, 7
    %v685 = vsub.s32 0, %v684
    %v686 = vrot.slane %v679, %v685
    %v687 = vlaneseq
    %v688 = vshrl.u32 %v687, 7
    %v689 = vsub.s32 1, %v688
    %v690 = vrot.slane %v679, %v689
    %v691 = vlaneseq
    %v692 = vshrl.u32 %v691, 7
    %v693 = vsub.s32 2, %v692
    %v694 = vrot.slane %v679, %v693
    %v695 = vlaneseq
    %v696 = vshrl.u32 %v695, 7
    %v697 = vsub.s32 3, %v696
    %v698 = vrot.slane %v679, %v697
    %v699 = vlaneseq
    %v700 = vshrl.u32 %v699, 7
    %v701 = vsub.s32 4, %v700
    %v702 = vrot.slane %v679, %v701
    %v703 = vlaneseq
    %v704 = vshrl.u32 %v703, 7
    %v705 = vsub.s32 5, %v704
    %v706 = vrot.slane %v679, %v705
    %v707 = vlaneseq
    %v708 = vshrl.u32 %v707, 7
    %v709 = vsub.s32 6, %v708
    %v710 = vrot.slane %v679, %v709
    %v711 = vlaneseq
    %v712 = vshrl.u32 %v711, 7
    %v713 = vsub.s32 7, %v712
    %v714 = vrot.slane %v679, %v713
    %v715 = vlaneseq
    %v716 = vshrl.u32 %v715, 7
    %v717 = vsub.s32 0, %v716
    %v718 = vrot.slane %v680, %v717
    %v719 = vlaneseq
    %v720 = vshrl.u32 %v719, 7
    %v721 = vsub.s32 1, %v720
    %v722 = vrot.slane %v680, %v721
    %v737 = vunpack.c.l.b16 %v115
    %v738 = vunpack.c.h.b16 %v115
    %v739 = vunpack.c.l.b16 %v116
    %v740 = vunpack.c.h.b16 %v116
    %v741 = vunpack.c.l.b16 %v117
    %v742 = vunpack.c.h.b16 %v117
    %v743 = vunpack.c.l.b16 %v118
    %v744 = vpack.c.b16 %v737, %v737
    %v745 = vpack.c.b16 %v738, %v738
    %v746 = vpack.c.b16 %v739, %v739
    %v747 = vpack.c.b16 %v740, %v740
    %v748 = vpack.c.b16 %v741, %v741
    %v749 = vpack.c.b16 %v742, %v742
    %v750 = vpack.c.b16 %v743, %v743
    %v1318 = vunpack.c.l.b16 %v119
    %v1319 = vunpack.c.h.b16 %v119
    %v1320 = vunpack.c.l.b16 %v120
    %v1321 = vunpack.c.h.b16 %v120
    %v1322 = vunpack.c.l.b16 %v121
    %v1323 = vunpack.c.h.b16 %v121
    %v1324 = vunpack.c.l.b16 %v122
    %v1325 = vunpack.c.h.b16 %v122
    %v1326 = vunpack.c.l.b16 %v123
    %v1327 = vunpack.c.h.b16 %v123
    %v1328 = vunpack.c.l.b16 %v124
    %v1329 = vunpack.c.h.b16 %v124
    %v1330 = vunpack.c.l.b16 %v125
    %v1331 = vunpack.c.h.b16 %v125
    %v1332 = vunpack.c.l.b16 %v126
    %v1333 = vunpack.c.h.b16 %v126
    %v1334 = vunpack.c.l.b16 %v127
    %v1335 = vunpack.c.h.b16 %v127
    %v1336 = vunpack.c.l.b16 %v128
    %v1337 = vunpack.c.h.b16 %v128
    %v1338 = vunpack.c.l.b16 %v129
    %v1339 = vunpack.c.h.b16 %v129
    %v1340 = vunpack.c.l.b16 %v130
    %v1341 = vunpack.c.h.b16 %v130
    %v1342 = vunpack.c.l.b16 %v131
    %v1343 = vunpack.c.h.b16 %v131
    %v1344 = vunpack.c.l.b16 %v132
    %v1345 = vunpack.c.h.b16 %v132
    %v1346 = vunpack.c.l.b16 %v133
    %v1347 = vunpack.c.h.b16 %v133
    %v1348 = vunpack.c.l.b16 %v134
    %v1349 = vunpack.c.h.b16 %v134
    %v1350 = vunpack.c.l.b16 %v135
    %v1351 = vunpack.c.h.b16 %v135
    %v1352 = vunpack.c.l.b16 %v136
    %v1353 = vunpack.c.h.b16 %v136
    %v1354 = vunpack.c.l.b16 %v137
    %v1355 = vunpack.c.h.b16 %v137
    %v1356 = vunpack.c.l.b16 %v138
    %v1357 = vunpack.c.h.b16 %v138
    %v1358 = vunpack.c.l.b16 %v139
    %v1359 = vunpack.c.h.b16 %v139
    %v1360 = vunpack.c.l.b16 %v140
    %v1361 = vunpack.c.h.b16 %v140
    %v1362 = vunpack.c.l.b16 %v141
    %v1363 = vunpack.c.h.b16 %v141
    %v1364 = vunpack.c.l.b16 %v142
    %v1365 = vunpack.c.h.b16 %v142
    %v1366 = vunpack.c.l.b16 %v143
    %v1367 = vunpack.c.h.b16 %v143
    %v1368 = vunpack.c.l.b16 %v144
    %v1369 = vunpack.c.h.b16 %v144
    %v1370 = vunpack.c.l.b16 %v145
    %v1371 = vunpack.c.h.b16 %v145
    %v1372 = vunpack.c.l.b16 %v146
    %v1373 = vunpack.c.h.b16 %v146
    %v1374 = vunpack.c.l.b16 %v147
    %v1375 = vunpack.c.h.b16 %v147
    %v1376 = vunpack.c.l.b16 %v148
    %v1377 = vunpack.c.h.b16 %v148
    %v1378 = vunpack.c.l.b16 %v149
    %v1379 = vunpack.c.h.b16 %v149
    %v1380 = vunpack.c.l.b16 %v150
    %v1381 = vunpack.c.h.b16 %v150
    %v1382 = vunpack.c.l.b16 %v151
    %v1383 = vunpack.c.h.b16 %v151
    %v1384 = vunpack.c.l.b16 %v152
    %v1385 = vunpack.c.h.b16 %v152
    %v1386 = vunpack.c.l.b16 %v153
    %v1387 = vunpack.c.h.b16 %v153
    %v1388 = vunpack.c.l.b16 %v154
    %v1389 = vunpack.c.h.b16 %v154
    %v1390 = vunpack.c.l.b16 %v155
    %v1391 = vunpack.c.h.b16 %v155
    %v1392 = vunpack.c.l.b16 %v156
    %v1393 = vunpack.c.h.b16 %v156
    %v1394 = vunpack.c.l.b16 %v157
    %v1395 = vunpack.c.h.b16 %v157
    %v1396 = vunpack.c.l.b16 %v158
    %v1397 = vunpack.c.h.b16 %v158
    %v1398 = vunpack.c.l.b16 %v159
    %v1399 = vunpack.c.h.b16 %v159
    %v1400 = vunpack.c.l.b16 %v160
    %v1401 = vunpack.c.h.b16 %v160
    %v1402 = vunpack.c.l.b16 %v161
    %v1403 = vunpack.c.h.b16 %v161
    %v1404 = vunpack.c.l.b16 %v162
    %v1405 = vunpack.c.h.b16 %v162
    %v1406 = vunpack.c.l.b16 %v163
    %v1407 = vunpack.c.h.b16 %v163
    %v1408 = vunpack.c.l.b16 %v164
    %v1409 = vunpack.c.h.b16 %v164
    %v1410 = vunpack.c.l.b16 %v165
    %v1411 = vunpack.c.h.b16 %v165
    %v1412 = vunpack.c.l.b16 %v166
    %v1413 = vunpack.c.h.b16 %v166
    %v1414 = vunpack.c.l.b16 %v167
    %v1415 = vunpack.c.h.b16 %v167
    %v1416 = vunpack.c.l.b16 %v168
    %v1417 = vunpack.c.h.b16 %v168
    %v1418 = vunpack.c.l.b16 %v169
    %v1419 = vunpack.c.h.b16 %v169
    %v1420 = vunpack.c.l.b16 %v170
    %v1421 = vunpack.c.h.b16 %v170
    %v1422 = vunpack.c.l.b16 %v171
    %v1423 = vunpack.c.h.b16 %v171
    %v1424 = vunpack.c.l.b16 %v172
    %v1425 = vunpack.c.h.b16 %v172
    %v1426 = vunpack.c.l.b16 %v173
    %v1427 = vunpack.c.h.b16 %v173
    %v1428 = vunpack.c.l.b16 %v174
    %v1429 = vunpack.c.h.b16 %v174
    %v1430 = vunpack.c.l.b16 %v175
    %v1431 = vunpack.c.h.b16 %v175
    %v1432 = vunpack.c.l.b16 %v176
    %v1433 = vunpack.c.h.b16 %v176
    %v1434 = vunpack.c.l.b16 %v177
    %v1435 = vunpack.c.h.b16 %v177
    %v1436 = vunpack.c.l.b16 %v178
    %v1437 = vunpack.c.h.b16 %v178
    %v1438 = vunpack.c.l.b16 %v179
    %v1439 = vunpack.c.h.b16 %v179
    %v1440 = vunpack.c.l.b16 %v180
    %v1441 = vunpack.c.h.b16 %v180
    %v1442 = vunpack.c.l.b16 %v181
    %v1443 = vunpack.c.h.b16 %v181
    %v1444 = vunpack.c.l.b16 %v182
    %v1445 = vunpack.c.h.b16 %v182
    %v1446 = vunpack.c.l.b16 %v183
    %v1447 = vunpack.c.h.b16 %v183
    %v1448 = vunpack.c.l.b16 %v184
    %v1449 = vunpack.c.h.b16 %v184
    %v1450 = vunpack.c.l.b16 %v185
    %v1451 = vunpack.c.h.b16 %v185
    %v1452 = vunpack.c.l.b16 %v186
    %v1453 = vunpack.c.h.b16 %v186
    %v1454 = vunpack.c.l.b16 %v187
    %v1455 = vunpack.c.h.b16 %v187
    %v1456 = vunpack.c.l.b16 %v188
    %v1457 = vunpack.c.h.b16 %v188
    %v1458 = vunpack.c.l.b16 %v189
    %v1459 = vunpack.c.h.b16 %v189
    %v1460 = vunpack.c.l.b16 %v190
    %v1461 = vunpack.c.h.b16 %v190
    %v1462 = vunpack.c.l.b16 %v191
    %v1463 = vunpack.c.h.b16 %v191
    %v1464 = vunpack.c.l.b16 %v192
    %v1465 = vunpack.c.h.b16 %v192
    %v1466 = vunpack.c.l.b16 %v193
    %v1467 = vunpack.c.h.b16 %v193
    %v1468 = vunpack.c.l.b16 %v194
    %v1469 = vunpack.c.h.b16 %v194
    %v1470 = vunpack.c.l.b16 %v195
    %v1471 = vunpack.c.h.b16 %v195
    %v1472 = vunpack.c.l.b16 %v196
    %v1473 = vunpack.c.h.b16 %v196
    %v1474 = vunpack.c.l.b16 %v197
    %v1475 = vunpack.c.h.b16 %v197
    %v1476 = vunpack.c.l.b16 %v198
    %v1477 = vunpack.c.h.b16 %v198
    %v1478 = vunpack.c.l.b16 %v199
    %v1479 = vunpack.c.h.b16 %v199
    %v1480 = vunpack.c.l.b16 %v200
    %v1481 = vunpack.c.h.b16 %v200
    %v1482 = vunpack.c.l.b16 %v201
    %v1483 = vunpack.c.h.b16 %v201
    %v1484 = vunpack.c.l.b16 %v202
    %v1485 = vunpack.c.h.b16 %v202
    %v1486 = vunpack.c.l.b16 %v203
    %v1487 = vunpack.c.h.b16 %v203
    %v1488 = vunpack.c.l.b16 %v204
    %v1489 = vunpack.c.h.b16 %v204
    %v1490 = vunpack.c.l.b16 %v205
    %v1491 = vunpack.c.h.b16 %v205
    %v1492 = vunpack.c.l.b16 %v206
    %v1493 = vunpack.c.h.b16 %v206
    %v1494 = vunpack.c.l.b16 %v207
    %v1495 = vunpack.c.h.b16 %v207
    %v1496 = vunpack.c.l.b16 %v208
    %v1497 = vunpack.c.h.b16 %v208
    %v1498 = vunpack.c.l.b16 %v209
    %v1499 = vunpack.c.h.b16 %v209
    %v1500 = vunpack.c.l.b16 %v210
    %v1501 = vunpack.c.h.b16 %v210
    %v1502 = vunpack.c.l.b16 %v211
    %v1503 = vunpack.c.h.b16 %v211
    %v1504 = vunpack.c.l.b16 %v212
    %v1505 = vunpack.c.h.b16 %v212
    %v1506 = vunpack.c.l.b16 %v213
    %v1507 = vunpack.c.h.b16 %v213
    %v1508 = vunpack.c.l.b16 %v214
    %v1509 = vunpack.c.h.b16 %v214
    %v1510 = vunpack.c.l.b16 %v215
    %v1511 = vunpack.c.h.b16 %v215
    %v1512 = vunpack.c.l.b16 %v216
    %v1513 = vunpack.c.h.b16 %v216
    %v1514 = vunpack.c.l.b16 %v217
    %v1515 = vunpack.c.h.b16 %v217
    %v1516 = vunpack.c.l.b16 %v218
    %v1517 = vunpack.c.h.b16 %v218
    %v1518 = vunpack.c.l.b16 %v219
    %v1519 = vunpack.c.h.b16 %v219
    %v1520 = vunpack.c.l.b16 %v220
    %v1521 = vunpack.c.h.b16 %v220
    %v1522 = vunpack.c.l.b16 %v221
    %v1523 = vunpack.c.h.b16 %v221
    %v1524 = vunpack.c.l.b16 %v222
    %v1525 = vunpack.c.h.b16 %v222
    %v1526 = vunpack.c.l.b16 %v223
    %v1527 = vunpack.c.h.b16 %v223
    %v1528 = vunpack.c.l.b16 %v224
    %v1529 = vunpack.c.h.b16 %v224
    %v1530 = vunpack.c.l.b16 %v225
    %v1531 = vunpack.c.h.b16 %v225
    %v1532 = vunpack.c.l.b16 %v226
    %v1533 = vunpack.c.h.b16 %v226
    %v1534 = vunpack.c.l.b16 %v227
    %v1535 = vunpack.c.h.b16 %v227
    %v1536 = vunpack.c.l.b16 %v228
    %v1537 = vunpack.c.h.b16 %v228
    %v1538 = vunpack.c.l.b16 %v229
    %v1539 = vunpack.c.h.b16 %v229
    %v1540 = vunpack.c.l.b16 %v230
    %v1541 = vunpack.c.h.b16 %v230
    %v1542 = vunpack.c.l.b16 %v231
    %v1543 = vunpack.c.h.b16 %v231
    %v1544 = vunpack.c.l.b16 %v232
    %v1545 = vunpack.c.h.b16 %v232
    %v1546 = vunpack.c.l.b16 %v233
    %v1547 = vunpack.c.h.b16 %v233
    %v1548 = vunpack.c.l.b16 %v234
    %v1549 = vunpack.c.h.b16 %v234
    %v1550 = vunpack.c.l.b16 %v235
    %v1551 = vunpack.c.h.b16 %v235
    %v1552 = vunpack.c.l.b16 %v236
    %v1553 = vunpack.c.h.b16 %v236
    %v1554 = vunpack.c.l.b16 %v237
    %v1555 = vunpack.c.h.b16 %v237
    %v1556 = vunpack.c.l.b16 %v238
    %v1557 = vunpack.c.h.b16 %v238
    %v1558 = vunpack.c.l.b16 %v239
    %v1559 = vunpack.c.h.b16 %v239
    %v1560 = vunpack.c.l.b16 %v240
    %v1561 = vunpack.c.h.b16 %v240
    %v1562 = vunpack.c.l.b16 %v241
    %v1563 = vunpack.c.h.b16 %v241
    %v1564 = vunpack.c.l.b16 %v242
    %v1565 = vunpack.c.h.b16 %v242
    %v1566 = vunpack.c.l.b16 %v243
    %v1567 = vunpack.c.h.b16 %v243
    %v1568 = vunpack.c.l.b16 %v244
    %v1569 = vunpack.c.h.b16 %v244
    %v1570 = vunpack.c.l.b16 %v245
    %v1571 = vunpack.c.h.b16 %v245
    %v1572 = vunpack.c.l.b16 %v246
    %v1573 = vunpack.c.h.b16 %v246
    %v1574 = vunpack.c.l.b16 %v247
    %v1575 = vunpack.c.h.b16 %v247
    %v1576 = vunpack.c.l.b16 %v248
    %v1577 = vunpack.c.h.b16 %v248
    %v1578 = vunpack.c.l.b16 %v249
    %v1579 = vunpack.c.h.b16 %v249
    %v1580 = vunpack.c.l.b16 %v250
    %v1581 = vunpack.c.h.b16 %v250
    %v1582 = vunpack.c.l.b16 %v251
    %v1583 = vunpack.c.h.b16 %v251
    %v1584 = vunpack.c.l.b16 %v252
    %v1585 = vunpack.c.h.b16 %v252
    %v1586 = vunpack.c.l.b16 %v253
    %v1587 = vunpack.c.h.b16 %v253
    %v1588 = vunpack.c.l.b16 %v254
    %v1589 = vunpack.c.h.b16 %v254
    %v1590 = vunpack.c.l.b16 %v255
    %v1591 = vunpack.c.h.b16 %v255
    %v1592 = vunpack.c.l.b16 %v256
    %v1593 = vunpack.c.h.b16 %v256
    %v1594 = vunpack.c.l.b16 %v257
    %v1595 = vunpack.c.h.b16 %v257
    %v1596 = vunpack.c.l.b16 %v258
    %v1597 = vunpack.c.h.b16 %v258
    %v1598 = vunpack.c.l.b16 %v259
    %v1599 = vunpack.c.h.b16 %v259
    %v1600 = vunpack.c.l.b16 %v260
    %v1601 = vunpack.c.h.b16 %v260
    %v1602 = vunpack.c.l.b16 %v261
    %v1603 = vunpack.c.h.b16 %v261
    %v1604 = vunpack.c.l.b16 %v262
    %v1605 = vunpack.c.h.b16 %v262
    %v1606 = vunpack.c.l.b16 %v263
    %v1607 = vunpack.c.h.b16 %v263
    %v1608 = vunpack.c.l.b16 %v264
    %v1609 = vunpack.c.h.b16 %v264
    %v1610 = vunpack.c.l.b16 %v265
    %v1611 = vunpack.c.h.b16 %v265
    %v1612 = vunpack.c.l.b16 %v266
    %v1613 = vunpack.c.h.b16 %v266
    %v1614 = vunpack.c.l.b16 %v267
    %v1615 = vunpack.c.h.b16 %v267
    %v1616 = vunpack.c.l.b16 %v268
    %v1617 = vunpack.c.h.b16 %v268
    %v1618 = vunpack.c.l.b16 %v269
    %v1619 = vunpack.c.h.b16 %v269
    %v1620 = vunpack.c.l.b16 %v270
    %v1621 = vunpack.c.h.b16 %v270
    %v1622 = vunpack.c.l.b16 %v271
    %v1623 = vunpack.c.h.b16 %v271
    %v1624 = vunpack.c.l.b16 %v272
    %v1625 = vunpack.c.h.b16 %v272
    %v1626 = vunpack.c.l.b16 %v273
    %v1627 = vunpack.c.h.b16 %v273
    %v1628 = vunpack.c.l.b16 %v274
    %v1629 = vunpack.c.h.b16 %v274
    %v1630 = vunpack.c.l.b16 %v275
    %v1631 = vunpack.c.h.b16 %v275
    %v1632 = vunpack.c.l.b16 %v276
    %v1633 = vunpack.c.h.b16 %v276
    %v1634 = vunpack.c.l.b16 %v277
    %v1635 = vunpack.c.h.b16 %v277
    %v1636 = vunpack.c.l.b16 %v278
    %v1637 = vunpack.c.h.b16 %v278
    %v1638 = vunpack.c.l.b16 %v279
    %v1639 = vunpack.c.h.b16 %v279
    %v1640 = vunpack.c.l.b16 %v280
    %v1641 = vunpack.c.h.b16 %v280
    %v1642 = vunpack.c.l.b16 %v281
    %v1643 = vunpack.c.h.b16 %v281
    %v1644 = vunpack.c.l.b16 %v282
    %v1645 = vunpack.c.h.b16 %v282
    %v1646 = vunpack.c.l.b16 %v283
    %v1647 = vunpack.c.h.b16 %v283
    %v1648 = vunpack.c.l.b16 %v284
    %v1649 = vunpack.c.h.b16 %v284
    %v1650 = vunpack.c.l.b16 %v285
    %v1651 = vunpack.c.h.b16 %v285
    %v1652 = vunpack.c.l.b16 %v286
    %v1653 = vunpack.c.h.b16 %v286
    %v1654 = vunpack.c.l.b16 %v287
    %v1655 = vunpack.c.h.b16 %v287
    %v1656 = vunpack.c.l.b16 %v288
    %v1657 = vunpack.c.h.b16 %v288
    %v1658 = vunpack.c.l.b16 %v289
    %v1659 = vunpack.c.h.b16 %v289
    %v1660 = vunpack.c.l.b16 %v290
    %v1661 = vunpack.c.h.b16 %v290
    %v1662 = vunpack.c.l.b16 %v291
    %v1663 = vunpack.c.h.b16 %v291
    %v1664 = vunpack.c.l.b16 %v292
    %v1665 = vunpack.c.h.b16 %v292
    %v1666 = vunpack.c.l.b16 %v293
    %v1667 = vunpack.c.h.b16 %v293
    %v1668 = vunpack.c.l.b16 %v294
    %v1669 = vunpack.c.h.b16 %v294
    %v1670 = vunpack.c.l.b16 %v295
    %v1671 = vunpack.c.h.b16 %v295
    %v1672 = vunpack.c.l.b16 %v296
    %v1673 = vunpack.c.h.b16 %v296
    %v1674 = vunpack.c.l.b16 %v297
    %v1675 = vunpack.c.h.b16 %v297
    %v1676 = vunpack.c.l.b16 %v298
    %v1677 = vunpack.c.h.b16 %v298
    %v1678 = vunpack.c.l.b16 %v299
    %v1679 = vunpack.c.h.b16 %v299
    %v1680 = vunpack.c.l.b16 %v300
    %v1681 = vunpack.c.h.b16 %v300
    %v1682 = vunpack.c.l.b16 %v301
    %v1683 = vunpack.c.h.b16 %v301
    %v1684 = vunpack.c.l.b16 %v302
    %v1685 = vunpack.c.h.b16 %v302
    %v1686 = vunpack.c.l.b16 %v303
    %v1687 = vunpack.c.h.b16 %v303
    %v1688 = vunpack.c.l.b16 %v304
    %v1689 = vunpack.c.h.b16 %v304
    %v1690 = vunpack.c.l.b16 %v305
    %v1691 = vunpack.c.h.b16 %v305
    %v1692 = vunpack.c.l.b16 %v306
    %v1693 = vunpack.c.h.b16 %v306
    %v1694 = vunpack.c.l.b16 %v307
    %v1695 = vunpack.c.h.b16 %v307
    %v1696 = vunpack.c.l.b16 %v308
    %v1697 = vunpack.c.h.b16 %v308
    %v1698 = vunpack.c.l.b16 %v309
    %v1699 = vunpack.c.h.b16 %v309
    %v1700 = vunpack.c.l.b16 %v310
    %v1701 = vunpack.c.h.b16 %v310
    %v1702 = vunpack.c.l.b16 %v311
    %v1703 = vunpack.c.h.b16 %v311
    %v1704 = vunpack.c.l.b16 %v312
    %v1705 = vunpack.c.h.b16 %v312
    %v1706 = vunpack.c.l.b16 %v313
    %v1707 = vunpack.c.h.b16 %v313
    %v1708 = vunpack.c.l.b16 %v314
    %v1709 = vunpack.c.h.b16 %v314
    %v1710 = vunpack.c.l.b16 %v315
    %v1711 = vunpack.c.h.b16 %v315
    %v1712 = vunpack.c.l.b16 %v316
    %v1713 = vunpack.c.h.b16 %v316
    %v1714 = vunpack.c.l.b16 %v317
    %v1715 = vunpack.c.h.b16 %v317
    %v1716 = vunpack.c.l.b16 %v318
    %v1717 = vunpack.c.h.b16 %v318
    %v1718 = vunpack.c.l.b16 %v319
    %v1719 = vunpack.c.h.b16 %v319
    %v1720 = vunpack.c.l.b16 %v320
    %v1721 = vunpack.c.h.b16 %v320
    %v1722 = vunpack.c.l.b16 %v321
    %v1723 = vunpack.c.h.b16 %v321
    %v1724 = vunpack.c.l.b16 %v322
    %v1725 = vunpack.c.h.b16 %v322
    %v1726 = vunpack.c.l.b16 %v323
    %v1727 = vunpack.c.h.b16 %v323
    %v1728 = vunpack.c.l.b16 %v324
    %v1729 = vunpack.c.h.b16 %v324
    %v1730 = vunpack.c.l.b16 %v325
    %v1731 = vunpack.c.h.b16 %v325
    %v1732 = vunpack.c.l.b16 %v326
    %v1733 = vunpack.c.h.b16 %v326
    %v1734 = vunpack.c.l.b16 %v327
    %v1735 = vunpack.c.h.b16 %v327
    %v1736 = vunpack.c.l.b16 %v328
    %v1737 = vunpack.c.h.b16 %v328
    %v1738 = vunpack.c.l.b16 %v329
    %v1739 = vunpack.c.h.b16 %v329
    %v1740 = vunpack.c.l.b16 %v330
    %v1741 = vunpack.c.h.b16 %v330
    %v1742 = vunpack.c.l.b16 %v331
    %v1743 = vunpack.c.h.b16 %v331
    %v1744 = vunpack.c.l.b16 %v332
    %v1745 = vunpack.c.h.b16 %v332
    %v1746 = vunpack.c.l.b16 %v333
    %v1747 = vunpack.c.h.b16 %v333
    %v1748 = vunpack.c.l.b16 %v334
    %v1749 = vunpack.c.h.b16 %v334
    %v1750 = vunpack.c.l.b16 %v335
    %v1751 = vunpack.c.h.b16 %v335
    %v1752 = vunpack.c.l.b16 %v336
    %v1753 = vunpack.c.h.b16 %v336
    %v1754 = vunpack.c.l.b16 %v337
    %v1755 = vunpack.c.h.b16 %v337
    %v1756 = vunpack.c.l.b16 %v338
    %v1757 = vunpack.c.h.b16 %v338
    %v1758 = vunpack.c.l.b16 %v339
    %v1759 = vunpack.c.h.b16 %v339
    %v1760 = vunpack.c.l.b16 %v340
    %v1761 = vunpack.c.h.b16 %v340
    %v1762 = vunpack.c.l.b16 %v341
    %v1763 = vunpack.c.h.b16 %v341
    %v1764 = vunpack.c.l.b16 %v342
    %v1765 = vunpack.c.h.b16 %v342
    %v1766 = vunpack.c.l.b16 %v343
    %v1767 = vunpack.c.h.b16 %v343
    %v1768 = vunpack.c.l.b16 %v344
    %v1769 = vunpack.c.h.b16 %v344
    %v1770 = vunpack.c.l.b16 %v345
    %v1771 = vunpack.c.h.b16 %v345
    %v1772 = vunpack.c.l.b16 %v346
    %v1773 = vunpack.c.h.b16 %v346
    %v1774 = vunpack.c.l.b16 %v347
    %v1775 = vunpack.c.h.b16 %v347
    %v1776 = vunpack.c.l.b16 %v348
    %v1777 = vunpack.c.h.b16 %v348
    %v1778 = vunpack.c.l.b16 %v349
    %v1779 = vunpack.c.h.b16 %v349
    %v1780 = vunpack.c.l.b16 %v350
    %v1781 = vunpack.c.h.b16 %v350
    %v1782 = vunpack.c.l.b16 %v351
    %v1783 = vunpack.c.h.b16 %v351
    %v1784 = vunpack.c.l.b16 %v352
    %v1785 = vunpack.c.h.b16 %v352
    %v1786 = vunpack.c.l.b16 %v353
    %v1787 = vunpack.c.h.b16 %v353
    %v1788 = vunpack.c.l.b16 %v354
    %v1789 = vunpack.c.h.b16 %v354
    %v1790 = vunpack.c.l.b16 %v355
    %v1791 = vunpack.c.h.b16 %v355
    %v1792 = vunpack.c.l.b16 %v356
    %v1793 = vunpack.c.h.b16 %v356
    %v1794 = vunpack.c.l.b16 %v357
    %v1795 = vunpack.c.h.b16 %v357
    %v1796 = vunpack.c.l.b16 %v358
    %v1797 = vunpack.c.h.b16 %v358
    %v1798 = vunpack.c.l.b16 %v359
    %v1799 = vunpack.c.h.b16 %v359
    %v1800 = vunpack.c.l.b16 %v360
    %v1801 = vunpack.c.h.b16 %v360
    %v1802 = vunpack.c.l.b16 %v361
    %v1803 = vunpack.c.h.b16 %v361
    %v1804 = vunpack.c.l.b16 %v362
    %v1805 = vunpack.c.h.b16 %v362
    %v1806 = vunpack.c.l.b16 %v363
    %v1807 = vunpack.c.h.b16 %v363
    %v1808 = vunpack.c.l.b16 %v364
    %v1809 = vunpack.c.h.b16 %v364
    %v1810 = vunpack.c.l.b16 %v365
    %v1811 = vunpack.c.h.b16 %v365
    %v1812 = vunpack.c.l.b16 %v366
    %v1813 = vunpack.c.h.b16 %v366
    %v1814 = vunpack.c.l.b16 %v367
    %v1815 = vunpack.c.h.b16 %v367
    %v1816 = vunpack.c.l.b16 %v368
    %v1817 = vunpack.c.h.b16 %v368
    %v1818 = vunpack.c.l.b16 %v369
    %v1819 = vunpack.c.h.b16 %v369
    %v1820 = vunpack.c.l.b16 %v370
    %v1821 = vunpack.c.h.b16 %v370
    %v1822 = vunpack.c.l.b16 %v371
    %v1823 = vunpack.c.h.b16 %v371
    %v1824 = vunpack.c.l.b16 %v372
    %v1825 = vunpack.c.h.b16 %v372
    %v1826 = vunpack.c.l.b16 %v373
    %v1827 = vunpack.c.h.b16 %v373
    %v1828 = vunpack.c.l.b16 %v374
    %v1829 = vunpack.c.h.b16 %v374
    %v1830 = vunpack.c.l.b16 %v375
    %v1831 = vunpack.c.h.b16 %v375
    %v1832 = vunpack.c.l.b16 %v376
    %v1833 = vunpack.c.h.b16 %v376
    %v1834 = vunpack.c.l.b16 %v377
    %v1835 = vunpack.c.h.b16 %v377
    %v1836 = vunpack.c.l.b16 %v378
    %v1837 = vunpack.c.h.b16 %v378
    %v1838 = vunpack.c.l.b16 %v379
    %v1839 = vunpack.c.h.b16 %v379
    %v1840 = vunpack.c.l.b16 %v380
    %v1841 = vunpack.c.h.b16 %v380
    %v1842 = vunpack.c.l.b16 %v381
    %v1843 = vunpack.c.h.b16 %v381
    %v1844 = vunpack.c.l.b16 %v382
    %v1845 = vunpack.c.h.b16 %v382
    %v1846 = vunpack.c.l.b16 %v383
    %v1847 = vunpack.c.h.b16 %v383
    %v1848 = vunpack.c.l.b16 %v384
    %v1849 = vunpack.c.h.b16 %v384
    %v1850 = vunpack.c.l.b16 %v385
    %v1851 = vunpack.c.h.b16 %v385
    %v1852 = vunpack.c.l.b16 %v386
    %v1853 = vunpack.c.h.b16 %v386
    %v1854 = vunpack.c.l.b16 %v387
    %v1855 = vunpack.c.h.b16 %v387
    %v1856 = vunpack.c.l.b16 %v388
    %v1857 = vunpack.c.h.b16 %v388
    %v1858 = vunpack.c.l.b16 %v389
    %v1859 = vunpack.c.h.b16 %v389
    %v1860 = vunpack.c.l.b16 %v390
    %v1861 = vunpack.c.h.b16 %v390
    %v1862 = vunpack.c.l.b16 %v391
    %v1863 = vunpack.c.h.b16 %v391
    %v1864 = vunpack.c.l.b16 %v392
    %v1865 = vunpack.c.h.b16 %v392
    %v1866 = vunpack.c.l.b16 %v393
    %v1867 = vunpack.c.h.b16 %v393
    %v1868 = vunpack.c.l.b16 %v394
    %v1869 = vunpack.c.h.b16 %v394
    %v1870 = vunpack.c.l.b16 %v395
    %v1871 = vunpack.c.h.b16 %v395
    %v1872 = vunpack.c.l.b16 %v396
    %v1873 = vunpack.c.h.b16 %v396
    %v1874 = vunpack.c.l.b16 %v397
    %v1875 = vunpack.c.h.b16 %v397
    %v1876 = vunpack.c.l.b16 %v398
    %v1877 = vunpack.c.h.b16 %v398
    %v1878 = vunpack.c.l.b16 %v399
    %v1879 = vunpack.c.h.b16 %v399
    %v1880 = vunpack.c.l.b16 %v400
    %v1881 = vunpack.c.h.b16 %v400
    %v1882 = vunpack.c.l.b16 %v401
    %v1883 = vunpack.c.h.b16 %v401
    %v1884 = vunpack.c.l.b16 %v402
    %v1885 = vunpack.c.h.b16 %v402
    %v1886 = vunpack.c.l.b16 %v403
    %v1887 = vunpack.c.h.b16 %v403
    %v1888 = vunpack.c.l.b16 %v404
    %v1889 = vunpack.c.h.b16 %v404
    %v1890 = vunpack.c.l.b16 %v405
    %v1891 = vunpack.c.h.b16 %v405
    %v1892 = vunpack.c.l.b16 %v406
    %v1893 = vunpack.c.h.b16 %v406
    %v1894 = vunpack.c.l.b16 %v407
    %v1895 = vunpack.c.h.b16 %v407
    %v1896 = vunpack.c.l.b16 %v408
    %v1897 = vunpack.c.h.b16 %v408
    %v1898 = vunpack.c.l.b16 %v409
    %v1899 = vunpack.c.h.b16 %v409
    %v1900 = vunpack.c.l.b16 %v410
    %v1901 = vunpack.c.h.b16 %v410
    %v1902 = vunpack.c.l.b16 %v411
    %v1903 = vunpack.c.h.b16 %v411
    %v1904 = vunpack.c.l.b16 %v412
    %v1905 = vunpack.c.h.b16 %v412
    %v1906 = vunpack.c.l.b16 %v413
    %v1907 = vunpack.c.h.b16 %v413
    %v1908 = vunpack.c.l.b16 %v414
    %v1909 = vunpack.c.h.b16 %v414
    %v1910 = vunpack.c.l.b16 %v415
    %v1911 = vunpack.c.h.b16 %v415
    %v1912 = vunpack.c.l.b16 %v416
    %v1913 = vunpack.c.h.b16 %v416
    %v1914 = vunpack.c.l.b16 %v417
    %v1915 = vunpack.c.h.b16 %v417
    %v1916 = vunpack.c.l.b16 %v418
    %v1917 = vunpack.c.h.b16 %v418
    %v1918 = vunpack.c.l.b16 %v419
    %v1919 = vunpack.c.h.b16 %v419
    %v1920 = vunpack.c.l.b16 %v420
    %v1921 = vunpack.c.h.b16 %v420
    %v1922 = vunpack.c.l.b16 %v421
    %v1923 = vunpack.c.h.b16 %v421
    %v1924 = vunpack.c.l.b16 %v422
    %v1925 = vunpack.c.h.b16 %v422
    %v1926 = vunpack.c.l.b16 %v423
    %v1927 = vunpack.c.h.b16 %v423
    %v1928 = vunpack.c.l.b16 %v424
    %v1929 = vunpack.c.h.b16 %v424
    %v1930 = vunpack.c.l.b16 %v425
    %v1931 = vunpack.c.h.b16 %v425
    %v1932 = vunpack.c.l.b16 %v426
    %v1933 = vunpack.c.h.b16 %v426
    %v1934 = vunpack.c.l.b16 %v427
    %v1935 = vunpack.c.h.b16 %v427
    %v1936 = vunpack.c.l.b16 %v428
    %v1937 = vunpack.c.h.b16 %v428
    %v1938 = vunpack.c.l.b16 %v429
    %v1939 = vunpack.c.h.b16 %v429
    %v1940 = vunpack.c.l.b16 %v430
    %v1941 = vunpack.c.h.b16 %v430
    %v1942 = vunpack.c.l.b16 %v431
    %v1943 = vunpack.c.h.b16 %v431
    %v1944 = vunpack.c.l.b16 %v432
    %v1945 = vunpack.c.h.b16 %v432
    %v1946 = vunpack.c.l.b16 %v433
    %v1947 = vunpack.c.h.b16 %v433
    %v1948 = vunpack.c.l.b16 %v434
    %v1949 = vunpack.c.h.b16 %v434
    %v1950 = vunpack.c.l.b16 %v435
    %v1951 = vunpack.c.h.b16 %v435
    %v1952 = vunpack.c.l.b16 %v436
    %v1953 = vunpack.c.h.b16 %v436
    %v1954 = vunpack.c.l.b16 %v437
    %v1955 = vunpack.c.h.b16 %v437
    %v1956 = vunpack.c.l.b16 %v438
    %v1957 = vunpack.c.h.b16 %v438
    %v1958 = vunpack.c.l.b16 %v439
    %v1959 = vunpack.c.h.b16 %v439
    %v1960 = vunpack.c.l.b16 %v440
    %v1961 = vunpack.c.h.b16 %v440
    %v1962 = vunpack.c.l.b16 %v441
    %v1963 = vunpack.c.h.b16 %v441
    %v1964 = vunpack.c.l.b16 %v442
    %v1965 = vunpack.c.h.b16 %v442
    %v1966 = vunpack.c.l.b16 %v443
    %v1967 = vunpack.c.h.b16 %v443
    %v1968 = vunpack.c.l.b16 %v444
    %v1969 = vunpack.c.h.b16 %v444
    %v1970 = vunpack.c.l.b16 %v445
    %v1971 = vunpack.c.h.b16 %v445
    %v1972 = vunpack.c.l.b16 %v446
    %v1973 = vunpack.c.h.b16 %v446
    %v1974 = vunpack.c.l.b16 %v447
    %v1975 = vunpack.c.h.b16 %v447
    %v1976 = vunpack.c.l.b16 %v448
    %v1977 = vunpack.c.h.b16 %v448
    %v1978 = vunpack.c.l.b16 %v449
    %v1979 = vunpack.c.h.b16 %v449
    %v1980 = vunpack.c.l.b16 %v450
    %v1981 = vunpack.c.h.b16 %v450
    %v1982 = vunpack.c.l.b16 %v451
    %v1983 = vunpack.c.h.b16 %v451
    %v1984 = vunpack.c.l.b16 %v452
    %v1985 = vunpack.c.h.b16 %v452
    %v1986 = vunpack.c.l.b16 %v453
    %v1987 = vunpack.c.h.b16 %v453
    %v1988 = vunpack.c.l.b16 %v454
    %v1989 = vunpack.c.h.b16 %v454
    %v1990 = vunpack.c.l.b16 %v455
    %v1991 = vunpack.c.h.b16 %v455
    %v1992 = vunpack.c.l.b16 %v456
    %v1993 = vunpack.c.h.b16 %v456
    %v1994 = vunpack.c.l.b16 %v457
    %v1995 = vunpack.c.h.b16 %v457
    %v1996 = vunpack.c.l.b16 %v458
    %v1997 = vunpack.c.h.b16 %v458
    %v1998 = vunpack.c.l.b16 %v459
    %v1999 = vunpack.c.h.b16 %v459
    %v2000 = vunpack.c.l.b16 %v460
    %v2001 = vunpack.c.h.b16 %v460
    %v2002 = vunpack.c.l.b16 %v461
    %v2003 = vunpack.c.h.b16 %v461
    %v2004 = vunpack.c.l.b16 %v462
    %v2005 = vunpack.c.h.b16 %v462
    %v2006 = vunpack.c.l.b16 %v463
    %v2007 = vunpack.c.h.b16 %v463
    %v2008 = vunpack.c.l.b16 %v464
    %v2009 = vunpack.c.h.b16 %v464
    %v2010 = vunpack.c.l.b16 %v465
    %v2011 = vunpack.c.h.b16 %v465
    %v2012 = vunpack.c.l.b16 %v466
    %v2013 = vunpack.c.h.b16 %v466
    %v2014 = vunpack.c.l.b16 %v467
    %v2015 = vunpack.c.h.b16 %v467
    %v2016 = vunpack.c.l.b16 %v468
    %v2017 = vunpack.c.h.b16 %v468
    %v2018 = vunpack.c.l.b16 %v469
    %v2019 = vunpack.c.h.b16 %v469
    %v2020 = vunpack.c.l.b16 %v470
    %v2021 = vunpack.c.h.b16 %v470
    %v2022 = vunpack.c.l.b16 %v471
    %v2023 = vunpack.c.h.b16 %v471
    %v2024 = vunpack.c.l.b16 %v472
    %v2025 = vunpack.c.h.b16 %v472
    %v2026 = vunpack.c.l.b16 %v473
    %v2027 = vunpack.c.h.b16 %v473
    %v2028 = vunpack.c.l.b16 %v474
    %v2029 = vunpack.c.h.b16 %v474
    %v2030 = vunpack.c.l.b16 %v475
    %v2031 = vunpack.c.h.b16 %v475
    %v2032 = vunpack.c.l.b16 %v476
    %v2033 = vunpack.c.h.b16 %v476
    %v2034 = vunpack.c.l.b16 %v477
    %v2035 = vunpack.c.h.b16 %v477
    %v2036 = vunpack.c.l.b16 %v478
    %v2037 = vunpack.c.h.b16 %v478
    %v2038 = vunpack.c.l.b16 %v479
    %v2039 = vunpack.c.h.b16 %v479
    %v2040 = vunpack.c.l.b16 %v480
    %v2041 = vunpack.c.h.b16 %v480
    %v2042 = vunpack.c.l.b16 %v481
    %v2043 = vunpack.c.h.b16 %v481
    %v2044 = vunpack.c.l.b16 %v482
    %v2045 = vunpack.c.h.b16 %v482
    %v2046 = vunpack.c.l.b16 %v483
    %v2047 = vunpack.c.h.b16 %v483
    %v2048 = vunpack.c.l.b16 %v484
    %v2049 = vunpack.c.h.b16 %v484
    %v2050 = vunpack.c.l.b16 %v485
    %v2051 = vunpack.c.h.b16 %v485
    %v2052 = vunpack.c.l.b16 %v486
    %v2053 = vunpack.c.h.b16 %v486
    %v2054 = vunpack.c.l.b16 %v487
    %v2055 = vunpack.c.h.b16 %v487
    %v2056 = vunpack.c.l.b16 %v488
    %v2057 = vunpack.c.h.b16 %v488
    %v2058 = vunpack.c.l.b16 %v489
    %v2059 = vunpack.c.h.b16 %v489
    %v2060 = vunpack.c.l.b16 %v490
    %v2061 = vunpack.c.h.b16 %v490
    %v2062 = vunpack.c.l.b16 %v491
    %v2063 = vunpack.c.h.b16 %v491
    %v2064 = vunpack.c.l.b16 %v492
    %v2065 = vunpack.c.h.b16 %v492
    %v2066 = vunpack.c.l.b16 %v493
    %v2067 = vunpack.c.h.b16 %v493
    %v2068 = vunpack.c.l.b16 %v494
    %v2069 = vunpack.c.h.b16 %v494
    %v2070 = vunpack.c.l.b16 %v495
    %v2071 = vunpack.c.h.b16 %v495
    %v2072 = vunpack.c.l.b16 %v496
    %v2073 = vunpack.c.h.b16 %v496
    %v2074 = vunpack.c.l.b16 %v497
    %v2075 = vunpack.c.h.b16 %v497
    %v2076 = vunpack.c.l.b16 %v498
    %v2077 = vunpack.c.h.b16 %v498
    %v2078 = vunpack.c.l.b16 %v499
    %v2079 = vunpack.c.h.b16 %v499
    %v2080 = vunpack.c.l.b16 %v500
    %v2081 = vunpack.c.h.b16 %v500
    %v2082 = vunpack.c.l.b16 %v501
    %v2083 = vunpack.c.h.b16 %v501
    %v2084 = vunpack.c.l.b16 %v502
    %v2085 = vunpack.c.h.b16 %v502
    %v2086 = vunpack.c.l.b16 %v503
    %v2087 = vunpack.c.h.b16 %v503
    %v2088 = vunpack.c.l.b16 %v504
    %v2089 = vunpack.c.h.b16 %v504
    %v2090 = vunpack.c.l.b16 %v505
    %v2091 = vunpack.c.h.b16 %v505
    %v2092 = vunpack.c.l.b16 %v506
    %v2093 = vunpack.c.h.b16 %v506
    %v2094 = vunpack.c.l.b16 %v507
    %v2095 = vunpack.c.h.b16 %v507
    %v2096 = vunpack.c.l.b16 %v508
    %v2097 = vunpack.c.h.b16 %v508
    %v2098 = vunpack.c.l.b16 %v509
    %v2099 = vunpack.c.h.b16 %v509
    %v2100 = vunpack.c.l.b16 %v510
    %v2101 = vunpack.c.h.b16 %v510
    %v2102 = vunpack.c.l.b16 %v511
    %v2103 = vunpack.c.h.b16 %v511
    %v2104 = vunpack.c.l.b16 %v512
    %v2105 = vunpack.c.h.b16 %v512
    %v2106 = vunpack.c.l.b16 %v513
    %v2107 = vunpack.c.h.b16 %v513
    %v2108 = vunpack.c.l.b16 %v514
    %v2109 = vunpack.c.h.b16 %v514
    %v2110 = vunpack.c.l.b16 %v515
    %v2111 = vunpack.c.h.b16 %v515
    %v2112 = vunpack.c.l.b16 %v516
    %v2113 = vunpack.c.h.b16 %v516
    %v2114 = vunpack.c.l.b16 %v517
    %v2115 = vunpack.c.h.b16 %v517
    %v2116 = vunpack.c.l.b16 %v518
    %v2117 = vunpack.c.h.b16 %v518
    %v2118 = vunpack.c.l.b16 %v519
    %v2119 = vunpack.c.h.b16 %v519
    %v2120 = vunpack.c.l.b16 %v520
    %v2121 = vunpack.c.h.b16 %v520
    %v2122 = vunpack.c.l.b16 %v521
    %v2123 = vunpack.c.h.b16 %v521
    %v2124 = vunpack.c.l.b16 %v522
    %v2125 = vunpack.c.h.b16 %v522
    %v2126 = vunpack.c.l.b16 %v523
    %v2127 = vunpack.c.h.b16 %v523
    %v2128 = vunpack.c.l.b16 %v524
    %v2129 = vunpack.c.h.b16 %v524
    %v2130 = vunpack.c.l.b16 %v525
    %v2131 = vunpack.c.h.b16 %v525
    %v2132 = vunpack.c.l.b16 %v526
    %v2133 = vunpack.c.h.b16 %v526
    %v2134 = vunpack.c.l.b16 %v527
    %v2135 = vunpack.c.h.b16 %v527
    %v2136 = vunpack.c.l.b16 %v528
    %v2137 = vunpack.c.h.b16 %v528
    %v2138 = vunpack.c.l.b16 %v529
    %v2139 = vunpack.c.h.b16 %v529
    %v2140 = vunpack.c.l.b16 %v530
    %v2141 = vunpack.c.h.b16 %v530
    %v2142 = vunpack.c.l.b16 %v531
    %v2143 = vunpack.c.h.b16 %v531
    %v2144 = vunpack.c.l.b16 %v532
    %v2145 = vunpack.c.h.b16 %v532
    %v2146 = vunpack.c.l.b16 %v533
    %v2147 = vunpack.c.h.b16 %v533
    %v2148 = vunpack.c.l.b16 %v534
    %v2149 = vunpack.c.h.b16 %v534
    %v2150 = vunpack.c.l.b16 %v535
    %v2151 = vunpack.c.h.b16 %v535
    %v2152 = vunpack.c.l.b16 %v536
    %v2153 = vunpack.c.h.b16 %v536
    %v2154 = vunpack.c.l.b16 %v537
    %v2155 = vunpack.c.h.b16 %v537
    %v2156 = vunpack.c.l.b16 %v538
    %v2157 = vunpack.c.h.b16 %v538
    %v2158 = vunpack.c.l.b16 %v539
    %v2159 = vunpack.c.h.b16 %v539
    %v2160 = vunpack.c.l.b16 %v540
    %v2161 = vunpack.c.h.b16 %v540
    %v2162 = vunpack.c.l.b16 %v541
    %v2163 = vunpack.c.h.b16 %v541
    %v2164 = vunpack.c.l.b16 %v542
    %v2165 = vunpack.c.h.b16 %v542
    %v2166 = vunpack.c.l.b16 %v543
    %v2167 = vunpack.c.h.b16 %v543
    %v2168 = vunpack.c.l.b16 %v544
    %v2169 = vunpack.c.h.b16 %v544
    %v2170 = vunpack.c.l.b16 %v545
    %v2171 = vunpack.c.h.b16 %v545
    %v2172 = vunpack.c.l.b16 %v546
    %v2173 = vunpack.c.h.b16 %v546
    %v2174 = vunpack.c.l.b16 %v547
    %v2175 = vunpack.c.h.b16 %v547
    %v2176 = vunpack.c.l.b16 %v548
    %v2177 = vunpack.c.h.b16 %v548
    %v2178 = vunpack.c.l.b16 %v549
    %v2179 = vunpack.c.h.b16 %v549
    %v2180 = vunpack.c.l.b16 %v550
    %v2181 = vunpack.c.h.b16 %v550
    %v2182 = vunpack.c.l.b16 %v551
    %v2183 = vunpack.c.h.b16 %v551
    %v2184 = vunpack.c.l.b16 %v552
    %v2185 = vunpack.c.h.b16 %v552
    %v2186 = vunpack.c.l.b16 %v553
    %v2187 = vunpack.c.h.b16 %v553
    %v2188 = vunpack.c.l.b16 %v554
    %v2189 = vunpack.c.h.b16 %v554
    %v2190 = vunpack.c.l.b16 %v555
    %v2191 = vunpack.c.h.b16 %v555
    %v2192 = vunpack.c.l.b16 %v556
    %v2193 = vunpack.c.h.b16 %v556
    %v2194 = vunpack.c.l.b16 %v557
    %v2195 = vunpack.c.h.b16 %v557
    %v2196 = vunpack.c.l.b16 %v558
    %v2197 = vunpack.c.h.b16 %v558
    %v2198 = vunpack.c.l.b16 %v559
    %v2199 = vunpack.c.h.b16 %v559
    %v2200 = vunpack.c.l.b16 %v560
    %v2201 = vunpack.c.h.b16 %v560
    %v2202 = vunpack.c.l.b16 %v561
    %v2203 = vunpack.c.h.b16 %v561
    %v2204 = vunpack.c.l.b16 %v562
    %v2205 = vunpack.c.h.b16 %v562
    %v2206 = vunpack.c.l.b16 %v563
    %v2207 = vunpack.c.h.b16 %v563
    %v2208 = vunpack.c.l.b16 %v564
    %v2209 = vunpack.c.h.b16 %v564
    %v2210 = vunpack.c.l.b16 %v565
    %v2211 = vunpack.c.h.b16 %v565
    %v2212 = vunpack.c.l.b16 %v566
    %v2213 = vunpack.c.h.b16 %v566
    %v2214 = vunpack.c.l.b16 %v567
    %v2215 = vunpack.c.h.b16 %v567
    %v2216 = vunpack.c.l.b16 %v568
    %v2217 = vunpack.c.h.b16 %v568
    %v2218 = vunpack.c.l.b16 %v569
    %v2219 = vunpack.c.h.b16 %v569
    %v2220 = vunpack.c.l.b16 %v570
    %v2221 = vunpack.c.h.b16 %v570
    %v2222 = vunpack.c.l.b16 %v571
    %v2223 = vunpack.c.h.b16 %v571
    %v2224 = vunpack.c.l.b16 %v572
    %v2225 = vunpack.c.h.b16 %v572
    %v2226 = vunpack.c.l.b16 %v573
    %v2227 = vunpack.c.h.b16 %v573
    %v2228 = vunpack.c.l.b16 %v574
    %v2229 = vunpack.c.h.b16 %v574
    %v2230 = vunpack.c.l.b16 %v575
    %v2231 = vunpack.c.h.b16 %v575
    %v2232 = vunpack.c.l.b16 %v576
    %v2233 = vunpack.c.h.b16 %v576
    %v2234 = vunpack.c.l.b16 %v577
    %v2235 = vunpack.c.h.b16 %v577
    %v2236 = vunpack.c.l.b16 %v578
    %v2237 = vunpack.c.h.b16 %v578
    %v2238 = vunpack.c.l.b16 %v579
    %v2239 = vunpack.c.h.b16 %v579
    %v2240 = vunpack.c.l.b16 %v580
    %v2241 = vunpack.c.h.b16 %v580
    %v2242 = vunpack.c.l.b16 %v581
    %v2243 = vunpack.c.h.b16 %v581
    %v2244 = vunpack.c.l.b16 %v582
    %v2245 = vunpack.c.h.b16 %v582
    %v2246 = vunpack.c.l.b16 %v583
    %v2247 = vunpack.c.h.b16 %v583
    %v2248 = vunpack.c.l.b16 %v584
    %v2249 = vunpack.c.h.b16 %v584
    %v2250 = vunpack.c.l.b16 %v585
    %v2251 = vunpack.c.h.b16 %v585
    %v2252 = vunpack.c.l.b16 %v586
    %v2253 = vunpack.c.h.b16 %v586
    %v2254 = vunpack.c.l.b16 %v587
    %v2255 = vunpack.c.h.b16 %v587
    %v2256 = vunpack.c.l.b16 %v588
    %v2257 = vunpack.c.h.b16 %v588
    %v2258 = vunpack.c.l.b16 %v589
    %v2259 = vunpack.c.h.b16 %v589
    %v2260 = vunpack.c.l.b16 %v590
    %v2261 = vunpack.c.h.b16 %v590
    %v2262 = vunpack.c.l.b16 %v591
    %v2263 = vunpack.c.h.b16 %v591
    %v2264 = vunpack.c.l.b16 %v592
    %v2265 = vunpack.c.h.b16 %v592
    %v2266 = vunpack.c.l.b16 %v593
    %v2267 = vunpack.c.h.b16 %v593
    %v2268 = vunpack.c.l.b16 %v594
    %v2269 = vunpack.c.h.b16 %v594
    %v2270 = vunpack.c.l.b16 %v595
    %v2271 = vunpack.c.h.b16 %v595
    %v2272 = vunpack.c.l.b16 %v596
    %v2273 = vunpack.c.h.b16 %v596
    %v2274 = vunpack.c.l.b16 %v597
    %v2275 = vunpack.c.h.b16 %v597
    %v2276 = vunpack.c.l.b16 %v598
    %v2277 = vunpack.c.h.b16 %v598
    %v2278 = vunpack.c.l.b16 %v599
    %v2279 = vunpack.c.h.b16 %v599
    %v2280 = vunpack.c.l.b16 %v600
    %v2281 = vunpack.c.h.b16 %v600
    %v2282 = vunpack.c.l.b16 %v601
    %v2283 = vunpack.c.h.b16 %v601
    %v2284 = vunpack.c.l.b16 %v602
    %v2285 = vunpack.c.h.b16 %v602
    %v2286 = vunpack.c.l.b16 %v603
    %v2287 = vunpack.c.h.b16 %v603
    %v2288 = vunpack.c.l.b16 %v604
    %v2289 = vunpack.c.h.b16 %v604
    %v2290 = vunpack.c.l.b16 %v605
    %v2291 = vunpack.c.h.b16 %v605
    %v2292 = vunpack.c.l.b16 %v606
    %v2293 = vunpack.c.h.b16 %v606
    %v2294 = vunpack.c.l.b16 %v607
    %v2295 = vunpack.c.h.b16 %v607
    %v2296 = vunpack.c.l.b16 %v608
    %v2297 = vunpack.c.h.b16 %v608
    %v2298 = vunpack.c.l.b16 %v609
    %v2299 = vunpack.c.h.b16 %v609
    %v2300 = vunpack.c.l.b16 %v610
    %v2301 = vunpack.c.h.b16 %v610
    %v2302 = vunpack.c.l.b16 %v611
    %v2303 = vunpack.c.h.b16 %v611
    %v2304 = vunpack.c.l.b16 %v612
    %v2305 = vunpack.c.h.b16 %v612
    %v2306 = vunpack.c.l.b16 %v613
    %v2307 = vunpack.c.h.b16 %v613
    %v2308 = vunpack.c.l.b16 %v614
    %v2309 = vunpack.c.h.b16 %v614
    %v2310 = vunpack.c.l.b16 %v615
    %v2311 = vunpack.c.h.b16 %v615
    %v2312 = vunpack.c.l.b16 %v616
    %v2313 = vunpack.c.h.b16 %v616
    %v2314 = vunpack.c.l.b16 %v617
    %v2315 = vunpack.c.h.b16 %v617
    %v2316 = vunpack.c.l.b16 %v618
    %v2317 = vunpack.c.h.b16 %v618
    %v2318 = vunpack.c.l.b16 %v619
    %v2319 = vunpack.c.h.b16 %v619
    %v2320 = vunpack.c.l.b16 %v620
    %v2321 = vunpack.c.h.b16 %v620
    %v2322 = vunpack.c.l.b16 %v621
    %v2323 = vunpack.c.h.b16 %v621
    %v2324 = vunpack.c.l.b16 %v622
    %v2325 = vunpack.c.h.b16 %v622
    %v2326 = vunpack.c.l.b16 %v623
    %v2327 = vunpack.c.h.b16 %v623
    %v2328 = vunpack.c.l.b16 %v624
    %v2329 = vunpack.c.h.b16 %v624
    %v2330 = vunpack.c.l.b16 %v625
    %v2331 = vunpack.c.h.b16 %v625
    %v2332 = vunpack.c.l.b16 %v626
    %v2333 = vunpack.c.h.b16 %v626
    %v2334 = vunpack.c.l.b16 %v627
    %v2335 = vunpack.c.h.b16 %v627
    %v2336 = vunpack.c.l.b16 %v628
    %v2337 = vunpack.c.h.b16 %v628
    %v2338 = vunpack.c.l.b16 %v629
    %v2339 = vunpack.c.h.b16 %v629
    %v2340 = vunpack.c.l.b16 %v630
    %v2341 = vunpack.c.h.b16 %v630
    %v2342 = vunpack.c.l.b16 %v631
    %v2343 = vunpack.c.h.b16 %v631
    %v2344 = vunpack.c.l.b16 %v632
    %v2345 = vunpack.c.h.b16 %v632
    %v2346 = vunpack.c.l.b16 %v633
    %v2347 = vunpack.c.h.b16 %v633
    %v2348 = vunpack.c.l.b16 %v634
    %v2349 = vunpack.c.h.b16 %v634
    %v2350 = vunpack.c.l.b16 %v635
    %v2351 = vunpack.c.h.b16 %v635
    %v2352 = vunpack.c.l.b16 %v636
    %v2353 = vunpack.c.h.b16 %v636
    %v2354 = vunpack.c.l.b16 %v637
    %v2355 = vunpack.c.h.b16 %v637
    %v2356 = vunpack.c.l.b16 %v638
    %v2357 = vunpack.c.h.b16 %v638
    %v2358 = vunpack.c.l.b16 %v639
    %v2359 = vunpack.c.h.b16 %v639
    %v2360 = vunpack.c.l.b16 %v640
    %v2361 = vunpack.c.h.b16 %v640
    %v2362 = vunpack.c.l.b16 %v641
    %v2363 = vunpack.c.h.b16 %v641
    %v2364 = vunpack.c.l.b16 %v642
    %v2365 = vunpack.c.h.b16 %v642
    %v2366 = vunpack.c.l.b16 %v643
    %v2367 = vunpack.c.h.b16 %v643
    %v2368 = vunpack.c.l.b16 %v644
    %v2369 = vunpack.c.h.b16 %v644
    %v2370 = vunpack.c.l.b16 %v645
    %v2371 = vunpack.c.h.b16 %v645
    %v2372 = vunpack.c.l.b16 %v646
    %v2373 = vunpack.c.h.b16 %v646
    %v2374 = vunpack.c.l.b16 %v647
    %v2375 = vunpack.c.h.b16 %v647
    %v2376 = vunpack.c.l.b16 %v648
    %v2377 = vunpack.c.h.b16 %v648
    %v2378 = vunpack.c.l.b16 %v649
    %v2379 = vunpack.c.h.b16 %v649
    %v2380 = vunpack.c.l.b16 %v650
    %v2381 = vunpack.c.h.b16 %v650
    %v2382 = vunpack.c.l.b16 %v651
    %v2383 = vunpack.c.h.b16 %v651
    %v2384 = vunpack.c.l.b16 %v652
    %v2385 = vunpack.c.h.b16 %v652
    %v2386 = vunpack.c.l.b16 %v653
    %v2387 = vunpack.c.h.b16 %v653
    %v2388 = vunpack.c.l.b16 %v654
    %v2389 = vunpack.c.h.b16 %v654
    %v2390 = vunpack.c.l.b16 %v655
    %v2391 = vunpack.c.h.b16 %v655
    %v2392 = vunpack.c.l.b16 %v656
    %v2393 = vunpack.c.h.b16 %v656
    %v2394 = vunpack.c.l.b16 %v657
    %v2395 = vunpack.c.h.b16 %v657
    %v2396 = vunpack.c.l.b16 %v658
    %v2397 = vunpack.c.h.b16 %v658
    %v2398 = vunpack.c.l.b16 %v659
    %v2399 = vunpack.c.h.b16 %v659
    %v2400 = vunpack.c.l.b16 %v660
    %v2401 = vunpack.c.h.b16 %v660
    %v2402 = vunpack.c.l.b16 %v661
    %v2403 = vunpack.c.h.b16 %v661
    %v2404 = vunpack.c.l.b16 %v662
    %v2405 = vunpack.c.h.b16 %v662
    %v2406 = vunpack.c.l.b16 %v663
    %v2407 = vunpack.c.h.b16 %v663
    %v2408 = vunpack.c.l.b16 %v664
    %v2409 = vunpack.c.h.b16 %v664
    %v2410 = vunpack.c.l.b16 %v665
    %v2411 = vunpack.c.h.b16 %v665
    %v2412 = vunpack.c.l.b16 %v666
    %v2413 = vunpack.c.h.b16 %v666
    %v2414 = vunpack.c.l.b16 %v667
    %v2415 = vunpack.c.h.b16 %v667
    %v2416 = vunpack.c.l.b16 %v668
    %v2417 = vunpack.c.h.b16 %v668
    %v2418 = vunpack.c.l.b16 %v669
    %v2419 = vunpack.c.h.b16 %v669
    %v2420 = vunpack.c.l.b16 %v670
    %v2421 = vunpack.c.h.b16 %v670
    %v2422 = vunpack.c.l.b16 %v671
    %v2423 = vunpack.c.h.b16 %v671
    %v2424 = vunpack.c.l.b16 %v672
    %v2425 = vunpack.c.h.b16 %v672
    %v2426 = vunpack.c.l.b16 %v673
    %v2427 = vunpack.c.h.b16 %v673
    %v2428 = vunpack.c.l.b16 %v674
    %v2429 = vunpack.c.h.b16 %v674
    %v2430 = vunpack.c.l.b16 %v675
    %v2431 = vunpack.c.h.b16 %v675
    %v2432 = vunpack.c.l.b16 %v676
    %v2433 = vunpack.c.h.b16 %v676
    %v2434 = vunpack.c.l.b16 %v677
    %v2435 = vunpack.c.h.b16 %v677
    %v2436 = vunpack.c.l.b16 %v678
    %v2437 = vunpack.c.h.b16 %v678
    %v2438 = vpack.c.b16 %v1328, %v1318
    %v2439 = vpack.c.b16 %v1329, %v1319
    %v2440 = vpack.c.b16 %v1330, %v1320
    %v2441 = vpack.c.b16 %v1331, %v1321
    %v2442 = vpack.c.b16 %v1332, %v1322
    %v2443 = vpack.c.b16 %v1333, %v1323
    %v2444 = vpack.c.b16 %v1334, %v1324
    %v2445 = vpack.c.b16 %v1335, %v1325
    %v2446 = vpack.c.b16 %v1336, %v1326
    %v2447 = vpack.c.b16 %v1337, %v1327
    %v2448 = vpack.c.b16 %v1348, %v1338
    %v2449 = vpack.c.b16 %v1349, %v1339
    %v2450 = vpack.c.b16 %v1350, %v1340
    %v2451 = vpack.c.b16 %v1351, %v1341
    %v2452 = vpack.c.b16 %v1352, %v1342
    %v2453 = vpack.c.b16 %v1353, %v1343
    %v2454 = vpack.c.b16 %v1354, %v1344
    %v2455 = vpack.c.b16 %v1355, %v1345
    %v2456 = vpack.c.b16 %v1356, %v1346
    %v2457 = vpack.c.b16 %v1357, %v1347
    %v2458 = vpack.c.b16 %v1368, %v1358
    %v2459 = vpack.c.b16 %v1369, %v1359
    %v2460 = vpack.c.b16 %v1370, %v1360
    %v2461 = vpack.c.b16 %v1371, %v1361
    %v2462 = vpack.c.b16 %v1372, %v1362
    %v2463 = vpack.c.b16 %v1373, %v1363
    %v2464 = vpack.c.b16 %v1374, %v1364
    %v2465 = vpack.c.b16 %v1375, %v1365
    %v2466 = vpack.c.b16 %v1376, %v1366
    %v2467 = vpack.c.b16 %v1377, %v1367
    %v2468 = vpack.c.b16 %v1388, %v1378
    %v2469 = vpack.c.b16 %v1389, %v1379
    %v2470 = vpack.c.b16 %v1390, %v1380
    %v2471 = vpack.c.b16 %v1391, %v1381
    %v2472 = vpack.c.b16 %v1392, %v1382
    %v2473 = vpack.c.b16 %v1393, %v1383
    %v2474 = vpack.c.b16 %v1394, %v1384
    %v2475 = vpack.c.b16 %v1395, %v1385
    %v2476 = vpack.c.b16 %v1396, %v1386
    %v2477 = vpack.c.b16 %v1397, %v1387
    %v2478 = vpack.c.b16 %v1408, %v1398
    %v2479 = vpack.c.b16 %v1409, %v1399
    %v2480 = vpack.c.b16 %v1410, %v1400
    %v2481 = vpack.c.b16 %v1411, %v1401
    %v2482 = vpack.c.b16 %v1412, %v1402
    %v2483 = vpack.c.b16 %v1413, %v1403
    %v2484 = vpack.c.b16 %v1414, %v1404
    %v2485 = vpack.c.b16 %v1415, %v1405
    %v2486 = vpack.c.b16 %v1416, %v1406
    %v2487 = vpack.c.b16 %v1417, %v1407
    %v2488 = vpack.c.b16 %v1428, %v1418
    %v2489 = vpack.c.b16 %v1429, %v1419
    %v2490 = vpack.c.b16 %v1430, %v1420
    %v2491 = vpack.c.b16 %v1431, %v1421
    %v2492 = vpack.c.b16 %v1432, %v1422
    %v2493 = vpack.c.b16 %v1433, %v1423
    %v2494 = vpack.c.b16 %v1434, %v1424
    %v2495 = vpack.c.b16 %v1435, %v1425
    %v2496 = vpack.c.b16 %v1436, %v1426
    %v2497 = vpack.c.b16 %v1437, %v1427
    %v2498 = vpack.c.b16 %v1448, %v1438
    %v2499 = vpack.c.b16 %v1449, %v1439
    %v2500 = vpack.c.b16 %v1450, %v1440
    %v2501 = vpack.c.b16 %v1451, %v1441
    %v2502 = vpack.c.b16 %v1452, %v1442
    %v2503 = vpack.c.b16 %v1453, %v1443
    %v2504 = vpack.c.b16 %v1454, %v1444
    %v2505 = vpack.c.b16 %v1455, %v1445
    %v2506 = vpack.c.b16 %v1456, %v1446
    %v2507 = vpack.c.b16 %v1457, %v1447
    %v2508 = vpack.c.b16 %v1468, %v1458
    %v2509 = vpack.c.b16 %v1469, %v1459
    %v2510 = vpack.c.b16 %v1470, %v1460
    %v2511 = vpack.c.b16 %v1471, %v1461
    %v2512 = vpack.c.b16 %v1472, %v1462
    %v2513 = vpack.c.b16 %v1473, %v1463
    %v2514 = vpack.c.b16 %v1474, %v1464
    %v2515 = vpack.c.b16 %v1475, %v1465
    %v2516 = vpack.c.b16 %v1476, %v1466
    %v2517 = vpack.c.b16 %v1477, %v1467
    %v2518 = vpack.c.b16 %v1488, %v1478
    %v2519 = vpack.c.b16 %v1489, %v1479
    %v2520 = vpack.c.b16 %v1490, %v1480
    %v2521 = vpack.c.b16 %v1491, %v1481
    %v2522 = vpack.c.b16 %v1492, %v1482
    %v2523 = vpack.c.b16 %v1493, %v1483
    %v2524 = vpack.c.b16 %v1494, %v1484
    %v2525 = vpack.c.b16 %v1495, %v1485
    %v2526 = vpack.c.b16 %v1496, %v1486
    %v2527 = vpack.c.b16 %v1497, %v1487
    %v2528 = vpack.c.b16 %v1508, %v1498
    %v2529 = vpack.c.b16 %v1509, %v1499
    %v2530 = vpack.c.b16 %v1510, %v1500
    %v2531 = vpack.c.b16 %v1511, %v1501
    %v2532 = vpack.c.b16 %v1512, %v1502
    %v2533 = vpack.c.b16 %v1513, %v1503
    %v2534 = vpack.c.b16 %v1514, %v1504
    %v2535 = vpack.c.b16 %v1515, %v1505
    %v2536 = vpack.c.b16 %v1516, %v1506
    %v2537 = vpack.c.b16 %v1517, %v1507
    %v2538 = vpack.c.b16 %v1528, %v1518
    %v2539 = vpack.c.b16 %v1529, %v1519
    %v2540 = vpack.c.b16 %v1530, %v1520
    %v2541 = vpack.c.b16 %v1531, %v1521
    %v2542 = vpack.c.b16 %v1532, %v1522
    %v2543 = vpack.c.b16 %v1533, %v1523
    %v2544 = vpack.c.b16 %v1534, %v1524
    %v2545 = vpack.c.b16 %v1535, %v1525
    %v2546 = vpack.c.b16 %v1536, %v1526
    %v2547 = vpack.c.b16 %v1537, %v1527
    %v2548 = vpack.c.b16 %v1548, %v1538
    %v2549 = vpack.c.b16 %v1549, %v1539
    %v2550 = vpack.c.b16 %v1550, %v1540
    %v2551 = vpack.c.b16 %v1551, %v1541
    %v2552 = vpack.c.b16 %v1552, %v1542
    %v2553 = vpack.c.b16 %v1553, %v1543
    %v2554 = vpack.c.b16 %v1554, %v1544
    %v2555 = vpack.c.b16 %v1555, %v1545
    %v2556 = vpack.c.b16 %v1556, %v1546
    %v2557 = vpack.c.b16 %v1557, %v1547
    %v2558 = vpack.c.b16 %v1568, %v1558
    %v2559 = vpack.c.b16 %v1569, %v1559
    %v2560 = vpack.c.b16 %v1570, %v1560
    %v2561 = vpack.c.b16 %v1571, %v1561
    %v2562 = vpack.c.b16 %v1572, %v1562
    %v2563 = vpack.c.b16 %v1573, %v1563
    %v2564 = vpack.c.b16 %v1574, %v1564
    %v2565 = vpack.c.b16 %v1575, %v1565
    %v2566 = vpack.c.b16 %v1576, %v1566
    %v2567 = vpack.c.b16 %v1577, %v1567
    %v2568 = vpack.c.b16 %v1588, %v1578
    %v2569 = vpack.c.b16 %v1589, %v1579
    %v2570 = vpack.c.b16 %v1590, %v1580
    %v2571 = vpack.c.b16 %v1591, %v1581
    %v2572 = vpack.c.b16 %v1592, %v1582
    %v2573 = vpack.c.b16 %v1593, %v1583
    %v2574 = vpack.c.b16 %v1594, %v1584
    %v2575 = vpack.c.b16 %v1595, %v1585
    %v2576 = vpack.c.b16 %v1596, %v1586
    %v2577 = vpack.c.b16 %v1597, %v1587
    %v2578 = vpack.c.b16 %v1608, %v1598
    %v2579 = vpack.c.b16 %v1609, %v1599
    %v2580 = vpack.c.b16 %v1610, %v1600
    %v2581 = vpack.c.b16 %v1611, %v1601
    %v2582 = vpack.c.b16 %v1612, %v1602
    %v2583 = vpack.c.b16 %v1613, %v1603
    %v2584 = vpack.c.b16 %v1614, %v1604
    %v2585 = vpack.c.b16 %v1615, %v1605
    %v2586 = vpack.c.b16 %v1616, %v1606
    %v2587 = vpack.c.b16 %v1617, %v1607
    %v2588 = vpack.c.b16 %v1628, %v1618
    %v2589 = vpack.c.b16 %v1629, %v1619
    %v2590 = vpack.c.b16 %v1630, %v1620
    %v2591 = vpack.c.b16 %v1631, %v1621
    %v2592 = vpack.c.b16 %v1632, %v1622
    %v2593 = vpack.c.b16 %v1633, %v1623
    %v2594 = vpack.c.b16 %v1634, %v1624
    %v2595 = vpack.c.b16 %v1635, %v1625
    %v2596 = vpack.c.b16 %v1636, %v1626
    %v2597 = vpack.c.b16 %v1637, %v1627
    %v2598 = vpack.c.b16 %v1648, %v1638
    %v2599 = vpack.c.b16 %v1649, %v1639
    %v2600 = vpack.c.b16 %v1650, %v1640
    %v2601 = vpack.c.b16 %v1651, %v1641
    %v2602 = vpack.c.b16 %v1652, %v1642
    %v2603 = vpack.c.b16 %v1653, %v1643
    %v2604 = vpack.c.b16 %v1654, %v1644
    %v2605 = vpack.c.b16 %v1655, %v1645
    %v2606 = vpack.c.b16 %v1656, %v1646
    %v2607 = vpack.c.b16 %v1657, %v1647
    %v2608 = vpack.c.b16 %v1668, %v1658
    %v2609 = vpack.c.b16 %v1669, %v1659
    %v2610 = vpack.c.b16 %v1670, %v1660
    %v2611 = vpack.c.b16 %v1671, %v1661
    %v2612 = vpack.c.b16 %v1672, %v1662
    %v2613 = vpack.c.b16 %v1673, %v1663
    %v2614 = vpack.c.b16 %v1674, %v1664
    %v2615 = vpack.c.b16 %v1675, %v1665
    %v2616 = vpack.c.b16 %v1676, %v1666
    %v2617 = vpack.c.b16 %v1677, %v1667
    %v2618 = vpack.c.b16 %v1688, %v1678
    %v2619 = vpack.c.b16 %v1689, %v1679
    %v2620 = vpack.c.b16 %v1690, %v1680
    %v2621 = vpack.c.b16 %v1691, %v1681
    %v2622 = vpack.c.b16 %v1692, %v1682
    %v2623 = vpack.c.b16 %v1693, %v1683
    %v2624 = vpack.c.b16 %v1694, %v1684
    %v2625 = vpack.c.b16 %v1695, %v1685
    %v2626 = vpack.c.b16 %v1696, %v1686
    %v2627 = vpack.c.b16 %v1697, %v1687
    %v2628 = vpack.c.b16 %v1708, %v1698
    %v2629 = vpack.c.b16 %v1709, %v1699
    %v2630 = vpack.c.b16 %v1710, %v1700
    %v2631 = vpack.c.b16 %v1711, %v1701
    %v2632 = vpack.c.b16 %v1712, %v1702
    %v2633 = vpack.c.b16 %v1713, %v1703
    %v2634 = vpack.c.b16 %v1714, %v1704
    %v2635 = vpack.c.b16 %v1715, %v1705
    %v2636 = vpack.c.b16 %v1716, %v1706
    %v2637 = vpack.c.b16 %v1717, %v1707
    %v2638 = vpack.c.b16 %v1728, %v1718
    %v2639 = vpack.c.b16 %v1729, %v1719
    %v2640 = vpack.c.b16 %v1730, %v1720
    %v2641 = vpack.c.b16 %v1731, %v1721
    %v2642 = vpack.c.b16 %v1732, %v1722
    %v2643 = vpack.c.b16 %v1733, %v1723
    %v2644 = vpack.c.b16 %v1734, %v1724
    %v2645 = vpack.c.b16 %v1735, %v1725
    %v2646 = vpack.c.b16 %v1736, %v1726
    %v2647 = vpack.c.b16 %v1737, %v1727
    %v2648 = vpack.c.b16 %v1748, %v1738
    %v2649 = vpack.c.b16 %v1749, %v1739
    %v2650 = vpack.c.b16 %v1750, %v1740
    %v2651 = vpack.c.b16 %v1751, %v1741
    %v2652 = vpack.c.b16 %v1752, %v1742
    %v2653 = vpack.c.b16 %v1753, %v1743
    %v2654 = vpack.c.b16 %v1754, %v1744
    %v2655 = vpack.c.b16 %v1755, %v1745
    %v2656 = vpack.c.b16 %v1756, %v1746
    %v2657 = vpack.c.b16 %v1757, %v1747
    %v2658 = vpack.c.b16 %v1768, %v1758
    %v2659 = vpack.c.b16 %v1769, %v1759
    %v2660 = vpack.c.b16 %v1770, %v1760
    %v2661 = vpack.c.b16 %v1771, %v1761
    %v2662 = vpack.c.b16 %v1772, %v1762
    %v2663 = vpack.c.b16 %v1773, %v1763
    %v2664 = vpack.c.b16 %v1774, %v1764
    %v2665 = vpack.c.b16 %v1775, %v1765
    %v2666 = vpack.c.b16 %v1776, %v1766
    %v2667 = vpack.c.b16 %v1777, %v1767
    %v2668 = vpack.c.b16 %v1788, %v1778
    %v2669 = vpack.c.b16 %v1789, %v1779
    %v2670 = vpack.c.b16 %v1790, %v1780
    %v2671 = vpack.c.b16 %v1791, %v1781
    %v2672 = vpack.c.b16 %v1792, %v1782
    %v2673 = vpack.c.b16 %v1793, %v1783
    %v2674 = vpack.c.b16 %v1794, %v1784
    %v2675 = vpack.c.b16 %v1795, %v1785
    %v2676 = vpack.c.b16 %v1796, %v1786
    %v2677 = vpack.c.b16 %v1797, %v1787
    %v2678 = vpack.c.b16 %v1808, %v1798
    %v2679 = vpack.c.b16 %v1809, %v1799
    %v2680 = vpack.c.b16 %v1810, %v1800
    %v2681 = vpack.c.b16 %v1811, %v1801
    %v2682 = vpack.c.b16 %v1812, %v1802
    %v2683 = vpack.c.b16 %v1813, %v1803
    %v2684 = vpack.c.b16 %v1814, %v1804
    %v2685 = vpack.c.b16 %v1815, %v1805
    %v2686 = vpack.c.b16 %v1816, %v1806
    %v2687 = vpack.c.b16 %v1817, %v1807
    %v2688 = vpack.c.b16 %v1828, %v1818
    %v2689 = vpack.c.b16 %v1829, %v1819
    %v2690 = vpack.c.b16 %v1830, %v1820
    %v2691 = vpack.c.b16 %v1831, %v1821
    %v2692 = vpack.c.b16 %v1832, %v1822
    %v2693 = vpack.c.b16 %v1833, %v1823
    %v2694 = vpack.c.b16 %v1834, %v1824
    %v2695 = vpack.c.b16 %v1835, %v1825
    %v2696 = vpack.c.b16 %v1836, %v1826
    %v2697 = vpack.c.b16 %v1837, %v1827
    %v2698 = vpack.c.b16 %v1848, %v1838
    %v2699 = vpack.c.b16 %v1849, %v1839
    %v2700 = vpack.c.b16 %v1850, %v1840
    %v2701 = vpack.c.b16 %v1851, %v1841
    %v2702 = vpack.c.b16 %v1852, %v1842
    %v2703 = vpack.c.b16 %v1853, %v1843
    %v2704 = vpack.c.b16 %v1854, %v1844
    %v2705 = vpack.c.b16 %v1855, %v1845
    %v2706 = vpack.c.b16 %v1856, %v1846
    %v2707 = vpack.c.b16 %v1857, %v1847
    %v2708 = vpack.c.b16 %v1868, %v1858
    %v2709 = vpack.c.b16 %v1869, %v1859
    %v2710 = vpack.c.b16 %v1870, %v1860
    %v2711 = vpack.c.b16 %v1871, %v1861
    %v2712 = vpack.c.b16 %v1872, %v1862
    %v2713 = vpack.c.b16 %v1873, %v1863
    %v2714 = vpack.c.b16 %v1874, %v1864
    %v2715 = vpack.c.b16 %v1875, %v1865
    %v2716 = vpack.c.b16 %v1876, %v1866
    %v2717 = vpack.c.b16 %v1877, %v1867
    %v2718 = vpack.c.b16 %v1888, %v1878
    %v2719 = vpack.c.b16 %v1889, %v1879
    %v2720 = vpack.c.b16 %v1890, %v1880
    %v2721 = vpack.c.b16 %v1891, %v1881
    %v2722 = vpack.c.b16 %v1892, %v1882
    %v2723 = vpack.c.b16 %v1893, %v1883
    %v2724 = vpack.c.b16 %v1894, %v1884
    %v2725 = vpack.c.b16 %v1895, %v1885
    %v2726 = vpack.c.b16 %v1896, %v1886
    %v2727 = vpack.c.b16 %v1897, %v1887
    %v2728 = vpack.c.b16 %v1908, %v1898
    %v2729 = vpack.c.b16 %v1909, %v1899
    %v2730 = vpack.c.b16 %v1910, %v1900
    %v2731 = vpack.c.b16 %v1911, %v1901
    %v2732 = vpack.c.b16 %v1912, %v1902
    %v2733 = vpack.c.b16 %v1913, %v1903
    %v2734 = vpack.c.b16 %v1914, %v1904
    %v2735 = vpack.c.b16 %v1915, %v1905
    %v2736 = vpack.c.b16 %v1916, %v1906
    %v2737 = vpack.c.b16 %v1917, %v1907
    %v2738 = vpack.c.b16 %v1928, %v1918
    %v2739 = vpack.c.b16 %v1929, %v1919
    %v2740 = vpack.c.b16 %v1930, %v1920
    %v2741 = vpack.c.b16 %v1931, %v1921
    %v2742 = vpack.c.b16 %v1932, %v1922
    %v2743 = vpack.c.b16 %v1933, %v1923
    %v2744 = vpack.c.b16 %v1934, %v1924
    %v2745 = vpack.c.b16 %v1935, %v1925
    %v2746 = vpack.c.b16 %v1936, %v1926
    %v2747 = vpack.c.b16 %v1937, %v1927
    %v2748 = vpack.c.b16 %v1948, %v1938
    %v2749 = vpack.c.b16 %v1949, %v1939
    %v2750 = vpack.c.b16 %v1950, %v1940
    %v2751 = vpack.c.b16 %v1951, %v1941
    %v2752 = vpack.c.b16 %v1952, %v1942
    %v2753 = vpack.c.b16 %v1953, %v1943
    %v2754 = vpack.c.b16 %v1954, %v1944
    %v2755 = vpack.c.b16 %v1955, %v1945
    %v2756 = vpack.c.b16 %v1956, %v1946
    %v2757 = vpack.c.b16 %v1957, %v1947
    %v2758 = vpack.c.b16 %v1968, %v1958
    %v2759 = vpack.c.b16 %v1969, %v1959
    %v2760 = vpack.c.b16 %v1970, %v1960
    %v2761 = vpack.c.b16 %v1971, %v1961
    %v2762 = vpack.c.b16 %v1972, %v1962
    %v2763 = vpack.c.b16 %v1973, %v1963
    %v2764 = vpack.c.b16 %v1974, %v1964
    %v2765 = vpack.c.b16 %v1975, %v1965
    %v2766 = vpack.c.b16 %v1976, %v1966
    %v2767 = vpack.c.b16 %v1977, %v1967
    %v2768 = vpack.c.b16 %v1988, %v1978
    %v2769 = vpack.c.b16 %v1989, %v1979
    %v2770 = vpack.c.b16 %v1990, %v1980
    %v2771 = vpack.c.b16 %v1991, %v1981
    %v2772 = vpack.c.b16 %v1992, %v1982
    %v2773 = vpack.c.b16 %v1993, %v1983
    %v2774 = vpack.c.b16 %v1994, %v1984
    %v2775 = vpack.c.b16 %v1995, %v1985
    %v2776 = vpack.c.b16 %v1996, %v1986
    %v2777 = vpack.c.b16 %v1997, %v1987
    %v2778 = vpack.c.b16 %v2008, %v1998
    %v2779 = vpack.c.b16 %v2009, %v1999
    %v2780 = vpack.c.b16 %v2010, %v2000
    %v2781 = vpack.c.b16 %v2011, %v2001
    %v2782 = vpack.c.b16 %v2012, %v2002
    %v2783 = vpack.c.b16 %v2013, %v2003
    %v2784 = vpack.c.b16 %v2014, %v2004
    %v2785 = vpack.c.b16 %v2015, %v2005
    %v2786 = vpack.c.b16 %v2016, %v2006
    %v2787 = vpack.c.b16 %v2017, %v2007
    %v2788 = vpack.c.b16 %v2028, %v2018
    %v2789 = vpack.c.b16 %v2029, %v2019
    %v2790 = vpack.c.b16 %v2030, %v2020
    %v2791 = vpack.c.b16 %v2031, %v2021
    %v2792 = vpack.c.b16 %v2032, %v2022
    %v2793 = vpack.c.b16 %v2033, %v2023
    %v2794 = vpack.c.b16 %v2034, %v2024
    %v2795 = vpack.c.b16 %v2035, %v2025
    %v2796 = vpack.c.b16 %v2036, %v2026
    %v2797 = vpack.c.b16 %v2037, %v2027
    %v2798 = vpack.c.b16 %v2048, %v2038
    %v2799 = vpack.c.b16 %v2049, %v2039
    %v2800 = vpack.c.b16 %v2050, %v2040
    %v2801 = vpack.c.b16 %v2051, %v2041
    %v2802 = vpack.c.b16 %v2052, %v2042
    %v2803 = vpack.c.b16 %v2053, %v2043
    %v2804 = vpack.c.b16 %v2054, %v2044
    %v2805 = vpack.c.b16 %v2055, %v2045
    %v2806 = vpack.c.b16 %v2056, %v2046
    %v2807 = vpack.c.b16 %v2057, %v2047
    %v2808 = vpack.c.b16 %v2068, %v2058
    %v2809 = vpack.c.b16 %v2069, %v2059
    %v2810 = vpack.c.b16 %v2070, %v2060
    %v2811 = vpack.c.b16 %v2071, %v2061
    %v2812 = vpack.c.b16 %v2072, %v2062
    %v2813 = vpack.c.b16 %v2073, %v2063
    %v2814 = vpack.c.b16 %v2074, %v2064
    %v2815 = vpack.c.b16 %v2075, %v2065
    %v2816 = vpack.c.b16 %v2076, %v2066
    %v2817 = vpack.c.b16 %v2077, %v2067
    %v2818 = vpack.c.b16 %v2088, %v2078
    %v2819 = vpack.c.b16 %v2089, %v2079
    %v2820 = vpack.c.b16 %v2090, %v2080
    %v2821 = vpack.c.b16 %v2091, %v2081
    %v2822 = vpack.c.b16 %v2092, %v2082
    %v2823 = vpack.c.b16 %v2093, %v2083
    %v2824 = vpack.c.b16 %v2094, %v2084
    %v2825 = vpack.c.b16 %v2095, %v2085
    %v2826 = vpack.c.b16 %v2096, %v2086
    %v2827 = vpack.c.b16 %v2097, %v2087
    %v2828 = vpack.c.b16 %v2108, %v2098
    %v2829 = vpack.c.b16 %v2109, %v2099
    %v2830 = vpack.c.b16 %v2110, %v2100
    %v2831 = vpack.c.b16 %v2111, %v2101
    %v2832 = vpack.c.b16 %v2112, %v2102
    %v2833 = vpack.c.b16 %v2113, %v2103
    %v2834 = vpack.c.b16 %v2114, %v2104
    %v2835 = vpack.c.b16 %v2115, %v2105
    %v2836 = vpack.c.b16 %v2116, %v2106
    %v2837 = vpack.c.b16 %v2117, %v2107
    %v2838 = vpack.c.b16 %v2128, %v2118
    %v2839 = vpack.c.b16 %v2129, %v2119
    %v2840 = vpack.c.b16 %v2130, %v2120
    %v2841 = vpack.c.b16 %v2131, %v2121
    %v2842 = vpack.c.b16 %v2132, %v2122
    %v2843 = vpack.c.b16 %v2133, %v2123
    %v2844 = vpack.c.b16 %v2134, %v2124
    %v2845 = vpack.c.b16 %v2135, %v2125
    %v2846 = vpack.c.b16 %v2136, %v2126
    %v2847 = vpack.c.b16 %v2137, %v2127
    %v2848 = vpack.c.b16 %v2148, %v2138
    %v2849 = vpack.c.b16 %v2149, %v2139
    %v2850 = vpack.c.b16 %v2150, %v2140
    %v2851 = vpack.c.b16 %v2151, %v2141
    %v2852 = vpack.c.b16 %v2152, %v2142
    %v2853 = vpack.c.b16 %v2153, %v2143
    %v2854 = vpack.c.b16 %v2154, %v2144
    %v2855 = vpack.c.b16 %v2155, %v2145
    %v2856 = vpack.c.b16 %v2156, %v2146
    %v2857 = vpack.c.b16 %v2157, %v2147
    %v2858 = vpack.c.b16 %v2168, %v2158
    %v2859 = vpack.c.b16 %v2169, %v2159
    %v2860 = vpack.c.b16 %v2170, %v2160
    %v2861 = vpack.c.b16 %v2171, %v2161
    %v2862 = vpack.c.b16 %v2172, %v2162
    %v2863 = vpack.c.b16 %v2173, %v2163
    %v2864 = vpack.c.b16 %v2174, %v2164
    %v2865 = vpack.c.b16 %v2175, %v2165
    %v2866 = vpack.c.b16 %v2176, %v2166
    %v2867 = vpack.c.b16 %v2177, %v2167
    %v2868 = vpack.c.b16 %v2188, %v2178
    %v2869 = vpack.c.b16 %v2189, %v2179
    %v2870 = vpack.c.b16 %v2190, %v2180
    %v2871 = vpack.c.b16 %v2191, %v2181
    %v2872 = vpack.c.b16 %v2192, %v2182
    %v2873 = vpack.c.b16 %v2193, %v2183
    %v2874 = vpack.c.b16 %v2194, %v2184
    %v2875 = vpack.c.b16 %v2195, %v2185
    %v2876 = vpack.c.b16 %v2196, %v2186
    %v2877 = vpack.c.b16 %v2197, %v2187
    %v2878 = vpack.c.b16 %v2208, %v2198
    %v2879 = vpack.c.b16 %v2209, %v2199
    %v2880 = vpack.c.b16 %v2210, %v2200
    %v2881 = vpack.c.b16 %v2211, %v2201
    %v2882 = vpack.c.b16 %v2212, %v2202
    %v2883 = vpack.c.b16 %v2213, %v2203
    %v2884 = vpack.c.b16 %v2214, %v2204
    %v2885 = vpack.c.b16 %v2215, %v2205
    %v2886 = vpack.c.b16 %v2216, %v2206
    %v2887 = vpack.c.b16 %v2217, %v2207
    %v2888 = vpack.c.b16 %v2228, %v2218
    %v2889 = vpack.c.b16 %v2229, %v2219
    %v2890 = vpack.c.b16 %v2230, %v2220
    %v2891 = vpack.c.b16 %v2231, %v2221
    %v2892 = vpack.c.b16 %v2232, %v2222
    %v2893 = vpack.c.b16 %v2233, %v2223
    %v2894 = vpack.c.b16 %v2234, %v2224
    %v2895 = vpack.c.b16 %v2235, %v2225
    %v2896 = vpack.c.b16 %v2236, %v2226
    %v2897 = vpack.c.b16 %v2237, %v2227
    %v2898 = vpack.c.b16 %v2248, %v2238
    %v2899 = vpack.c.b16 %v2249, %v2239
    %v2900 = vpack.c.b16 %v2250, %v2240
    %v2901 = vpack.c.b16 %v2251, %v2241
    %v2902 = vpack.c.b16 %v2252, %v2242
    %v2903 = vpack.c.b16 %v2253, %v2243
    %v2904 = vpack.c.b16 %v2254, %v2244
    %v2905 = vpack.c.b16 %v2255, %v2245
    %v2906 = vpack.c.b16 %v2256, %v2246
    %v2907 = vpack.c.b16 %v2257, %v2247
    %v2908 = vpack.c.b16 %v2268, %v2258
    %v2909 = vpack.c.b16 %v2269, %v2259
    %v2910 = vpack.c.b16 %v2270, %v2260
    %v2911 = vpack.c.b16 %v2271, %v2261
    %v2912 = vpack.c.b16 %v2272, %v2262
    %v2913 = vpack.c.b16 %v2273, %v2263
    %v2914 = vpack.c.b16 %v2274, %v2264
    %v2915 = vpack.c.b16 %v2275, %v2265
    %v2916 = vpack.c.b16 %v2276, %v2266
    %v2917 = vpack.c.b16 %v2277, %v2267
    %v2918 = vpack.c.b16 %v2288, %v2278
    %v2919 = vpack.c.b16 %v2289, %v2279
    %v2920 = vpack.c.b16 %v2290, %v2280
    %v2921 = vpack.c.b16 %v2291, %v2281
    %v2922 = vpack.c.b16 %v2292, %v2282
    %v2923 = vpack.c.b16 %v2293, %v2283
    %v2924 = vpack.c.b16 %v2294, %v2284
    %v2925 = vpack.c.b16 %v2295, %v2285
    %v2926 = vpack.c.b16 %v2296, %v2286
    %v2927 = vpack.c.b16 %v2297, %v2287
    %v2928 = vpack.c.b16 %v2308, %v2298
    %v2929 = vpack.c.b16 %v2309, %v2299
    %v2930 = vpack.c.b16 %v2310, %v2300
    %v2931 = vpack.c.b16 %v2311, %v2301
    %v2932 = vpack.c.b16 %v2312, %v2302
    %v2933 = vpack.c.b16 %v2313, %v2303
    %v2934 = vpack.c.b16 %v2314, %v2304
    %v2935 = vpack.c.b16 %v2315, %v2305
    %v2936 = vpack.c.b16 %v2316, %v2306
    %v2937 = vpack.c.b16 %v2317, %v2307
    %v2938 = vpack.c.b16 %v2328, %v2318
    %v2939 = vpack.c.b16 %v2329, %v2319
    %v2940 = vpack.c.b16 %v2330, %v2320
    %v2941 = vpack.c.b16 %v2331, %v2321
    %v2942 = vpack.c.b16 %v2332, %v2322
    %v2943 = vpack.c.b16 %v2333, %v2323
    %v2944 = vpack.c.b16 %v2334, %v2324
    %v2945 = vpack.c.b16 %v2335, %v2325
    %v2946 = vpack.c.b16 %v2336, %v2326
    %v2947 = vpack.c.b16 %v2337, %v2327
    %v2948 = vpack.c.b16 %v2348, %v2338
    %v2949 = vpack.c.b16 %v2349, %v2339
    %v2950 = vpack.c.b16 %v2350, %v2340
    %v2951 = vpack.c.b16 %v2351, %v2341
    %v2952 = vpack.c.b16 %v2352, %v2342
    %v2953 = vpack.c.b16 %v2353, %v2343
    %v2954 = vpack.c.b16 %v2354, %v2344
    %v2955 = vpack.c.b16 %v2355, %v2345
    %v2956 = vpack.c.b16 %v2356, %v2346
    %v2957 = vpack.c.b16 %v2357, %v2347
    %v2958 = vpack.c.b16 %v2368, %v2358
    %v2959 = vpack.c.b16 %v2369, %v2359
    %v2960 = vpack.c.b16 %v2370, %v2360
    %v2961 = vpack.c.b16 %v2371, %v2361
    %v2962 = vpack.c.b16 %v2372, %v2362
    %v2963 = vpack.c.b16 %v2373, %v2363
    %v2964 = vpack.c.b16 %v2374, %v2364
    %v2965 = vpack.c.b16 %v2375, %v2365
    %v2966 = vpack.c.b16 %v2376, %v2366
    %v2967 = vpack.c.b16 %v2377, %v2367
    %v2968 = vpack.c.b16 %v2388, %v2378
    %v2969 = vpack.c.b16 %v2389, %v2379
    %v2970 = vpack.c.b16 %v2390, %v2380
    %v2971 = vpack.c.b16 %v2391, %v2381
    %v2972 = vpack.c.b16 %v2392, %v2382
    %v2973 = vpack.c.b16 %v2393, %v2383
    %v2974 = vpack.c.b16 %v2394, %v2384
    %v2975 = vpack.c.b16 %v2395, %v2385
    %v2976 = vpack.c.b16 %v2396, %v2386
    %v2977 = vpack.c.b16 %v2397, %v2387
    %v2978 = vpack.c.b16 %v2408, %v2398
    %v2979 = vpack.c.b16 %v2409, %v2399
    %v2980 = vpack.c.b16 %v2410, %v2400
    %v2981 = vpack.c.b16 %v2411, %v2401
    %v2982 = vpack.c.b16 %v2412, %v2402
    %v2983 = vpack.c.b16 %v2413, %v2403
    %v2984 = vpack.c.b16 %v2414, %v2404
    %v2985 = vpack.c.b16 %v2415, %v2405
    %v2986 = vpack.c.b16 %v2416, %v2406
    %v2987 = vpack.c.b16 %v2417, %v2407
    %v2988 = vpack.c.b16 %v2428, %v2418
    %v2989 = vpack.c.b16 %v2429, %v2419
    %v2990 = vpack.c.b16 %v2430, %v2420
    %v2991 = vpack.c.b16 %v2431, %v2421
    %v2992 = vpack.c.b16 %v2432, %v2422
    %v2993 = vpack.c.b16 %v2433, %v2423
    %v2994 = vpack.c.b16 %v2434, %v2424
    %v2995 = vpack.c.b16 %v2435, %v2425
    %v2996 = vpack.c.b16 %v2436, %v2426
    %v2997 = vpack.c.b16 %v2437, %v2427
    %3558 = vmatprep.subr.bf16.mxu0 %v2439
    %3559 = vmatpush1.bf16.msra.mxu0 %v2438
    %3560 = vmatprep.subr.bf16.mxu0 %v2449
    %3561 = vmatpush1.bf16.msra.mxu0 %v2448
    %3562 = vmatprep.subr.bf16.mxu0 %v2459
    %3563 = vmatpush1.bf16.msra.mxu0 %v2458
    %3564 = vmatprep.subr.bf16.mxu0 %v2469
    %3565 = vmatpush1.bf16.msra.mxu0 %v2468
    %3566 = vmatprep.subr.bf16.mxu0 %v2479
    %3567 = vmatpush1.bf16.msra.mxu0 %v2478
    %3568 = vmatprep.subr.bf16.mxu0 %v2489
    %3569 = vmatpush1.bf16.msra.mxu0 %v2488
    %3570 = vmatprep.subr.bf16.mxu0 %v2499
    %3571 = vmatpush1.bf16.msra.mxu0 %v2498
    %3572 = vmatprep.subr.bf16.mxu0 %v2509
    %3573 = vmatpush1.bf16.msra.mxu0 %v2508
    %3574 = vmatprep.subr.bf16.mxu0 %v2519
    %3575 = vmatpush1.bf16.msra.mxu0 %v2518
    %3576 = vmatprep.subr.bf16.mxu0 %v2529
    %3577 = vmatpush1.bf16.msra.mxu0 %v2528
    %3578 = vmatprep.subr.bf16.mxu0 %v2539
    %3579 = vmatpush1.bf16.msra.mxu0 %v2538
    %3580 = vmatprep.subr.bf16.mxu0 %v2549
    %3581 = vmatpush1.bf16.msra.mxu0 %v2548
    %3582 = vmatprep.subr.bf16.mxu0 %v2559
    %3583 = vmatpush1.bf16.msra.mxu0 %v2558
    %3584 = vmatprep.subr.bf16.mxu0 %v2569
    %3585 = vmatpush1.bf16.msra.mxu0 %v2568
    %3586 = vmatprep.subr.bf16.mxu0 %v2579
    %3587 = vmatpush1.bf16.msra.mxu0 %v2578
    %3588 = vmatprep.subr.bf16.mxu0 %v2589
    %3589 = vmatpush1.bf16.msra.mxu0 %v2588
    %3590 = vmatprep.mubr.bf16.mxu0 %v745
    %3591 = vmatmul.mubr.bf16.gmra.mrb[0].mxu0 %v744
    %v3592 = vpop.f32.mrb[0].mxu0
    %v3593 = vadd.f32 %v686, %v3592
    %v3594 = vpop.f32.mrb[0].mxu0
    %v3595 = vadd.f32 %v690, %v3594
    %v3596 = vpop.f32.mrb[0].mxu0
    %v3597 = vpop.f32.mrb[0].mxu0
    %3598 = vdwg.mxu0
    %3599 = vmatprep.subr.bf16.mxu0 %v2599
    %3600 = vmatpush1.bf16.msra.mxu0 %v2598
    %3601 = vmatprep.subr.bf16.mxu0 %v2609
    %3602 = vmatpush1.bf16.msra.mxu0 %v2608
    %3603 = vmatprep.subr.bf16.mxu0 %v2619
    %3604 = vmatpush1.bf16.msra.mxu0 %v2618
    %3605 = vmatprep.subr.bf16.mxu0 %v2629
    %3606 = vmatpush1.bf16.msra.mxu0 %v2628
    %3607 = vmatprep.subr.bf16.mxu0 %v2639
    %3608 = vmatpush1.bf16.msra.mxu0 %v2638
    %3609 = vmatprep.subr.bf16.mxu0 %v2649
    %3610 = vmatpush1.bf16.msra.mxu0 %v2648
    %3611 = vmatprep.subr.bf16.mxu0 %v2659
    %3612 = vmatpush1.bf16.msra.mxu0 %v2658
    %3613 = vmatprep.subr.bf16.mxu0 %v2669
    %3614 = vmatpush1.bf16.msra.mxu0 %v2668
    %3615 = vmatprep.subr.bf16.mxu0 %v2679
    %3616 = vmatpush1.bf16.msra.mxu0 %v2678
    %3617 = vmatprep.subr.bf16.mxu0 %v2689
    %3618 = vmatpush1.bf16.msra.mxu0 %v2688
    %3619 = vmatprep.subr.bf16.mxu0 %v2699
    %3620 = vmatpush1.bf16.msra.mxu0 %v2698
    %3621 = vmatprep.subr.bf16.mxu0 %v2709
    %3622 = vmatpush1.bf16.msra.mxu0 %v2708
    %3623 = vmatprep.subr.bf16.mxu0 %v2719
    %3624 = vmatpush1.bf16.msra.mxu0 %v2718
    %3625 = vmatprep.subr.bf16.mxu0 %v2729
    %3626 = vmatpush1.bf16.msra.mxu0 %v2728
    %3627 = vmatprep.subr.bf16.mxu0 %v2739
    %3628 = vmatpush1.bf16.msra.mxu0 %v2738
    %3629 = vmatprep.subr.bf16.mxu0 %v2749
    %3630 = vmatpush1.bf16.msra.mxu0 %v2748
    %3631 = vmatprep.mubr.bf16.mxu0 %v747
    %3632 = vmatmul.mubr.bf16.gmra.mrb[0].mxu0 %v746
    %v3633 = vpop.f32.mrb[0].mxu0
    %v3634 = vadd.f32 %v3593, %v3633
    %v3635 = vpop.f32.mrb[0].mxu0
    %v3636 = vadd.f32 %v3595, %v3635
    %v3637 = vpop.f32.mrb[0].mxu0
    %v3638 = vpop.f32.mrb[0].mxu0
    %3639 = vdwg.mxu0
    %3640 = vmatprep.subr.bf16.mxu0 %v2759
    %3641 = vmatpush1.bf16.msra.mxu0 %v2758
    %3642 = vmatprep.subr.bf16.mxu0 %v2769
    %3643 = vmatpush1.bf16.msra.mxu0 %v2768
    %3644 = vmatprep.subr.bf16.mxu0 %v2779
    %3645 = vmatpush1.bf16.msra.mxu0 %v2778
    %3646 = vmatprep.subr.bf16.mxu0 %v2789
    %3647 = vmatpush1.bf16.msra.mxu0 %v2788
    %3648 = vmatprep.subr.bf16.mxu0 %v2799
    %3649 = vmatpush1.bf16.msra.mxu0 %v2798
    %3650 = vmatprep.subr.bf16.mxu0 %v2809
    %3651 = vmatpush1.bf16.msra.mxu0 %v2808
    %3652 = vmatprep.subr.bf16.mxu0 %v2819
    %3653 = vmatpush1.bf16.msra.mxu0 %v2818
    %3654 = vmatprep.subr.bf16.mxu0 %v2829
    %3655 = vmatpush1.bf16.msra.mxu0 %v2828
    %3656 = vmatprep.subr.bf16.mxu0 %v2839
    %3657 = vmatpush1.bf16.msra.mxu0 %v2838
    %3658 = vmatprep.subr.bf16.mxu0 %v2849
    %3659 = vmatpush1.bf16.msra.mxu0 %v2848
    %3660 = vmatprep.subr.bf16.mxu0 %v2859
    %3661 = vmatpush1.bf16.msra.mxu0 %v2858
    %3662 = vmatprep.subr.bf16.mxu0 %v2869
    %3663 = vmatpush1.bf16.msra.mxu0 %v2868
    %3664 = vmatprep.subr.bf16.mxu0 %v2879
    %3665 = vmatpush1.bf16.msra.mxu0 %v2878
    %3666 = vmatprep.subr.bf16.mxu0 %v2889
    %3667 = vmatpush1.bf16.msra.mxu0 %v2888
    %3668 = vmatprep.subr.bf16.mxu0 %v2899
    %3669 = vmatpush1.bf16.msra.mxu0 %v2898
    %3670 = vmatprep.subr.bf16.mxu0 %v2909
    %3671 = vmatpush1.bf16.msra.mxu0 %v2908
    %3672 = vmatprep.mubr.bf16.mxu0 %v749
    %3673 = vmatmul.mubr.bf16.gmra.mrb[0].mxu0 %v748
    %v3674 = vpop.f32.mrb[0].mxu0
    %v3675 = vadd.f32 %v3634, %v3674
    %v3676 = vpop.f32.mrb[0].mxu0
    %v3677 = vadd.f32 %v3636, %v3676
    %v3678 = vpop.f32.mrb[0].mxu0
    %v3679 = vpop.f32.mrb[0].mxu0
    %3680 = vdwg.mxu0
    %3681 = vmatprep.subr.bf16.mxu0 %v2919
    %3682 = vmatpush1.bf16.msra.mxu0 %v2918
    %3683 = vmatprep.subr.bf16.mxu0 %v2929
    %3684 = vmatpush1.bf16.msra.mxu0 %v2928
    %3685 = vmatprep.subr.bf16.mxu0 %v2939
    %3686 = vmatpush1.bf16.msra.mxu0 %v2938
    %3687 = vmatprep.subr.bf16.mxu0 %v2949
    %3688 = vmatpush1.bf16.msra.mxu0 %v2948
    %3689 = vmatprep.subr.bf16.mxu0 %v2959
    %3690 = vmatpush1.bf16.msra.mxu0 %v2958
    %3691 = vmatprep.subr.bf16.mxu0 %v2969
    %3692 = vmatpush1.bf16.msra.mxu0 %v2968
    %3693 = vmatprep.subr.bf16.mxu0 %v2979
    %3694 = vmatpush1.bf16.msra.mxu0 %v2978
    %3695 = vmatprep.subr.bf16.mxu0 %v2989
    %3696 = vmatpush1.bf16.msra.mxu0 %v2988
    %3697 = vmatprep.subr.bf16.mxu0 0
    %3698 = vmatpush1.bf16.msra.mxu0 0
    %3699 = vmatprep.subr.bf16.mxu0 0
    %3700 = vmatpush1.bf16.msra.mxu0 0
    %3701 = vmatprep.subr.bf16.mxu0 0
    %3702 = vmatpush1.bf16.msra.mxu0 0
    %3703 = vmatprep.subr.bf16.mxu0 0
    %3704 = vmatpush1.bf16.msra.mxu0 0
    %3705 = vmatprep.subr.bf16.mxu0 0
    %3706 = vmatpush1.bf16.msra.mxu0 0
    %3707 = vmatprep.subr.bf16.mxu0 0
    %3708 = vmatpush1.bf16.msra.mxu0 0
    %3709 = vmatprep.subr.bf16.mxu0 0
    %3710 = vmatpush1.bf16.msra.mxu0 0
    %3711 = vmatprep.subr.bf16.mxu0 0
    %3712 = vmatpush1.bf16.msra.mxu0 0
    %3713 = vmatprep.mubr.bf16.mxu0 0
    %3714 = vmatmul.mubr.bf16.gmra.mrb[0].mxu0 %v750
    %v3715 = vpop.f32.mrb[0].mxu0
    %v3716 = vadd.f32 %v3675, %v3715
    %v3717 = vpop.f32.mrb[0].mxu0
    %v3718 = vadd.f32 %v3677, %v3717
    %v3719 = vpop.f32.mrb[0].mxu0
    %v3720 = vpop.f32.mrb[0].mxu0
    %3721 = vdwg.mxu0
    %3722 = vmatprep.subr.bf16.mxu0 %v2441
    %3723 = vmatpush1.bf16.msra.mxu0 %v2440
    %3724 = vmatprep.subr.bf16.mxu0 %v2451
    %3725 = vmatpush1.bf16.msra.mxu0 %v2450
    %3726 = vmatprep.subr.bf16.mxu0 %v2461
    %3727 = vmatpush1.bf16.msra.mxu0 %v2460
    %3728 = vmatprep.subr.bf16.mxu0 %v2471
    %3729 = vmatpush1.bf16.msra.mxu0 %v2470
    %3730 = vmatprep.subr.bf16.mxu0 %v2481
    %3731 = vmatpush1.bf16.msra.mxu0 %v2480
    %3732 = vmatprep.subr.bf16.mxu0 %v2491
    %3733 = vmatpush1.bf16.msra.mxu0 %v2490
    %3734 = vmatprep.subr.bf16.mxu0 %v2501
    %3735 = vmatpush1.bf16.msra.mxu0 %v2500
    %3736 = vmatprep.subr.bf16.mxu0 %v2511
    %3737 = vmatpush1.bf16.msra.mxu0 %v2510
    %3738 = vmatprep.subr.bf16.mxu0 %v2521
    %3739 = vmatpush1.bf16.msra.mxu0 %v2520
    %3740 = vmatprep.subr.bf16.mxu0 %v2531
    %3741 = vmatpush1.bf16.msra.mxu0 %v2530
    %3742 = vmatprep.subr.bf16.mxu0 %v2541
    %3743 = vmatpush1.bf16.msra.mxu0 %v2540
    %3744 = vmatprep.subr.bf16.mxu0 %v2551
    %3745 = vmatpush1.bf16.msra.mxu0 %v2550
    %3746 = vmatprep.subr.bf16.mxu0 %v2561
    %3747 = vmatpush1.bf16.msra.mxu0 %v2560
    %3748 = vmatprep.subr.bf16.mxu0 %v2571
    %3749 = vmatpush1.bf16.msra.mxu0 %v2570
    %3750 = vmatprep.subr.bf16.mxu0 %v2581
    %3751 = vmatpush1.bf16.msra.mxu0 %v2580
    %3752 = vmatprep.subr.bf16.mxu0 %v2591
    %3753 = vmatpush1.bf16.msra.mxu0 %v2590
    %3754 = vmatprep.mubr.bf16.mxu0 %v745
    %3755 = vmatmul.mubr.bf16.gmra.mrb[0].mxu0 %v744
    %v3756 = vpop.f32.mrb[0].mxu0
    %v3757 = vadd.f32 %v694, %v3756
    %v3758 = vpop.f32.mrb[0].mxu0
    %v3759 = vadd.f32 %v698, %v3758
    %v3760 = vpop.f32.mrb[0].mxu0
    %v3761 = vpop.f32.mrb[0].mxu0
    %3762 = vdwg.mxu0
    %3763 = vmatprep.subr.bf16.mxu0 %v2601
    %3764 = vmatpush1.bf16.msra.mxu0 %v2600
    %3765 = vmatprep.subr.bf16.mxu0 %v2611
    %3766 = vmatpush1.bf16.msra.mxu0 %v2610
    %3767 = vmatprep.subr.bf16.mxu0 %v2621
    %3768 = vmatpush1.bf16.msra.mxu0 %v2620
    %3769 = vmatprep.subr.bf16.mxu0 %v2631
    %3770 = vmatpush1.bf16.msra.mxu0 %v2630
    %3771 = vmatprep.subr.bf16.mxu0 %v2641
    %3772 = vmatpush1.bf16.msra.mxu0 %v2640
    %3773 = vmatprep.subr.bf16.mxu0 %v2651
    %3774 = vmatpush1.bf16.msra.mxu0 %v2650
    %3775 = vmatprep.subr.bf16.mxu0 %v2661
    %3776 = vmatpush1.bf16.msra.mxu0 %v2660
    %3777 = vmatprep.subr.bf16.mxu0 %v2671
    %3778 = vmatpush1.bf16.msra.mxu0 %v2670
    %3779 = vmatprep.subr.bf16.mxu0 %v2681
    %3780 = vmatpush1.bf16.msra.mxu0 %v2680
    %3781 = vmatprep.subr.bf16.mxu0 %v2691
    %3782 = vmatpush1.bf16.msra.mxu0 %v2690
    %3783 = vmatprep.subr.bf16.mxu0 %v2701
    %3784 = vmatpush1.bf16.msra.mxu0 %v2700
    %3785 = vmatprep.subr.bf16.mxu0 %v2711
    %3786 = vmatpush1.bf16.msra.mxu0 %v2710
    %3787 = vmatprep.subr.bf16.mxu0 %v2721
    %3788 = vmatpush1.bf16.msra.mxu0 %v2720
    %3789 = vmatprep.subr.bf16.mxu0 %v2731
    %3790 = vmatpush1.bf16.msra.mxu0 %v2730
    %3791 = vmatprep.subr.bf16.mxu0 %v2741
    %3792 = vmatpush1.bf16.msra.mxu0 %v2740
    %3793 = vmatprep.subr.bf16.mxu0 %v2751
    %3794 = vmatpush1.bf16.msra.mxu0 %v2750
    %3795 = vmatprep.mubr.bf16.mxu0 %v747
    %3796 = vmatmul.mubr.bf16.gmra.mrb[0].mxu0 %v746
    %v3797 = vpop.f32.mrb[0].mxu0
    %v3798 = vadd.f32 %v3757, %v3797
    %v3799 = vpop.f32.mrb[0].mxu0
    %v3800 = vadd.f32 %v3759, %v3799
    %v3801 = vpop.f32.mrb[0].mxu0
    %v3802 = vpop.f32.mrb[0].mxu0
    %3803 = vdwg.mxu0
    %3804 = vmatprep.subr.bf16.mxu0 %v2761
    %3805 = vmatpush1.bf16.msra.mxu0 %v2760
    %3806 = vmatprep.subr.bf16.mxu0 %v2771
    %3807 = vmatpush1.bf16.msra.mxu0 %v2770
    %3808 = vmatprep.subr.bf16.mxu0 %v2781
    %3809 = vmatpush1.bf16.msra.mxu0 %v2780
    %3810 = vmatprep.subr.bf16.mxu0 %v2791
    %3811 = vmatpush1.bf16.msra.mxu0 %v2790
    %3812 = vmatprep.subr.bf16.mxu0 %v2801
    %3813 = vmatpush1.bf16.msra.mxu0 %v2800
    %3814 = vmatprep.subr.bf16.mxu0 %v2811
    %3815 = vmatpush1.bf16.msra.mxu0 %v2810
    %3816 = vmatprep.subr.bf16.mxu0 %v2821
    %3817 = vmatpush1.bf16.msra.mxu0 %v2820
    %3818 = vmatprep.subr.bf16.mxu0 %v2831
    %3819 = vmatpush1.bf16.msra.mxu0 %v2830
    %3820 = vmatprep.subr.bf16.mxu0 %v2841
    %3821 = vmatpush1.bf16.msra.mxu0 %v2840
    %3822 = vmatprep.subr.bf16.mxu0 %v2851
    %3823 = vmatpush1.bf16.msra.mxu0 %v2850
    %3824 = vmatprep.subr.bf16.mxu0 %v2861
    %3825 = vmatpush1.bf16.msra.mxu0 %v2860
    %3826 = vmatprep.subr.bf16.mxu0 %v2871
    %3827 = vmatpush1.bf16.msra.mxu0 %v2870
    %3828 = vmatprep.subr.bf16.mxu0 %v2881
    %3829 = vmatpush1.bf16.msra.mxu0 %v2880
    %3830 = vmatprep.subr.bf16.mxu0 %v2891
    %3831 = vmatpush1.bf16.msra.mxu0 %v2890
    %3832 = vmatprep.subr.bf16.mxu0 %v2901
    %3833 = vmatpush1.bf16.msra.mxu0 %v2900
    %3834 = vmatprep.subr.bf16.mxu0 %v2911
    %3835 = vmatpush1.bf16.msra.mxu0 %v2910
    %3836 = vmatprep.mubr.bf16.mxu0 %v749
    %3837 = vmatmul.mubr.bf16.gmra.mrb[0].mxu0 %v748
    %v3838 = vpop.f32.mrb[0].mxu0
    %v3839 = vadd.f32 %v3798, %v3838
    %v3840 = vpop.f32.mrb[0].mxu0
    %v3841 = vadd.f32 %v3800, %v3840
    %v3842 = vpop.f32.mrb[0].mxu0
    %v3843 = vpop.f32.mrb[0].mxu0
    %3844 = vdwg.mxu0
    %3845 = vmatprep.subr.bf16.mxu0 %v2921
    %3846 = vmatpush1.bf16.msra.mxu0 %v2920
    %3847 = vmatprep.subr.bf16.mxu0 %v2931
    %3848 = vmatpush1.bf16.msra.mxu0 %v2930
    %3849 = vmatprep.subr.bf16.mxu0 %v2941
    %3850 = vmatpush1.bf16.msra.mxu0 %v2940
    %3851 = vmatprep.subr.bf16.mxu0 %v2951
    %3852 = vmatpush1.bf16.msra.mxu0 %v2950
    %3853 = vmatprep.subr.bf16.mxu0 %v2961
    %3854 = vmatpush1.bf16.msra.mxu0 %v2960
    %3855 = vmatprep.subr.bf16.mxu0 %v2971
    %3856 = vmatpush1.bf16.msra.mxu0 %v2970
    %3857 = vmatprep.subr.bf16.mxu0 %v2981
    %3858 = vmatpush1.bf16.msra.mxu0 %v2980
    %3859 = vmatprep.subr.bf16.mxu0 %v2991
    %3860 = vmatpush1.bf16.msra.mxu0 %v2990
    %3861 = vmatprep.subr.bf16.mxu0 0
    %3862 = vmatpush1.bf16.msra.mxu0 0
    %3863 = vmatprep.subr.bf16.mxu0 0
    %3864 = vmatpush1.bf16.msra.mxu0 0
    %3865 = vmatprep.subr.bf16.mxu0 0
    %3866 = vmatpush1.bf16.msra.mxu0 0
    %3867 = vmatprep.subr.bf16.mxu0 0
    %3868 = vmatpush1.bf16.msra.mxu0 0
    %3869 = vmatprep.subr.bf16.mxu0 0
    %3870 = vmatpush1.bf16.msra.mxu0 0
    %3871 = vmatprep.subr.bf16.mxu0 0
    %3872 = vmatpush1.bf16.msra.mxu0 0
    %3873 = vmatprep.subr.bf16.mxu0 0
    %3874 = vmatpush1.bf16.msra.mxu0 0
    %3875 = vmatprep.subr.bf16.mxu0 0
    %3876 = vmatpush1.bf16.msra.mxu0 0
    %3877 = vmatprep.mubr.bf16.mxu0 0
    %3878 = vmatmul.mubr.bf16.gmra.mrb[0].mxu0 %v750
    %v3879 = vpop.f32.mrb[0].mxu0
    %v3880 = vadd.f32 %v3839, %v3879
    %v3881 = vpop.f32.mrb[0].mxu0
    %v3882 = vadd.f32 %v3841, %v3881
    %v3883 = vpop.f32.mrb[0].mxu0
    %v3884 = vpop.f32.mrb[0].mxu0
    %3885 = vdwg.mxu0
    %3886 = vmatprep.subr.bf16.mxu0 %v2443
    %3887 = vmatpush1.bf16.msra.mxu0 %v2442
    %3888 = vmatprep.subr.bf16.mxu0 %v2453
    %3889 = vmatpush1.bf16.msra.mxu0 %v2452
    %3890 = vmatprep.subr.bf16.mxu0 %v2463
    %3891 = vmatpush1.bf16.msra.mxu0 %v2462
    %3892 = vmatprep.subr.bf16.mxu0 %v2473
    %3893 = vmatpush1.bf16.msra.mxu0 %v2472
    %3894 = vmatprep.subr.bf16.mxu0 %v2483
    %3895 = vmatpush1.bf16.msra.mxu0 %v2482
    %3896 = vmatprep.subr.bf16.mxu0 %v2493
    %3897 = vmatpush1.bf16.msra.mxu0 %v2492
    %3898 = vmatprep.subr.bf16.mxu0 %v2503
    %3899 = vmatpush1.bf16.msra.mxu0 %v2502
    %3900 = vmatprep.subr.bf16.mxu0 %v2513
    %3901 = vmatpush1.bf16.msra.mxu0 %v2512
    %3902 = vmatprep.subr.bf16.mxu0 %v2523
    %3903 = vmatpush1.bf16.msra.mxu0 %v2522
    %3904 = vmatprep.subr.bf16.mxu0 %v2533
    %3905 = vmatpush1.bf16.msra.mxu0 %v2532
    %3906 = vmatprep.subr.bf16.mxu0 %v2543
    %3907 = vmatpush1.bf16.msra.mxu0 %v2542
    %3908 = vmatprep.subr.bf16.mxu0 %v2553
    %3909 = vmatpush1.bf16.msra.mxu0 %v2552
    %3910 = vmatprep.subr.bf16.mxu0 %v2563
    %3911 = vmatpush1.bf16.msra.mxu0 %v2562
    %3912 = vmatprep.subr.bf16.mxu0 %v2573
    %3913 = vmatpush1.bf16.msra.mxu0 %v2572
    %3914 = vmatprep.subr.bf16.mxu0 %v2583
    %3915 = vmatpush1.bf16.msra.mxu0 %v2582
    %3916 = vmatprep.subr.bf16.mxu0 %v2593
    %3917 = vmatpush1.bf16.msra.mxu0 %v2592
    %3918 = vmatprep.mubr.bf16.mxu0 %v745
    %3919 = vmatmul.mubr.bf16.gmra.mrb[0].mxu0 %v744
    %v3920 = vpop.f32.mrb[0].mxu0
    %v3921 = vadd.f32 %v702, %v3920
    %v3922 = vpop.f32.mrb[0].mxu0
    %v3923 = vadd.f32 %v706, %v3922
    %v3924 = vpop.f32.mrb[0].mxu0
    %v3925 = vpop.f32.mrb[0].mxu0
    %3926 = vdwg.mxu0
    %3927 = vmatprep.subr.bf16.mxu0 %v2603
    %3928 = vmatpush1.bf16.msra.mxu0 %v2602
    %3929 = vmatprep.subr.bf16.mxu0 %v2613
    %3930 = vmatpush1.bf16.msra.mxu0 %v2612
    %3931 = vmatprep.subr.bf16.mxu0 %v2623
    %3932 = vmatpush1.bf16.msra.mxu0 %v2622
    %3933 = vmatprep.subr.bf16.mxu0 %v2633
    %3934 = vmatpush1.bf16.msra.mxu0 %v2632
    %3935 = vmatprep.subr.bf16.mxu0 %v2643
    %3936 = vmatpush1.bf16.msra.mxu0 %v2642
    %3937 = vmatprep.subr.bf16.mxu0 %v2653
    %3938 = vmatpush1.bf16.msra.mxu0 %v2652
    %3939 = vmatprep.subr.bf16.mxu0 %v2663
    %3940 = vmatpush1.bf16.msra.mxu0 %v2662
    %3941 = vmatprep.subr.bf16.mxu0 %v2673
    %3942 = vmatpush1.bf16.msra.mxu0 %v2672
    %3943 = vmatprep.subr.bf16.mxu0 %v2683
    %3944 = vmatpush1.bf16.msra.mxu0 %v2682
    %3945 = vmatprep.subr.bf16.mxu0 %v2693
    %3946 = vmatpush1.bf16.msra.mxu0 %v2692
    %3947 = vmatprep.subr.bf16.mxu0 %v2703
    %3948 = vmatpush1.bf16.msra.mxu0 %v2702
    %3949 = vmatprep.subr.bf16.mxu0 %v2713
    %3950 = vmatpush1.bf16.msra.mxu0 %v2712
    %3951 = vmatprep.subr.bf16.mxu0 %v2723
    %3952 = vmatpush1.bf16.msra.mxu0 %v2722
    %3953 = vmatprep.subr.bf16.mxu0 %v2733
    %3954 = vmatpush1.bf16.msra.mxu0 %v2732
    %3955 = vmatprep.subr.bf16.mxu0 %v2743
    %3956 = vmatpush1.bf16.msra.mxu0 %v2742
    %3957 = vmatprep.subr.bf16.mxu0 %v2753
    %3958 = vmatpush1.bf16.msra.mxu0 %v2752
    %3959 = vmatprep.mubr.bf16.mxu0 %v747
    %3960 = vmatmul.mubr.bf16.gmra.mrb[0].mxu0 %v746
    %v3961 = vpop.f32.mrb[0].mxu0
    %v3962 = vadd.f32 %v3921, %v3961
    %v3963 = vpop.f32.mrb[0].mxu0
    %v3964 = vadd.f32 %v3923, %v3963
    %v3965 = vpop.f32.mrb[0].mxu0
    %v3966 = vpop.f32.mrb[0].mxu0
    %3967 = vdwg.mxu0
    %3968 = vmatprep.subr.bf16.mxu0 %v2763
    %3969 = vmatpush1.bf16.msra.mxu0 %v2762
    %3970 = vmatprep.subr.bf16.mxu0 %v2773
    %3971 = vmatpush1.bf16.msra.mxu0 %v2772
    %3972 = vmatprep.subr.bf16.mxu0 %v2783
    %3973 = vmatpush1.bf16.msra.mxu0 %v2782
    %3974 = vmatprep.subr.bf16.mxu0 %v2793
    %3975 = vmatpush1.bf16.msra.mxu0 %v2792
    %3976 = vmatprep.subr.bf16.mxu0 %v2803
    %3977 = vmatpush1.bf16.msra.mxu0 %v2802
    %3978 = vmatprep.subr.bf16.mxu0 %v2813
    %3979 = vmatpush1.bf16.msra.mxu0 %v2812
    %3980 = vmatprep.subr.bf16.mxu0 %v2823
    %3981 = vmatpush1.bf16.msra.mxu0 %v2822
    %3982 = vmatprep.subr.bf16.mxu0 %v2833
    %3983 = vmatpush1.bf16.msra.mxu0 %v2832
    %3984 = vmatprep.subr.bf16.mxu0 %v2843
    %3985 = vmatpush1.bf16.msra.mxu0 %v2842
    %3986 = vmatprep.subr.bf16.mxu0 %v2853
    %3987 = vmatpush1.bf16.msra.mxu0 %v2852
    %3988 = vmatprep.subr.bf16.mxu0 %v2863
    %3989 = vmatpush1.bf16.msra.mxu0 %v2862
    %3990 = vmatprep.subr.bf16.mxu0 %v2873
    %3991 = vmatpush1.bf16.msra.mxu0 %v2872
    %3992 = vmatprep.subr.bf16.mxu0 %v2883
    %3993 = vmatpush1.bf16.msra.mxu0 %v2882
    %3994 = vmatprep.subr.bf16.mxu0 %v2893
    %3995 = vmatpush1.bf16.msra.mxu0 %v2892
    %3996 = vmatprep.subr.bf16.mxu0 %v2903
    %3997 = vmatpush1.bf16.msra.mxu0 %v2902
    %3998 = vmatprep.subr.bf16.mxu0 %v2913
    %3999 = vmatpush1.bf16.msra.mxu0 %v2912
    %4000 = vmatprep.mubr.bf16.mxu0 %v749
    %4001 = vmatmul.mubr.bf16.gmra.mrb[0].mxu0 %v748
    %v4002 = vpop.f32.mrb[0].mxu0
    %v4003 = vadd.f32 %v3962, %v4002
    %v4004 = vpop.f32.mrb[0].mxu0
    %v4005 = vadd.f32 %v3964, %v4004
    %v4006 = vpop.f32.mrb[0].mxu0
    %v4007 = vpop.f32.mrb[0].mxu0
    %4008 = vdwg.mxu0
    %4009 = vmatprep.subr.bf16.mxu0 %v2923
    %4010 = vmatpush1.bf16.msra.mxu0 %v2922
    %4011 = vmatprep.subr.bf16.mxu0 %v2933
    %4012 = vmatpush1.bf16.msra.mxu0 %v2932
    %4013 = vmatprep.subr.bf16.mxu0 %v2943
    %4014 = vmatpush1.bf16.msra.mxu0 %v2942
    %4015 = vmatprep.subr.bf16.mxu0 %v2953
    %4016 = vmatpush1.bf16.msra.mxu0 %v2952
    %4017 = vmatprep.subr.bf16.mxu0 %v2963
    %4018 = vmatpush1.bf16.msra.mxu0 %v2962
    %4019 = vmatprep.subr.bf16.mxu0 %v2973
    %4020 = vmatpush1.bf16.msra.mxu0 %v2972
    %4021 = vmatprep.subr.bf16.mxu0 %v2983
    %4022 = vmatpush1.bf16.msra.mxu0 %v2982
    %4023 = vmatprep.subr.bf16.mxu0 %v2993
    %4024 = vmatpush1.bf16.msra.mxu0 %v2992
    %4025 = vmatprep.subr.bf16.mxu0 0
    %4026 = vmatpush1.bf16.msra.mxu0 0
    %4027 = vmatprep.subr.bf16.mxu0 0
    %4028 = vmatpush1.bf16.msra.mxu0 0
    %4029 = vmatprep.subr.bf16.mxu0 0
    %4030 = vmatpush1.bf16.msra.mxu0 0
    %4031 = vmatprep.subr.bf16.mxu0 0
    %4032 = vmatpush1.bf16.msra.mxu0 0
    %4033 = vmatprep.subr.bf16.mxu0 0
    %4034 = vmatpush1.bf16.msra.mxu0 0
    %4035 = vmatprep.subr.bf16.mxu0 0
    %4036 = vmatpush1.bf16.msra.mxu0 0
    %4037 = vmatprep.subr.bf16.mxu0 0
    %4038 = vmatpush1.bf16.msra.mxu0 0
    %4039 = vmatprep.subr.bf16.mxu0 0
    %4040 = vmatpush1.bf16.msra.mxu0 0
    %4041 = vmatprep.mubr.bf16.mxu0 0
    %4042 = vmatmul.mubr.bf16.gmra.mrb[0].mxu0 %v750
    %v4043 = vpop.f32.mrb[0].mxu0
    %v4044 = vadd.f32 %v4003, %v4043
    %v4045 = vpop.f32.mrb[0].mxu0
    %v4046 = vadd.f32 %v4005, %v4045
    %v4047 = vpop.f32.mrb[0].mxu0
    %v4048 = vpop.f32.mrb[0].mxu0
    %4049 = vdwg.mxu0
    %4050 = vmatprep.subr.bf16.mxu0 %v2445
    %4051 = vmatpush1.bf16.msra.mxu0 %v2444
    %4052 = vmatprep.subr.bf16.mxu0 %v2455
    %4053 = vmatpush1.bf16.msra.mxu0 %v2454
    %4054 = vmatprep.subr.bf16.mxu0 %v2465
    %4055 = vmatpush1.bf16.msra.mxu0 %v2464
    %4056 = vmatprep.subr.bf16.mxu0 %v2475
    %4057 = vmatpush1.bf16.msra.mxu0 %v2474
    %4058 = vmatprep.subr.bf16.mxu0 %v2485
    %4059 = vmatpush1.bf16.msra.mxu0 %v2484
    %4060 = vmatprep.subr.bf16.mxu0 %v2495
    %4061 = vmatpush1.bf16.msra.mxu0 %v2494
    %4062 = vmatprep.subr.bf16.mxu0 %v2505
    %4063 = vmatpush1.bf16.msra.mxu0 %v2504
    %4064 = vmatprep.subr.bf16.mxu0 %v2515
    %4065 = vmatpush1.bf16.msra.mxu0 %v2514
    %4066 = vmatprep.subr.bf16.mxu0 %v2525
    %4067 = vmatpush1.bf16.msra.mxu0 %v2524
    %4068 = vmatprep.subr.bf16.mxu0 %v2535
    %4069 = vmatpush1.bf16.msra.mxu0 %v2534
    %4070 = vmatprep.subr.bf16.mxu0 %v2545
    %4071 = vmatpush1.bf16.msra.mxu0 %v2544
    %4072 = vmatprep.subr.bf16.mxu0 %v2555
    %4073 = vmatpush1.bf16.msra.mxu0 %v2554
    %4074 = vmatprep.subr.bf16.mxu0 %v2565
    %4075 = vmatpush1.bf16.msra.mxu0 %v2564
    %4076 = vmatprep.subr.bf16.mxu0 %v2575
    %4077 = vmatpush1.bf16.msra.mxu0 %v2574
    %4078 = vmatprep.subr.bf16.mxu0 %v2585
    %4079 = vmatpush1.bf16.msra.mxu0 %v2584
    %4080 = vmatprep.subr.bf16.mxu0 %v2595
    %4081 = vmatpush1.bf16.msra.mxu0 %v2594
    %4082 = vmatprep.mubr.bf16.mxu0 %v745
    %4083 = vmatmul.mubr.bf16.gmra.mrb[0].mxu0 %v744
    %v4084 = vpop.f32.mrb[0].mxu0
    %v4085 = vadd.f32 %v710, %v4084
    %v4086 = vpop.f32.mrb[0].mxu0
    %v4087 = vadd.f32 %v714, %v4086
    %v4088 = vpop.f32.mrb[0].mxu0
    %v4089 = vpop.f32.mrb[0].mxu0
    %4090 = vdwg.mxu0
    %4091 = vmatprep.subr.bf16.mxu0 %v2605
    %4092 = vmatpush1.bf16.msra.mxu0 %v2604
    %4093 = vmatprep.subr.bf16.mxu0 %v2615
    %4094 = vmatpush1.bf16.msra.mxu0 %v2614
    %4095 = vmatprep.subr.bf16.mxu0 %v2625
    %4096 = vmatpush1.bf16.msra.mxu0 %v2624
    %4097 = vmatprep.subr.bf16.mxu0 %v2635
    %4098 = vmatpush1.bf16.msra.mxu0 %v2634
    %4099 = vmatprep.subr.bf16.mxu0 %v2645
    %4100 = vmatpush1.bf16.msra.mxu0 %v2644
    %4101 = vmatprep.subr.bf16.mxu0 %v2655
    %4102 = vmatpush1.bf16.msra.mxu0 %v2654
    %4103 = vmatprep.subr.bf16.mxu0 %v2665
    %4104 = vmatpush1.bf16.msra.mxu0 %v2664
    %4105 = vmatprep.subr.bf16.mxu0 %v2675
    %4106 = vmatpush1.bf16.msra.mxu0 %v2674
    %4107 = vmatprep.subr.bf16.mxu0 %v2685
    %4108 = vmatpush1.bf16.msra.mxu0 %v2684
    %4109 = vmatprep.subr.bf16.mxu0 %v2695
    %4110 = vmatpush1.bf16.msra.mxu0 %v2694
    %4111 = vmatprep.subr.bf16.mxu0 %v2705
    %4112 = vmatpush1.bf16.msra.mxu0 %v2704
    %4113 = vmatprep.subr.bf16.mxu0 %v2715
    %4114 = vmatpush1.bf16.msra.mxu0 %v2714
    %4115 = vmatprep.subr.bf16.mxu0 %v2725
    %4116 = vmatpush1.bf16.msra.mxu0 %v2724
    %4117 = vmatprep.subr.bf16.mxu0 %v2735
    %4118 = vmatpush1.bf16.msra.mxu0 %v2734
    %4119 = vmatprep.subr.bf16.mxu0 %v2745
    %4120 = vmatpush1.bf16.msra.mxu0 %v2744
    %4121 = vmatprep.subr.bf16.mxu0 %v2755
    %4122 = vmatpush1.bf16.msra.mxu0 %v2754
    %4123 = vmatprep.mubr.bf16.mxu0 %v747
    %4124 = vmatmul.mubr.bf16.gmra.mrb[0].mxu0 %v746
    %v4125 = vpop.f32.mrb[0].mxu0
    %v4126 = vadd.f32 %v4085, %v4125
    %v4127 = vpop.f32.mrb[0].mxu0
    %v4128 = vadd.f32 %v4087, %v4127
    %v4129 = vpop.f32.mrb[0].mxu0
    %v4130 = vpop.f32.mrb[0].mxu0
    %4131 = vdwg.mxu0
    %4132 = vmatprep.subr.bf16.mxu0 %v2765
    %4133 = vmatpush1.bf16.msra.mxu0 %v2764
    %4134 = vmatprep.subr.bf16.mxu0 %v2775
    %4135 = vmatpush1.bf16.msra.mxu0 %v2774
    %4136 = vmatprep.subr.bf16.mxu0 %v2785
    %4137 = vmatpush1.bf16.msra.mxu0 %v2784
    %4138 = vmatprep.subr.bf16.mxu0 %v2795
    %4139 = vmatpush1.bf16.msra.mxu0 %v2794
    %4140 = vmatprep.subr.bf16.mxu0 %v2805
    %4141 = vmatpush1.bf16.msra.mxu0 %v2804
    %4142 = vmatprep.subr.bf16.mxu0 %v2815
    %4143 = vmatpush1.bf16.msra.mxu0 %v2814
    %4144 = vmatprep.subr.bf16.mxu0 %v2825
    %4145 = vmatpush1.bf16.msra.mxu0 %v2824
    %4146 = vmatprep.subr.bf16.mxu0 %v2835
    %4147 = vmatpush1.bf16.msra.mxu0 %v2834
    %4148 = vmatprep.subr.bf16.mxu0 %v2845
    %4149 = vmatpush1.bf16.msra.mxu0 %v2844
    %4150 = vmatprep.subr.bf16.mxu0 %v2855
    %4151 = vmatpush1.bf16.msra.mxu0 %v2854
    %4152 = vmatprep.subr.bf16.mxu0 %v2865
    %4153 = vmatpush1.bf16.msra.mxu0 %v2864
    %4154 = vmatprep.subr.bf16.mxu0 %v2875
    %4155 = vmatpush1.bf16.msra.mxu0 %v2874
    %4156 = vmatprep.subr.bf16.mxu0 %v2885
    %4157 = vmatpush1.bf16.msra.mxu0 %v2884
    %4158 = vmatprep.subr.bf16.mxu0 %v2895
    %4159 = vmatpush1.bf16.msra.mxu0 %v2894
    %4160 = vmatprep.subr.bf16.mxu0 %v2905
    %4161 = vmatpush1.bf16.msra.mxu0 %v2904
    %4162 = vmatprep.subr.bf16.mxu0 %v2915
    %4163 = vmatpush1.bf16.msra.mxu0 %v2914
    %4164 = vmatprep.mubr.bf16.mxu0 %v749
    %4165 = vmatmul.mubr.bf16.gmra.mrb[0].mxu0 %v748
    %v4166 = vpop.f32.mrb[0].mxu0
    %v4167 = vadd.f32 %v4126, %v4166
    %v4168 = vpop.f32.mrb[0].mxu0
    %v4169 = vadd.f32 %v4128, %v4168
    %v4170 = vpop.f32.mrb[0].mxu0
    %v4171 = vpop.f32.mrb[0].mxu0
    %4172 = vdwg.mxu0
    %4173 = vmatprep.subr.bf16.mxu0 %v2925
    %4174 = vmatpush1.bf16.msra.mxu0 %v2924
    %4175 = vmatprep.subr.bf16.mxu0 %v2935
    %4176 = vmatpush1.bf16.msra.mxu0 %v2934
    %4177 = vmatprep.subr.bf16.mxu0 %v2945
    %4178 = vmatpush1.bf16.msra.mxu0 %v2944
    %4179 = vmatprep.subr.bf16.mxu0 %v2955
    %4180 = vmatpush1.bf16.msra.mxu0 %v2954
    %4181 = vmatprep.subr.bf16.mxu0 %v2965
    %4182 = vmatpush1.bf16.msra.mxu0 %v2964
    %4183 = vmatprep.subr.bf16.mxu0 %v2975
    %4184 = vmatpush1.bf16.msra.mxu0 %v2974
    %4185 = vmatprep.subr.bf16.mxu0 %v2985
    %4186 = vmatpush1.bf16.msra.mxu0 %v2984
    %4187 = vmatprep.subr.bf16.mxu0 %v2995
    %4188 = vmatpush1.bf16.msra.mxu0 %v2994
    %4189 = vmatprep.subr.bf16.mxu0 0
    %4190 = vmatpush1.bf16.msra.mxu0 0
    %4191 = vmatprep.subr.bf16.mxu0 0
    %4192 = vmatpush1.bf16.msra.mxu0 0
    %4193 = vmatprep.subr.bf16.mxu0 0
    %4194 = vmatpush1.bf16.msra.mxu0 0
    %4195 = vmatprep.subr.bf16.mxu0 0
    %4196 = vmatpush1.bf16.msra.mxu0 0
    %4197 = vmatprep.subr.bf16.mxu0 0
    %4198 = vmatpush1.bf16.msra.mxu0 0
    %4199 = vmatprep.subr.bf16.mxu0 0
    %4200 = vmatpush1.bf16.msra.mxu0 0
    %4201 = vmatprep.subr.bf16.mxu0 0
    %4202 = vmatpush1.bf16.msra.mxu0 0
    %4203 = vmatprep.subr.bf16.mxu0 0
    %4204 = vmatpush1.bf16.msra.mxu0 0
    %4205 = vmatprep.mubr.bf16.mxu0 0
    %4206 = vmatmul.mubr.bf16.gmra.mrb[0].mxu0 %v750
    %v4207 = vpop.f32.mrb[0].mxu0
    %v4208 = vadd.f32 %v4167, %v4207
    %v4209 = vpop.f32.mrb[0].mxu0
    %v4210 = vadd.f32 %v4169, %v4209
    %v4211 = vpop.f32.mrb[0].mxu0
    %v4212 = vpop.f32.mrb[0].mxu0
    %4213 = vdwg.mxu0
    %4214 = vmatprep.subr.bf16.mxu0 %v2447
    %4215 = vmatpush1.bf16.msra.mxu0 %v2446
    %4216 = vmatprep.subr.bf16.mxu0 %v2457
    %4217 = vmatpush1.bf16.msra.mxu0 %v2456
    %4218 = vmatprep.subr.bf16.mxu0 %v2467
    %4219 = vmatpush1.bf16.msra.mxu0 %v2466
    %4220 = vmatprep.subr.bf16.mxu0 %v2477
    %4221 = vmatpush1.bf16.msra.mxu0 %v2476
    %4222 = vmatprep.subr.bf16.mxu0 %v2487
    %4223 = vmatpush1.bf16.msra.mxu0 %v2486
    %4224 = vmatprep.subr.bf16.mxu0 %v2497
    %4225 = vmatpush1.bf16.msra.mxu0 %v2496
    %4226 = vmatprep.subr.bf16.mxu0 %v2507
    %4227 = vmatpush1.bf16.msra.mxu0 %v2506
    %4228 = vmatprep.subr.bf16.mxu0 %v2517
    %4229 = vmatpush1.bf16.msra.mxu0 %v2516
    %4230 = vmatprep.subr.bf16.mxu0 %v2527
    %4231 = vmatpush1.bf16.msra.mxu0 %v2526
    %4232 = vmatprep.subr.bf16.mxu0 %v2537
    %4233 = vmatpush1.bf16.msra.mxu0 %v2536
    %4234 = vmatprep.subr.bf16.mxu0 %v2547
    %4235 = vmatpush1.bf16.msra.mxu0 %v2546
    %4236 = vmatprep.subr.bf16.mxu0 %v2557
    %4237 = vmatpush1.bf16.msra.mxu0 %v2556
    %4238 = vmatprep.subr.bf16.mxu0 %v2567
    %4239 = vmatpush1.bf16.msra.mxu0 %v2566
    %4240 = vmatprep.subr.bf16.mxu0 %v2577
    %4241 = vmatpush1.bf16.msra.mxu0 %v2576
    %4242 = vmatprep.subr.bf16.mxu0 %v2587
    %4243 = vmatpush1.bf16.msra.mxu0 %v2586
    %4244 = vmatprep.subr.bf16.mxu0 %v2597
    %4245 = vmatpush1.bf16.msra.mxu0 %v2596
    %4246 = vmatprep.mubr.bf16.mxu0 %v745
    %4247 = vmatmul.mubr.bf16.gmra.mrb[0].mxu0 %v744
    %v4248 = vpop.f32.mrb[0].mxu0
    %v4249 = vadd.f32 %v718, %v4248
    %v4250 = vpop.f32.mrb[0].mxu0
    %v4251 = vadd.f32 %v722, %v4250
    %v4252 = vpop.f32.mrb[0].mxu0
    %v4253 = vpop.f32.mrb[0].mxu0
    %4254 = vdwg.mxu0
    %4255 = vmatprep.subr.bf16.mxu0 %v2607
    %4256 = vmatpush1.bf16.msra.mxu0 %v2606
    %4257 = vmatprep.subr.bf16.mxu0 %v2617
    %4258 = vmatpush1.bf16.msra.mxu0 %v2616
    %4259 = vmatprep.subr.bf16.mxu0 %v2627
    %4260 = vmatpush1.bf16.msra.mxu0 %v2626
    %4261 = vmatprep.subr.bf16.mxu0 %v2637
    %4262 = vmatpush1.bf16.msra.mxu0 %v2636
    %4263 = vmatprep.subr.bf16.mxu0 %v2647
    %4264 = vmatpush1.bf16.msra.mxu0 %v2646
    %4265 = vmatprep.subr.bf16.mxu0 %v2657
    %4266 = vmatpush1.bf16.msra.mxu0 %v2656
    %4267 = vmatprep.subr.bf16.mxu0 %v2667
    %4268 = vmatpush1.bf16.msra.mxu0 %v2666
    %4269 = vmatprep.subr.bf16.mxu0 %v2677
    %4270 = vmatpush1.bf16.msra.mxu0 %v2676
    %4271 = vmatprep.subr.bf16.mxu0 %v2687
    %4272 = vmatpush1.bf16.msra.mxu0 %v2686
    %4273 = vmatprep.subr.bf16.mxu0 %v2697
    %4274 = vmatpush1.bf16.msra.mxu0 %v2696
    %4275 = vmatprep.subr.bf16.mxu0 %v2707
    %4276 = vmatpush1.bf16.msra.mxu0 %v2706
    %4277 = vmatprep.subr.bf16.mxu0 %v2717
    %4278 = vmatpush1.bf16.msra.mxu0 %v2716
    %4279 = vmatprep.subr.bf16.mxu0 %v2727
    %4280 = vmatpush1.bf16.msra.mxu0 %v2726
    %4281 = vmatprep.subr.bf16.mxu0 %v2737
    %4282 = vmatpush1.bf16.msra.mxu0 %v2736
    %4283 = vmatprep.subr.bf16.mxu0 %v2747
    %4284 = vmatpush1.bf16.msra.mxu0 %v2746
    %4285 = vmatprep.subr.bf16.mxu0 %v2757
    %4286 = vmatpush1.bf16.msra.mxu0 %v2756
    %4287 = vmatprep.mubr.bf16.mxu0 %v747
    %4288 = vmatmul.mubr.bf16.gmra.mrb[0].mxu0 %v746
    %v4289 = vpop.f32.mrb[0].mxu0
    %v4290 = vadd.f32 %v4249, %v4289
    %v4291 = vpop.f32.mrb[0].mxu0
    %v4292 = vadd.f32 %v4251, %v4291
    %v4293 = vpop.f32.mrb[0].mxu0
    %v4294 = vpop.f32.mrb[0].mxu0
    %4295 = vdwg.mxu0
    %4296 = vmatprep.subr.bf16.mxu0 %v2767
    %4297 = vmatpush1.bf16.msra.mxu0 %v2766
    %4298 = vmatprep.subr.bf16.mxu0 %v2777
    %4299 = vmatpush1.bf16.msra.mxu0 %v2776
    %4300 = vmatprep.subr.bf16.mxu0 %v2787
    %4301 = vmatpush1.bf16.msra.mxu0 %v2786
    %4302 = vmatprep.subr.bf16.mxu0 %v2797
    %4303 = vmatpush1.bf16.msra.mxu0 %v2796
    %4304 = vmatprep.subr.bf16.mxu0 %v2807
    %4305 = vmatpush1.bf16.msra.mxu0 %v2806
    %4306 = vmatprep.subr.bf16.mxu0 %v2817
    %4307 = vmatpush1.bf16.msra.mxu0 %v2816
    %4308 = vmatprep.subr.bf16.mxu0 %v2827
    %4309 = vmatpush1.bf16.msra.mxu0 %v2826
    %4310 = vmatprep.subr.bf16.mxu0 %v2837
    %4311 = vmatpush1.bf16.msra.mxu0 %v2836
    %4312 = vmatprep.subr.bf16.mxu0 %v2847
    %4313 = vmatpush1.bf16.msra.mxu0 %v2846
    %4314 = vmatprep.subr.bf16.mxu0 %v2857
    %4315 = vmatpush1.bf16.msra.mxu0 %v2856
    %4316 = vmatprep.subr.bf16.mxu0 %v2867
    %4317 = vmatpush1.bf16.msra.mxu0 %v2866
    %4318 = vmatprep.subr.bf16.mxu0 %v2877
    %4319 = vmatpush1.bf16.msra.mxu0 %v2876
    %4320 = vmatprep.subr.bf16.mxu0 %v2887
    %4321 = vmatpush1.bf16.msra.mxu0 %v2886
    %4322 = vmatprep.subr.bf16.mxu0 %v2897
    %4323 = vmatpush1.bf16.msra.mxu0 %v2896
    %4324 = vmatprep.subr.bf16.mxu0 %v2907
    %4325 = vmatpush1.bf16.msra.mxu0 %v2906
    %4326 = vmatprep.subr.bf16.mxu0 %v2917
    %4327 = vmatpush1.bf16.msra.mxu0 %v2916
    %4328 = vmatprep.mubr.bf16.mxu0 %v749
    %4329 = vmatmul.mubr.bf16.gmra.mrb[0].mxu0 %v748
    %v4330 = vpop.f32.mrb[0].mxu0
    %v4331 = vadd.f32 %v4290, %v4330
    %v4332 = vpop.f32.mrb[0].mxu0
    %v4333 = vadd.f32 %v4292, %v4332
    %v4334 = vpop.f32.mrb[0].mxu0
    %v4335 = vpop.f32.mrb[0].mxu0
    %4336 = vdwg.mxu0
    %4337 = vmatprep.subr.bf16.mxu0 %v2927
    %4338 = vmatpush1.bf16.msra.mxu0 %v2926
    %4339 = vmatprep.subr.bf16.mxu0 %v2937
    %4340 = vmatpush1.bf16.msra.mxu0 %v2936
    %4341 = vmatprep.subr.bf16.mxu0 %v2947
    %4342 = vmatpush1.bf16.msra.mxu0 %v2946
    %4343 = vmatprep.subr.bf16.mxu0 %v2957
    %4344 = vmatpush1.bf16.msra.mxu0 %v2956
    %4345 = vmatprep.subr.bf16.mxu0 %v2967
    %4346 = vmatpush1.bf16.msra.mxu0 %v2966
    %4347 = vmatprep.subr.bf16.mxu0 %v2977
    %4348 = vmatpush1.bf16.msra.mxu0 %v2976
    %4349 = vmatprep.subr.bf16.mxu0 %v2987
    %4350 = vmatpush1.bf16.msra.mxu0 %v2986
    %4351 = vmatprep.subr.bf16.mxu0 %v2997
    %4352 = vmatpush1.bf16.msra.mxu0 %v2996
    %4353 = vmatprep.subr.bf16.mxu0 0
    %4354 = vmatpush1.bf16.msra.mxu0 0
    %4355 = vmatprep.subr.bf16.mxu0 0
    %4356 = vmatpush1.bf16.msra.mxu0 0
    %4357 = vmatprep.subr.bf16.mxu0 0
    %4358 = vmatpush1.bf16.msra.mxu0 0
    %4359 = vmatprep.subr.bf16.mxu0 0
    %4360 = vmatpush1.bf16.msra.mxu0 0
    %4361 = vmatprep.subr.bf16.mxu0 0
    %4362 = vmatpush1.bf16.msra.mxu0 0
    %4363 = vmatprep.subr.bf16.mxu0 0
    %4364 = vmatpush1.bf16.msra.mxu0 0
    %4365 = vmatprep.subr.bf16.mxu0 0
    %4366 = vmatpush1.bf16.msra.mxu0 0
    %4367 = vmatprep.subr.bf16.mxu0 0
    %4368 = vmatpush1.bf16.msra.mxu0 0
    %4369 = vmatprep.mubr.bf16.mxu0 0
    %4370 = vmatmul.mubr.bf16.gmra.mrb[0].mxu0 %v750
    %v4371 = vpop.f32.mrb[0].mxu0
    %v4372 = vadd.f32 %v4331, %v4371
    %v4373 = vpop.f32.mrb[0].mxu0
    %v4374 = vadd.f32 %v4333, %v4373
    %v4375 = vpop.f32.mrb[0].mxu0
    %v4376 = vpop.f32.mrb[0].mxu0
    %4377 = vdwg.mxu0
    %v4378 = vmax.f32 %v3716, 0.0
    %v4379 = vmax.f32 %v3718, 0.0
    %v4380 = vmax.f32 %v3880, 0.0
    %v4381 = vmax.f32 %v3882, 0.0
    %v4382 = vmax.f32 %v4044, 0.0
    %v4383 = vmax.f32 %v4046, 0.0
    %v4384 = vmax.f32 %v4208, 0.0
    %v4385 = vmax.f32 %v4210, 0.0
    %v4386 = vmax.f32 %v4372, 0.0
    %v4387 = vmax.f32 %v4374, 0.0
    %v4388 = vpack.c.bf16 %v4378, %v4378
    %v4389 = vpack.c.bf16 %v4379, %v4379
    %v4390 = vpack.c.bf16 %v4380, %v4380
    %v4391 = vpack.c.bf16 %v4381, %v4381
    %v4392 = vpack.c.bf16 %v4382, %v4382
    %v4393 = vpack.c.bf16 %v4383, %v4383
    %v4394 = vpack.c.bf16 %v4384, %v4384
    %v4395 = vpack.c.bf16 %v4385, %v4385
    %v4396 = vpack.c.bf16 %v4386, %v4386
    %v4397 = vpack.c.bf16 %v4387, %v4387
    %v4398 = vld [vmem:[#allocation8] sm:$0xff]
    %v4399 = vld [vmem:[#allocation8 + $0x8] sm:$0xff]
    %v4400 = vld [vmem:[#allocation8 + $0x10] sm:$0xff]
    %v4401 = vld [vmem:[#allocation8 + $0x18] sm:$0xff]
    %v4402 = vld [vmem:[#allocation8 + $0x20] sm:$0xff]
    %v4403 = vld [vmem:[#allocation8 + $0x28] sm:$0xff]
    %v4404 = vld [vmem:[#allocation8 + $0x30] sm:$0xff]
    %v4405 = vld [vmem:[#allocation8 + $0x38] sm:$0xff]
    %v4406 = vld [vmem:[#allocation8 + $0x40] sm:$0xff]
    %v4407 = vld [vmem:[#allocation8 + $0x48] sm:$0xff]
    %v4408 = vld [vmem:[#allocation8 + $0x50] sm:$0xff]
    %v4409 = vld [vmem:[#allocation8 + $0x58] sm:$0xff]
    %v4410 = vld [vmem:[#allocation8 + $0x60] sm:$0xff]
    %v4411 = vld [vmem:[#allocation8 + $0x68] sm:$0xff]
    %v4412 = vld [vmem:[#allocation8 + $0x70] sm:$0xff]
    %v4413 = vld [vmem:[#allocation8 + $0x78] sm:$0xff]
    %v4414 = vld [vmem:[#allocation8 + $0x80] sm:$0xff]
    %v4415 = vld [vmem:[#allocation8 + $0x88] sm:$0xff]
    %v4416 = vld [vmem:[#allocation8 + $0x90] sm:$0xff]
    %v4417 = vld [vmem:[#allocation8 + $0x98] sm:$0xff]
    %v4418 = vld [vmem:[#allocation8 + $0xa0] sm:$0xff]
    %v4419 = vld [vmem:[#allocation8 + $0xa8] sm:$0xff]
    %v4420 = vld [vmem:[#allocation8 + $0xb0] sm:$0xff]
    %v4421 = vld [vmem:[#allocation8 + $0xb8] sm:$0xff]
    %v4422 = vld [vmem:[#allocation8 + $0xc0] sm:$0xff]
    %v4423 = vld [vmem:[#allocation8 + $0xc8] sm:$0xff]
    %v4424 = vld [vmem:[#allocation8 + $0xd0] sm:$0xff]
    %v4425 = vld [vmem:[#allocation8 + $0xd8] sm:$0xff]
    %v4426 = vld [vmem:[#allocation8 + $0xe0] sm:$0xff]
    %v4427 = vld [vmem:[#allocation8 + $0xe8] sm:$0xff]
    %v4428 = vld [vmem:[#allocation8 + $0xf0] sm:$0xff]
    %v4429 = vld [vmem:[#allocation8 + $0xf8] sm:$0xff]
    %v4430 = vld [vmem:[#allocation8 + $0x100] sm:$0xff]
    %v4431 = vld [vmem:[#allocation8 + $0x108] sm:$0xff]
    %v4432 = vld [vmem:[#allocation8 + $0x110] sm:$0xff]
    %v4433 = vld [vmem:[#allocation8 + $0x118] sm:$0xff]
    %v4434 = vld [vmem:[#allocation8 + $0x120] sm:$0xff]
    %v4435 = vld [vmem:[#allocation8 + $0x128] sm:$0xff]
    %v4436 = vld [vmem:[#allocation8 + $0x130] sm:$0xff]
    %v4437 = vld [vmem:[#allocation8 + $0x138] sm:$0xff]
    %v4438 = vld [vmem:[#allocation8 + $0x140] sm:$0xff]
    %v4439 = vld [vmem:[#allocation8 + $0x148] sm:$0xff]
    %v4440 = vld [vmem:[#allocation8 + $0x150] sm:$0xff]
    %v4441 = vld [vmem:[#allocation8 + $0x158] sm:$0xff]
    %v4442 = vld [vmem:[#allocation8 + $0x160] sm:$0xff]
    %v4443 = vld [vmem:[#allocation8 + $0x168] sm:$0xff]
    %v4444 = vld [vmem:[#allocation8 + $0x170] sm:$0xff]
    %v4445 = vld [vmem:[#allocation8 + $0x178] sm:$0xff]
    %v4446 = vld [vmem:[#allocation8 + $0x180] sm:$0xff]
    %v4447 = vld [vmem:[#allocation8 + $0x188] sm:$0xff]
    %v4448 = vld [vmem:[#allocation8 + $0x190] sm:$0xff]
    %v4449 = vld [vmem:[#allocation8 + $0x198] sm:$0xff]
    %v4450 = vld [vmem:[#allocation8 + $0x1a0] sm:$0xff]
    %v4451 = vld [vmem:[#allocation8 + $0x1a8] sm:$0xff]
    %v4452 = vld [vmem:[#allocation8 + $0x1b0] sm:$0xff]
    %v4453 = vld [vmem:[#allocation8 + $0x1b8] sm:$0xff]
    %v4454 = vld [vmem:[#allocation8 + $0x1c0] sm:$0xff]
    %v4455 = vld [vmem:[#allocation8 + $0x1c8] sm:$0xff]
    %v4456 = vld [vmem:[#allocation8 + $0x1d0] sm:$0xff]
    %v4457 = vld [vmem:[#allocation8 + $0x1d8] sm:$0xff]
    %v4458 = vld [vmem:[#allocation8 + $0x1e0] sm:$0xff]
    %v4459 = vld [vmem:[#allocation8 + $0x1e8] sm:$0xff]
    %v4460 = vld [vmem:[#allocation8 + $0x1f0] sm:$0xff]
    %v4461 = vld [vmem:[#allocation8 + $0x1f8] sm:$0xff]
    %v4462 = vld [vmem:[#allocation8 + $0x200] sm:$0xff]
    %v4463 = vld [vmem:[#allocation8 + $0x208] sm:$0xff]
    %v4464 = vld [vmem:[#allocation8 + $0x210] sm:$0xff]
    %v4465 = vld [vmem:[#allocation8 + $0x218] sm:$0xff]
    %v4466 = vld [vmem:[#allocation8 + $0x220] sm:$0xff]
    %v4467 = vld [vmem:[#allocation8 + $0x228] sm:$0xff]
    %v4468 = vld [vmem:[#allocation8 + $0x230] sm:$0xff]
    %v4469 = vld [vmem:[#allocation8 + $0x238] sm:$0xff]
    %v4470 = vld [vmem:[#allocation8 + $0x240] sm:$0xff]
    %v4471 = vld [vmem:[#allocation8 + $0x248] sm:$0xff]
    %v4472 = vld [vmem:[#allocation8 + $0x250] sm:$0xff]
    %v4473 = vld [vmem:[#allocation8 + $0x258] sm:$0xff]
    %v4474 = vld [vmem:[#allocation8 + $0x260] sm:$0xff]
    %v4475 = vld [vmem:[#allocation8 + $0x268] sm:$0xff]
    %v4476 = vld [vmem:[#allocation8 + $0x270] sm:$0xff]
    %v4477 = vld [vmem:[#allocation8 + $0x278] sm:$0xff]
    %v4478 = vld [vmem:[#allocation8 + $0x280] sm:$0xff]
    %v4479 = vld [vmem:[#allocation8 + $0x288] sm:$0xff]
    %v4480 = vld [vmem:[#allocation8 + $0x290] sm:$0xff]
    %v4481 = vld [vmem:[#allocation8 + $0x298] sm:$0xff]
    %v4482 = vld [vmem:[#allocation8 + $0x2a0] sm:$0xff]
    %v4483 = vld [vmem:[#allocation8 + $0x2a8] sm:$0xff]
    %v4484 = vld [vmem:[#allocation8 + $0x2b0] sm:$0xff]
    %v4485 = vld [vmem:[#allocation8 + $0x2b8] sm:$0xff]
    %v4486 = vld [vmem:[#allocation8 + $0x2c0] sm:$0xff]
    %v4487 = vld [vmem:[#allocation8 + $0x2c8] sm:$0xff]
    %v4488 = vld [vmem:[#allocation8 + $0x2d0] sm:$0xff]
    %v4489 = vld [vmem:[#allocation8 + $0x2d8] sm:$0xff]
    %v4490 = vld [vmem:[#allocation8 + $0x2e0] sm:$0xff]
    %v4491 = vld [vmem:[#allocation8 + $0x2e8] sm:$0xff]
    %v4492 = vld [vmem:[#allocation8 + $0x2f0] sm:$0xff]
    %v4493 = vld [vmem:[#allocation8 + $0x2f8] sm:$0xff]
    %v4494 = vld [vmem:[#allocation8 + $0x300] sm:$0xff]
    %v4495 = vld [vmem:[#allocation8 + $0x308] sm:$0xff]
    %v4496 = vld [vmem:[#allocation8 + $0x310] sm:$0xff]
    %v4497 = vld [vmem:[#allocation8 + $0x318] sm:$0xff]
    %v4498 = vld [vmem:[#allocation8 + $0x320] sm:$0xff]
    %v4499 = vld [vmem:[#allocation8 + $0x328] sm:$0xff]
    %v4500 = vld [vmem:[#allocation8 + $0x330] sm:$0xff]
    %v4501 = vld [vmem:[#allocation8 + $0x338] sm:$0xff]
    %v4502 = vld [vmem:[#allocation8 + $0x340] sm:$0xff]
    %v4503 = vld [vmem:[#allocation8 + $0x348] sm:$0xff]
    %v4504 = vld [vmem:[#allocation8 + $0x350] sm:$0xff]
    %v4505 = vld [vmem:[#allocation8 + $0x358] sm:$0xff]
    %v4506 = vld [vmem:[#allocation8 + $0x360] sm:$0xff]
    %v4507 = vld [vmem:[#allocation8 + $0x368] sm:$0xff]
    %v4508 = vld [vmem:[#allocation8 + $0x370] sm:$0xff]
    %v4509 = vld [vmem:[#allocation8 + $0x378] sm:$0xff]
    %v4510 = vld [vmem:[#allocation8 + $0x380] sm:$0xff]
    %v4511 = vld [vmem:[#allocation8 + $0x388] sm:$0xff]
    %v4512 = vld [vmem:[#allocation8 + $0x390] sm:$0xff]
    %v4513 = vld [vmem:[#allocation8 + $0x398] sm:$0xff]
    %v4514 = vld [vmem:[#allocation8 + $0x3a0] sm:$0xff]
    %v4515 = vld [vmem:[#allocation8 + $0x3a8] sm:$0xff]
    %v4516 = vld [vmem:[#allocation8 + $0x3b0] sm:$0xff]
    %v4517 = vld [vmem:[#allocation8 + $0x3b8] sm:$0xff]
    %v4518 = vld [vmem:[#allocation8 + $0x3c0] sm:$0xff]
    %v4519 = vld [vmem:[#allocation8 + $0x3c8] sm:$0xff]
    %v4520 = vld [vmem:[#allocation8 + $0x3d0] sm:$0xff]
    %v4521 = vld [vmem:[#allocation8 + $0x3d8] sm:$0xff]
    %v4522 = vld [vmem:[#allocation8 + $0x3e0] sm:$0xff]
    %v4523 = vld [vmem:[#allocation8 + $0x3e8] sm:$0xff]
    %v4524 = vld [vmem:[#allocation8 + $0x3f0] sm:$0xff]
    %v4525 = vld [vmem:[#allocation8 + $0x3f8] sm:$0xff]
    %v4526 = vld [vmem:[#allocation8 + $0x400] sm:$0xff]
    %v4527 = vld [vmem:[#allocation8 + $0x408] sm:$0xff]
    %v4528 = vld [vmem:[#allocation8 + $0x410] sm:$0xff]
    %v4529 = vld [vmem:[#allocation8 + $0x418] sm:$0xff]
    %v4530 = vld [vmem:[#allocation8 + $0x420] sm:$0xff]
    %v4531 = vld [vmem:[#allocation8 + $0x428] sm:$0xff]
    %v4532 = vld [vmem:[#allocation8 + $0x430] sm:$0xff]
    %v4533 = vld [vmem:[#allocation8 + $0x438] sm:$0xff]
    %v4534 = vld [vmem:[#allocation8 + $0x440] sm:$0xff]
    %v4535 = vld [vmem:[#allocation8 + $0x448] sm:$0xff]
    %v4536 = vld [vmem:[#allocation8 + $0x450] sm:$0xff]
    %v4537 = vld [vmem:[#allocation8 + $0x458] sm:$0xff]
    %v4538 = vld [vmem:[#allocation8 + $0x460] sm:$0xff]
    %v4539 = vld [vmem:[#allocation8 + $0x468] sm:$0xff]
    %v4540 = vld [vmem:[#allocation8 + $0x470] sm:$0xff]
    %v4541 = vld [vmem:[#allocation8 + $0x478] sm:$0xff]
    %v4542 = vld [vmem:[#allocation8 + $0x480] sm:$0xff]
    %v4543 = vld [vmem:[#allocation8 + $0x488] sm:$0xff]
    %v4544 = vld [vmem:[#allocation8 + $0x490] sm:$0xff]
    %v4545 = vld [vmem:[#allocation8 + $0x498] sm:$0xff]
    %v4546 = vld [vmem:[#allocation8 + $0x4a0] sm:$0xff]
    %v4547 = vld [vmem:[#allocation8 + $0x4a8] sm:$0xff]
    %v4548 = vld [vmem:[#allocation8 + $0x4b0] sm:$0xff]
    %v4549 = vld [vmem:[#allocation8 + $0x4b8] sm:$0xff]
    %v4550 = vld [vmem:[#allocation8 + $0x4c0] sm:$0xff]
    %v4551 = vld [vmem:[#allocation8 + $0x4c8] sm:$0xff]
    %v4552 = vld [vmem:[#allocation8 + $0x4d0] sm:$0xff]
    %v4553 = vld [vmem:[#allocation8 + $0x4d8] sm:$0xff]
    %v4554 = vld [vmem:[#allocation8 + $0x4e0] sm:$0xff]
    %v4555 = vld [vmem:[#allocation8 + $0x4e8] sm:$0xff]
    %v4556 = vld [vmem:[#allocation8 + $0x4f0] sm:$0xff]
    %v4557 = vld [vmem:[#allocation8 + $0x4f8] sm:$0xff]
    %v4558 = vld [vmem:[#allocation8 + $0x500] sm:$0xff]
    %v4559 = vld [vmem:[#allocation8 + $0x508] sm:$0xff]
    %v4560 = vld [vmem:[#allocation8 + $0x510] sm:$0xff]
    %v4561 = vld [vmem:[#allocation8 + $0x518] sm:$0xff]
    %v4562 = vld [vmem:[#allocation8 + $0x520] sm:$0xff]
    %v4563 = vld [vmem:[#allocation8 + $0x528] sm:$0xff]
    %v4564 = vld [vmem:[#allocation8 + $0x530] sm:$0xff]
    %v4565 = vld [vmem:[#allocation8 + $0x538] sm:$0xff]
    %v4566 = vld [vmem:[#allocation8 + $0x540] sm:$0xff]
    %v4567 = vld [vmem:[#allocation8 + $0x548] sm:$0xff]
    %v4568 = vld [vmem:[#allocation8 + $0x550] sm:$0xff]
    %v4569 = vld [vmem:[#allocation8 + $0x558] sm:$0xff]
    %v4570 = vld [vmem:[#allocation8 + $0x560] sm:$0xff]
    %v4571 = vld [vmem:[#allocation8 + $0x568] sm:$0xff]
    %v4572 = vld [vmem:[#allocation8 + $0x570] sm:$0xff]
    %v4573 = vld [vmem:[#allocation8 + $0x578] sm:$0xff]
    %v4574 = vld [vmem:[#allocation8 + $0x580] sm:$0xff]
    %v4575 = vld [vmem:[#allocation8 + $0x588] sm:$0xff]
    %v4576 = vld [vmem:[#allocation8 + $0x590] sm:$0xff]
    %v4577 = vld [vmem:[#allocation8 + $0x598] sm:$0xff]
    %v4578 = vld [vmem:[#allocation8 + $0x5a0] sm:$0xff]
    %v4579 = vld [vmem:[#allocation8 + $0x5a8] sm:$0xff]
    %v4580 = vld [vmem:[#allocation8 + $0x5b0] sm:$0xff]
    %v4581 = vld [vmem:[#allocation8 + $0x5b8] sm:$0xff]
    %v4582 = vld [vmem:[#allocation8 + $0x5c0] sm:$0xff]
    %v4583 = vld [vmem:[#allocation8 + $0x5c8] sm:$0xff]
    %v4584 = vld [vmem:[#allocation8 + $0x5d0] sm:$0xff]
    %v4585 = vld [vmem:[#allocation8 + $0x5d8] sm:$0xff]
    %v4586 = vld [vmem:[#allocation8 + $0x5e0] sm:$0xff]
    %v4587 = vld [vmem:[#allocation8 + $0x5e8] sm:$0xff]
    %v4588 = vld [vmem:[#allocation8 + $0x5f0] sm:$0xff]
    %v4589 = vld [vmem:[#allocation8 + $0x5f8] sm:$0xff]
    %v4590 = vld [vmem:[#allocation8 + $0x600] sm:$0xff]
    %v4591 = vld [vmem:[#allocation8 + $0x608] sm:$0xff]
    %v4592 = vld [vmem:[#allocation8 + $0x610] sm:$0xff]
    %v4593 = vld [vmem:[#allocation8 + $0x618] sm:$0xff]
    %v4594 = vld [vmem:[#allocation8 + $0x620] sm:$0xff]
    %v4595 = vld [vmem:[#allocation8 + $0x628] sm:$0xff]
    %v4596 = vld [vmem:[#allocation8 + $0x630] sm:$0xff]
    %v4597 = vld [vmem:[#allocation8 + $0x638] sm:$0xff]
    %v4598 = vld [vmem:[#allocation8 + $0x640] sm:$0xff]
    %v4599 = vld [vmem:[#allocation8 + $0x648] sm:$0xff]
    %v4600 = vld [vmem:[#allocation8 + $0x650] sm:$0xff]
    %v4601 = vld [vmem:[#allocation8 + $0x658] sm:$0xff]
    %v4602 = vld [vmem:[#allocation8 + $0x660] sm:$0xff]
    %v4603 = vld [vmem:[#allocation8 + $0x668] sm:$0xff]
    %v4604 = vld [vmem:[#allocation8 + $0x670] sm:$0xff]
    %v4605 = vld [vmem:[#allocation8 + $0x678] sm:$0xff]
    %v4606 = vld [vmem:[#allocation8 + $0x680] sm:$0xff]
    %v4607 = vld [vmem:[#allocation8 + $0x688] sm:$0xff]
    %v4608 = vld [vmem:[#allocation8 + $0x690] sm:$0xff]
    %v4609 = vld [vmem:[#allocation8 + $0x698] sm:$0xff]
    %v4610 = vld [vmem:[#allocation8 + $0x6a0] sm:$0xff]
    %v4611 = vld [vmem:[#allocation8 + $0x6a8] sm:$0xff]
    %v4612 = vld [vmem:[#allocation8 + $0x6b0] sm:$0xff]
    %v4613 = vld [vmem:[#allocation8 + $0x6b8] sm:$0xff]
    %v4614 = vld [vmem:[#allocation8 + $0x6c0] sm:$0xff]
    %v4615 = vld [vmem:[#allocation8 + $0x6c8] sm:$0xff]
    %v4616 = vld [vmem:[#allocation8 + $0x6d0] sm:$0xff]
    %v4617 = vld [vmem:[#allocation8 + $0x6d8] sm:$0xff]
    %v4618 = vld [vmem:[#allocation8 + $0x6e0] sm:$0xff]
    %v4619 = vld [vmem:[#allocation8 + $0x6e8] sm:$0xff]
    %v4620 = vld [vmem:[#allocation8 + $0x6f0] sm:$0xff]
    %v4621 = vld [vmem:[#allocation8 + $0x6f8] sm:$0xff]
    %v4622 = vld [vmem:[#allocation8 + $0x700] sm:$0xff]
    %v4623 = vld [vmem:[#allocation8 + $0x708] sm:$0xff]
    %v4624 = vld [vmem:[#allocation8 + $0x710] sm:$0xff]
    %v4625 = vld [vmem:[#allocation8 + $0x718] sm:$0xff]
    %v4626 = vld [vmem:[#allocation8 + $0x720] sm:$0xff]
    %v4627 = vld [vmem:[#allocation8 + $0x728] sm:$0xff]
    %v4628 = vld [vmem:[#allocation8 + $0x730] sm:$0xff]
    %v4629 = vld [vmem:[#allocation8 + $0x738] sm:$0xff]
    %v4630 = vld [vmem:[#allocation8 + $0x740] sm:$0xff]
    %v4631 = vld [vmem:[#allocation8 + $0x748] sm:$0xff]
    %v4632 = vld [vmem:[#allocation8 + $0x750] sm:$0xff]
    %v4633 = vld [vmem:[#allocation8 + $0x758] sm:$0xff]
    %v4634 = vld [vmem:[#allocation8 + $0x760] sm:$0xff]
    %v4635 = vld [vmem:[#allocation8 + $0x768] sm:$0xff]
    %v4636 = vld [vmem:[#allocation8 + $0x770] sm:$0xff]
    %v4637 = vld [vmem:[#allocation8 + $0x778] sm:$0xff]
    %v4638 = vld [vmem:[#allocation8 + $0x780] sm:$0xff]
    %v4639 = vld [vmem:[#allocation8 + $0x788] sm:$0xff]
    %v4640 = vld [vmem:[#allocation8 + $0x790] sm:$0xff]
    %v4641 = vld [vmem:[#allocation8 + $0x798] sm:$0xff]
    %v4642 = vld [vmem:[#allocation8 + $0x7a0] sm:$0xff]
    %v4643 = vld [vmem:[#allocation8 + $0x7a8] sm:$0xff]
    %v4644 = vld [vmem:[#allocation8 + $0x7b0] sm:$0xff]
    %v4645 = vld [vmem:[#allocation8 + $0x7b8] sm:$0xff]
    %v4646 = vld [vmem:[#allocation8 + $0x7c0] sm:$0xff]
    %v4647 = vld [vmem:[#allocation8 + $0x7c8] sm:$0xff]
    %v4648 = vld [vmem:[#allocation8 + $0x7d0] sm:$0xff]
    %v4649 = vld [vmem:[#allocation8 + $0x7d8] sm:$0xff]
    %v4650 = vld [vmem:[#allocation8 + $0x7e0] sm:$0xff]
    %v4651 = vld [vmem:[#allocation8 + $0x7e8] sm:$0xff]
    %v4652 = vld [vmem:[#allocation8 + $0x7f0] sm:$0xff]
    %v4653 = vld [vmem:[#allocation8 + $0x7f8] sm:$0xff]
    %v4654 = vld [vmem:[#allocation8 + $0x800] sm:$0xff]
    %v4655 = vld [vmem:[#allocation8 + $0x808] sm:$0xff]
    %v4656 = vld [vmem:[#allocation8 + $0x810] sm:$0xff]
    %v4657 = vld [vmem:[#allocation8 + $0x818] sm:$0xff]
    %v4658 = vld [vmem:[#allocation8 + $0x820] sm:$0xff]
    %v4659 = vld [vmem:[#allocation8 + $0x828] sm:$0xff]
    %v4660 = vld [vmem:[#allocation8 + $0x830] sm:$0xff]
    %v4661 = vld [vmem:[#allocation8 + $0x838] sm:$0xff]
    %v4662 = vld [vmem:[#allocation8 + $0x840] sm:$0xff]
    %v4663 = vld [vmem:[#allocation8 + $0x848] sm:$0xff]
    %v4664 = vld [vmem:[#allocation8 + $0x850] sm:$0xff]
    %v4665 = vld [vmem:[#allocation8 + $0x858] sm:$0xff]
    %v4666 = vld [vmem:[#allocation8 + $0x860] sm:$0xff]
    %v4667 = vld [vmem:[#allocation8 + $0x868] sm:$0xff]
    %v4668 = vld [vmem:[#allocation8 + $0x870] sm:$0xff]
    %v4669 = vld [vmem:[#allocation8 + $0x878] sm:$0xff]
    %v4670 = vld [vmem:[#allocation8 + $0x880] sm:$0xff]
    %v4671 = vld [vmem:[#allocation8 + $0x888] sm:$0xff]
    %v4672 = vld [vmem:[#allocation8 + $0x890] sm:$0xff]
    %v4673 = vld [vmem:[#allocation8 + $0x898] sm:$0xff]
    %v4674 = vld [vmem:[#allocation8 + $0x8a0] sm:$0xff]
    %v4675 = vld [vmem:[#allocation8 + $0x8a8] sm:$0xff]
    %v4676 = vld [vmem:[#allocation8 + $0x8b0] sm:$0xff]
    %v4677 = vld [vmem:[#allocation8 + $0x8b8] sm:$0xff]
    %v4678 = vld [vmem:[#allocation8 + $0x8c0] sm:$0xff]
    %v4679 = vld [vmem:[#allocation8 + $0x8c8] sm:$0xff]
    %v4680 = vld [vmem:[#allocation8 + $0x8d0] sm:$0xff]
    %v4681 = vld [vmem:[#allocation8 + $0x8d8] sm:$0xff]
    %v4682 = vld [vmem:[#allocation8 + $0x8e0] sm:$0xff]
    %v4683 = vld [vmem:[#allocation8 + $0x8e8] sm:$0xff]
    %v4684 = vld [vmem:[#allocation8 + $0x8f0] sm:$0xff]
    %v4685 = vld [vmem:[#allocation8 + $0x8f8] sm:$0xff]
    %v4686 = vld [vmem:[#allocation8 + $0x900] sm:$0xff]
    %v4687 = vld [vmem:[#allocation8 + $0x908] sm:$0xff]
    %v4688 = vld [vmem:[#allocation8 + $0x910] sm:$0xff]
    %v4689 = vld [vmem:[#allocation8 + $0x918] sm:$0xff]
    %v4690 = vld [vmem:[#allocation8 + $0x920] sm:$0xff]
    %v4691 = vld [vmem:[#allocation8 + $0x928] sm:$0xff]
    %v4692 = vld [vmem:[#allocation8 + $0x930] sm:$0xff]
    %v4693 = vld [vmem:[#allocation8 + $0x938] sm:$0xff]
    %v4694 = vld [vmem:[#allocation8 + $0x940] sm:$0xff]
    %v4695 = vld [vmem:[#allocation8 + $0x948] sm:$0xff]
    %v4696 = vld [vmem:[#allocation8 + $0x950] sm:$0xff]
    %v4697 = vld [vmem:[#allocation8 + $0x958] sm:$0xff]
    %v4698 = vld [vmem:[#allocation8 + $0x960] sm:$0xff]
    %v4699 = vld [vmem:[#allocation8 + $0x968] sm:$0xff]
    %v4700 = vld [vmem:[#allocation8 + $0x970] sm:$0xff]
    %v4701 = vld [vmem:[#allocation8 + $0x978] sm:$0xff]
    %v4702 = vld [vmem:[#allocation8 + $0x980] sm:$0xff]
    %v4703 = vld [vmem:[#allocation8 + $0x988] sm:$0xff]
    %v4704 = vld [vmem:[#allocation8 + $0x990] sm:$0xff]
    %v4705 = vld [vmem:[#allocation8 + $0x998] sm:$0xff]
    %v4706 = vld [vmem:[#allocation8 + $0x9a0] sm:$0xff]
    %v4707 = vld [vmem:[#allocation8 + $0x9a8] sm:$0xff]
    %v4708 = vld [vmem:[#allocation8 + $0x9b0] sm:$0xff]
    %v4709 = vld [vmem:[#allocation8 + $0x9b8] sm:$0xff]
    %v4710 = vld [vmem:[#allocation8 + $0x9c0] sm:$0xff]
    %v4711 = vld [vmem:[#allocation8 + $0x9c8] sm:$0xff]
    %v4712 = vld [vmem:[#allocation8 + $0x9d0] sm:$0xff]
    %v4713 = vld [vmem:[#allocation8 + $0x9d8] sm:$0xff]
    %v4714 = vld [vmem:[#allocation8 + $0x9e0] sm:$0xff]
    %v4715 = vld [vmem:[#allocation8 + $0x9e8] sm:$0xff]
    %v4716 = vld [vmem:[#allocation8 + $0x9f0] sm:$0xff]
    %v4717 = vld [vmem:[#allocation8 + $0x9f8] sm:$0xff]
    %v4718 = vld [vmem:[#allocation8 + $0xa00] sm:$0xff]
    %v4719 = vld [vmem:[#allocation8 + $0xa08] sm:$0xff]
    %v4720 = vld [vmem:[#allocation8 + $0xa10] sm:$0xff]
    %v4721 = vld [vmem:[#allocation8 + $0xa18] sm:$0xff]
    %v4722 = vld [vmem:[#allocation8 + $0xa20] sm:$0xff]
    %v4723 = vld [vmem:[#allocation8 + $0xa28] sm:$0xff]
    %v4724 = vld [vmem:[#allocation8 + $0xa30] sm:$0xff]
    %v4725 = vld [vmem:[#allocation8 + $0xa38] sm:$0xff]
    %v4726 = vld [vmem:[#allocation8 + $0xa40] sm:$0xff]
    %v4727 = vld [vmem:[#allocation8 + $0xa48] sm:$0xff]
    %v4728 = vld [vmem:[#allocation8 + $0xa50] sm:$0xff]
    %v4729 = vld [vmem:[#allocation8 + $0xa58] sm:$0xff]
    %v4730 = vld [vmem:[#allocation8 + $0xa60] sm:$0xff]
    %v4731 = vld [vmem:[#allocation8 + $0xa68] sm:$0xff]
    %v4732 = vld [vmem:[#allocation8 + $0xa70] sm:$0xff]
    %v4733 = vld [vmem:[#allocation8 + $0xa78] sm:$0xff]
    %v4734 = vld [vmem:[#allocation8 + $0xa80] sm:$0xff]
    %v4735 = vld [vmem:[#allocation8 + $0xa88] sm:$0xff]
    %v4736 = vld [vmem:[#allocation8 + $0xa90] sm:$0xff]
    %v4737 = vld [vmem:[#allocation8 + $0xa98] sm:$0xff]
    %v4738 = vld [vmem:[#allocation8 + $0xaa0] sm:$0xff]
    %v4739 = vld [vmem:[#allocation8 + $0xaa8] sm:$0xff]
    %v4740 = vld [vmem:[#allocation8 + $0xab0] sm:$0xff]
    %v4741 = vld [vmem:[#allocation8 + $0xab8] sm:$0xff]
    %v4742 = vld [vmem:[#allocation8 + $0xac0] sm:$0xff]
    %v4743 = vld [vmem:[#allocation8 + $0xac8] sm:$0xff]
    %v4744 = vld [vmem:[#allocation8 + $0xad0] sm:$0xff]
    %v4745 = vld [vmem:[#allocation8 + $0xad8] sm:$0xff]
    %v4746 = vld [vmem:[#allocation8 + $0xae0] sm:$0xff]
    %v4747 = vld [vmem:[#allocation8 + $0xae8] sm:$0xff]
    %v4748 = vld [vmem:[#allocation8 + $0xaf0] sm:$0xff]
    %v4749 = vld [vmem:[#allocation8 + $0xaf8] sm:$0xff]
    %v4750 = vld [vmem:[#allocation8 + $0xb00] sm:$0xff]
    %v4751 = vld [vmem:[#allocation8 + $0xb08] sm:$0xff]
    %v4752 = vld [vmem:[#allocation8 + $0xb10] sm:$0xff]
    %v4753 = vld [vmem:[#allocation8 + $0xb18] sm:$0xff]
    %v4754 = vld [vmem:[#allocation8 + $0xb20] sm:$0xff]
    %v4755 = vld [vmem:[#allocation8 + $0xb28] sm:$0xff]
    %v4756 = vld [vmem:[#allocation8 + $0xb30] sm:$0xff]
    %v4757 = vld [vmem:[#allocation8 + $0xb38] sm:$0xff]
    %v4758 = vld [vmem:[#allocation8 + $0xb40] sm:$0xff]
    %v4759 = vld [vmem:[#allocation8 + $0xb48] sm:$0xff]
    %v4760 = vld [vmem:[#allocation8 + $0xb50] sm:$0xff]
    %v4761 = vld [vmem:[#allocation8 + $0xb58] sm:$0xff]
    %v4762 = vld [vmem:[#allocation8 + $0xb60] sm:$0xff]
    %v4763 = vld [vmem:[#allocation8 + $0xb68] sm:$0xff]
    %v4764 = vld [vmem:[#allocation8 + $0xb70] sm:$0xff]
    %v4765 = vld [vmem:[#allocation8 + $0xb78] sm:$0xff]
    %v4766 = vld [vmem:[#allocation8 + $0xb80] sm:$0xff]
    %v4767 = vld [vmem:[#allocation8 + $0xb88] sm:$0xff]
    %v4768 = vld [vmem:[#allocation8 + $0xb90] sm:$0xff]
    %v4769 = vld [vmem:[#allocation8 + $0xb98] sm:$0xff]
    %v4770 = vld [vmem:[#allocation8 + $0xba0] sm:$0xff]
    %v4771 = vld [vmem:[#allocation8 + $0xba8] sm:$0xff]
    %v4772 = vld [vmem:[#allocation8 + $0xbb0] sm:$0xff]
    %v4773 = vld [vmem:[#allocation8 + $0xbb8] sm:$0xff]
    %v4774 = vld [vmem:[#allocation8 + $0xbc0] sm:$0xff]
    %v4775 = vld [vmem:[#allocation8 + $0xbc8] sm:$0xff]
    %v4776 = vld [vmem:[#allocation8 + $0xbd0] sm:$0xff]
    %v4777 = vld [vmem:[#allocation8 + $0xbd8] sm:$0xff]
    %v4778 = vld [vmem:[#allocation8 + $0xbe0] sm:$0xff]
    %v4779 = vld [vmem:[#allocation8 + $0xbe8] sm:$0xff]
    %v4780 = vld [vmem:[#allocation8 + $0xbf0] sm:$0xff]
    %v4781 = vld [vmem:[#allocation8 + $0xbf8] sm:$0xff]
    %v4782 = vld [vmem:[#allocation8 + $0xc00] sm:$0xff]
    %v4783 = vld [vmem:[#allocation8 + $0xc08] sm:$0xff]
    %v4784 = vld [vmem:[#allocation8 + $0xc10] sm:$0xff]
    %v4785 = vld [vmem:[#allocation8 + $0xc18] sm:$0xff]
    %v4786 = vld [vmem:[#allocation8 + $0xc20] sm:$0xff]
    %v4787 = vld [vmem:[#allocation8 + $0xc28] sm:$0xff]
    %v4788 = vld [vmem:[#allocation8 + $0xc30] sm:$0xff]
    %v4789 = vld [vmem:[#allocation8 + $0xc38] sm:$0xff]
    %v4790 = vld [vmem:[#allocation8 + $0xc40] sm:$0xff]
    %v4791 = vld [vmem:[#allocation8 + $0xc48] sm:$0xff]
    %v4792 = vld [vmem:[#allocation8 + $0xc50] sm:$0xff]
    %v4793 = vld [vmem:[#allocation8 + $0xc58] sm:$0xff]
    %v4794 = vld [vmem:[#allocation8 + $0xc60] sm:$0xff]
    %v4795 = vld [vmem:[#allocation8 + $0xc68] sm:$0xff]
    %v4796 = vld [vmem:[#allocation8 + $0xc70] sm:$0xff]
    %v4797 = vld [vmem:[#allocation8 + $0xc78] sm:$0xff]
    %v4798 = vld [vmem:[#allocation8 + $0xc80] sm:$0xff]
    %v4799 = vld [vmem:[#allocation8 + $0xc88] sm:$0xff]
    %v4800 = vld [vmem:[#allocation8 + $0xc90] sm:$0xff]
    %v4801 = vld [vmem:[#allocation8 + $0xc98] sm:$0xff]
    %v4802 = vld [vmem:[#allocation8 + $0xca0] sm:$0xff]
    %v4803 = vld [vmem:[#allocation8 + $0xca8] sm:$0xff]
    %v4804 = vld [vmem:[#allocation8 + $0xcb0] sm:$0xff]
    %v4805 = vld [vmem:[#allocation8 + $0xcb8] sm:$0xff]
    %v4806 = vld [vmem:[#allocation8 + $0xcc0] sm:$0xff]
    %v4807 = vld [vmem:[#allocation8 + $0xcc8] sm:$0xff]
    %v4808 = vld [vmem:[#allocation8 + $0xcd0] sm:$0xff]
    %v4809 = vld [vmem:[#allocation8 + $0xcd8] sm:$0xff]
    %v4810 = vld [vmem:[#allocation8 + $0xce0] sm:$0xff]
    %v4811 = vld [vmem:[#allocation8 + $0xce8] sm:$0xff]
    %v4812 = vld [vmem:[#allocation8 + $0xcf0] sm:$0xff]
    %v4813 = vld [vmem:[#allocation8 + $0xcf8] sm:$0xff]
    %v4814 = vld [vmem:[#allocation8 + $0xd00] sm:$0xff]
    %v4815 = vld [vmem:[#allocation8 + $0xd08] sm:$0xff]
    %v4816 = vld [vmem:[#allocation8 + $0xd10] sm:$0xff]
    %v4817 = vld [vmem:[#allocation8 + $0xd18] sm:$0xff]
    %v4818 = vld [vmem:[#allocation8 + $0xd20] sm:$0xff]
    %v4819 = vld [vmem:[#allocation8 + $0xd28] sm:$0xff]
    %v4820 = vld [vmem:[#allocation8 + $0xd30] sm:$0xff]
    %v4821 = vld [vmem:[#allocation8 + $0xd38] sm:$0xff]
    %v4822 = vld [vmem:[#allocation8 + $0xd40] sm:$0xff]
    %v4823 = vld [vmem:[#allocation8 + $0xd48] sm:$0xff]
    %v4824 = vld [vmem:[#allocation8 + $0xd50] sm:$0xff]
    %v4825 = vld [vmem:[#allocation8 + $0xd58] sm:$0xff]
    %v4826 = vld [vmem:[#allocation8 + $0xd60] sm:$0xff]
    %v4827 = vld [vmem:[#allocation8 + $0xd68] sm:$0xff]
    %v4828 = vld [vmem:[#allocation8 + $0xd70] sm:$0xff]
    %v4829 = vld [vmem:[#allocation8 + $0xd78] sm:$0xff]
    %v4830 = vld [vmem:[#allocation8 + $0xd80] sm:$0xff]
    %v4831 = vld [vmem:[#allocation8 + $0xd88] sm:$0xff]
    %v4832 = vld [vmem:[#allocation8 + $0xd90] sm:$0xff]
    %v4833 = vld [vmem:[#allocation8 + $0xd98] sm:$0xff]
    %v4834 = vld [vmem:[#allocation8 + $0xda0] sm:$0xff]
    %v4835 = vld [vmem:[#allocation8 + $0xda8] sm:$0xff]
    %v4836 = vld [vmem:[#allocation8 + $0xdb0] sm:$0xff]
    %v4837 = vld [vmem:[#allocation8 + $0xdb8] sm:$0xff]
    %v4838 = vld [vmem:[#allocation8 + $0xdc0] sm:$0xff]
    %v4839 = vld [vmem:[#allocation8 + $0xdc8] sm:$0xff]
    %v4840 = vld [vmem:[#allocation8 + $0xdd0] sm:$0xff]
    %v4841 = vld [vmem:[#allocation8 + $0xdd8] sm:$0xff]
    %v4842 = vld [vmem:[#allocation8 + $0xde0] sm:$0xff]
    %v4843 = vld [vmem:[#allocation8 + $0xde8] sm:$0xff]
    %v4844 = vld [vmem:[#allocation8 + $0xdf0] sm:$0xff]
    %v4845 = vld [vmem:[#allocation8 + $0xdf8] sm:$0xff]
    %v4846 = vld [vmem:[#allocation8 + $0xe00] sm:$0xff]
    %v4847 = vld [vmem:[#allocation8 + $0xe08] sm:$0xff]
    %v4848 = vld [vmem:[#allocation8 + $0xe10] sm:$0xff]
    %v4849 = vld [vmem:[#allocation8 + $0xe18] sm:$0xff]
    %v4850 = vld [vmem:[#allocation8 + $0xe20] sm:$0xff]
    %v4851 = vld [vmem:[#allocation8 + $0xe28] sm:$0xff]
    %v4852 = vld [vmem:[#allocation8 + $0xe30] sm:$0xff]
    %v4853 = vld [vmem:[#allocation8 + $0xe38] sm:$0xff]
    %v4854 = vld [vmem:[#allocation8 + $0xe40] sm:$0xff]
    %v4855 = vld [vmem:[#allocation8 + $0xe48] sm:$0xff]
    %v4856 = vld [vmem:[#allocation8 + $0xe50] sm:$0xff]
    %v4857 = vld [vmem:[#allocation8 + $0xe58] sm:$0xff]
    %v4858 = vld [vmem:[#allocation8 + $0xe60] sm:$0xff]
    %v4859 = vld [vmem:[#allocation8 + $0xe68] sm:$0xff]
    %v4860 = vld [vmem:[#allocation8 + $0xe70] sm:$0xff]
    %v4861 = vld [vmem:[#allocation8 + $0xe78] sm:$0xff]
    %v4862 = vld [vmem:[#allocation8 + $0xe80] sm:$0xff]
    %v4863 = vld [vmem:[#allocation8 + $0xe88] sm:$0xff]
    %v4864 = vld [vmem:[#allocation8 + $0xe90] sm:$0xff]
    %v4865 = vld [vmem:[#allocation8 + $0xe98] sm:$0xff]
    %v4866 = vld [vmem:[#allocation8 + $0xea0] sm:$0xff]
    %v4867 = vld [vmem:[#allocation8 + $0xea8] sm:$0xff]
    %v4868 = vld [vmem:[#allocation8 + $0xeb0] sm:$0xff]
    %v4869 = vld [vmem:[#allocation8 + $0xeb8] sm:$0xff]
    %v4870 = vld [vmem:[#allocation8 + $0xec0] sm:$0xff]
    %v4871 = vld [vmem:[#allocation8 + $0xec8] sm:$0xff]
    %v4872 = vld [vmem:[#allocation8 + $0xed0] sm:$0xff]
    %v4873 = vld [vmem:[#allocation8 + $0xed8] sm:$0xff]
    %v4874 = vld [vmem:[#allocation8 + $0xee0] sm:$0xff]
    %v4875 = vld [vmem:[#allocation8 + $0xee8] sm:$0xff]
    %v4876 = vld [vmem:[#allocation8 + $0xef0] sm:$0xff]
    %v4877 = vld [vmem:[#allocation8 + $0xef8] sm:$0xff]
    %v4878 = vld [vmem:[#allocation8 + $0xf00] sm:$0xff]
    %v4879 = vld [vmem:[#allocation8 + $0xf08] sm:$0xff]
    %v4880 = vld [vmem:[#allocation8 + $0xf10] sm:$0xff]
    %v4881 = vld [vmem:[#allocation8 + $0xf18] sm:$0xff]
    %v4882 = vld [vmem:[#allocation8 + $0xf20] sm:$0xff]
    %v4883 = vld [vmem:[#allocation8 + $0xf28] sm:$0xff]
    %v4884 = vld [vmem:[#allocation8 + $0xf30] sm:$0xff]
    %v4885 = vld [vmem:[#allocation8 + $0xf38] sm:$0xff]
    %v4886 = vld [vmem:[#allocation8 + $0xf40] sm:$0xff]
    %v4887 = vld [vmem:[#allocation8 + $0xf48] sm:$0xff]
    %v4888 = vld [vmem:[#allocation8 + $0xf50] sm:$0xff]
    %v4889 = vld [vmem:[#allocation8 + $0xf58] sm:$0xff]
    %v4890 = vld [vmem:[#allocation8 + $0xf60] sm:$0xff]
    %v4891 = vld [vmem:[#allocation8 + $0xf68] sm:$0xff]
    %v4892 = vld [vmem:[#allocation8 + $0xf70] sm:$0xff]
    %v4893 = vld [vmem:[#allocation8 + $0xf78] sm:$0xff]
    %v4894 = vld [vmem:[#allocation8 + $0xf80] sm:$0xff]
    %v4895 = vld [vmem:[#allocation8 + $0xf88] sm:$0xff]
    %v4896 = vld [vmem:[#allocation8 + $0xf90] sm:$0xff]
    %v4897 = vld [vmem:[#allocation8 + $0xf98] sm:$0xff]
    %v4898 = vld [vmem:[#allocation8 + $0xfa0] sm:$0xff]
    %v4899 = vld [vmem:[#allocation8 + $0xfa8] sm:$0xff]
    %v4900 = vld [vmem:[#allocation8 + $0xfb0] sm:$0xff]
    %v4901 = vld [vmem:[#allocation8 + $0xfb8] sm:$0xff]
    %v4902 = vld [vmem:[#allocation8 + $0xfc0] sm:$0xff]
    %v4903 = vld [vmem:[#allocation8 + $0xfc8] sm:$0xff]
    %v4904 = vld [vmem:[#allocation8 + $0xfd0] sm:$0xff]
    %v4905 = vld [vmem:[#allocation8 + $0xfd8] sm:$0xff]
    %v4906 = vld [vmem:[#allocation8 + $0xfe0] sm:$0xff]
    %v4907 = vld [vmem:[#allocation8 + $0xfe8] sm:$0xff]
    %v4908 = vld [vmem:[#allocation8 + $0xff0] sm:$0xff]
    %v4909 = vld [vmem:[#allocation8 + $0xff8] sm:$0xff]
    %v4910 = vld [vmem:[#allocation8 + $0x1000] sm:$0xff]
    %v4911 = vld [vmem:[#allocation8 + $0x1008] sm:$0xff]
    %v4912 = vld [vmem:[#allocation8 + $0x1010] sm:$0xff]
    %v4913 = vld [vmem:[#allocation8 + $0x1018] sm:$0xff]
    %v4914 = vld [vmem:[#allocation8 + $0x1020] sm:$0xff]
    %v4915 = vld [vmem:[#allocation8 + $0x1028] sm:$0xff]
    %v4916 = vld [vmem:[#allocation8 + $0x1030] sm:$0xff]
    %v4917 = vld [vmem:[#allocation8 + $0x1038] sm:$0xff]
    %v4918 = vld [vmem:[#allocation8 + $0x1040] sm:$0xff]
    %v4919 = vld [vmem:[#allocation8 + $0x1048] sm:$0xff]
    %v4920 = vld [vmem:[#allocation8 + $0x1050] sm:$0xff]
    %v4921 = vld [vmem:[#allocation8 + $0x1058] sm:$0xff]
    %v4922 = vld [vmem:[#allocation8 + $0x1060] sm:$0xff]
    %v4923 = vld [vmem:[#allocation8 + $0x1068] sm:$0xff]
    %v4924 = vld [vmem:[#allocation8 + $0x1070] sm:$0xff]
    %v4925 = vld [vmem:[#allocation8 + $0x1078] sm:$0xff]
    %v4926 = vld [vmem:[#allocation8 + $0x1080] sm:$0xff]
    %v4927 = vld [vmem:[#allocation8 + $0x1088] sm:$0xff]
    %v4928 = vld [vmem:[#allocation8 + $0x1090] sm:$0xff]
    %v4929 = vld [vmem:[#allocation8 + $0x1098] sm:$0xff]
    %v4930 = vld [vmem:[#allocation8 + $0x10a0] sm:$0xff]
    %v4931 = vld [vmem:[#allocation8 + $0x10a8] sm:$0xff]
    %v4932 = vld [vmem:[#allocation8 + $0x10b0] sm:$0xff]
    %v4933 = vld [vmem:[#allocation8 + $0x10b8] sm:$0xff]
    %v4934 = vld [vmem:[#allocation8 + $0x10c0] sm:$0xff]
    %v4935 = vld [vmem:[#allocation8 + $0x10c8] sm:$0xff]
    %v4936 = vld [vmem:[#allocation8 + $0x10d0] sm:$0xff]
    %v4937 = vld [vmem:[#allocation8 + $0x10d8] sm:$0xff]
    %v4938 = vld [vmem:[#allocation8 + $0x10e0] sm:$0xff]
    %v4939 = vld [vmem:[#allocation8 + $0x10e8] sm:$0xff]
    %v4940 = vld [vmem:[#allocation8 + $0x10f0] sm:$0xff]
    %v4941 = vld [vmem:[#allocation8 + $0x10f8] sm:$0xff]
    %v4942 = vld [vmem:[#allocation8 + $0x1100] sm:$0xff]
    %v4943 = vld [vmem:[#allocation8 + $0x1108] sm:$0xff]
    %v4944 = vld [vmem:[#allocation8 + $0x1110] sm:$0xff]
    %v4945 = vld [vmem:[#allocation8 + $0x1118] sm:$0xff]
    %v4946 = vld [vmem:[#allocation8 + $0x1120] sm:$0xff]
    %v4947 = vld [vmem:[#allocation8 + $0x1128] sm:$0xff]
    %v4948 = vld [vmem:[#allocation8 + $0x1130] sm:$0xff]
    %v4949 = vld [vmem:[#allocation8 + $0x1138] sm:$0xff]
    %v4950 = vld [vmem:[#allocation8 + $0x1140] sm:$0xff]
    %v4951 = vld [vmem:[#allocation8 + $0x1148] sm:$0xff]
    %v4952 = vld [vmem:[#allocation8 + $0x1150] sm:$0xff]
    %v4953 = vld [vmem:[#allocation8 + $0x1158] sm:$0xff]
    %v4954 = vld [vmem:[#allocation8 + $0x1160] sm:$0xff]
    %v4955 = vld [vmem:[#allocation8 + $0x1168] sm:$0xff]
    %v4956 = vld [vmem:[#allocation8 + $0x1170] sm:$0xff]
    %v4957 = vld [vmem:[#allocation8 + $0x1178] sm:$0xff]
    %v4958 = vld [vmem:[#allocation8 + $0x1180] sm:$0xff]
    %v4959 = vld [vmem:[#allocation8 + $0x1188] sm:$0xff]
    %v4960 = vld [vmem:[#allocation8 + $0x1190] sm:$0xff]
    %v4961 = vld [vmem:[#allocation8 + $0x1198] sm:$0xff]
    %v4962 = vld [vmem:[#allocation8 + $0x11a0] sm:$0xff]
    %v4963 = vld [vmem:[#allocation8 + $0x11a8] sm:$0xff]
    %v4964 = vld [vmem:[#allocation8 + $0x11b0] sm:$0xff]
    %v4965 = vld [vmem:[#allocation8 + $0x11b8] sm:$0xff]
    %v4966 = vld [vmem:[#allocation8 + $0x11c0] sm:$0xff]
    %v4967 = vld [vmem:[#allocation8 + $0x11c8] sm:$0xff]
    %v4968 = vld [vmem:[#allocation8 + $0x11d0] sm:$0xff]
    %v4969 = vld [vmem:[#allocation8 + $0x11d8] sm:$0xff]
    %v4970 = vld [vmem:[#allocation8 + $0x11e0] sm:$0xff]
    %v4971 = vld [vmem:[#allocation8 + $0x11e8] sm:$0xff]
    %v4972 = vld [vmem:[#allocation8 + $0x11f0] sm:$0xff]
    %v4973 = vld [vmem:[#allocation8 + $0x11f8] sm:$0xff]
    %v4974 = vld [vmem:[#allocation8 + $0x1200] sm:$0xff]
    %v4975 = vld [vmem:[#allocation8 + $0x1208] sm:$0xff]
    %v4976 = vld [vmem:[#allocation8 + $0x1210] sm:$0xff]
    %v4977 = vld [vmem:[#allocation8 + $0x1218] sm:$0xff]
    %v4978 = vld [vmem:[#allocation8 + $0x1220] sm:$0xff]
    %v4979 = vld [vmem:[#allocation8 + $0x1228] sm:$0xff]
    %v4980 = vld [vmem:[#allocation8 + $0x1230] sm:$0xff]
    %v4981 = vld [vmem:[#allocation8 + $0x1238] sm:$0xff]
    %v4982 = vld [vmem:[#allocation8 + $0x1240] sm:$0xff]
    %v4983 = vld [vmem:[#allocation8 + $0x1248] sm:$0xff]
    %v4984 = vld [vmem:[#allocation8 + $0x1250] sm:$0xff]
    %v4985 = vld [vmem:[#allocation8 + $0x1258] sm:$0xff]
    %v4986 = vld [vmem:[#allocation8 + $0x1260] sm:$0xff]
    %v4987 = vld [vmem:[#allocation8 + $0x1268] sm:$0xff]
    %v4988 = vld [vmem:[#allocation8 + $0x1270] sm:$0xff]
    %v4989 = vld [vmem:[#allocation8 + $0x1278] sm:$0xff]
    %v4990 = vld [vmem:[#allocation8 + $0x1280] sm:$0xff]
    %v4991 = vld [vmem:[#allocation8 + $0x1288] sm:$0xff]
    %v4992 = vld [vmem:[#allocation8 + $0x1290] sm:$0xff]
    %v4993 = vld [vmem:[#allocation8 + $0x1298] sm:$0xff]
    %v4994 = vld [vmem:[#allocation8 + $0x12a0] sm:$0xff]
    %v4995 = vld [vmem:[#allocation8 + $0x12a8] sm:$0xff]
    %v4996 = vld [vmem:[#allocation8 + $0x12b0] sm:$0xff]
    %v4997 = vld [vmem:[#allocation8 + $0x12b8] sm:$0xff]
    %v4998 = vld [vmem:[#allocation8 + $0x12c0] sm:$0xff]
    %v4999 = vld [vmem:[#allocation8 + $0x12c8] sm:$0xff]
    %v5000 = vld [vmem:[#allocation8 + $0x12d0] sm:$0xff]
    %v5001 = vld [vmem:[#allocation8 + $0x12d8] sm:$0xff]
    %v5002 = vld [vmem:[#allocation8 + $0x12e0] sm:$0xff]
    %v5003 = vld [vmem:[#allocation8 + $0x12e8] sm:$0xff]
    %v5004 = vld [vmem:[#allocation8 + $0x12f0] sm:$0xff]
    %v5005 = vld [vmem:[#allocation8 + $0x12f8] sm:$0xff]
    %v5006 = vld [vmem:[#allocation8 + $0x1300] sm:$0xff]
    %v5007 = vld [vmem:[#allocation8 + $0x1308] sm:$0xff]
    %v5008 = vld [vmem:[#allocation8 + $0x1310] sm:$0xff]
    %v5009 = vld [vmem:[#allocation8 + $0x1318] sm:$0xff]
    %v5010 = vld [vmem:[#allocation8 + $0x1320] sm:$0xff]
    %v5011 = vld [vmem:[#allocation8 + $0x1328] sm:$0xff]
    %v5012 = vld [vmem:[#allocation8 + $0x1330] sm:$0xff]
    %v5013 = vld [vmem:[#allocation8 + $0x1338] sm:$0xff]
    %v5014 = vld [vmem:[#allocation8 + $0x1340] sm:$0xff]
    %v5015 = vld [vmem:[#allocation8 + $0x1348] sm:$0xff]
    %v5016 = vld [vmem:[#allocation8 + $0x1350] sm:$0xff]
    %v5017 = vld [vmem:[#allocation8 + $0x1358] sm:$0xff]
    %v5018 = vld [vmem:[#allocation8 + $0x1360] sm:$0xff]
    %v5019 = vld [vmem:[#allocation8 + $0x1368] sm:$0xff]
    %v5020 = vld [vmem:[#allocation8 + $0x1370] sm:$0xff]
    %v5021 = vld [vmem:[#allocation8 + $0x1378] sm:$0xff]
    %v5022 = vld [vmem:[#allocation8 + $0x1380] sm:$0xff]
    %v5023 = vld [vmem:[#allocation8 + $0x1388] sm:$0xff]
    %v5024 = vld [vmem:[#allocation8 + $0x1390] sm:$0xff]
    %v5025 = vld [vmem:[#allocation8 + $0x1398] sm:$0xff]
    %v5026 = vld [vmem:[#allocation8 + $0x13a0] sm:$0xff]
    %v5027 = vld [vmem:[#allocation8 + $0x13a8] sm:$0xff]
    %v5028 = vld [vmem:[#allocation8 + $0x13b0] sm:$0xff]
    %v5029 = vld [vmem:[#allocation8 + $0x13b8] sm:$0xff]
    %v5030 = vld [vmem:[#allocation8 + $0x13c0] sm:$0xff]
    %v5031 = vld [vmem:[#allocation8 + $0x13c8] sm:$0xff]
    %v5032 = vld [vmem:[#allocation8 + $0x13d0] sm:$0xff]
    %v5033 = vld [vmem:[#allocation8 + $0x13d8] sm:$0xff]
    %v5034 = vld [vmem:[#allocation8 + $0x13e0] sm:$0xff]
    %v5035 = vld [vmem:[#allocation8 + $0x13e8] sm:$0xff]
    %v5036 = vld [vmem:[#allocation8 + $0x13f0] sm:$0xff]
    %v5037 = vld [vmem:[#allocation8 + $0x13f8] sm:$0xff]
    %v5038 = vld [vmem:[#allocation8 + $0x1400] sm:$0xff]
    %v5039 = vld [vmem:[#allocation8 + $0x1408] sm:$0xff]
    %v5040 = vld [vmem:[#allocation8 + $0x1410] sm:$0xff]
    %v5041 = vld [vmem:[#allocation8 + $0x1418] sm:$0xff]
    %v5042 = vld [vmem:[#allocation8 + $0x1420] sm:$0xff]
    %v5043 = vld [vmem:[#allocation8 + $0x1428] sm:$0xff]
    %v5044 = vld [vmem:[#allocation8 + $0x1430] sm:$0xff]
    %v5045 = vld [vmem:[#allocation8 + $0x1438] sm:$0xff]
    %v5046 = vld [vmem:[#allocation8 + $0x1440] sm:$0xff]
    %v5047 = vld [vmem:[#allocation8 + $0x1448] sm:$0xff]
    %v5048 = vld [vmem:[#allocation8 + $0x1450] sm:$0xff]
    %v5049 = vld [vmem:[#allocation8 + $0x1458] sm:$0xff]
    %v5050 = vld [vmem:[#allocation8 + $0x1460] sm:$0xff]
    %v5051 = vld [vmem:[#allocation8 + $0x1468] sm:$0xff]
    %v5052 = vld [vmem:[#allocation8 + $0x1470] sm:$0xff]
    %v5053 = vld [vmem:[#allocation8 + $0x1478] sm:$0xff]
    %v5054 = vld [vmem:[#allocation8 + $0x1480] sm:$0xff]
    %v5055 = vld [vmem:[#allocation8 + $0x1488] sm:$0xff]
    %v5056 = vld [vmem:[#allocation8 + $0x1490] sm:$0xff]
    %v5057 = vld [vmem:[#allocation8 + $0x1498] sm:$0xff]
    %v5058 = vld [vmem:[#allocation8 + $0x14a0] sm:$0xff]
    %v5059 = vld [vmem:[#allocation8 + $0x14a8] sm:$0xff]
    %v5060 = vld [vmem:[#allocation8 + $0x14b0] sm:$0xff]
    %v5061 = vld [vmem:[#allocation8 + $0x14b8] sm:$0xff]
    %v5062 = vld [vmem:[#allocation8 + $0x14c0] sm:$0xff]
    %v5063 = vld [vmem:[#allocation8 + $0x14c8] sm:$0xff]
    %v5064 = vld [vmem:[#allocation8 + $0x14d0] sm:$0xff]
    %v5065 = vld [vmem:[#allocation8 + $0x14d8] sm:$0xff]
    %v5066 = vld [vmem:[#allocation8 + $0x14e0] sm:$0xff]
    %v5067 = vld [vmem:[#allocation8 + $0x14e8] sm:$0xff]
    %v5068 = vld [vmem:[#allocation8 + $0x14f0] sm:$0xff]
    %v5069 = vld [vmem:[#allocation8 + $0x14f8] sm:$0xff]
    %v5070 = vld [vmem:[#allocation8 + $0x1500] sm:$0xff]
    %v5071 = vld [vmem:[#allocation8 + $0x1508] sm:$0xff]
    %v5072 = vld [vmem:[#allocation8 + $0x1510] sm:$0xff]
    %v5073 = vld [vmem:[#allocation8 + $0x1518] sm:$0xff]
    %v5074 = vld [vmem:[#allocation8 + $0x1520] sm:$0xff]
    %v5075 = vld [vmem:[#allocation8 + $0x1528] sm:$0xff]
    %v5076 = vld [vmem:[#allocation8 + $0x1530] sm:$0xff]
    %v5077 = vld [vmem:[#allocation8 + $0x1538] sm:$0xff]
    %v5078 = vld [vmem:[#allocation8 + $0x1540] sm:$0xff]
    %v5079 = vld [vmem:[#allocation8 + $0x1548] sm:$0xff]
    %v5080 = vld [vmem:[#allocation8 + $0x1550] sm:$0xff]
    %v5081 = vld [vmem:[#allocation8 + $0x1558] sm:$0xff]
    %v5082 = vld [vmem:[#allocation8 + $0x1560] sm:$0xff]
    %v5083 = vld [vmem:[#allocation8 + $0x1568] sm:$0xff]
    %v5084 = vld [vmem:[#allocation8 + $0x1570] sm:$0xff]
    %v5085 = vld [vmem:[#allocation8 + $0x1578] sm:$0xff]
    %v5086 = vld [vmem:[#allocation8 + $0x1580] sm:$0xff]
    %v5087 = vld [vmem:[#allocation8 + $0x1588] sm:$0xff]
    %v5088 = vld [vmem:[#allocation8 + $0x1590] sm:$0xff]
    %v5089 = vld [vmem:[#allocation8 + $0x1598] sm:$0xff]
    %v5090 = vld [vmem:[#allocation8 + $0x15a0] sm:$0xff]
    %v5091 = vld [vmem:[#allocation8 + $0x15a8] sm:$0xff]
    %v5092 = vld [vmem:[#allocation8 + $0x15b0] sm:$0xff]
    %v5093 = vld [vmem:[#allocation8 + $0x15b8] sm:$0xff]
    %v5094 = vld [vmem:[#allocation8 + $0x15c0] sm:$0xff]
    %v5095 = vld [vmem:[#allocation8 + $0x15c8] sm:$0xff]
    %v5096 = vld [vmem:[#allocation8 + $0x15d0] sm:$0xff]
    %v5097 = vld [vmem:[#allocation8 + $0x15d8] sm:$0xff]
    %v5098 = vld [vmem:[#allocation8 + $0x15e0] sm:$0xff]
    %v5099 = vld [vmem:[#allocation8 + $0x15e8] sm:$0xff]
    %v5100 = vld [vmem:[#allocation8 + $0x15f0] sm:$0xff]
    %v5101 = vld [vmem:[#allocation8 + $0x15f8] sm:$0xff]
    %v5102 = vld [vmem:[#allocation8 + $0x1600] sm:$0xff]
    %v5103 = vld [vmem:[#allocation8 + $0x1608] sm:$0xff]
    %v5104 = vld [vmem:[#allocation8 + $0x1610] sm:$0xff]
    %v5105 = vld [vmem:[#allocation8 + $0x1618] sm:$0xff]
    %v5106 = vld [vmem:[#allocation8 + $0x1620] sm:$0xff]
    %v5107 = vld [vmem:[#allocation8 + $0x1628] sm:$0xff]
    %v5108 = vld [vmem:[#allocation8 + $0x1630] sm:$0xff]
    %v5109 = vld [vmem:[#allocation8 + $0x1638] sm:$0xff]
    %v5110 = vld [vmem:[#allocation8 + $0x1640] sm:$0xff]
    %v5111 = vld [vmem:[#allocation8 + $0x1648] sm:$0xff]
    %v5112 = vld [vmem:[#allocation8 + $0x1650] sm:$0xff]
    %v5113 = vld [vmem:[#allocation8 + $0x1658] sm:$0xff]
    %v5114 = vld [vmem:[#allocation8 + $0x1660] sm:$0xff]
    %v5115 = vld [vmem:[#allocation8 + $0x1668] sm:$0xff]
    %v5116 = vld [vmem:[#allocation8 + $0x1670] sm:$0xff]
    %v5117 = vld [vmem:[#allocation8 + $0x1678] sm:$0xff]
    %v5118 = vld [vmem:[#allocation8 + $0x1680] sm:$0xff]
    %v5119 = vld [vmem:[#allocation8 + $0x1688] sm:$0xff]
    %v5120 = vld [vmem:[#allocation8 + $0x1690] sm:$0xff]
    %v5121 = vld [vmem:[#allocation8 + $0x1698] sm:$0xff]
    %v5122 = vld [vmem:[#allocation8 + $0x16a0] sm:$0xff]
    %v5123 = vld [vmem:[#allocation8 + $0x16a8] sm:$0xff]
    %v5124 = vld [vmem:[#allocation8 + $0x16b0] sm:$0xff]
    %v5125 = vld [vmem:[#allocation8 + $0x16b8] sm:$0xff]
    %v5126 = vld [vmem:[#allocation8 + $0x16c0] sm:$0xff]
    %v5127 = vld [vmem:[#allocation8 + $0x16c8] sm:$0xff]
    %v5128 = vld [vmem:[#allocation8 + $0x16d0] sm:$0xff]
    %v5129 = vld [vmem:[#allocation8 + $0x16d8] sm:$0xff]
    %v5130 = vld [vmem:[#allocation8 + $0x16e0] sm:$0xff]
    %v5131 = vld [vmem:[#allocation8 + $0x16e8] sm:$0xff]
    %v5132 = vld [vmem:[#allocation8 + $0x16f0] sm:$0xff]
    %v5133 = vld [vmem:[#allocation8 + $0x16f8] sm:$0xff]
    %v5134 = vld [vmem:[#allocation8 + $0x1700] sm:$0xff]
    %v5135 = vld [vmem:[#allocation8 + $0x1708] sm:$0xff]
    %v5136 = vld [vmem:[#allocation8 + $0x1710] sm:$0xff]
    %v5137 = vld [vmem:[#allocation8 + $0x1718] sm:$0xff]
    %v5138 = vld [vmem:[#allocation8 + $0x1720] sm:$0xff]
    %v5139 = vld [vmem:[#allocation8 + $0x1728] sm:$0xff]
    %v5140 = vld [vmem:[#allocation8 + $0x1730] sm:$0xff]
    %v5141 = vld [vmem:[#allocation8 + $0x1738] sm:$0xff]
    %v5142 = vld [vmem:[#allocation8 + $0x1740] sm:$0xff]
    %v5143 = vld [vmem:[#allocation8 + $0x1748] sm:$0xff]
    %v5144 = vld [vmem:[#allocation8 + $0x1750] sm:$0xff]
    %v5145 = vld [vmem:[#allocation8 + $0x1758] sm:$0xff]
    %v5146 = vld [vmem:[#allocation8 + $0x1760] sm:$0xff]
    %v5147 = vld [vmem:[#allocation8 + $0x1768] sm:$0xff]
    %v5148 = vld [vmem:[#allocation8 + $0x1770] sm:$0xff]
    %v5149 = vld [vmem:[#allocation8 + $0x1778] sm:$0xff]
    %v5150 = vld [vmem:[#allocation8 + $0x1780] sm:$0xff]
    %v5151 = vld [vmem:[#allocation8 + $0x1788] sm:$0xff]
    %v5152 = vld [vmem:[#allocation8 + $0x1790] sm:$0xff]
    %v5153 = vld [vmem:[#allocation8 + $0x1798] sm:$0xff]
    %v5154 = vld [vmem:[#allocation8 + $0x17a0] sm:$0xff]
    %v5155 = vld [vmem:[#allocation8 + $0x17a8] sm:$0xff]
    %v5156 = vld [vmem:[#allocation8 + $0x17b0] sm:$0xff]
    %v5157 = vld [vmem:[#allocation8 + $0x17b8] sm:$0xff]
    %v5158 = vld [vmem:[#allocation8 + $0x17c0] sm:$0xff]
    %v5159 = vld [vmem:[#allocation8 + $0x17c8] sm:$0xff]
    %v5160 = vld [vmem:[#allocation8 + $0x17d0] sm:$0xff]
    %v5161 = vld [vmem:[#allocation8 + $0x17d8] sm:$0xff]
    %v5162 = vld [vmem:[#allocation8 + $0x17e0] sm:$0xff]
    %v5163 = vld [vmem:[#allocation8 + $0x17e8] sm:$0xff]
    %v5164 = vld [vmem:[#allocation8 + $0x17f0] sm:$0xff]
    %v5165 = vld [vmem:[#allocation8 + $0x17f8] sm:$0xff]
    %v5166 = vld [vmem:[#allocation8 + $0x1800] sm:$0xff]
    %v5167 = vld [vmem:[#allocation8 + $0x1808] sm:$0xff]
    %v5168 = vld [vmem:[#allocation8 + $0x1810] sm:$0xff]
    %v5169 = vld [vmem:[#allocation8 + $0x1818] sm:$0xff]
    %v5170 = vld [vmem:[#allocation8 + $0x1820] sm:$0xff]
    %v5171 = vld [vmem:[#allocation8 + $0x1828] sm:$0xff]
    %v5172 = vld [vmem:[#allocation8 + $0x1830] sm:$0xff]
    %v5173 = vld [vmem:[#allocation8 + $0x1838] sm:$0xff]
    %v5174 = vld [vmem:[#allocation8 + $0x1840] sm:$0xff]
    %v5175 = vld [vmem:[#allocation8 + $0x1848] sm:$0xff]
    %v5176 = vld [vmem:[#allocation8 + $0x1850] sm:$0xff]
    %v5177 = vld [vmem:[#allocation8 + $0x1858] sm:$0xff]
    %v5178 = vld [vmem:[#allocation8 + $0x1860] sm:$0xff]
    %v5179 = vld [vmem:[#allocation8 + $0x1868] sm:$0xff]
    %v5180 = vld [vmem:[#allocation8 + $0x1870] sm:$0xff]
    %v5181 = vld [vmem:[#allocation8 + $0x1878] sm:$0xff]
    %v5182 = vld [vmem:[#allocation8 + $0x1880] sm:$0xff]
    %v5183 = vld [vmem:[#allocation8 + $0x1888] sm:$0xff]
    %v5184 = vld [vmem:[#allocation8 + $0x1890] sm:$0xff]
    %v5185 = vld [vmem:[#allocation8 + $0x1898] sm:$0xff]
    %v5186 = vld [vmem:[#allocation8 + $0x18a0] sm:$0xff]
    %v5187 = vld [vmem:[#allocation8 + $0x18a8] sm:$0xff]
    %v5188 = vld [vmem:[#allocation8 + $0x18b0] sm:$0xff]
    %v5189 = vld [vmem:[#allocation8 + $0x18b8] sm:$0xff]
    %v5190 = vld [vmem:[#allocation8 + $0x18c0] sm:$0xff]
    %v5191 = vld [vmem:[#allocation8 + $0x18c8] sm:$0xff]
    %v5192 = vld [vmem:[#allocation8 + $0x18d0] sm:$0xff]
    %v5193 = vld [vmem:[#allocation8 + $0x18d8] sm:$0xff]
    %v5194 = vld [vmem:[#allocation8 + $0x18e0] sm:$0xff]
    %v5195 = vld [vmem:[#allocation8 + $0x18e8] sm:$0xff]
    %v5196 = vld [vmem:[#allocation8 + $0x18f0] sm:$0xff]
    %v5197 = vld [vmem:[#allocation8 + $0x18f8] sm:$0xff]
    %v5198 = vld [vmem:[#allocation10] sm:$0xff]
    %v5199 = vld [vmem:[#allocation10 + $0x8] sm:$0x3]
    %v5202 = vlaneseq
    %v5203 = vshrl.u32 %v5202, 7
    %v5204 = vsub.s32 0, %v5203
    %v5205 = vrot.slane %v5198, %v5204
    %v5206 = vlaneseq
    %v5207 = vshrl.u32 %v5206, 7
    %v5208 = vsub.s32 1, %v5207
    %v5209 = vrot.slane %v5198, %v5208
    %v5210 = vlaneseq
    %v5211 = vshrl.u32 %v5210, 7
    %v5212 = vsub.s32 2, %v5211
    %v5213 = vrot.slane %v5198, %v5212
    %v5214 = vlaneseq
    %v5215 = vshrl.u32 %v5214, 7
    %v5216 = vsub.s32 3, %v5215
    %v5217 = vrot.slane %v5198, %v5216
    %v5218 = vlaneseq
    %v5219 = vshrl.u32 %v5218, 7
    %v5220 = vsub.s32 4, %v5219
    %v5221 = vrot.slane %v5198, %v5220
    %v5222 = vlaneseq
    %v5223 = vshrl.u32 %v5222, 7
    %v5224 = vsub.s32 5, %v5223
    %v5225 = vrot.slane %v5198, %v5224
    %v5226 = vlaneseq
    %v5227 = vshrl.u32 %v5226, 7
    %v5228 = vsub.s32 6, %v5227
    %v5229 = vrot.slane %v5198, %v5228
    %v5230 = vlaneseq
    %v5231 = vshrl.u32 %v5230, 7
    %v5232 = vsub.s32 7, %v5231
    %v5233 = vrot.slane %v5198, %v5232
    %v5234 = vlaneseq
    %v5235 = vshrl.u32 %v5234, 7
    %v5236 = vsub.s32 0, %v5235
    %v5237 = vrot.slane %v5199, %v5236
    %v5238 = vlaneseq
    %v5239 = vshrl.u32 %v5238, 7
    %v5240 = vsub.s32 1, %v5239
    %v5241 = vrot.slane %v5199, %v5240
    %v6052 = vunpack.c.l.b16 %v4398
    %v6053 = vunpack.c.h.b16 %v4398
    %v6054 = vunpack.c.l.b16 %v4399
    %v6055 = vunpack.c.h.b16 %v4399
    %v6056 = vunpack.c.l.b16 %v4400
    %v6057 = vunpack.c.h.b16 %v4400
    %v6058 = vunpack.c.l.b16 %v4401
    %v6059 = vunpack.c.h.b16 %v4401
    %v6060 = vunpack.c.l.b16 %v4402
    %v6061 = vunpack.c.h.b16 %v4402
    %v6062 = vunpack.c.l.b16 %v4403
    %v6063 = vunpack.c.h.b16 %v4403
    %v6064 = vunpack.c.l.b16 %v4404
    %v6065 = vunpack.c.h.b16 %v4404
    %v6066 = vunpack.c.l.b16 %v4405
    %v6067 = vunpack.c.h.b16 %v4405
    %v6068 = vunpack.c.l.b16 %v4406
    %v6069 = vunpack.c.h.b16 %v4406
    %v6070 = vunpack.c.l.b16 %v4407
    %v6071 = vunpack.c.h.b16 %v4407
    %v6072 = vunpack.c.l.b16 %v4408
    %v6073 = vunpack.c.h.b16 %v4408
    %v6074 = vunpack.c.l.b16 %v4409
    %v6075 = vunpack.c.h.b16 %v4409
    %v6076 = vunpack.c.l.b16 %v4410
    %v6077 = vunpack.c.h.b16 %v4410
    %v6078 = vunpack.c.l.b16 %v4411
    %v6079 = vunpack.c.h.b16 %v4411
    %v6080 = vunpack.c.l.b16 %v4412
    %v6081 = vunpack.c.h.b16 %v4412
    %v6082 = vunpack.c.l.b16 %v4413
    %v6083 = vunpack.c.h.b16 %v4413
    %v6084 = vunpack.c.l.b16 %v4414
    %v6085 = vunpack.c.h.b16 %v4414
    %v6086 = vunpack.c.l.b16 %v4415
    %v6087 = vunpack.c.h.b16 %v4415
    %v6088 = vunpack.c.l.b16 %v4416
    %v6089 = vunpack.c.h.b16 %v4416
    %v6090 = vunpack.c.l.b16 %v4417
    %v6091 = vunpack.c.h.b16 %v4417
    %v6092 = vunpack.c.l.b16 %v4418
    %v6093 = vunpack.c.h.b16 %v4418
    %v6094 = vunpack.c.l.b16 %v4419
    %v6095 = vunpack.c.h.b16 %v4419
    %v6096 = vunpack.c.l.b16 %v4420
    %v6097 = vunpack.c.h.b16 %v4420
    %v6098 = vunpack.c.l.b16 %v4421
    %v6099 = vunpack.c.h.b16 %v4421
    %v6100 = vunpack.c.l.b16 %v4422
    %v6101 = vunpack.c.h.b16 %v4422
    %v6102 = vunpack.c.l.b16 %v4423
    %v6103 = vunpack.c.h.b16 %v4423
    %v6104 = vunpack.c.l.b16 %v4424
    %v6105 = vunpack.c.h.b16 %v4424
    %v6106 = vunpack.c.l.b16 %v4425
    %v6107 = vunpack.c.h.b16 %v4425
    %v6108 = vunpack.c.l.b16 %v4426
    %v6109 = vunpack.c.h.b16 %v4426
    %v6110 = vunpack.c.l.b16 %v4427
    %v6111 = vunpack.c.h.b16 %v4427
    %v6112 = vunpack.c.l.b16 %v4428
    %v6113 = vunpack.c.h.b16 %v4428
    %v6114 = vunpack.c.l.b16 %v4429
    %v6115 = vunpack.c.h.b16 %v4429
    %v6116 = vunpack.c.l.b16 %v4430
    %v6117 = vunpack.c.h.b16 %v4430
    %v6118 = vunpack.c.l.b16 %v4431
    %v6119 = vunpack.c.h.b16 %v4431
    %v6120 = vunpack.c.l.b16 %v4432
    %v6121 = vunpack.c.h.b16 %v4432
    %v6122 = vunpack.c.l.b16 %v4433
    %v6123 = vunpack.c.h.b16 %v4433
    %v6124 = vunpack.c.l.b16 %v4434
    %v6125 = vunpack.c.h.b16 %v4434
    %v6126 = vunpack.c.l.b16 %v4435
    %v6127 = vunpack.c.h.b16 %v4435
    %v6128 = vunpack.c.l.b16 %v4436
    %v6129 = vunpack.c.h.b16 %v4436
    %v6130 = vunpack.c.l.b16 %v4437
    %v6131 = vunpack.c.h.b16 %v4437
    %v6132 = vunpack.c.l.b16 %v4438
    %v6133 = vunpack.c.h.b16 %v4438
    %v6134 = vunpack.c.l.b16 %v4439
    %v6135 = vunpack.c.h.b16 %v4439
    %v6136 = vunpack.c.l.b16 %v4440
    %v6137 = vunpack.c.h.b16 %v4440
    %v6138 = vunpack.c.l.b16 %v4441
    %v6139 = vunpack.c.h.b16 %v4441
    %v6140 = vunpack.c.l.b16 %v4442
    %v6141 = vunpack.c.h.b16 %v4442
    %v6142 = vunpack.c.l.b16 %v4443
    %v6143 = vunpack.c.h.b16 %v4443
    %v6144 = vunpack.c.l.b16 %v4444
    %v6145 = vunpack.c.h.b16 %v4444
    %v6146 = vunpack.c.l.b16 %v4445
    %v6147 = vunpack.c.h.b16 %v4445
    %v6148 = vunpack.c.l.b16 %v4446
    %v6149 = vunpack.c.h.b16 %v4446
    %v6150 = vunpack.c.l.b16 %v4447
    %v6151 = vunpack.c.h.b16 %v4447
    %v6152 = vunpack.c.l.b16 %v4448
    %v6153 = vunpack.c.h.b16 %v4448
    %v6154 = vunpack.c.l.b16 %v4449
    %v6155 = vunpack.c.h.b16 %v4449
    %v6156 = vunpack.c.l.b16 %v4450
    %v6157 = vunpack.c.h.b16 %v4450
    %v6158 = vunpack.c.l.b16 %v4451
    %v6159 = vunpack.c.h.b16 %v4451
    %v6160 = vunpack.c.l.b16 %v4452
    %v6161 = vunpack.c.h.b16 %v4452
    %v6162 = vunpack.c.l.b16 %v4453
    %v6163 = vunpack.c.h.b16 %v4453
    %v6164 = vunpack.c.l.b16 %v4454
    %v6165 = vunpack.c.h.b16 %v4454
    %v6166 = vunpack.c.l.b16 %v4455
    %v6167 = vunpack.c.h.b16 %v4455
    %v6168 = vunpack.c.l.b16 %v4456
    %v6169 = vunpack.c.h.b16 %v4456
    %v6170 = vunpack.c.l.b16 %v4457
    %v6171 = vunpack.c.h.b16 %v4457
    %v6172 = vunpack.c.l.b16 %v4458
    %v6173 = vunpack.c.h.b16 %v4458
    %v6174 = vunpack.c.l.b16 %v4459
    %v6175 = vunpack.c.h.b16 %v4459
    %v6176 = vunpack.c.l.b16 %v4460
    %v6177 = vunpack.c.h.b16 %v4460
    %v6178 = vunpack.c.l.b16 %v4461
    %v6179 = vunpack.c.h.b16 %v4461
    %v6180 = vunpack.c.l.b16 %v4462
    %v6181 = vunpack.c.h.b16 %v4462
    %v6182 = vunpack.c.l.b16 %v4463
    %v6183 = vunpack.c.h.b16 %v4463
    %v6184 = vunpack.c.l.b16 %v4464
    %v6185 = vunpack.c.h.b16 %v4464
    %v6186 = vunpack.c.l.b16 %v4465
    %v6187 = vunpack.c.h.b16 %v4465
    %v6188 = vunpack.c.l.b16 %v4466
    %v6189 = vunpack.c.h.b16 %v4466
    %v6190 = vunpack.c.l.b16 %v4467
    %v6191 = vunpack.c.h.b16 %v4467
    %v6192 = vunpack.c.l.b16 %v4468
    %v6193 = vunpack.c.h.b16 %v4468
    %v6194 = vunpack.c.l.b16 %v4469
    %v6195 = vunpack.c.h.b16 %v4469
    %v6196 = vunpack.c.l.b16 %v4470
    %v6197 = vunpack.c.h.b16 %v4470
    %v6198 = vunpack.c.l.b16 %v4471
    %v6199 = vunpack.c.h.b16 %v4471
    %v6200 = vunpack.c.l.b16 %v4472
    %v6201 = vunpack.c.h.b16 %v4472
    %v6202 = vunpack.c.l.b16 %v4473
    %v6203 = vunpack.c.h.b16 %v4473
    %v6204 = vunpack.c.l.b16 %v4474
    %v6205 = vunpack.c.h.b16 %v4474
    %v6206 = vunpack.c.l.b16 %v4475
    %v6207 = vunpack.c.h.b16 %v4475
    %v6208 = vunpack.c.l.b16 %v4476
    %v6209 = vunpack.c.h.b16 %v4476
    %v6210 = vunpack.c.l.b16 %v4477
    %v6211 = vunpack.c.h.b16 %v4477
    %v6212 = vunpack.c.l.b16 %v4478
    %v6213 = vunpack.c.h.b16 %v4478
    %v6214 = vunpack.c.l.b16 %v4479
    %v6215 = vunpack.c.h.b16 %v4479
    %v6216 = vunpack.c.l.b16 %v4480
    %v6217 = vunpack.c.h.b16 %v4480
    %v6218 = vunpack.c.l.b16 %v4481
    %v6219 = vunpack.c.h.b16 %v4481
    %v6220 = vunpack.c.l.b16 %v4482
    %v6221 = vunpack.c.h.b16 %v4482
    %v6222 = vunpack.c.l.b16 %v4483
    %v6223 = vunpack.c.h.b16 %v4483
    %v6224 = vunpack.c.l.b16 %v4484
    %v6225 = vunpack.c.h.b16 %v4484
    %v6226 = vunpack.c.l.b16 %v4485
    %v6227 = vunpack.c.h.b16 %v4485
    %v6228 = vunpack.c.l.b16 %v4486
    %v6229 = vunpack.c.h.b16 %v4486
    %v6230 = vunpack.c.l.b16 %v4487
    %v6231 = vunpack.c.h.b16 %v4487
    %v6232 = vunpack.c.l.b16 %v4488
    %v6233 = vunpack.c.h.b16 %v4488
    %v6234 = vunpack.c.l.b16 %v4489
    %v6235 = vunpack.c.h.b16 %v4489
    %v6236 = vunpack.c.l.b16 %v4490
    %v6237 = vunpack.c.h.b16 %v4490
    %v6238 = vunpack.c.l.b16 %v4491
    %v6239 = vunpack.c.h.b16 %v4491
    %v6240 = vunpack.c.l.b16 %v4492
    %v6241 = vunpack.c.h.b16 %v4492
    %v6242 = vunpack.c.l.b16 %v4493
    %v6243 = vunpack.c.h.b16 %v4493
    %v6244 = vunpack.c.l.b16 %v4494
    %v6245 = vunpack.c.h.b16 %v4494
    %v6246 = vunpack.c.l.b16 %v4495
    %v6247 = vunpack.c.h.b16 %v4495
    %v6248 = vunpack.c.l.b16 %v4496
    %v6249 = vunpack.c.h.b16 %v4496
    %v6250 = vunpack.c.l.b16 %v4497
    %v6251 = vunpack.c.h.b16 %v4497
    %v6252 = vunpack.c.l.b16 %v4498
    %v6253 = vunpack.c.h.b16 %v4498
    %v6254 = vunpack.c.l.b16 %v4499
    %v6255 = vunpack.c.h.b16 %v4499
    %v6256 = vunpack.c.l.b16 %v4500
    %v6257 = vunpack.c.h.b16 %v4500
    %v6258 = vunpack.c.l.b16 %v4501
    %v6259 = vunpack.c.h.b16 %v4501
    %v6260 = vunpack.c.l.b16 %v4502
    %v6261 = vunpack.c.h.b16 %v4502
    %v6262 = vunpack.c.l.b16 %v4503
    %v6263 = vunpack.c.h.b16 %v4503
    %v6264 = vunpack.c.l.b16 %v4504
    %v6265 = vunpack.c.h.b16 %v4504
    %v6266 = vunpack.c.l.b16 %v4505
    %v6267 = vunpack.c.h.b16 %v4505
    %v6268 = vunpack.c.l.b16 %v4506
    %v6269 = vunpack.c.h.b16 %v4506
    %v6270 = vunpack.c.l.b16 %v4507
    %v6271 = vunpack.c.h.b16 %v4507
    %v6272 = vunpack.c.l.b16 %v4508
    %v6273 = vunpack.c.h.b16 %v4508
    %v6274 = vunpack.c.l.b16 %v4509
    %v6275 = vunpack.c.h.b16 %v4509
    %v6276 = vunpack.c.l.b16 %v4510
    %v6277 = vunpack.c.h.b16 %v4510
    %v6278 = vunpack.c.l.b16 %v4511
    %v6279 = vunpack.c.h.b16 %v4511
    %v6280 = vunpack.c.l.b16 %v4512
    %v6281 = vunpack.c.h.b16 %v4512
    %v6282 = vunpack.c.l.b16 %v4513
    %v6283 = vunpack.c.h.b16 %v4513
    %v6284 = vunpack.c.l.b16 %v4514
    %v6285 = vunpack.c.h.b16 %v4514
    %v6286 = vunpack.c.l.b16 %v4515
    %v6287 = vunpack.c.h.b16 %v4515
    %v6288 = vunpack.c.l.b16 %v4516
    %v6289 = vunpack.c.h.b16 %v4516
    %v6290 = vunpack.c.l.b16 %v4517
    %v6291 = vunpack.c.h.b16 %v4517
    %v6292 = vunpack.c.l.b16 %v4518
    %v6293 = vunpack.c.h.b16 %v4518
    %v6294 = vunpack.c.l.b16 %v4519
    %v6295 = vunpack.c.h.b16 %v4519
    %v6296 = vunpack.c.l.b16 %v4520
    %v6297 = vunpack.c.h.b16 %v4520
    %v6298 = vunpack.c.l.b16 %v4521
    %v6299 = vunpack.c.h.b16 %v4521
    %v6300 = vunpack.c.l.b16 %v4522
    %v6301 = vunpack.c.h.b16 %v4522
    %v6302 = vunpack.c.l.b16 %v4523
    %v6303 = vunpack.c.h.b16 %v4523
    %v6304 = vunpack.c.l.b16 %v4524
    %v6305 = vunpack.c.h.b16 %v4524
    %v6306 = vunpack.c.l.b16 %v4525
    %v6307 = vunpack.c.h.b16 %v4525
    %v6308 = vunpack.c.l.b16 %v4526
    %v6309 = vunpack.c.h.b16 %v4526
    %v6310 = vunpack.c.l.b16 %v4527
    %v6311 = vunpack.c.h.b16 %v4527
    %v6312 = vunpack.c.l.b16 %v4528
    %v6313 = vunpack.c.h.b16 %v4528
    %v6314 = vunpack.c.l.b16 %v4529
    %v6315 = vunpack.c.h.b16 %v4529
    %v6316 = vunpack.c.l.b16 %v4530
    %v6317 = vunpack.c.h.b16 %v4530
    %v6318 = vunpack.c.l.b16 %v4531
    %v6319 = vunpack.c.h.b16 %v4531
    %v6320 = vunpack.c.l.b16 %v4532
    %v6321 = vunpack.c.h.b16 %v4532
    %v6322 = vunpack.c.l.b16 %v4533
    %v6323 = vunpack.c.h.b16 %v4533
    %v6324 = vunpack.c.l.b16 %v4534
    %v6325 = vunpack.c.h.b16 %v4534
    %v6326 = vunpack.c.l.b16 %v4535
    %v6327 = vunpack.c.h.b16 %v4535
    %v6328 = vunpack.c.l.b16 %v4536
    %v6329 = vunpack.c.h.b16 %v4536
    %v6330 = vunpack.c.l.b16 %v4537
    %v6331 = vunpack.c.h.b16 %v4537
    %v6332 = vunpack.c.l.b16 %v4538
    %v6333 = vunpack.c.h.b16 %v4538
    %v6334 = vunpack.c.l.b16 %v4539
    %v6335 = vunpack.c.h.b16 %v4539
    %v6336 = vunpack.c.l.b16 %v4540
    %v6337 = vunpack.c.h.b16 %v4540
    %v6338 = vunpack.c.l.b16 %v4541
    %v6339 = vunpack.c.h.b16 %v4541
    %v6340 = vunpack.c.l.b16 %v4542
    %v6341 = vunpack.c.h.b16 %v4542
    %v6342 = vunpack.c.l.b16 %v4543
    %v6343 = vunpack.c.h.b16 %v4543
    %v6344 = vunpack.c.l.b16 %v4544
    %v6345 = vunpack.c.h.b16 %v4544
    %v6346 = vunpack.c.l.b16 %v4545
    %v6347 = vunpack.c.h.b16 %v4545
    %v6348 = vunpack.c.l.b16 %v4546
    %v6349 = vunpack.c.h.b16 %v4546
    %v6350 = vunpack.c.l.b16 %v4547
    %v6351 = vunpack.c.h.b16 %v4547
    %v6352 = vunpack.c.l.b16 %v4548
    %v6353 = vunpack.c.h.b16 %v4548
    %v6354 = vunpack.c.l.b16 %v4549
    %v6355 = vunpack.c.h.b16 %v4549
    %v6356 = vunpack.c.l.b16 %v4550
    %v6357 = vunpack.c.h.b16 %v4550
    %v6358 = vunpack.c.l.b16 %v4551
    %v6359 = vunpack.c.h.b16 %v4551
    %v6360 = vunpack.c.l.b16 %v4552
    %v6361 = vunpack.c.h.b16 %v4552
    %v6362 = vunpack.c.l.b16 %v4553
    %v6363 = vunpack.c.h.b16 %v4553
    %v6364 = vunpack.c.l.b16 %v4554
    %v6365 = vunpack.c.h.b16 %v4554
    %v6366 = vunpack.c.l.b16 %v4555
    %v6367 = vunpack.c.h.b16 %v4555
    %v6368 = vunpack.c.l.b16 %v4556
    %v6369 = vunpack.c.h.b16 %v4556
    %v6370 = vunpack.c.l.b16 %v4557
    %v6371 = vunpack.c.h.b16 %v4557
    %v6372 = vunpack.c.l.b16 %v4558
    %v6373 = vunpack.c.h.b16 %v4558
    %v6374 = vunpack.c.l.b16 %v4559
    %v6375 = vunpack.c.h.b16 %v4559
    %v6376 = vunpack.c.l.b16 %v4560
    %v6377 = vunpack.c.h.b16 %v4560
    %v6378 = vunpack.c.l.b16 %v4561
    %v6379 = vunpack.c.h.b16 %v4561
    %v6380 = vunpack.c.l.b16 %v4562
    %v6381 = vunpack.c.h.b16 %v4562
    %v6382 = vunpack.c.l.b16 %v4563
    %v6383 = vunpack.c.h.b16 %v4563
    %v6384 = vunpack.c.l.b16 %v4564
    %v6385 = vunpack.c.h.b16 %v4564
    %v6386 = vunpack.c.l.b16 %v4565
    %v6387 = vunpack.c.h.b16 %v4565
    %v6388 = vunpack.c.l.b16 %v4566
    %v6389 = vunpack.c.h.b16 %v4566
    %v6390 = vunpack.c.l.b16 %v4567
    %v6391 = vunpack.c.h.b16 %v4567
    %v6392 = vunpack.c.l.b16 %v4568
    %v6393 = vunpack.c.h.b16 %v4568
    %v6394 = vunpack.c.l.b16 %v4569
    %v6395 = vunpack.c.h.b16 %v4569
    %v6396 = vunpack.c.l.b16 %v4570
    %v6397 = vunpack.c.h.b16 %v4570
    %v6398 = vunpack.c.l.b16 %v4571
    %v6399 = vunpack.c.h.b16 %v4571
    %v6400 = vunpack.c.l.b16 %v4572
    %v6401 = vunpack.c.h.b16 %v4572
    %v6402 = vunpack.c.l.b16 %v4573
    %v6403 = vunpack.c.h.b16 %v4573
    %v6404 = vunpack.c.l.b16 %v4574
    %v6405 = vunpack.c.h.b16 %v4574
    %v6406 = vunpack.c.l.b16 %v4575
    %v6407 = vunpack.c.h.b16 %v4575
    %v6408 = vunpack.c.l.b16 %v4576
    %v6409 = vunpack.c.h.b16 %v4576
    %v6410 = vunpack.c.l.b16 %v4577
    %v6411 = vunpack.c.h.b16 %v4577
    %v6412 = vunpack.c.l.b16 %v4578
    %v6413 = vunpack.c.h.b16 %v4578
    %v6414 = vunpack.c.l.b16 %v4579
    %v6415 = vunpack.c.h.b16 %v4579
    %v6416 = vunpack.c.l.b16 %v4580
    %v6417 = vunpack.c.h.b16 %v4580
    %v6418 = vunpack.c.l.b16 %v4581
    %v6419 = vunpack.c.h.b16 %v4581
    %v6420 = vunpack.c.l.b16 %v4582
    %v6421 = vunpack.c.h.b16 %v4582
    %v6422 = vunpack.c.l.b16 %v4583
    %v6423 = vunpack.c.h.b16 %v4583
    %v6424 = vunpack.c.l.b16 %v4584
    %v6425 = vunpack.c.h.b16 %v4584
    %v6426 = vunpack.c.l.b16 %v4585
    %v6427 = vunpack.c.h.b16 %v4585
    %v6428 = vunpack.c.l.b16 %v4586
    %v6429 = vunpack.c.h.b16 %v4586
    %v6430 = vunpack.c.l.b16 %v4587
    %v6431 = vunpack.c.h.b16 %v4587
    %v6432 = vunpack.c.l.b16 %v4588
    %v6433 = vunpack.c.h.b16 %v4588
    %v6434 = vunpack.c.l.b16 %v4589
    %v6435 = vunpack.c.h.b16 %v4589
    %v6436 = vunpack.c.l.b16 %v4590
    %v6437 = vunpack.c.h.b16 %v4590
    %v6438 = vunpack.c.l.b16 %v4591
    %v6439 = vunpack.c.h.b16 %v4591
    %v6440 = vunpack.c.l.b16 %v4592
    %v6441 = vunpack.c.h.b16 %v4592
    %v6442 = vunpack.c.l.b16 %v4593
    %v6443 = vunpack.c.h.b16 %v4593
    %v6444 = vunpack.c.l.b16 %v4594
    %v6445 = vunpack.c.h.b16 %v4594
    %v6446 = vunpack.c.l.b16 %v4595
    %v6447 = vunpack.c.h.b16 %v4595
    %v6448 = vunpack.c.l.b16 %v4596
    %v6449 = vunpack.c.h.b16 %v4596
    %v6450 = vunpack.c.l.b16 %v4597
    %v6451 = vunpack.c.h.b16 %v4597
    %v6452 = vunpack.c.l.b16 %v4598
    %v6453 = vunpack.c.h.b16 %v4598
    %v6454 = vunpack.c.l.b16 %v4599
    %v6455 = vunpack.c.h.b16 %v4599
    %v6456 = vunpack.c.l.b16 %v4600
    %v6457 = vunpack.c.h.b16 %v4600
    %v6458 = vunpack.c.l.b16 %v4601
    %v6459 = vunpack.c.h.b16 %v4601
    %v6460 = vunpack.c.l.b16 %v4602
    %v6461 = vunpack.c.h.b16 %v4602
    %v6462 = vunpack.c.l.b16 %v4603
    %v6463 = vunpack.c.h.b16 %v4603
    %v6464 = vunpack.c.l.b16 %v4604
    %v6465 = vunpack.c.h.b16 %v4604
    %v6466 = vunpack.c.l.b16 %v4605
    %v6467 = vunpack.c.h.b16 %v4605
    %v6468 = vunpack.c.l.b16 %v4606
    %v6469 = vunpack.c.h.b16 %v4606
    %v6470 = vunpack.c.l.b16 %v4607
    %v6471 = vunpack.c.h.b16 %v4607
    %v6472 = vunpack.c.l.b16 %v4608
    %v6473 = vunpack.c.h.b16 %v4608
    %v6474 = vunpack.c.l.b16 %v4609
    %v6475 = vunpack.c.h.b16 %v4609
    %v6476 = vunpack.c.l.b16 %v4610
    %v6477 = vunpack.c.h.b16 %v4610
    %v6478 = vunpack.c.l.b16 %v4611
    %v6479 = vunpack.c.h.b16 %v4611
    %v6480 = vunpack.c.l.b16 %v4612
    %v6481 = vunpack.c.h.b16 %v4612
    %v6482 = vunpack.c.l.b16 %v4613
    %v6483 = vunpack.c.h.b16 %v4613
    %v6484 = vunpack.c.l.b16 %v4614
    %v6485 = vunpack.c.h.b16 %v4614
    %v6486 = vunpack.c.l.b16 %v4615
    %v6487 = vunpack.c.h.b16 %v4615
    %v6488 = vunpack.c.l.b16 %v4616
    %v6489 = vunpack.c.h.b16 %v4616
    %v6490 = vunpack.c.l.b16 %v4617
    %v6491 = vunpack.c.h.b16 %v4617
    %v6492 = vunpack.c.l.b16 %v4618
    %v6493 = vunpack.c.h.b16 %v4618
    %v6494 = vunpack.c.l.b16 %v4619
    %v6495 = vunpack.c.h.b16 %v4619
    %v6496 = vunpack.c.l.b16 %v4620
    %v6497 = vunpack.c.h.b16 %v4620
    %v6498 = vunpack.c.l.b16 %v4621
    %v6499 = vunpack.c.h.b16 %v4621
    %v6500 = vunpack.c.l.b16 %v4622
    %v6501 = vunpack.c.h.b16 %v4622
    %v6502 = vunpack.c.l.b16 %v4623
    %v6503 = vunpack.c.h.b16 %v4623
    %v6504 = vunpack.c.l.b16 %v4624
    %v6505 = vunpack.c.h.b16 %v4624
    %v6506 = vunpack.c.l.b16 %v4625
    %v6507 = vunpack.c.h.b16 %v4625
    %v6508 = vunpack.c.l.b16 %v4626
    %v6509 = vunpack.c.h.b16 %v4626
    %v6510 = vunpack.c.l.b16 %v4627
    %v6511 = vunpack.c.h.b16 %v4627
    %v6512 = vunpack.c.l.b16 %v4628
    %v6513 = vunpack.c.h.b16 %v4628
    %v6514 = vunpack.c.l.b16 %v4629
    %v6515 = vunpack.c.h.b16 %v4629
    %v6516 = vunpack.c.l.b16 %v4630
    %v6517 = vunpack.c.h.b16 %v4630
    %v6518 = vunpack.c.l.b16 %v4631
    %v6519 = vunpack.c.h.b16 %v4631
    %v6520 = vunpack.c.l.b16 %v4632
    %v6521 = vunpack.c.h.b16 %v4632
    %v6522 = vunpack.c.l.b16 %v4633
    %v6523 = vunpack.c.h.b16 %v4633
    %v6524 = vunpack.c.l.b16 %v4634
    %v6525 = vunpack.c.h.b16 %v4634
    %v6526 = vunpack.c.l.b16 %v4635
    %v6527 = vunpack.c.h.b16 %v4635
    %v6528 = vunpack.c.l.b16 %v4636
    %v6529 = vunpack.c.h.b16 %v4636
    %v6530 = vunpack.c.l.b16 %v4637
    %v6531 = vunpack.c.h.b16 %v4637
    %v6532 = vunpack.c.l.b16 %v4638
    %v6533 = vunpack.c.h.b16 %v4638
    %v6534 = vunpack.c.l.b16 %v4639
    %v6535 = vunpack.c.h.b16 %v4639
    %v6536 = vunpack.c.l.b16 %v4640
    %v6537 = vunpack.c.h.b16 %v4640
    %v6538 = vunpack.c.l.b16 %v4641
    %v6539 = vunpack.c.h.b16 %v4641
    %v6540 = vunpack.c.l.b16 %v4642
    %v6541 = vunpack.c.h.b16 %v4642
    %v6542 = vunpack.c.l.b16 %v4643
    %v6543 = vunpack.c.h.b16 %v4643
    %v6544 = vunpack.c.l.b16 %v4644
    %v6545 = vunpack.c.h.b16 %v4644
    %v6546 = vunpack.c.l.b16 %v4645
    %v6547 = vunpack.c.h.b16 %v4645
    %v6548 = vunpack.c.l.b16 %v4646
    %v6549 = vunpack.c.h.b16 %v4646
    %v6550 = vunpack.c.l.b16 %v4647
    %v6551 = vunpack.c.h.b16 %v4647
    %v6552 = vunpack.c.l.b16 %v4648
    %v6553 = vunpack.c.h.b16 %v4648
    %v6554 = vunpack.c.l.b16 %v4649
    %v6555 = vunpack.c.h.b16 %v4649
    %v6556 = vunpack.c.l.b16 %v4650
    %v6557 = vunpack.c.h.b16 %v4650
    %v6558 = vunpack.c.l.b16 %v4651
    %v6559 = vunpack.c.h.b16 %v4651
    %v6560 = vunpack.c.l.b16 %v4652
    %v6561 = vunpack.c.h.b16 %v4652
    %v6562 = vunpack.c.l.b16 %v4653
    %v6563 = vunpack.c.h.b16 %v4653
    %v6564 = vunpack.c.l.b16 %v4654
    %v6565 = vunpack.c.h.b16 %v4654
    %v6566 = vunpack.c.l.b16 %v4655
    %v6567 = vunpack.c.h.b16 %v4655
    %v6568 = vunpack.c.l.b16 %v4656
    %v6569 = vunpack.c.h.b16 %v4656
    %v6570 = vunpack.c.l.b16 %v4657
    %v6571 = vunpack.c.h.b16 %v4657
    %v6572 = vunpack.c.l.b16 %v4658
    %v6573 = vunpack.c.h.b16 %v4658
    %v6574 = vunpack.c.l.b16 %v4659
    %v6575 = vunpack.c.h.b16 %v4659
    %v6576 = vunpack.c.l.b16 %v4660
    %v6577 = vunpack.c.h.b16 %v4660
    %v6578 = vunpack.c.l.b16 %v4661
    %v6579 = vunpack.c.h.b16 %v4661
    %v6580 = vunpack.c.l.b16 %v4662
    %v6581 = vunpack.c.h.b16 %v4662
    %v6582 = vunpack.c.l.b16 %v4663
    %v6583 = vunpack.c.h.b16 %v4663
    %v6584 = vunpack.c.l.b16 %v4664
    %v6585 = vunpack.c.h.b16 %v4664
    %v6586 = vunpack.c.l.b16 %v4665
    %v6587 = vunpack.c.h.b16 %v4665
    %v6588 = vunpack.c.l.b16 %v4666
    %v6589 = vunpack.c.h.b16 %v4666
    %v6590 = vunpack.c.l.b16 %v4667
    %v6591 = vunpack.c.h.b16 %v4667
    %v6592 = vunpack.c.l.b16 %v4668
    %v6593 = vunpack.c.h.b16 %v4668
    %v6594 = vunpack.c.l.b16 %v4669
    %v6595 = vunpack.c.h.b16 %v4669
    %v6596 = vunpack.c.l.b16 %v4670
    %v6597 = vunpack.c.h.b16 %v4670
    %v6598 = vunpack.c.l.b16 %v4671
    %v6599 = vunpack.c.h.b16 %v4671
    %v6600 = vunpack.c.l.b16 %v4672
    %v6601 = vunpack.c.h.b16 %v4672
    %v6602 = vunpack.c.l.b16 %v4673
    %v6603 = vunpack.c.h.b16 %v4673
    %v6604 = vunpack.c.l.b16 %v4674
    %v6605 = vunpack.c.h.b16 %v4674
    %v6606 = vunpack.c.l.b16 %v4675
    %v6607 = vunpack.c.h.b16 %v4675
    %v6608 = vunpack.c.l.b16 %v4676
    %v6609 = vunpack.c.h.b16 %v4676
    %v6610 = vunpack.c.l.b16 %v4677
    %v6611 = vunpack.c.h.b16 %v4677
    %v6612 = vunpack.c.l.b16 %v4678
    %v6613 = vunpack.c.h.b16 %v4678
    %v6614 = vunpack.c.l.b16 %v4679
    %v6615 = vunpack.c.h.b16 %v4679
    %v6616 = vunpack.c.l.b16 %v4680
    %v6617 = vunpack.c.h.b16 %v4680
    %v6618 = vunpack.c.l.b16 %v4681
    %v6619 = vunpack.c.h.b16 %v4681
    %v6620 = vunpack.c.l.b16 %v4682
    %v6621 = vunpack.c.h.b16 %v4682
    %v6622 = vunpack.c.l.b16 %v4683
    %v6623 = vunpack.c.h.b16 %v4683
    %v6624 = vunpack.c.l.b16 %v4684
    %v6625 = vunpack.c.h.b16 %v4684
    %v6626 = vunpack.c.l.b16 %v4685
    %v6627 = vunpack.c.h.b16 %v4685
    %v6628 = vunpack.c.l.b16 %v4686
    %v6629 = vunpack.c.h.b16 %v4686
    %v6630 = vunpack.c.l.b16 %v4687
    %v6631 = vunpack.c.h.b16 %v4687
    %v6632 = vunpack.c.l.b16 %v4688
    %v6633 = vunpack.c.h.b16 %v4688
    %v6634 = vunpack.c.l.b16 %v4689
    %v6635 = vunpack.c.h.b16 %v4689
    %v6636 = vunpack.c.l.b16 %v4690
    %v6637 = vunpack.c.h.b16 %v4690
    %v6638 = vunpack.c.l.b16 %v4691
    %v6639 = vunpack.c.h.b16 %v4691
    %v6640 = vunpack.c.l.b16 %v4692
    %v6641 = vunpack.c.h.b16 %v4692
    %v6642 = vunpack.c.l.b16 %v4693
    %v6643 = vunpack.c.h.b16 %v4693
    %v6644 = vunpack.c.l.b16 %v4694
    %v6645 = vunpack.c.h.b16 %v4694
    %v6646 = vunpack.c.l.b16 %v4695
    %v6647 = vunpack.c.h.b16 %v4695
    %v6648 = vunpack.c.l.b16 %v4696
    %v6649 = vunpack.c.h.b16 %v4696
    %v6650 = vunpack.c.l.b16 %v4697
    %v6651 = vunpack.c.h.b16 %v4697
    %v6652 = vunpack.c.l.b16 %v4698
    %v6653 = vunpack.c.h.b16 %v4698
    %v6654 = vunpack.c.l.b16 %v4699
    %v6655 = vunpack.c.h.b16 %v4699
    %v6656 = vunpack.c.l.b16 %v4700
    %v6657 = vunpack.c.h.b16 %v4700
    %v6658 = vunpack.c.l.b16 %v4701
    %v6659 = vunpack.c.h.b16 %v4701
    %v6660 = vunpack.c.l.b16 %v4702
    %v6661 = vunpack.c.h.b16 %v4702
    %v6662 = vunpack.c.l.b16 %v4703
    %v6663 = vunpack.c.h.b16 %v4703
    %v6664 = vunpack.c.l.b16 %v4704
    %v6665 = vunpack.c.h.b16 %v4704
    %v6666 = vunpack.c.l.b16 %v4705
    %v6667 = vunpack.c.h.b16 %v4705
    %v6668 = vunpack.c.l.b16 %v4706
    %v6669 = vunpack.c.h.b16 %v4706
    %v6670 = vunpack.c.l.b16 %v4707
    %v6671 = vunpack.c.h.b16 %v4707
    %v6672 = vunpack.c.l.b16 %v4708
    %v6673 = vunpack.c.h.b16 %v4708
    %v6674 = vunpack.c.l.b16 %v4709
    %v6675 = vunpack.c.h.b16 %v4709
    %v6676 = vunpack.c.l.b16 %v4710
    %v6677 = vunpack.c.h.b16 %v4710
    %v6678 = vunpack.c.l.b16 %v4711
    %v6679 = vunpack.c.h.b16 %v4711
    %v6680 = vunpack.c.l.b16 %v4712
    %v6681 = vunpack.c.h.b16 %v4712
    %v6682 = vunpack.c.l.b16 %v4713
    %v6683 = vunpack.c.h.b16 %v4713
    %v6684 = vunpack.c.l.b16 %v4714
    %v6685 = vunpack.c.h.b16 %v4714
    %v6686 = vunpack.c.l.b16 %v4715
    %v6687 = vunpack.c.h.b16 %v4715
    %v6688 = vunpack.c.l.b16 %v4716
    %v6689 = vunpack.c.h.b16 %v4716
    %v6690 = vunpack.c.l.b16 %v4717
    %v6691 = vunpack.c.h.b16 %v4717
    %v6692 = vunpack.c.l.b16 %v4718
    %v6693 = vunpack.c.h.b16 %v4718
    %v6694 = vunpack.c.l.b16 %v4719
    %v6695 = vunpack.c.h.b16 %v4719
    %v6696 = vunpack.c.l.b16 %v4720
    %v6697 = vunpack.c.h.b16 %v4720
    %v6698 = vunpack.c.l.b16 %v4721
    %v6699 = vunpack.c.h.b16 %v4721
    %v6700 = vunpack.c.l.b16 %v4722
    %v6701 = vunpack.c.h.b16 %v4722
    %v6702 = vunpack.c.l.b16 %v4723
    %v6703 = vunpack.c.h.b16 %v4723
    %v6704 = vunpack.c.l.b16 %v4724
    %v6705 = vunpack.c.h.b16 %v4724
    %v6706 = vunpack.c.l.b16 %v4725
    %v6707 = vunpack.c.h.b16 %v4725
    %v6708 = vunpack.c.l.b16 %v4726
    %v6709 = vunpack.c.h.b16 %v4726
    %v6710 = vunpack.c.l.b16 %v4727
    %v6711 = vunpack.c.h.b16 %v4727
    %v6712 = vunpack.c.l.b16 %v4728
    %v6713 = vunpack.c.h.b16 %v4728
    %v6714 = vunpack.c.l.b16 %v4729
    %v6715 = vunpack.c.h.b16 %v4729
    %v6716 = vunpack.c.l.b16 %v4730
    %v6717 = vunpack.c.h.b16 %v4730
    %v6718 = vunpack.c.l.b16 %v4731
    %v6719 = vunpack.c.h.b16 %v4731
    %v6720 = vunpack.c.l.b16 %v4732
    %v6721 = vunpack.c.h.b16 %v4732
    %v6722 = vunpack.c.l.b16 %v4733
    %v6723 = vunpack.c.h.b16 %v4733
    %v6724 = vunpack.c.l.b16 %v4734
    %v6725 = vunpack.c.h.b16 %v4734
    %v6726 = vunpack.c.l.b16 %v4735
    %v6727 = vunpack.c.h.b16 %v4735
    %v6728 = vunpack.c.l.b16 %v4736
    %v6729 = vunpack.c.h.b16 %v4736
    %v6730 = vunpack.c.l.b16 %v4737
    %v6731 = vunpack.c.h.b16 %v4737
    %v6732 = vunpack.c.l.b16 %v4738
    %v6733 = vunpack.c.h.b16 %v4738
    %v6734 = vunpack.c.l.b16 %v4739
    %v6735 = vunpack.c.h.b16 %v4739
    %v6736 = vunpack.c.l.b16 %v4740
    %v6737 = vunpack.c.h.b16 %v4740
    %v6738 = vunpack.c.l.b16 %v4741
    %v6739 = vunpack.c.h.b16 %v4741
    %v6740 = vunpack.c.l.b16 %v4742
    %v6741 = vunpack.c.h.b16 %v4742
    %v6742 = vunpack.c.l.b16 %v4743
    %v6743 = vunpack.c.h.b16 %v4743
    %v6744 = vunpack.c.l.b16 %v4744
    %v6745 = vunpack.c.h.b16 %v4744
    %v6746 = vunpack.c.l.b16 %v4745
    %v6747 = vunpack.c.h.b16 %v4745
    %v6748 = vunpack.c.l.b16 %v4746
    %v6749 = vunpack.c.h.b16 %v4746
    %v6750 = vunpack.c.l.b16 %v4747
    %v6751 = vunpack.c.h.b16 %v4747
    %v6752 = vunpack.c.l.b16 %v4748
    %v6753 = vunpack.c.h.b16 %v4748
    %v6754 = vunpack.c.l.b16 %v4749
    %v6755 = vunpack.c.h.b16 %v4749
    %v6756 = vunpack.c.l.b16 %v4750
    %v6757 = vunpack.c.h.b16 %v4750
    %v6758 = vunpack.c.l.b16 %v4751
    %v6759 = vunpack.c.h.b16 %v4751
    %v6760 = vunpack.c.l.b16 %v4752
    %v6761 = vunpack.c.h.b16 %v4752
    %v6762 = vunpack.c.l.b16 %v4753
    %v6763 = vunpack.c.h.b16 %v4753
    %v6764 = vunpack.c.l.b16 %v4754
    %v6765 = vunpack.c.h.b16 %v4754
    %v6766 = vunpack.c.l.b16 %v4755
    %v6767 = vunpack.c.h.b16 %v4755
    %v6768 = vunpack.c.l.b16 %v4756
    %v6769 = vunpack.c.h.b16 %v4756
    %v6770 = vunpack.c.l.b16 %v4757
    %v6771 = vunpack.c.h.b16 %v4757
    %v6772 = vunpack.c.l.b16 %v4758
    %v6773 = vunpack.c.h.b16 %v4758
    %v6774 = vunpack.c.l.b16 %v4759
    %v6775 = vunpack.c.h.b16 %v4759
    %v6776 = vunpack.c.l.b16 %v4760
    %v6777 = vunpack.c.h.b16 %v4760
    %v6778 = vunpack.c.l.b16 %v4761
    %v6779 = vunpack.c.h.b16 %v4761
    %v6780 = vunpack.c.l.b16 %v4762
    %v6781 = vunpack.c.h.b16 %v4762
    %v6782 = vunpack.c.l.b16 %v4763
    %v6783 = vunpack.c.h.b16 %v4763
    %v6784 = vunpack.c.l.b16 %v4764
    %v6785 = vunpack.c.h.b16 %v4764
    %v6786 = vunpack.c.l.b16 %v4765
    %v6787 = vunpack.c.h.b16 %v4765
    %v6788 = vunpack.c.l.b16 %v4766
    %v6789 = vunpack.c.h.b16 %v4766
    %v6790 = vunpack.c.l.b16 %v4767
    %v6791 = vunpack.c.h.b16 %v4767
    %v6792 = vunpack.c.l.b16 %v4768
    %v6793 = vunpack.c.h.b16 %v4768
    %v6794 = vunpack.c.l.b16 %v4769
    %v6795 = vunpack.c.h.b16 %v4769
    %v6796 = vunpack.c.l.b16 %v4770
    %v6797 = vunpack.c.h.b16 %v4770
    %v6798 = vunpack.c.l.b16 %v4771
    %v6799 = vunpack.c.h.b16 %v4771
    %v6800 = vunpack.c.l.b16 %v4772
    %v6801 = vunpack.c.h.b16 %v4772
    %v6802 = vunpack.c.l.b16 %v4773
    %v6803 = vunpack.c.h.b16 %v4773
    %v6804 = vunpack.c.l.b16 %v4774
    %v6805 = vunpack.c.h.b16 %v4774
    %v6806 = vunpack.c.l.b16 %v4775
    %v6807 = vunpack.c.h.b16 %v4775
    %v6808 = vunpack.c.l.b16 %v4776
    %v6809 = vunpack.c.h.b16 %v4776
    %v6810 = vunpack.c.l.b16 %v4777
    %v6811 = vunpack.c.h.b16 %v4777
    %v6812 = vunpack.c.l.b16 %v4778
    %v6813 = vunpack.c.h.b16 %v4778
    %v6814 = vunpack.c.l.b16 %v4779
    %v6815 = vunpack.c.h.b16 %v4779
    %v6816 = vunpack.c.l.b16 %v4780
    %v6817 = vunpack.c.h.b16 %v4780
    %v6818 = vunpack.c.l.b16 %v4781
    %v6819 = vunpack.c.h.b16 %v4781
    %v6820 = vunpack.c.l.b16 %v4782
    %v6821 = vunpack.c.h.b16 %v4782
    %v6822 = vunpack.c.l.b16 %v4783
    %v6823 = vunpack.c.h.b16 %v4783
    %v6824 = vunpack.c.l.b16 %v4784
    %v6825 = vunpack.c.h.b16 %v4784
    %v6826 = vunpack.c.l.b16 %v4785
    %v6827 = vunpack.c.h.b16 %v4785
    %v6828 = vunpack.c.l.b16 %v4786
    %v6829 = vunpack.c.h.b16 %v4786
    %v6830 = vunpack.c.l.b16 %v4787
    %v6831 = vunpack.c.h.b16 %v4787
    %v6832 = vunpack.c.l.b16 %v4788
    %v6833 = vunpack.c.h.b16 %v4788
    %v6834 = vunpack.c.l.b16 %v4789
    %v6835 = vunpack.c.h.b16 %v4789
    %v6836 = vunpack.c.l.b16 %v4790
    %v6837 = vunpack.c.h.b16 %v4790
    %v6838 = vunpack.c.l.b16 %v4791
    %v6839 = vunpack.c.h.b16 %v4791
    %v6840 = vunpack.c.l.b16 %v4792
    %v6841 = vunpack.c.h.b16 %v4792
    %v6842 = vunpack.c.l.b16 %v4793
    %v6843 = vunpack.c.h.b16 %v4793
    %v6844 = vunpack.c.l.b16 %v4794
    %v6845 = vunpack.c.h.b16 %v4794
    %v6846 = vunpack.c.l.b16 %v4795
    %v6847 = vunpack.c.h.b16 %v4795
    %v6848 = vunpack.c.l.b16 %v4796
    %v6849 = vunpack.c.h.b16 %v4796
    %v6850 = vunpack.c.l.b16 %v4797
    %v6851 = vunpack.c.h.b16 %v4797
    %v6852 = vunpack.c.l.b16 %v4798
    %v6853 = vunpack.c.h.b16 %v4798
    %v6854 = vunpack.c.l.b16 %v4799
    %v6855 = vunpack.c.h.b16 %v4799
    %v6856 = vunpack.c.l.b16 %v4800
    %v6857 = vunpack.c.h.b16 %v4800
    %v6858 = vunpack.c.l.b16 %v4801
    %v6859 = vunpack.c.h.b16 %v4801
    %v6860 = vunpack.c.l.b16 %v4802
    %v6861 = vunpack.c.h.b16 %v4802
    %v6862 = vunpack.c.l.b16 %v4803
    %v6863 = vunpack.c.h.b16 %v4803
    %v6864 = vunpack.c.l.b16 %v4804
    %v6865 = vunpack.c.h.b16 %v4804
    %v6866 = vunpack.c.l.b16 %v4805
    %v6867 = vunpack.c.h.b16 %v4805
    %v6868 = vunpack.c.l.b16 %v4806
    %v6869 = vunpack.c.h.b16 %v4806
    %v6870 = vunpack.c.l.b16 %v4807
    %v6871 = vunpack.c.h.b16 %v4807
    %v6872 = vunpack.c.l.b16 %v4808
    %v6873 = vunpack.c.h.b16 %v4808
    %v6874 = vunpack.c.l.b16 %v4809
    %v6875 = vunpack.c.h.b16 %v4809
    %v6876 = vunpack.c.l.b16 %v4810
    %v6877 = vunpack.c.h.b16 %v4810
    %v6878 = vunpack.c.l.b16 %v4811
    %v6879 = vunpack.c.h.b16 %v4811
    %v6880 = vunpack.c.l.b16 %v4812
    %v6881 = vunpack.c.h.b16 %v4812
    %v6882 = vunpack.c.l.b16 %v4813
    %v6883 = vunpack.c.h.b16 %v4813
    %v6884 = vunpack.c.l.b16 %v4814
    %v6885 = vunpack.c.h.b16 %v4814
    %v6886 = vunpack.c.l.b16 %v4815
    %v6887 = vunpack.c.h.b16 %v4815
    %v6888 = vunpack.c.l.b16 %v4816
    %v6889 = vunpack.c.h.b16 %v4816
    %v6890 = vunpack.c.l.b16 %v4817
    %v6891 = vunpack.c.h.b16 %v4817
    %v6892 = vunpack.c.l.b16 %v4818
    %v6893 = vunpack.c.h.b16 %v4818
    %v6894 = vunpack.c.l.b16 %v4819
    %v6895 = vunpack.c.h.b16 %v4819
    %v6896 = vunpack.c.l.b16 %v4820
    %v6897 = vunpack.c.h.b16 %v4820
    %v6898 = vunpack.c.l.b16 %v4821
    %v6899 = vunpack.c.h.b16 %v4821
    %v6900 = vunpack.c.l.b16 %v4822
    %v6901 = vunpack.c.h.b16 %v4822
    %v6902 = vunpack.c.l.b16 %v4823
    %v6903 = vunpack.c.h.b16 %v4823
    %v6904 = vunpack.c.l.b16 %v4824
    %v6905 = vunpack.c.h.b16 %v4824
    %v6906 = vunpack.c.l.b16 %v4825
    %v6907 = vunpack.c.h.b16 %v4825
    %v6908 = vunpack.c.l.b16 %v4826
    %v6909 = vunpack.c.h.b16 %v4826
    %v6910 = vunpack.c.l.b16 %v4827
    %v6911 = vunpack.c.h.b16 %v4827
    %v6912 = vunpack.c.l.b16 %v4828
    %v6913 = vunpack.c.h.b16 %v4828
    %v6914 = vunpack.c.l.b16 %v4829
    %v6915 = vunpack.c.h.b16 %v4829
    %v6916 = vunpack.c.l.b16 %v4830
    %v6917 = vunpack.c.h.b16 %v4830
    %v6918 = vunpack.c.l.b16 %v4831
    %v6919 = vunpack.c.h.b16 %v4831
    %v6920 = vunpack.c.l.b16 %v4832
    %v6921 = vunpack.c.h.b16 %v4832
    %v6922 = vunpack.c.l.b16 %v4833
    %v6923 = vunpack.c.h.b16 %v4833
    %v6924 = vunpack.c.l.b16 %v4834
    %v6925 = vunpack.c.h.b16 %v4834
    %v6926 = vunpack.c.l.b16 %v4835
    %v6927 = vunpack.c.h.b16 %v4835
    %v6928 = vunpack.c.l.b16 %v4836
    %v6929 = vunpack.c.h.b16 %v4836
    %v6930 = vunpack.c.l.b16 %v4837
    %v6931 = vunpack.c.h.b16 %v4837
    %v6932 = vunpack.c.l.b16 %v4838
    %v6933 = vunpack.c.h.b16 %v4838
    %v6934 = vunpack.c.l.b16 %v4839
    %v6935 = vunpack.c.h.b16 %v4839
    %v6936 = vunpack.c.l.b16 %v4840
    %v6937 = vunpack.c.h.b16 %v4840
    %v6938 = vunpack.c.l.b16 %v4841
    %v6939 = vunpack.c.h.b16 %v4841
    %v6940 = vunpack.c.l.b16 %v4842
    %v6941 = vunpack.c.h.b16 %v4842
    %v6942 = vunpack.c.l.b16 %v4843
    %v6943 = vunpack.c.h.b16 %v4843
    %v6944 = vunpack.c.l.b16 %v4844
    %v6945 = vunpack.c.h.b16 %v4844
    %v6946 = vunpack.c.l.b16 %v4845
    %v6947 = vunpack.c.h.b16 %v4845
    %v6948 = vunpack.c.l.b16 %v4846
    %v6949 = vunpack.c.h.b16 %v4846
    %v6950 = vunpack.c.l.b16 %v4847
    %v6951 = vunpack.c.h.b16 %v4847
    %v6952 = vunpack.c.l.b16 %v4848
    %v6953 = vunpack.c.h.b16 %v4848
    %v6954 = vunpack.c.l.b16 %v4849
    %v6955 = vunpack.c.h.b16 %v4849
    %v6956 = vunpack.c.l.b16 %v4850
    %v6957 = vunpack.c.h.b16 %v4850
    %v6958 = vunpack.c.l.b16 %v4851
    %v6959 = vunpack.c.h.b16 %v4851
    %v6960 = vunpack.c.l.b16 %v4852
    %v6961 = vunpack.c.h.b16 %v4852
    %v6962 = vunpack.c.l.b16 %v4853
    %v6963 = vunpack.c.h.b16 %v4853
    %v6964 = vunpack.c.l.b16 %v4854
    %v6965 = vunpack.c.h.b16 %v4854
    %v6966 = vunpack.c.l.b16 %v4855
    %v6967 = vunpack.c.h.b16 %v4855
    %v6968 = vunpack.c.l.b16 %v4856
    %v6969 = vunpack.c.h.b16 %v4856
    %v6970 = vunpack.c.l.b16 %v4857
    %v6971 = vunpack.c.h.b16 %v4857
    %v6972 = vunpack.c.l.b16 %v4858
    %v6973 = vunpack.c.h.b16 %v4858
    %v6974 = vunpack.c.l.b16 %v4859
    %v6975 = vunpack.c.h.b16 %v4859
    %v6976 = vunpack.c.l.b16 %v4860
    %v6977 = vunpack.c.h.b16 %v4860
    %v6978 = vunpack.c.l.b16 %v4861
    %v6979 = vunpack.c.h.b16 %v4861
    %v6980 = vunpack.c.l.b16 %v4862
    %v6981 = vunpack.c.h.b16 %v4862
    %v6982 = vunpack.c.l.b16 %v4863
    %v6983 = vunpack.c.h.b16 %v4863
    %v6984 = vunpack.c.l.b16 %v4864
    %v6985 = vunpack.c.h.b16 %v4864
    %v6986 = vunpack.c.l.b16 %v4865
    %v6987 = vunpack.c.h.b16 %v4865
    %v6988 = vunpack.c.l.b16 %v4866
    %v6989 = vunpack.c.h.b16 %v4866
    %v6990 = vunpack.c.l.b16 %v4867
    %v6991 = vunpack.c.h.b16 %v4867
    %v6992 = vunpack.c.l.b16 %v4868
    %v6993 = vunpack.c.h.b16 %v4868
    %v6994 = vunpack.c.l.b16 %v4869
    %v6995 = vunpack.c.h.b16 %v4869
    %v6996 = vunpack.c.l.b16 %v4870
    %v6997 = vunpack.c.h.b16 %v4870
    %v6998 = vunpack.c.l.b16 %v4871
    %v6999 = vunpack.c.h.b16 %v4871
    %v7000 = vunpack.c.l.b16 %v4872
    %v7001 = vunpack.c.h.b16 %v4872
    %v7002 = vunpack.c.l.b16 %v4873
    %v7003 = vunpack.c.h.b16 %v4873
    %v7004 = vunpack.c.l.b16 %v4874
    %v7005 = vunpack.c.h.b16 %v4874
    %v7006 = vunpack.c.l.b16 %v4875
    %v7007 = vunpack.c.h.b16 %v4875
    %v7008 = vunpack.c.l.b16 %v4876
    %v7009 = vunpack.c.h.b16 %v4876
    %v7010 = vunpack.c.l.b16 %v4877
    %v7011 = vunpack.c.h.b16 %v4877
    %v7012 = vunpack.c.l.b16 %v4878
    %v7013 = vunpack.c.h.b16 %v4878
    %v7014 = vunpack.c.l.b16 %v4879
    %v7015 = vunpack.c.h.b16 %v4879
    %v7016 = vunpack.c.l.b16 %v4880
    %v7017 = vunpack.c.h.b16 %v4880
    %v7018 = vunpack.c.l.b16 %v4881
    %v7019 = vunpack.c.h.b16 %v4881
    %v7020 = vunpack.c.l.b16 %v4882
    %v7021 = vunpack.c.h.b16 %v4882
    %v7022 = vunpack.c.l.b16 %v4883
    %v7023 = vunpack.c.h.b16 %v4883
    %v7024 = vunpack.c.l.b16 %v4884
    %v7025 = vunpack.c.h.b16 %v4884
    %v7026 = vunpack.c.l.b16 %v4885
    %v7027 = vunpack.c.h.b16 %v4885
    %v7028 = vunpack.c.l.b16 %v4886
    %v7029 = vunpack.c.h.b16 %v4886
    %v7030 = vunpack.c.l.b16 %v4887
    %v7031 = vunpack.c.h.b16 %v4887
    %v7032 = vunpack.c.l.b16 %v4888
    %v7033 = vunpack.c.h.b16 %v4888
    %v7034 = vunpack.c.l.b16 %v4889
    %v7035 = vunpack.c.h.b16 %v4889
    %v7036 = vunpack.c.l.b16 %v4890
    %v7037 = vunpack.c.h.b16 %v4890
    %v7038 = vunpack.c.l.b16 %v4891
    %v7039 = vunpack.c.h.b16 %v4891
    %v7040 = vunpack.c.l.b16 %v4892
    %v7041 = vunpack.c.h.b16 %v4892
    %v7042 = vunpack.c.l.b16 %v4893
    %v7043 = vunpack.c.h.b16 %v4893
    %v7044 = vunpack.c.l.b16 %v4894
    %v7045 = vunpack.c.h.b16 %v4894
    %v7046 = vunpack.c.l.b16 %v4895
    %v7047 = vunpack.c.h.b16 %v4895
    %v7048 = vunpack.c.l.b16 %v4896
    %v7049 = vunpack.c.h.b16 %v4896
    %v7050 = vunpack.c.l.b16 %v4897
    %v7051 = vunpack.c.h.b16 %v4897
    %v7052 = vunpack.c.l.b16 %v4898
    %v7053 = vunpack.c.h.b16 %v4898
    %v7054 = vunpack.c.l.b16 %v4899
    %v7055 = vunpack.c.h.b16 %v4899
    %v7056 = vunpack.c.l.b16 %v4900
    %v7057 = vunpack.c.h.b16 %v4900
    %v7058 = vunpack.c.l.b16 %v4901
    %v7059 = vunpack.c.h.b16 %v4901
    %v7060 = vunpack.c.l.b16 %v4902
    %v7061 = vunpack.c.h.b16 %v4902
    %v7062 = vunpack.c.l.b16 %v4903
    %v7063 = vunpack.c.h.b16 %v4903
    %v7064 = vunpack.c.l.b16 %v4904
    %v7065 = vunpack.c.h.b16 %v4904
    %v7066 = vunpack.c.l.b16 %v4905
    %v7067 = vunpack.c.h.b16 %v4905
    %v7068 = vunpack.c.l.b16 %v4906
    %v7069 = vunpack.c.h.b16 %v4906
    %v7070 = vunpack.c.l.b16 %v4907
    %v7071 = vunpack.c.h.b16 %v4907
    %v7072 = vunpack.c.l.b16 %v4908
    %v7073 = vunpack.c.h.b16 %v4908
    %v7074 = vunpack.c.l.b16 %v4909
    %v7075 = vunpack.c.h.b16 %v4909
    %v7076 = vunpack.c.l.b16 %v4910
    %v7077 = vunpack.c.h.b16 %v4910
    %v7078 = vunpack.c.l.b16 %v4911
    %v7079 = vunpack.c.h.b16 %v4911
    %v7080 = vunpack.c.l.b16 %v4912
    %v7081 = vunpack.c.h.b16 %v4912
    %v7082 = vunpack.c.l.b16 %v4913
    %v7083 = vunpack.c.h.b16 %v4913
    %v7084 = vunpack.c.l.b16 %v4914
    %v7085 = vunpack.c.h.b16 %v4914
    %v7086 = vunpack.c.l.b16 %v4915
    %v7087 = vunpack.c.h.b16 %v4915
    %v7088 = vunpack.c.l.b16 %v4916
    %v7089 = vunpack.c.h.b16 %v4916
    %v7090 = vunpack.c.l.b16 %v4917
    %v7091 = vunpack.c.h.b16 %v4917
    %v7092 = vunpack.c.l.b16 %v4918
    %v7093 = vunpack.c.h.b16 %v4918
    %v7094 = vunpack.c.l.b16 %v4919
    %v7095 = vunpack.c.h.b16 %v4919
    %v7096 = vunpack.c.l.b16 %v4920
    %v7097 = vunpack.c.h.b16 %v4920
    %v7098 = vunpack.c.l.b16 %v4921
    %v7099 = vunpack.c.h.b16 %v4921
    %v7100 = vunpack.c.l.b16 %v4922
    %v7101 = vunpack.c.h.b16 %v4922
    %v7102 = vunpack.c.l.b16 %v4923
    %v7103 = vunpack.c.h.b16 %v4923
    %v7104 = vunpack.c.l.b16 %v4924
    %v7105 = vunpack.c.h.b16 %v4924
    %v7106 = vunpack.c.l.b16 %v4925
    %v7107 = vunpack.c.h.b16 %v4925
    %v7108 = vunpack.c.l.b16 %v4926
    %v7109 = vunpack.c.h.b16 %v4926
    %v7110 = vunpack.c.l.b16 %v4927
    %v7111 = vunpack.c.h.b16 %v4927
    %v7112 = vunpack.c.l.b16 %v4928
    %v7113 = vunpack.c.h.b16 %v4928
    %v7114 = vunpack.c.l.b16 %v4929
    %v7115 = vunpack.c.h.b16 %v4929
    %v7116 = vunpack.c.l.b16 %v4930
    %v7117 = vunpack.c.h.b16 %v4930
    %v7118 = vunpack.c.l.b16 %v4931
    %v7119 = vunpack.c.h.b16 %v4931
    %v7120 = vunpack.c.l.b16 %v4932
    %v7121 = vunpack.c.h.b16 %v4932
    %v7122 = vunpack.c.l.b16 %v4933
    %v7123 = vunpack.c.h.b16 %v4933
    %v7124 = vunpack.c.l.b16 %v4934
    %v7125 = vunpack.c.h.b16 %v4934
    %v7126 = vunpack.c.l.b16 %v4935
    %v7127 = vunpack.c.h.b16 %v4935
    %v7128 = vunpack.c.l.b16 %v4936
    %v7129 = vunpack.c.h.b16 %v4936
    %v7130 = vunpack.c.l.b16 %v4937
    %v7131 = vunpack.c.h.b16 %v4937
    %v7132 = vunpack.c.l.b16 %v4938
    %v7133 = vunpack.c.h.b16 %v4938
    %v7134 = vunpack.c.l.b16 %v4939
    %v7135 = vunpack.c.h.b16 %v4939
    %v7136 = vunpack.c.l.b16 %v4940
    %v7137 = vunpack.c.h.b16 %v4940
    %v7138 = vunpack.c.l.b16 %v4941
    %v7139 = vunpack.c.h.b16 %v4941
    %v7140 = vunpack.c.l.b16 %v4942
    %v7141 = vunpack.c.h.b16 %v4942
    %v7142 = vunpack.c.l.b16 %v4943
    %v7143 = vunpack.c.h.b16 %v4943
    %v7144 = vunpack.c.l.b16 %v4944
    %v7145 = vunpack.c.h.b16 %v4944
    %v7146 = vunpack.c.l.b16 %v4945
    %v7147 = vunpack.c.h.b16 %v4945
    %v7148 = vunpack.c.l.b16 %v4946
    %v7149 = vunpack.c.h.b16 %v4946
    %v7150 = vunpack.c.l.b16 %v4947
    %v7151 = vunpack.c.h.b16 %v4947
    %v7152 = vunpack.c.l.b16 %v4948
    %v7153 = vunpack.c.h.b16 %v4948
    %v7154 = vunpack.c.l.b16 %v4949
    %v7155 = vunpack.c.h.b16 %v4949
    %v7156 = vunpack.c.l.b16 %v4950
    %v7157 = vunpack.c.h.b16 %v4950
    %v7158 = vunpack.c.l.b16 %v4951
    %v7159 = vunpack.c.h.b16 %v4951
    %v7160 = vunpack.c.l.b16 %v4952
    %v7161 = vunpack.c.h.b16 %v4952
    %v7162 = vunpack.c.l.b16 %v4953
    %v7163 = vunpack.c.h.b16 %v4953
    %v7164 = vunpack.c.l.b16 %v4954
    %v7165 = vunpack.c.h.b16 %v4954
    %v7166 = vunpack.c.l.b16 %v4955
    %v7167 = vunpack.c.h.b16 %v4955
    %v7168 = vunpack.c.l.b16 %v4956
    %v7169 = vunpack.c.h.b16 %v4956
    %v7170 = vunpack.c.l.b16 %v4957
    %v7171 = vunpack.c.h.b16 %v4957
    %v7172 = vunpack.c.l.b16 %v4958
    %v7173 = vunpack.c.h.b16 %v4958
    %v7174 = vunpack.c.l.b16 %v4959
    %v7175 = vunpack.c.h.b16 %v4959
    %v7176 = vunpack.c.l.b16 %v4960
    %v7177 = vunpack.c.h.b16 %v4960
    %v7178 = vunpack.c.l.b16 %v4961
    %v7179 = vunpack.c.h.b16 %v4961
    %v7180 = vunpack.c.l.b16 %v4962
    %v7181 = vunpack.c.h.b16 %v4962
    %v7182 = vunpack.c.l.b16 %v4963
    %v7183 = vunpack.c.h.b16 %v4963
    %v7184 = vunpack.c.l.b16 %v4964
    %v7185 = vunpack.c.h.b16 %v4964
    %v7186 = vunpack.c.l.b16 %v4965
    %v7187 = vunpack.c.h.b16 %v4965
    %v7188 = vunpack.c.l.b16 %v4966
    %v7189 = vunpack.c.h.b16 %v4966
    %v7190 = vunpack.c.l.b16 %v4967
    %v7191 = vunpack.c.h.b16 %v4967
    %v7192 = vunpack.c.l.b16 %v4968
    %v7193 = vunpack.c.h.b16 %v4968
    %v7194 = vunpack.c.l.b16 %v4969
    %v7195 = vunpack.c.h.b16 %v4969
    %v7196 = vunpack.c.l.b16 %v4970
    %v7197 = vunpack.c.h.b16 %v4970
    %v7198 = vunpack.c.l.b16 %v4971
    %v7199 = vunpack.c.h.b16 %v4971
    %v7200 = vunpack.c.l.b16 %v4972
    %v7201 = vunpack.c.h.b16 %v4972
    %v7202 = vunpack.c.l.b16 %v4973
    %v7203 = vunpack.c.h.b16 %v4973
    %v7204 = vunpack.c.l.b16 %v4974
    %v7205 = vunpack.c.h.b16 %v4974
    %v7206 = vunpack.c.l.b16 %v4975
    %v7207 = vunpack.c.h.b16 %v4975
    %v7208 = vunpack.c.l.b16 %v4976
    %v7209 = vunpack.c.h.b16 %v4976
    %v7210 = vunpack.c.l.b16 %v4977
    %v7211 = vunpack.c.h.b16 %v4977
    %v7212 = vunpack.c.l.b16 %v4978
    %v7213 = vunpack.c.h.b16 %v4978
    %v7214 = vunpack.c.l.b16 %v4979
    %v7215 = vunpack.c.h.b16 %v4979
    %v7216 = vunpack.c.l.b16 %v4980
    %v7217 = vunpack.c.h.b16 %v4980
    %v7218 = vunpack.c.l.b16 %v4981
    %v7219 = vunpack.c.h.b16 %v4981
    %v7220 = vunpack.c.l.b16 %v4982
    %v7221 = vunpack.c.h.b16 %v4982
    %v7222 = vunpack.c.l.b16 %v4983
    %v7223 = vunpack.c.h.b16 %v4983
    %v7224 = vunpack.c.l.b16 %v4984
    %v7225 = vunpack.c.h.b16 %v4984
    %v7226 = vunpack.c.l.b16 %v4985
    %v7227 = vunpack.c.h.b16 %v4985
    %v7228 = vunpack.c.l.b16 %v4986
    %v7229 = vunpack.c.h.b16 %v4986
    %v7230 = vunpack.c.l.b16 %v4987
    %v7231 = vunpack.c.h.b16 %v4987
    %v7232 = vunpack.c.l.b16 %v4988
    %v7233 = vunpack.c.h.b16 %v4988
    %v7234 = vunpack.c.l.b16 %v4989
    %v7235 = vunpack.c.h.b16 %v4989
    %v7236 = vunpack.c.l.b16 %v4990
    %v7237 = vunpack.c.h.b16 %v4990
    %v7238 = vunpack.c.l.b16 %v4991
    %v7239 = vunpack.c.h.b16 %v4991
    %v7240 = vunpack.c.l.b16 %v4992
    %v7241 = vunpack.c.h.b16 %v4992
    %v7242 = vunpack.c.l.b16 %v4993
    %v7243 = vunpack.c.h.b16 %v4993
    %v7244 = vunpack.c.l.b16 %v4994
    %v7245 = vunpack.c.h.b16 %v4994
    %v7246 = vunpack.c.l.b16 %v4995
    %v7247 = vunpack.c.h.b16 %v4995
    %v7248 = vunpack.c.l.b16 %v4996
    %v7249 = vunpack.c.h.b16 %v4996
    %v7250 = vunpack.c.l.b16 %v4997
    %v7251 = vunpack.c.h.b16 %v4997
    %v7252 = vunpack.c.l.b16 %v4998
    %v7253 = vunpack.c.h.b16 %v4998
    %v7254 = vunpack.c.l.b16 %v4999
    %v7255 = vunpack.c.h.b16 %v4999
    %v7256 = vunpack.c.l.b16 %v5000
    %v7257 = vunpack.c.h.b16 %v5000
    %v7258 = vunpack.c.l.b16 %v5001
    %v7259 = vunpack.c.h.b16 %v5001
    %v7260 = vunpack.c.l.b16 %v5002
    %v7261 = vunpack.c.h.b16 %v5002
    %v7262 = vunpack.c.l.b16 %v5003
    %v7263 = vunpack.c.h.b16 %v5003
    %v7264 = vunpack.c.l.b16 %v5004
    %v7265 = vunpack.c.h.b16 %v5004
    %v7266 = vunpack.c.l.b16 %v5005
    %v7267 = vunpack.c.h.b16 %v5005
    %v7268 = vunpack.c.l.b16 %v5006
    %v7269 = vunpack.c.h.b16 %v5006
    %v7270 = vunpack.c.l.b16 %v5007
    %v7271 = vunpack.c.h.b16 %v5007
    %v7272 = vunpack.c.l.b16 %v5008
    %v7273 = vunpack.c.h.b16 %v5008
    %v7274 = vunpack.c.l.b16 %v5009
    %v7275 = vunpack.c.h.b16 %v5009
    %v7276 = vunpack.c.l.b16 %v5010
    %v7277 = vunpack.c.h.b16 %v5010
    %v7278 = vunpack.c.l.b16 %v5011
    %v7279 = vunpack.c.h.b16 %v5011
    %v7280 = vunpack.c.l.b16 %v5012
    %v7281 = vunpack.c.h.b16 %v5012
    %v7282 = vunpack.c.l.b16 %v5013
    %v7283 = vunpack.c.h.b16 %v5013
    %v7284 = vunpack.c.l.b16 %v5014
    %v7285 = vunpack.c.h.b16 %v5014
    %v7286 = vunpack.c.l.b16 %v5015
    %v7287 = vunpack.c.h.b16 %v5015
    %v7288 = vunpack.c.l.b16 %v5016
    %v7289 = vunpack.c.h.b16 %v5016
    %v7290 = vunpack.c.l.b16 %v5017
    %v7291 = vunpack.c.h.b16 %v5017
    %v7292 = vunpack.c.l.b16 %v5018
    %v7293 = vunpack.c.h.b16 %v5018
    %v7294 = vunpack.c.l.b16 %v5019
    %v7295 = vunpack.c.h.b16 %v5019
    %v7296 = vunpack.c.l.b16 %v5020
    %v7297 = vunpack.c.h.b16 %v5020
    %v7298 = vunpack.c.l.b16 %v5021
    %v7299 = vunpack.c.h.b16 %v5021
    %v7300 = vunpack.c.l.b16 %v5022
    %v7301 = vunpack.c.h.b16 %v5022
    %v7302 = vunpack.c.l.b16 %v5023
    %v7303 = vunpack.c.h.b16 %v5023
    %v7304 = vunpack.c.l.b16 %v5024
    %v7305 = vunpack.c.h.b16 %v5024
    %v7306 = vunpack.c.l.b16 %v5025
    %v7307 = vunpack.c.h.b16 %v5025
    %v7308 = vunpack.c.l.b16 %v5026
    %v7309 = vunpack.c.h.b16 %v5026
    %v7310 = vunpack.c.l.b16 %v5027
    %v7311 = vunpack.c.h.b16 %v5027
    %v7312 = vunpack.c.l.b16 %v5028
    %v7313 = vunpack.c.h.b16 %v5028
    %v7314 = vunpack.c.l.b16 %v5029
    %v7315 = vunpack.c.h.b16 %v5029
    %v7316 = vunpack.c.l.b16 %v5030
    %v7317 = vunpack.c.h.b16 %v5030
    %v7318 = vunpack.c.l.b16 %v5031
    %v7319 = vunpack.c.h.b16 %v5031
    %v7320 = vunpack.c.l.b16 %v5032
    %v7321 = vunpack.c.h.b16 %v5032
    %v7322 = vunpack.c.l.b16 %v5033
    %v7323 = vunpack.c.h.b16 %v5033
    %v7324 = vunpack.c.l.b16 %v5034
    %v7325 = vunpack.c.h.b16 %v5034
    %v7326 = vunpack.c.l.b16 %v5035
    %v7327 = vunpack.c.h.b16 %v5035
    %v7328 = vunpack.c.l.b16 %v5036
    %v7329 = vunpack.c.h.b16 %v5036
    %v7330 = vunpack.c.l.b16 %v5037
    %v7331 = vunpack.c.h.b16 %v5037
    %v7332 = vunpack.c.l.b16 %v5038
    %v7333 = vunpack.c.h.b16 %v5038
    %v7334 = vunpack.c.l.b16 %v5039
    %v7335 = vunpack.c.h.b16 %v5039
    %v7336 = vunpack.c.l.b16 %v5040
    %v7337 = vunpack.c.h.b16 %v5040
    %v7338 = vunpack.c.l.b16 %v5041
    %v7339 = vunpack.c.h.b16 %v5041
    %v7340 = vunpack.c.l.b16 %v5042
    %v7341 = vunpack.c.h.b16 %v5042
    %v7342 = vunpack.c.l.b16 %v5043
    %v7343 = vunpack.c.h.b16 %v5043
    %v7344 = vunpack.c.l.b16 %v5044
    %v7345 = vunpack.c.h.b16 %v5044
    %v7346 = vunpack.c.l.b16 %v5045
    %v7347 = vunpack.c.h.b16 %v5045
    %v7348 = vunpack.c.l.b16 %v5046
    %v7349 = vunpack.c.h.b16 %v5046
    %v7350 = vunpack.c.l.b16 %v5047
    %v7351 = vunpack.c.h.b16 %v5047
    %v7352 = vunpack.c.l.b16 %v5048
    %v7353 = vunpack.c.h.b16 %v5048
    %v7354 = vunpack.c.l.b16 %v5049
    %v7355 = vunpack.c.h.b16 %v5049
    %v7356 = vunpack.c.l.b16 %v5050
    %v7357 = vunpack.c.h.b16 %v5050
    %v7358 = vunpack.c.l.b16 %v5051
    %v7359 = vunpack.c.h.b16 %v5051
    %v7360 = vunpack.c.l.b16 %v5052
    %v7361 = vunpack.c.h.b16 %v5052
    %v7362 = vunpack.c.l.b16 %v5053
    %v7363 = vunpack.c.h.b16 %v5053
    %v7364 = vunpack.c.l.b16 %v5054
    %v7365 = vunpack.c.h.b16 %v5054
    %v7366 = vunpack.c.l.b16 %v5055
    %v7367 = vunpack.c.h.b16 %v5055
    %v7368 = vunpack.c.l.b16 %v5056
    %v7369 = vunpack.c.h.b16 %v5056
    %v7370 = vunpack.c.l.b16 %v5057
    %v7371 = vunpack.c.h.b16 %v5057
    %v7372 = vunpack.c.l.b16 %v5058
    %v7373 = vunpack.c.h.b16 %v5058
    %v7374 = vunpack.c.l.b16 %v5059
    %v7375 = vunpack.c.h.b16 %v5059
    %v7376 = vunpack.c.l.b16 %v5060
    %v7377 = vunpack.c.h.b16 %v5060
    %v7378 = vunpack.c.l.b16 %v5061
    %v7379 = vunpack.c.h.b16 %v5061
    %v7380 = vunpack.c.l.b16 %v5062
    %v7381 = vunpack.c.h.b16 %v5062
    %v7382 = vunpack.c.l.b16 %v5063
    %v7383 = vunpack.c.h.b16 %v5063
    %v7384 = vunpack.c.l.b16 %v5064
    %v7385 = vunpack.c.h.b16 %v5064
    %v7386 = vunpack.c.l.b16 %v5065
    %v7387 = vunpack.c.h.b16 %v5065
    %v7388 = vunpack.c.l.b16 %v5066
    %v7389 = vunpack.c.h.b16 %v5066
    %v7390 = vunpack.c.l.b16 %v5067
    %v7391 = vunpack.c.h.b16 %v5067
    %v7392 = vunpack.c.l.b16 %v5068
    %v7393 = vunpack.c.h.b16 %v5068
    %v7394 = vunpack.c.l.b16 %v5069
    %v7395 = vunpack.c.h.b16 %v5069
    %v7396 = vunpack.c.l.b16 %v5070
    %v7397 = vunpack.c.h.b16 %v5070
    %v7398 = vunpack.c.l.b16 %v5071
    %v7399 = vunpack.c.h.b16 %v5071
    %v7400 = vunpack.c.l.b16 %v5072
    %v7401 = vunpack.c.h.b16 %v5072
    %v7402 = vunpack.c.l.b16 %v5073
    %v7403 = vunpack.c.h.b16 %v5073
    %v7404 = vunpack.c.l.b16 %v5074
    %v7405 = vunpack.c.h.b16 %v5074
    %v7406 = vunpack.c.l.b16 %v5075
    %v7407 = vunpack.c.h.b16 %v5075
    %v7408 = vunpack.c.l.b16 %v5076
    %v7409 = vunpack.c.h.b16 %v5076
    %v7410 = vunpack.c.l.b16 %v5077
    %v7411 = vunpack.c.h.b16 %v5077
    %v7412 = vunpack.c.l.b16 %v5078
    %v7413 = vunpack.c.h.b16 %v5078
    %v7414 = vunpack.c.l.b16 %v5079
    %v7415 = vunpack.c.h.b16 %v5079
    %v7416 = vunpack.c.l.b16 %v5080
    %v7417 = vunpack.c.h.b16 %v5080
    %v7418 = vunpack.c.l.b16 %v5081
    %v7419 = vunpack.c.h.b16 %v5081
    %v7420 = vunpack.c.l.b16 %v5082
    %v7421 = vunpack.c.h.b16 %v5082
    %v7422 = vunpack.c.l.b16 %v5083
    %v7423 = vunpack.c.h.b16 %v5083
    %v7424 = vunpack.c.l.b16 %v5084
    %v7425 = vunpack.c.h.b16 %v5084
    %v7426 = vunpack.c.l.b16 %v5085
    %v7427 = vunpack.c.h.b16 %v5085
    %v7428 = vunpack.c.l.b16 %v5086
    %v7429 = vunpack.c.h.b16 %v5086
    %v7430 = vunpack.c.l.b16 %v5087
    %v7431 = vunpack.c.h.b16 %v5087
    %v7432 = vunpack.c.l.b16 %v5088
    %v7433 = vunpack.c.h.b16 %v5088
    %v7434 = vunpack.c.l.b16 %v5089
    %v7435 = vunpack.c.h.b16 %v5089
    %v7436 = vunpack.c.l.b16 %v5090
    %v7437 = vunpack.c.h.b16 %v5090
    %v7438 = vunpack.c.l.b16 %v5091
    %v7439 = vunpack.c.h.b16 %v5091
    %v7440 = vunpack.c.l.b16 %v5092
    %v7441 = vunpack.c.h.b16 %v5092
    %v7442 = vunpack.c.l.b16 %v5093
    %v7443 = vunpack.c.h.b16 %v5093
    %v7444 = vunpack.c.l.b16 %v5094
    %v7445 = vunpack.c.h.b16 %v5094
    %v7446 = vunpack.c.l.b16 %v5095
    %v7447 = vunpack.c.h.b16 %v5095
    %v7448 = vunpack.c.l.b16 %v5096
    %v7449 = vunpack.c.h.b16 %v5096
    %v7450 = vunpack.c.l.b16 %v5097
    %v7451 = vunpack.c.h.b16 %v5097
    %v7452 = vunpack.c.l.b16 %v5098
    %v7453 = vunpack.c.h.b16 %v5098
    %v7454 = vunpack.c.l.b16 %v5099
    %v7455 = vunpack.c.h.b16 %v5099
    %v7456 = vunpack.c.l.b16 %v5100
    %v7457 = vunpack.c.h.b16 %v5100
    %v7458 = vunpack.c.l.b16 %v5101
    %v7459 = vunpack.c.h.b16 %v5101
    %v7460 = vunpack.c.l.b16 %v5102
    %v7461 = vunpack.c.h.b16 %v5102
    %v7462 = vunpack.c.l.b16 %v5103
    %v7463 = vunpack.c.h.b16 %v5103
    %v7464 = vunpack.c.l.b16 %v5104
    %v7465 = vunpack.c.h.b16 %v5104
    %v7466 = vunpack.c.l.b16 %v5105
    %v7467 = vunpack.c.h.b16 %v5105
    %v7468 = vunpack.c.l.b16 %v5106
    %v7469 = vunpack.c.h.b16 %v5106
    %v7470 = vunpack.c.l.b16 %v5107
    %v7471 = vunpack.c.h.b16 %v5107
    %v7472 = vunpack.c.l.b16 %v5108
    %v7473 = vunpack.c.h.b16 %v5108
    %v7474 = vunpack.c.l.b16 %v5109
    %v7475 = vunpack.c.h.b16 %v5109
    %v7476 = vunpack.c.l.b16 %v5110
    %v7477 = vunpack.c.h.b16 %v5110
    %v7478 = vunpack.c.l.b16 %v5111
    %v7479 = vunpack.c.h.b16 %v5111
    %v7480 = vunpack.c.l.b16 %v5112
    %v7481 = vunpack.c.h.b16 %v5112
    %v7482 = vunpack.c.l.b16 %v5113
    %v7483 = vunpack.c.h.b16 %v5113
    %v7484 = vunpack.c.l.b16 %v5114
    %v7485 = vunpack.c.h.b16 %v5114
    %v7486 = vunpack.c.l.b16 %v5115
    %v7487 = vunpack.c.h.b16 %v5115
    %v7488 = vunpack.c.l.b16 %v5116
    %v7489 = vunpack.c.h.b16 %v5116
    %v7490 = vunpack.c.l.b16 %v5117
    %v7491 = vunpack.c.h.b16 %v5117
    %v7492 = vunpack.c.l.b16 %v5118
    %v7493 = vunpack.c.h.b16 %v5118
    %v7494 = vunpack.c.l.b16 %v5119
    %v7495 = vunpack.c.h.b16 %v5119
    %v7496 = vunpack.c.l.b16 %v5120
    %v7497 = vunpack.c.h.b16 %v5120
    %v7498 = vunpack.c.l.b16 %v5121
    %v7499 = vunpack.c.h.b16 %v5121
    %v7500 = vunpack.c.l.b16 %v5122
    %v7501 = vunpack.c.h.b16 %v5122
    %v7502 = vunpack.c.l.b16 %v5123
    %v7503 = vunpack.c.h.b16 %v5123
    %v7504 = vunpack.c.l.b16 %v5124
    %v7505 = vunpack.c.h.b16 %v5124
    %v7506 = vunpack.c.l.b16 %v5125
    %v7507 = vunpack.c.h.b16 %v5125
    %v7508 = vunpack.c.l.b16 %v5126
    %v7509 = vunpack.c.h.b16 %v5126
    %v7510 = vunpack.c.l.b16 %v5127
    %v7511 = vunpack.c.h.b16 %v5127
    %v7512 = vunpack.c.l.b16 %v5128
    %v7513 = vunpack.c.h.b16 %v5128
    %v7514 = vunpack.c.l.b16 %v5129
    %v7515 = vunpack.c.h.b16 %v5129
    %v7516 = vunpack.c.l.b16 %v5130
    %v7517 = vunpack.c.h.b16 %v5130
    %v7518 = vunpack.c.l.b16 %v5131
    %v7519 = vunpack.c.h.b16 %v5131
    %v7520 = vunpack.c.l.b16 %v5132
    %v7521 = vunpack.c.h.b16 %v5132
    %v7522 = vunpack.c.l.b16 %v5133
    %v7523 = vunpack.c.h.b16 %v5133
    %v7524 = vunpack.c.l.b16 %v5134
    %v7525 = vunpack.c.h.b16 %v5134
    %v7526 = vunpack.c.l.b16 %v5135
    %v7527 = vunpack.c.h.b16 %v5135
    %v7528 = vunpack.c.l.b16 %v5136
    %v7529 = vunpack.c.h.b16 %v5136
    %v7530 = vunpack.c.l.b16 %v5137
    %v7531 = vunpack.c.h.b16 %v5137
    %v7532 = vunpack.c.l.b16 %v5138
    %v7533 = vunpack.c.h.b16 %v5138
    %v7534 = vunpack.c.l.b16 %v5139
    %v7535 = vunpack.c.h.b16 %v5139
    %v7536 = vunpack.c.l.b16 %v5140
    %v7537 = vunpack.c.h.b16 %v5140
    %v7538 = vunpack.c.l.b16 %v5141
    %v7539 = vunpack.c.h.b16 %v5141
    %v7540 = vunpack.c.l.b16 %v5142
    %v7541 = vunpack.c.h.b16 %v5142
    %v7542 = vunpack.c.l.b16 %v5143
    %v7543 = vunpack.c.h.b16 %v5143
    %v7544 = vunpack.c.l.b16 %v5144
    %v7545 = vunpack.c.h.b16 %v5144
    %v7546 = vunpack.c.l.b16 %v5145
    %v7547 = vunpack.c.h.b16 %v5145
    %v7548 = vunpack.c.l.b16 %v5146
    %v7549 = vunpack.c.h.b16 %v5146
    %v7550 = vunpack.c.l.b16 %v5147
    %v7551 = vunpack.c.h.b16 %v5147
    %v7552 = vunpack.c.l.b16 %v5148
    %v7553 = vunpack.c.h.b16 %v5148
    %v7554 = vunpack.c.l.b16 %v5149
    %v7555 = vunpack.c.h.b16 %v5149
    %v7556 = vunpack.c.l.b16 %v5150
    %v7557 = vunpack.c.h.b16 %v5150
    %v7558 = vunpack.c.l.b16 %v5151
    %v7559 = vunpack.c.h.b16 %v5151
    %v7560 = vunpack.c.l.b16 %v5152
    %v7561 = vunpack.c.h.b16 %v5152
    %v7562 = vunpack.c.l.b16 %v5153
    %v7563 = vunpack.c.h.b16 %v5153
    %v7564 = vunpack.c.l.b16 %v5154
    %v7565 = vunpack.c.h.b16 %v5154
    %v7566 = vunpack.c.l.b16 %v5155
    %v7567 = vunpack.c.h.b16 %v5155
    %v7568 = vunpack.c.l.b16 %v5156
    %v7569 = vunpack.c.h.b16 %v5156
    %v7570 = vunpack.c.l.b16 %v5157
    %v7571 = vunpack.c.h.b16 %v5157
    %v7572 = vunpack.c.l.b16 %v5158
    %v7573 = vunpack.c.h.b16 %v5158
    %v7574 = vunpack.c.l.b16 %v5159
    %v7575 = vunpack.c.h.b16 %v5159
    %v7576 = vunpack.c.l.b16 %v5160
    %v7577 = vunpack.c.h.b16 %v5160
    %v7578 = vunpack.c.l.b16 %v5161
    %v7579 = vunpack.c.h.b16 %v5161
    %v7580 = vunpack.c.l.b16 %v5162
    %v7581 = vunpack.c.h.b16 %v5162
    %v7582 = vunpack.c.l.b16 %v5163
    %v7583 = vunpack.c.h.b16 %v5163
    %v7584 = vunpack.c.l.b16 %v5164
    %v7585 = vunpack.c.h.b16 %v5164
    %v7586 = vunpack.c.l.b16 %v5165
    %v7587 = vunpack.c.h.b16 %v5165
    %v7588 = vunpack.c.l.b16 %v5166
    %v7589 = vunpack.c.h.b16 %v5166
    %v7590 = vunpack.c.l.b16 %v5167
    %v7591 = vunpack.c.h.b16 %v5167
    %v7592 = vunpack.c.l.b16 %v5168
    %v7593 = vunpack.c.h.b16 %v5168
    %v7594 = vunpack.c.l.b16 %v5169
    %v7595 = vunpack.c.h.b16 %v5169
    %v7596 = vunpack.c.l.b16 %v5170
    %v7597 = vunpack.c.h.b16 %v5170
    %v7598 = vunpack.c.l.b16 %v5171
    %v7599 = vunpack.c.h.b16 %v5171
    %v7600 = vunpack.c.l.b16 %v5172
    %v7601 = vunpack.c.h.b16 %v5172
    %v7602 = vunpack.c.l.b16 %v5173
    %v7603 = vunpack.c.h.b16 %v5173
    %v7604 = vunpack.c.l.b16 %v5174
    %v7605 = vunpack.c.h.b16 %v5174
    %v7606 = vunpack.c.l.b16 %v5175
    %v7607 = vunpack.c.h.b16 %v5175
    %v7608 = vunpack.c.l.b16 %v5176
    %v7609 = vunpack.c.h.b16 %v5176
    %v7610 = vunpack.c.l.b16 %v5177
    %v7611 = vunpack.c.h.b16 %v5177
    %v7612 = vunpack.c.l.b16 %v5178
    %v7613 = vunpack.c.h.b16 %v5178
    %v7614 = vunpack.c.l.b16 %v5179
    %v7615 = vunpack.c.h.b16 %v5179
    %v7616 = vunpack.c.l.b16 %v5180
    %v7617 = vunpack.c.h.b16 %v5180
    %v7618 = vunpack.c.l.b16 %v5181
    %v7619 = vunpack.c.h.b16 %v5181
    %v7620 = vunpack.c.l.b16 %v5182
    %v7621 = vunpack.c.h.b16 %v5182
    %v7622 = vunpack.c.l.b16 %v5183
    %v7623 = vunpack.c.h.b16 %v5183
    %v7624 = vunpack.c.l.b16 %v5184
    %v7625 = vunpack.c.h.b16 %v5184
    %v7626 = vunpack.c.l.b16 %v5185
    %v7627 = vunpack.c.h.b16 %v5185
    %v7628 = vunpack.c.l.b16 %v5186
    %v7629 = vunpack.c.h.b16 %v5186
    %v7630 = vunpack.c.l.b16 %v5187
    %v7631 = vunpack.c.h.b16 %v5187
    %v7632 = vunpack.c.l.b16 %v5188
    %v7633 = vunpack.c.h.b16 %v5188
    %v7634 = vunpack.c.l.b16 %v5189
    %v7635 = vunpack.c.h.b16 %v5189
    %v7636 = vunpack.c.l.b16 %v5190
    %v7637 = vunpack.c.h.b16 %v5190
    %v7638 = vunpack.c.l.b16 %v5191
    %v7639 = vunpack.c.h.b16 %v5191
    %v7640 = vunpack.c.l.b16 %v5192
    %v7641 = vunpack.c.h.b16 %v5192
    %v7642 = vunpack.c.l.b16 %v5193
    %v7643 = vunpack.c.h.b16 %v5193
    %v7644 = vunpack.c.l.b16 %v5194
    %v7645 = vunpack.c.h.b16 %v5194
    %v7646 = vunpack.c.l.b16 %v5195
    %v7647 = vunpack.c.h.b16 %v5195
    %v7648 = vunpack.c.l.b16 %v5196
    %v7649 = vunpack.c.h.b16 %v5196
    %v7650 = vunpack.c.l.b16 %v5197
    %v7651 = vunpack.c.h.b16 %v5197
    %v7652 = vpack.c.b16 %v6062, %v6052
    %v7653 = vpack.c.b16 %v6063, %v6053
    %v7654 = vpack.c.b16 %v6064, %v6054
    %v7655 = vpack.c.b16 %v6065, %v6055
    %v7656 = vpack.c.b16 %v6066, %v6056
    %v7657 = vpack.c.b16 %v6067, %v6057
    %v7658 = vpack.c.b16 %v6068, %v6058
    %v7659 = vpack.c.b16 %v6069, %v6059
    %v7660 = vpack.c.b16 %v6070, %v6060
    %v7661 = vpack.c.b16 %v6071, %v6061
    %v7662 = vpack.c.b16 %v6082, %v6072
    %v7663 = vpack.c.b16 %v6083, %v6073
    %v7664 = vpack.c.b16 %v6084, %v6074
    %v7665 = vpack.c.b16 %v6085, %v6075
    %v7666 = vpack.c.b16 %v6086, %v6076
    %v7667 = vpack.c.b16 %v6087, %v6077
    %v7668 = vpack.c.b16 %v6088, %v6078
    %v7669 = vpack.c.b16 %v6089, %v6079
    %v7670 = vpack.c.b16 %v6090, %v6080
    %v7671 = vpack.c.b16 %v6091, %v6081
    %v7672 = vpack.c.b16 %v6102, %v6092
    %v7673 = vpack.c.b16 %v6103, %v6093
    %v7674 = vpack.c.b16 %v6104, %v6094
    %v7675 = vpack.c.b16 %v6105, %v6095
    %v7676 = vpack.c.b16 %v6106, %v6096
    %v7677 = vpack.c.b16 %v6107, %v6097
    %v7678 = vpack.c.b16 %v6108, %v6098
    %v7679 = vpack.c.b16 %v6109, %v6099
    %v7680 = vpack.c.b16 %v6110, %v6100
    %v7681 = vpack.c.b16 %v6111, %v6101
    %v7682 = vpack.c.b16 %v6122, %v6112
    %v7683 = vpack.c.b16 %v6123, %v6113
    %v7684 = vpack.c.b16 %v6124, %v6114
    %v7685 = vpack.c.b16 %v6125, %v6115
    %v7686 = vpack.c.b16 %v6126, %v6116
    %v7687 = vpack.c.b16 %v6127, %v6117
    %v7688 = vpack.c.b16 %v6128, %v6118
    %v7689 = vpack.c.b16 %v6129, %v6119
    %v7690 = vpack.c.b16 %v6130, %v6120
    %v7691 = vpack.c.b16 %v6131, %v6121
    %v7692 = vpack.c.b16 %v6142, %v6132
    %v7693 = vpack.c.b16 %v6143, %v6133
    %v7694 = vpack.c.b16 %v6144, %v6134
    %v7695 = vpack.c.b16 %v6145, %v6135
    %v7696 = vpack.c.b16 %v6146, %v6136
    %v7697 = vpack.c.b16 %v6147, %v6137
    %v7698 = vpack.c.b16 %v6148, %v6138
    %v7699 = vpack.c.b16 %v6149, %v6139
    %v7700 = vpack.c.b16 %v6150, %v6140
    %v7701 = vpack.c.b16 %v6151, %v6141
    %v7702 = vpack.c.b16 %v6162, %v6152
    %v7703 = vpack.c.b16 %v6163, %v6153
    %v7704 = vpack.c.b16 %v6164, %v6154
    %v7705 = vpack.c.b16 %v6165, %v6155
    %v7706 = vpack.c.b16 %v6166, %v6156
    %v7707 = vpack.c.b16 %v6167, %v6157
    %v7708 = vpack.c.b16 %v6168, %v6158
    %v7709 = vpack.c.b16 %v6169, %v6159
    %v7710 = vpack.c.b16 %v6170, %v6160
    %v7711 = vpack.c.b16 %v6171, %v6161
    %v7712 = vpack.c.b16 %v6182, %v6172
    %v7713 = vpack.c.b16 %v6183, %v6173
    %v7714 = vpack.c.b16 %v6184, %v6174
    %v7715 = vpack.c.b16 %v6185, %v6175
    %v7716 = vpack.c.b16 %v6186, %v6176
    %v7717 = vpack.c.b16 %v6187, %v6177
    %v7718 = vpack.c.b16 %v6188, %v6178
    %v7719 = vpack.c.b16 %v6189, %v6179
    %v7720 = vpack.c.b16 %v6190, %v6180
    %v7721 = vpack.c.b16 %v6191, %v6181
    %v7722 = vpack.c.b16 %v6202, %v6192
    %v7723 = vpack.c.b16 %v6203, %v6193
    %v7724 = vpack.c.b16 %v6204, %v6194
    %v7725 = vpack.c.b16 %v6205, %v6195
    %v7726 = vpack.c.b16 %v6206, %v6196
    %v7727 = vpack.c.b16 %v6207, %v6197
    %v7728 = vpack.c.b16 %v6208, %v6198
    %v7729 = vpack.c.b16 %v6209, %v6199
    %v7730 = vpack.c.b16 %v6210, %v6200
    %v7731 = vpack.c.b16 %v6211, %v6201
    %v7732 = vpack.c.b16 %v6222, %v6212
    %v7733 = vpack.c.b16 %v6223, %v6213
    %v7734 = vpack.c.b16 %v6224, %v6214
    %v7735 = vpack.c.b16 %v6225, %v6215
    %v7736 = vpack.c.b16 %v6226, %v6216
    %v7737 = vpack.c.b16 %v6227, %v6217
    %v7738 = vpack.c.b16 %v6228, %v6218
    %v7739 = vpack.c.b16 %v6229, %v6219
    %v7740 = vpack.c.b16 %v6230, %v6220
    %v7741 = vpack.c.b16 %v6231, %v6221
    %v7742 = vpack.c.b16 %v6242, %v6232
    %v7743 = vpack.c.b16 %v6243, %v6233
    %v7744 = vpack.c.b16 %v6244, %v6234
    %v7745 = vpack.c.b16 %v6245, %v6235
    %v7746 = vpack.c.b16 %v6246, %v6236
    %v7747 = vpack.c.b16 %v6247, %v6237
    %v7748 = vpack.c.b16 %v6248, %v6238
    %v7749 = vpack.c.b16 %v6249, %v6239
    %v7750 = vpack.c.b16 %v6250, %v6240
    %v7751 = vpack.c.b16 %v6251, %v6241
    %v7752 = vpack.c.b16 %v6262, %v6252
    %v7753 = vpack.c.b16 %v6263, %v6253
    %v7754 = vpack.c.b16 %v6264, %v6254
    %v7755 = vpack.c.b16 %v6265, %v6255
    %v7756 = vpack.c.b16 %v6266, %v6256
    %v7757 = vpack.c.b16 %v6267, %v6257
    %v7758 = vpack.c.b16 %v6268, %v6258
    %v7759 = vpack.c.b16 %v6269, %v6259
    %v7760 = vpack.c.b16 %v6270, %v6260
    %v7761 = vpack.c.b16 %v6271, %v6261
    %v7762 = vpack.c.b16 %v6282, %v6272
    %v7763 = vpack.c.b16 %v6283, %v6273
    %v7764 = vpack.c.b16 %v6284, %v6274
    %v7765 = vpack.c.b16 %v6285, %v6275
    %v7766 = vpack.c.b16 %v6286, %v6276
    %v7767 = vpack.c.b16 %v6287, %v6277
    %v7768 = vpack.c.b16 %v6288, %v6278
    %v7769 = vpack.c.b16 %v6289, %v6279
    %v7770 = vpack.c.b16 %v6290, %v6280
    %v7771 = vpack.c.b16 %v6291, %v6281
    %v7772 = vpack.c.b16 %v6302, %v6292
    %v7773 = vpack.c.b16 %v6303, %v6293
    %v7774 = vpack.c.b16 %v6304, %v6294
    %v7775 = vpack.c.b16 %v6305, %v6295
    %v7776 = vpack.c.b16 %v6306, %v6296
    %v7777 = vpack.c.b16 %v6307, %v6297
    %v7778 = vpack.c.b16 %v6308, %v6298
    %v7779 = vpack.c.b16 %v6309, %v6299
    %v7780 = vpack.c.b16 %v6310, %v6300
    %v7781 = vpack.c.b16 %v6311, %v6301
    %v7782 = vpack.c.b16 %v6322, %v6312
    %v7783 = vpack.c.b16 %v6323, %v6313
    %v7784 = vpack.c.b16 %v6324, %v6314
    %v7785 = vpack.c.b16 %v6325, %v6315
    %v7786 = vpack.c.b16 %v6326, %v6316
    %v7787 = vpack.c.b16 %v6327, %v6317
    %v7788 = vpack.c.b16 %v6328, %v6318
    %v7789 = vpack.c.b16 %v6329, %v6319
    %v7790 = vpack.c.b16 %v6330, %v6320
    %v7791 = vpack.c.b16 %v6331, %v6321
    %v7792 = vpack.c.b16 %v6342, %v6332
    %v7793 = vpack.c.b16 %v6343, %v6333
    %v7794 = vpack.c.b16 %v6344, %v6334
    %v7795 = vpack.c.b16 %v6345, %v6335
    %v7796 = vpack.c.b16 %v6346, %v6336
    %v7797 = vpack.c.b16 %v6347, %v6337
    %v7798 = vpack.c.b16 %v6348, %v6338
    %v7799 = vpack.c.b16 %v6349, %v6339
    %v7800 = vpack.c.b16 %v6350, %v6340
    %v7801 = vpack.c.b16 %v6351, %v6341
    %v7802 = vpack.c.b16 %v6362, %v6352
    %v7803 = vpack.c.b16 %v6363, %v6353
    %v7804 = vpack.c.b16 %v6364, %v6354
    %v7805 = vpack.c.b16 %v6365, %v6355
    %v7806 = vpack.c.b16 %v6366, %v6356
    %v7807 = vpack.c.b16 %v6367, %v6357
    %v7808 = vpack.c.b16 %v6368, %v6358
    %v7809 = vpack.c.b16 %v6369, %v6359
    %v7810 = vpack.c.b16 %v6370, %v6360
    %v7811 = vpack.c.b16 %v6371, %v6361
    %v7812 = vpack.c.b16 %v6382, %v6372
    %v7813 = vpack.c.b16 %v6383, %v6373
    %v7814 = vpack.c.b16 %v6384, %v6374
    %v7815 = vpack.c.b16 %v6385, %v6375
    %v7816 = vpack.c.b16 %v6386, %v6376
    %v7817 = vpack.c.b16 %v6387, %v6377
    %v7818 = vpack.c.b16 %v6388, %v6378
    %v7819 = vpack.c.b16 %v6389, %v6379
    %v7820 = vpack.c.b16 %v6390, %v6380
    %v7821 = vpack.c.b16 %v6391, %v6381
    %v7822 = vpack.c.b16 %v6402, %v6392
    %v7823 = vpack.c.b16 %v6403, %v6393
    %v7824 = vpack.c.b16 %v6404, %v6394
    %v7825 = vpack.c.b16 %v6405, %v6395
    %v7826 = vpack.c.b16 %v6406, %v6396
    %v7827 = vpack.c.b16 %v6407, %v6397
    %v7828 = vpack.c.b16 %v6408, %v6398
    %v7829 = vpack.c.b16 %v6409, %v6399
    %v7830 = vpack.c.b16 %v6410, %v6400
    %v7831 = vpack.c.b16 %v6411, %v6401
    %v7832 = vpack.c.b16 %v6422, %v6412
    %v7833 = vpack.c.b16 %v6423, %v6413
    %v7834 = vpack.c.b16 %v6424, %v6414
    %v7835 = vpack.c.b16 %v6425, %v6415
    %v7836 = vpack.c.b16 %v6426, %v6416
    %v7837 = vpack.c.b16 %v6427, %v6417
    %v7838 = vpack.c.b16 %v6428, %v6418
    %v7839 = vpack.c.b16 %v6429, %v6419
    %v7840 = vpack.c.b16 %v6430, %v6420
    %v7841 = vpack.c.b16 %v6431, %v6421
    %v7842 = vpack.c.b16 %v6442, %v6432
    %v7843 = vpack.c.b16 %v6443, %v6433
    %v7844 = vpack.c.b16 %v6444, %v6434
    %v7845 = vpack.c.b16 %v6445, %v6435
    %v7846 = vpack.c.b16 %v6446, %v6436
    %v7847 = vpack.c.b16 %v6447, %v6437
    %v7848 = vpack.c.b16 %v6448, %v6438
    %v7849 = vpack.c.b16 %v6449, %v6439
    %v7850 = vpack.c.b16 %v6450, %v6440
    %v7851 = vpack.c.b16 %v6451, %v6441
    %v7852 = vpack.c.b16 %v6462, %v6452
    %v7853 = vpack.c.b16 %v6463, %v6453
    %v7854 = vpack.c.b16 %v6464, %v6454
    %v7855 = vpack.c.b16 %v6465, %v6455
    %v7856 = vpack.c.b16 %v6466, %v6456
    %v7857 = vpack.c.b16 %v6467, %v6457
    %v7858 = vpack.c.b16 %v6468, %v6458
    %v7859 = vpack.c.b16 %v6469, %v6459
    %v7860 = vpack.c.b16 %v6470, %v6460
    %v7861 = vpack.c.b16 %v6471, %v6461
    %v7862 = vpack.c.b16 %v6482, %v6472
    %v7863 = vpack.c.b16 %v6483, %v6473
    %v7864 = vpack.c.b16 %v6484, %v6474
    %v7865 = vpack.c.b16 %v6485, %v6475
    %v7866 = vpack.c.b16 %v6486, %v6476
    %v7867 = vpack.c.b16 %v6487, %v6477
    %v7868 = vpack.c.b16 %v6488, %v6478
    %v7869 = vpack.c.b16 %v6489, %v6479
    %v7870 = vpack.c.b16 %v6490, %v6480
    %v7871 = vpack.c.b16 %v6491, %v6481
    %v7872 = vpack.c.b16 %v6502, %v6492
    %v7873 = vpack.c.b16 %v6503, %v6493
    %v7874 = vpack.c.b16 %v6504, %v6494
    %v7875 = vpack.c.b16 %v6505, %v6495
    %v7876 = vpack.c.b16 %v6506, %v6496
    %v7877 = vpack.c.b16 %v6507, %v6497
    %v7878 = vpack.c.b16 %v6508, %v6498
    %v7879 = vpack.c.b16 %v6509, %v6499
    %v7880 = vpack.c.b16 %v6510, %v6500
    %v7881 = vpack.c.b16 %v6511, %v6501
    %v7882 = vpack.c.b16 %v6522, %v6512
    %v7883 = vpack.c.b16 %v6523, %v6513
    %v7884 = vpack.c.b16 %v6524, %v6514
    %v7885 = vpack.c.b16 %v6525, %v6515
    %v7886 = vpack.c.b16 %v6526, %v6516
    %v7887 = vpack.c.b16 %v6527, %v6517
    %v7888 = vpack.c.b16 %v6528, %v6518
    %v7889 = vpack.c.b16 %v6529, %v6519
    %v7890 = vpack.c.b16 %v6530, %v6520
    %v7891 = vpack.c.b16 %v6531, %v6521
    %v7892 = vpack.c.b16 %v6542, %v6532
    %v7893 = vpack.c.b16 %v6543, %v6533
    %v7894 = vpack.c.b16 %v6544, %v6534
    %v7895 = vpack.c.b16 %v6545, %v6535
    %v7896 = vpack.c.b16 %v6546, %v6536
    %v7897 = vpack.c.b16 %v6547, %v6537
    %v7898 = vpack.c.b16 %v6548, %v6538
    %v7899 = vpack.c.b16 %v6549, %v6539
    %v7900 = vpack.c.b16 %v6550, %v6540
    %v7901 = vpack.c.b16 %v6551, %v6541
    %v7902 = vpack.c.b16 %v6562, %v6552
    %v7903 = vpack.c.b16 %v6563, %v6553
    %v7904 = vpack.c.b16 %v6564, %v6554
    %v7905 = vpack.c.b16 %v6565, %v6555
    %v7906 = vpack.c.b16 %v6566, %v6556
    %v7907 = vpack.c.b16 %v6567, %v6557
    %v7908 = vpack.c.b16 %v6568, %v6558
    %v7909 = vpack.c.b16 %v6569, %v6559
    %v7910 = vpack.c.b16 %v6570, %v6560
    %v7911 = vpack.c.b16 %v6571, %v6561
    %v7912 = vpack.c.b16 %v6582, %v6572
    %v7913 = vpack.c.b16 %v6583, %v6573
    %v7914 = vpack.c.b16 %v6584, %v6574
    %v7915 = vpack.c.b16 %v6585, %v6575
    %v7916 = vpack.c.b16 %v6586, %v6576
    %v7917 = vpack.c.b16 %v6587, %v6577
    %v7918 = vpack.c.b16 %v6588, %v6578
    %v7919 = vpack.c.b16 %v6589, %v6579
    %v7920 = vpack.c.b16 %v6590, %v6580
    %v7921 = vpack.c.b16 %v6591, %v6581
    %v7922 = vpack.c.b16 %v6602, %v6592
    %v7923 = vpack.c.b16 %v6603, %v6593
    %v7924 = vpack.c.b16 %v6604, %v6594
    %v7925 = vpack.c.b16 %v6605, %v6595
    %v7926 = vpack.c.b16 %v6606, %v6596
    %v7927 = vpack.c.b16 %v6607, %v6597
    %v7928 = vpack.c.b16 %v6608, %v6598
    %v7929 = vpack.c.b16 %v6609, %v6599
    %v7930 = vpack.c.b16 %v6610, %v6600
    %v7931 = vpack.c.b16 %v6611, %v6601
    %v7932 = vpack.c.b16 %v6622, %v6612
    %v7933 = vpack.c.b16 %v6623, %v6613
    %v7934 = vpack.c.b16 %v6624, %v6614
    %v7935 = vpack.c.b16 %v6625, %v6615
    %v7936 = vpack.c.b16 %v6626, %v6616
    %v7937 = vpack.c.b16 %v6627, %v6617
    %v7938 = vpack.c.b16 %v6628, %v6618
    %v7939 = vpack.c.b16 %v6629, %v6619
    %v7940 = vpack.c.b16 %v6630, %v6620
    %v7941 = vpack.c.b16 %v6631, %v6621
    %v7942 = vpack.c.b16 %v6642, %v6632
    %v7943 = vpack.c.b16 %v6643, %v6633
    %v7944 = vpack.c.b16 %v6644, %v6634
    %v7945 = vpack.c.b16 %v6645, %v6635
    %v7946 = vpack.c.b16 %v6646, %v6636
    %v7947 = vpack.c.b16 %v6647, %v6637
    %v7948 = vpack.c.b16 %v6648, %v6638
    %v7949 = vpack.c.b16 %v6649, %v6639
    %v7950 = vpack.c.b16 %v6650, %v6640
    %v7951 = vpack.c.b16 %v6651, %v6641
    %v7952 = vpack.c.b16 %v6662, %v6652
    %v7953 = vpack.c.b16 %v6663, %v6653
    %v7954 = vpack.c.b16 %v6664, %v6654
    %v7955 = vpack.c.b16 %v6665, %v6655
    %v7956 = vpack.c.b16 %v6666, %v6656
    %v7957 = vpack.c.b16 %v6667, %v6657
    %v7958 = vpack.c.b16 %v6668, %v6658
    %v7959 = vpack.c.b16 %v6669, %v6659
    %v7960 = vpack.c.b16 %v6670, %v6660
    %v7961 = vpack.c.b16 %v6671, %v6661
    %v7962 = vpack.c.b16 %v6682, %v6672
    %v7963 = vpack.c.b16 %v6683, %v6673
    %v7964 = vpack.c.b16 %v6684, %v6674
    %v7965 = vpack.c.b16 %v6685, %v6675
    %v7966 = vpack.c.b16 %v6686, %v6676
    %v7967 = vpack.c.b16 %v6687, %v6677
    %v7968 = vpack.c.b16 %v6688, %v6678
    %v7969 = vpack.c.b16 %v6689, %v6679
    %v7970 = vpack.c.b16 %v6690, %v6680
    %v7971 = vpack.c.b16 %v6691, %v6681
    %v7972 = vpack.c.b16 %v6702, %v6692
    %v7973 = vpack.c.b16 %v6703, %v6693
    %v7974 = vpack.c.b16 %v6704, %v6694
    %v7975 = vpack.c.b16 %v6705, %v6695
    %v7976 = vpack.c.b16 %v6706, %v6696
    %v7977 = vpack.c.b16 %v6707, %v6697
    %v7978 = vpack.c.b16 %v6708, %v6698
    %v7979 = vpack.c.b16 %v6709, %v6699
    %v7980 = vpack.c.b16 %v6710, %v6700
    %v7981 = vpack.c.b16 %v6711, %v6701
    %v7982 = vpack.c.b16 %v6722, %v6712
    %v7983 = vpack.c.b16 %v6723, %v6713
    %v7984 = vpack.c.b16 %v6724, %v6714
    %v7985 = vpack.c.b16 %v6725, %v6715
    %v7986 = vpack.c.b16 %v6726, %v6716
    %v7987 = vpack.c.b16 %v6727, %v6717
    %v7988 = vpack.c.b16 %v6728, %v6718
    %v7989 = vpack.c.b16 %v6729, %v6719
    %v7990 = vpack.c.b16 %v6730, %v6720
    %v7991 = vpack.c.b16 %v6731, %v6721
    %v7992 = vpack.c.b16 %v6742, %v6732
    %v7993 = vpack.c.b16 %v6743, %v6733
    %v7994 = vpack.c.b16 %v6744, %v6734
    %v7995 = vpack.c.b16 %v6745, %v6735
    %v7996 = vpack.c.b16 %v6746, %v6736
    %v7997 = vpack.c.b16 %v6747, %v6737
    %v7998 = vpack.c.b16 %v6748, %v6738
    %v7999 = vpack.c.b16 %v6749, %v6739
    %v8000 = vpack.c.b16 %v6750, %v6740
    %v8001 = vpack.c.b16 %v6751, %v6741
    %v8002 = vpack.c.b16 %v6762, %v6752
    %v8003 = vpack.c.b16 %v6763, %v6753
    %v8004 = vpack.c.b16 %v6764, %v6754
    %v8005 = vpack.c.b16 %v6765, %v6755
    %v8006 = vpack.c.b16 %v6766, %v6756
    %v8007 = vpack.c.b16 %v6767, %v6757
    %v8008 = vpack.c.b16 %v6768, %v6758
    %v8009 = vpack.c.b16 %v6769, %v6759
    %v8010 = vpack.c.b16 %v6770, %v6760
    %v8011 = vpack.c.b16 %v6771, %v6761
    %v8012 = vpack.c.b16 %v6782, %v6772
    %v8013 = vpack.c.b16 %v6783, %v6773
    %v8014 = vpack.c.b16 %v6784, %v6774
    %v8015 = vpack.c.b16 %v6785, %v6775
    %v8016 = vpack.c.b16 %v6786, %v6776
    %v8017 = vpack.c.b16 %v6787, %v6777
    %v8018 = vpack.c.b16 %v6788, %v6778
    %v8019 = vpack.c.b16 %v6789, %v6779
    %v8020 = vpack.c.b16 %v6790, %v6780
    %v8021 = vpack.c.b16 %v6791, %v6781
    %v8022 = vpack.c.b16 %v6802, %v6792
    %v8023 = vpack.c.b16 %v6803, %v6793
    %v8024 = vpack.c.b16 %v6804, %v6794
    %v8025 = vpack.c.b16 %v6805, %v6795
    %v8026 = vpack.c.b16 %v6806, %v6796
    %v8027 = vpack.c.b16 %v6807, %v6797
    %v8028 = vpack.c.b16 %v6808, %v6798
    %v8029 = vpack.c.b16 %v6809, %v6799
    %v8030 = vpack.c.b16 %v6810, %v6800
    %v8031 = vpack.c.b16 %v6811, %v6801
    %v8032 = vpack.c.b16 %v6822, %v6812
    %v8033 = vpack.c.b16 %v6823, %v6813
    %v8034 = vpack.c.b16 %v6824, %v6814
    %v8035 = vpack.c.b16 %v6825, %v6815
    %v8036 = vpack.c.b16 %v6826, %v6816
    %v8037 = vpack.c.b16 %v6827, %v6817
    %v8038 = vpack.c.b16 %v6828, %v6818
    %v8039 = vpack.c.b16 %v6829, %v6819
    %v8040 = vpack.c.b16 %v6830, %v6820
    %v8041 = vpack.c.b16 %v6831, %v6821
    %v8042 = vpack.c.b16 %v6842, %v6832
    %v8043 = vpack.c.b16 %v6843, %v6833
    %v8044 = vpack.c.b16 %v6844, %v6834
    %v8045 = vpack.c.b16 %v6845, %v6835
    %v8046 = vpack.c.b16 %v6846, %v6836
    %v8047 = vpack.c.b16 %v6847, %v6837
    %v8048 = vpack.c.b16 %v6848, %v6838
    %v8049 = vpack.c.b16 %v6849, %v6839
    %v8050 = vpack.c.b16 %v6850, %v6840
    %v8051 = vpack.c.b16 %v6851, %v6841
    %v8052 = vpack.c.b16 %v6862, %v6852
    %v8053 = vpack.c.b16 %v6863, %v6853
    %v8054 = vpack.c.b16 %v6864, %v6854
    %v8055 = vpack.c.b16 %v6865, %v6855
    %v8056 = vpack.c.b16 %v6866, %v6856
    %v8057 = vpack.c.b16 %v6867, %v6857
    %v8058 = vpack.c.b16 %v6868, %v6858
    %v8059 = vpack.c.b16 %v6869, %v6859
    %v8060 = vpack.c.b16 %v6870, %v6860
    %v8061 = vpack.c.b16 %v6871, %v6861
    %v8062 = vpack.c.b16 %v6882, %v6872
    %v8063 = vpack.c.b16 %v6883, %v6873
    %v8064 = vpack.c.b16 %v6884, %v6874
    %v8065 = vpack.c.b16 %v6885, %v6875
    %v8066 = vpack.c.b16 %v6886, %v6876
    %v8067 = vpack.c.b16 %v6887, %v6877
    %v8068 = vpack.c.b16 %v6888, %v6878
    %v8069 = vpack.c.b16 %v6889, %v6879
    %v8070 = vpack.c.b16 %v6890, %v6880
    %v8071 = vpack.c.b16 %v6891, %v6881
    %v8072 = vpack.c.b16 %v6902, %v6892
    %v8073 = vpack.c.b16 %v6903, %v6893
    %v8074 = vpack.c.b16 %v6904, %v6894
    %v8075 = vpack.c.b16 %v6905, %v6895
    %v8076 = vpack.c.b16 %v6906, %v6896
    %v8077 = vpack.c.b16 %v6907, %v6897
    %v8078 = vpack.c.b16 %v6908, %v6898
    %v8079 = vpack.c.b16 %v6909, %v6899
    %v8080 = vpack.c.b16 %v6910, %v6900
    %v8081 = vpack.c.b16 %v6911, %v6901
    %v8082 = vpack.c.b16 %v6922, %v6912
    %v8083 = vpack.c.b16 %v6923, %v6913
    %v8084 = vpack.c.b16 %v6924, %v6914
    %v8085 = vpack.c.b16 %v6925, %v6915
    %v8086 = vpack.c.b16 %v6926, %v6916
    %v8087 = vpack.c.b16 %v6927, %v6917
    %v8088 = vpack.c.b16 %v6928, %v6918
    %v8089 = vpack.c.b16 %v6929, %v6919
    %v8090 = vpack.c.b16 %v6930, %v6920
    %v8091 = vpack.c.b16 %v6931, %v6921
    %v8092 = vpack.c.b16 %v6942, %v6932
    %v8093 = vpack.c.b16 %v6943, %v6933
    %v8094 = vpack.c.b16 %v6944, %v6934
    %v8095 = vpack.c.b16 %v6945, %v6935
    %v8096 = vpack.c.b16 %v6946, %v6936
    %v8097 = vpack.c.b16 %v6947, %v6937
    %v8098 = vpack.c.b16 %v6948, %v6938
    %v8099 = vpack.c.b16 %v6949, %v6939
    %v8100 = vpack.c.b16 %v6950, %v6940
    %v8101 = vpack.c.b16 %v6951, %v6941
    %v8102 = vpack.c.b16 %v6962, %v6952
    %v8103 = vpack.c.b16 %v6963, %v6953
    %v8104 = vpack.c.b16 %v6964, %v6954
    %v8105 = vpack.c.b16 %v6965, %v6955
    %v8106 = vpack.c.b16 %v6966, %v6956
    %v8107 = vpack.c.b16 %v6967, %v6957
    %v8108 = vpack.c.b16 %v6968, %v6958
    %v8109 = vpack.c.b16 %v6969, %v6959
    %v8110 = vpack.c.b16 %v6970, %v6960
    %v8111 = vpack.c.b16 %v6971, %v6961
    %v8112 = vpack.c.b16 %v6982, %v6972
    %v8113 = vpack.c.b16 %v6983, %v6973
    %v8114 = vpack.c.b16 %v6984, %v6974
    %v8115 = vpack.c.b16 %v6985, %v6975
    %v8116 = vpack.c.b16 %v6986, %v6976
    %v8117 = vpack.c.b16 %v6987, %v6977
    %v8118 = vpack.c.b16 %v6988, %v6978
    %v8119 = vpack.c.b16 %v6989, %v6979
    %v8120 = vpack.c.b16 %v6990, %v6980
    %v8121 = vpack.c.b16 %v6991, %v6981
    %v8122 = vpack.c.b16 %v7002, %v6992
    %v8123 = vpack.c.b16 %v7003, %v6993
    %v8124 = vpack.c.b16 %v7004, %v6994
    %v8125 = vpack.c.b16 %v7005, %v6995
    %v8126 = vpack.c.b16 %v7006, %v6996
    %v8127 = vpack.c.b16 %v7007, %v6997
    %v8128 = vpack.c.b16 %v7008, %v6998
    %v8129 = vpack.c.b16 %v7009, %v6999
    %v8130 = vpack.c.b16 %v7010, %v7000
    %v8131 = vpack.c.b16 %v7011, %v7001
    %v8132 = vpack.c.b16 %v7022, %v7012
    %v8133 = vpack.c.b16 %v7023, %v7013
    %v8134 = vpack.c.b16 %v7024, %v7014
    %v8135 = vpack.c.b16 %v7025, %v7015
    %v8136 = vpack.c.b16 %v7026, %v7016
    %v8137 = vpack.c.b16 %v7027, %v7017
    %v8138 = vpack.c.b16 %v7028, %v7018
    %v8139 = vpack.c.b16 %v7029, %v7019
    %v8140 = vpack.c.b16 %v7030, %v7020
    %v8141 = vpack.c.b16 %v7031, %v7021
    %v8142 = vpack.c.b16 %v7042, %v7032
    %v8143 = vpack.c.b16 %v7043, %v7033
    %v8144 = vpack.c.b16 %v7044, %v7034
    %v8145 = vpack.c.b16 %v7045, %v7035
    %v8146 = vpack.c.b16 %v7046, %v7036
    %v8147 = vpack.c.b16 %v7047, %v7037
    %v8148 = vpack.c.b16 %v7048, %v7038
    %v8149 = vpack.c.b16 %v7049, %v7039
    %v8150 = vpack.c.b16 %v7050, %v7040
    %v8151 = vpack.c.b16 %v7051, %v7041
    %v8152 = vpack.c.b16 %v7062, %v7052
    %v8153 = vpack.c.b16 %v7063, %v7053
    %v8154 = vpack.c.b16 %v7064, %v7054
    %v8155 = vpack.c.b16 %v7065, %v7055
    %v8156 = vpack.c.b16 %v7066, %v7056
    %v8157 = vpack.c.b16 %v7067, %v7057
    %v8158 = vpack.c.b16 %v7068, %v7058
    %v8159 = vpack.c.b16 %v7069, %v7059
    %v8160 = vpack.c.b16 %v7070, %v7060
    %v8161 = vpack.c.b16 %v7071, %v7061
    %v8162 = vpack.c.b16 %v7082, %v7072
    %v8163 = vpack.c.b16 %v7083, %v7073
    %v8164 = vpack.c.b16 %v7084, %v7074
    %v8165 = vpack.c.b16 %v7085, %v7075
    %v8166 = vpack.c.b16 %v7086, %v7076
    %v8167 = vpack.c.b16 %v7087, %v7077
    %v8168 = vpack.c.b16 %v7088, %v7078
    %v8169 = vpack.c.b16 %v7089, %v7079
    %v8170 = vpack.c.b16 %v7090, %v7080
    %v8171 = vpack.c.b16 %v7091, %v7081
    %v8172 = vpack.c.b16 %v7102, %v7092
    %v8173 = vpack.c.b16 %v7103, %v7093
    %v8174 = vpack.c.b16 %v7104, %v7094
    %v8175 = vpack.c.b16 %v7105, %v7095
    %v8176 = vpack.c.b16 %v7106, %v7096
    %v8177 = vpack.c.b16 %v7107, %v7097
    %v8178 = vpack.c.b16 %v7108, %v7098
    %v8179 = vpack.c.b16 %v7109, %v7099
    %v8180 = vpack.c.b16 %v7110, %v7100
    %v8181 = vpack.c.b16 %v7111, %v7101
    %v8182 = vpack.c.b16 %v7122, %v7112
    %v8183 = vpack.c.b16 %v7123, %v7113
    %v8184 = vpack.c.b16 %v7124, %v7114
    %v8185 = vpack.c.b16 %v7125, %v7115
    %v8186 = vpack.c.b16 %v7126, %v7116
    %v8187 = vpack.c.b16 %v7127, %v7117
    %v8188 = vpack.c.b16 %v7128, %v7118
    %v8189 = vpack.c.b16 %v7129, %v7119
    %v8190 = vpack.c.b16 %v7130, %v7120
    %v8191 = vpack.c.b16 %v7131, %v7121
    %v8192 = vpack.c.b16 %v7142, %v7132
    %v8193 = vpack.c.b16 %v7143, %v7133
    %v8194 = vpack.c.b16 %v7144, %v7134
    %v8195 = vpack.c.b16 %v7145, %v7135
    %v8196 = vpack.c.b16 %v7146, %v7136
    %v8197 = vpack.c.b16 %v7147, %v7137
    %v8198 = vpack.c.b16 %v7148, %v7138
    %v8199 = vpack.c.b16 %v7149, %v7139
    %v8200 = vpack.c.b16 %v7150, %v7140
    %v8201 = vpack.c.b16 %v7151, %v7141
    %v8202 = vpack.c.b16 %v7162, %v7152
    %v8203 = vpack.c.b16 %v7163, %v7153
    %v8204 = vpack.c.b16 %v7164, %v7154
    %v8205 = vpack.c.b16 %v7165, %v7155
    %v8206 = vpack.c.b16 %v7166, %v7156
    %v8207 = vpack.c.b16 %v7167, %v7157
    %v8208 = vpack.c.b16 %v7168, %v7158
    %v8209 = vpack.c.b16 %v7169, %v7159
    %v8210 = vpack.c.b16 %v7170, %v7160
    %v8211 = vpack.c.b16 %v7171, %v7161
    %v8212 = vpack.c.b16 %v7182, %v7172
    %v8213 = vpack.c.b16 %v7183, %v7173
    %v8214 = vpack.c.b16 %v7184, %v7174
    %v8215 = vpack.c.b16 %v7185, %v7175
    %v8216 = vpack.c.b16 %v7186, %v7176
    %v8217 = vpack.c.b16 %v7187, %v7177
    %v8218 = vpack.c.b16 %v7188, %v7178
    %v8219 = vpack.c.b16 %v7189, %v7179
    %v8220 = vpack.c.b16 %v7190, %v7180
    %v8221 = vpack.c.b16 %v7191, %v7181
    %v8222 = vpack.c.b16 %v7202, %v7192
    %v8223 = vpack.c.b16 %v7203, %v7193
    %v8224 = vpack.c.b16 %v7204, %v7194
    %v8225 = vpack.c.b16 %v7205, %v7195
    %v8226 = vpack.c.b16 %v7206, %v7196
    %v8227 = vpack.c.b16 %v7207, %v7197
    %v8228 = vpack.c.b16 %v7208, %v7198
    %v8229 = vpack.c.b16 %v7209, %v7199
    %v8230 = vpack.c.b16 %v7210, %v7200
    %v8231 = vpack.c.b16 %v7211, %v7201
    %v8232 = vpack.c.b16 %v7222, %v7212
    %v8233 = vpack.c.b16 %v7223, %v7213
    %v8234 = vpack.c.b16 %v7224, %v7214
    %v8235 = vpack.c.b16 %v7225, %v7215
    %v8236 = vpack.c.b16 %v7226, %v7216
    %v8237 = vpack.c.b16 %v7227, %v7217
    %v8238 = vpack.c.b16 %v7228, %v7218
    %v8239 = vpack.c.b16 %v7229, %v7219
    %v8240 = vpack.c.b16 %v7230, %v7220
    %v8241 = vpack.c.b16 %v7231, %v7221
    %v8242 = vpack.c.b16 %v7242, %v7232
    %v8243 = vpack.c.b16 %v7243, %v7233
    %v8244 = vpack.c.b16 %v7244, %v7234
    %v8245 = vpack.c.b16 %v7245, %v7235
    %v8246 = vpack.c.b16 %v7246, %v7236
    %v8247 = vpack.c.b16 %v7247, %v7237
    %v8248 = vpack.c.b16 %v7248, %v7238
    %v8249 = vpack.c.b16 %v7249, %v7239
    %v8250 = vpack.c.b16 %v7250, %v7240
    %v8251 = vpack.c.b16 %v7251, %v7241
    %v8252 = vpack.c.b16 %v7262, %v7252
    %v8253 = vpack.c.b16 %v7263, %v7253
    %v8254 = vpack.c.b16 %v7264, %v7254
    %v8255 = vpack.c.b16 %v7265, %v7255
    %v8256 = vpack.c.b16 %v7266, %v7256
    %v8257 = vpack.c.b16 %v7267, %v7257
    %v8258 = vpack.c.b16 %v7268, %v7258
    %v8259 = vpack.c.b16 %v7269, %v7259
    %v8260 = vpack.c.b16 %v7270, %v7260
    %v8261 = vpack.c.b16 %v7271, %v7261
    %v8262 = vpack.c.b16 %v7282, %v7272
    %v8263 = vpack.c.b16 %v7283, %v7273
    %v8264 = vpack.c.b16 %v7284, %v7274
    %v8265 = vpack.c.b16 %v7285, %v7275
    %v8266 = vpack.c.b16 %v7286, %v7276
    %v8267 = vpack.c.b16 %v7287, %v7277
    %v8268 = vpack.c.b16 %v7288, %v7278
    %v8269 = vpack.c.b16 %v7289, %v7279
    %v8270 = vpack.c.b16 %v7290, %v7280
    %v8271 = vpack.c.b16 %v7291, %v7281
    %v8272 = vpack.c.b16 %v7302, %v7292
    %v8273 = vpack.c.b16 %v7303, %v7293
    %v8274 = vpack.c.b16 %v7304, %v7294
    %v8275 = vpack.c.b16 %v7305, %v7295
    %v8276 = vpack.c.b16 %v7306, %v7296
    %v8277 = vpack.c.b16 %v7307, %v7297
    %v8278 = vpack.c.b16 %v7308, %v7298
    %v8279 = vpack.c.b16 %v7309, %v7299
    %v8280 = vpack.c.b16 %v7310, %v7300
    %v8281 = vpack.c.b16 %v7311, %v7301
    %v8282 = vpack.c.b16 %v7322, %v7312
    %v8283 = vpack.c.b16 %v7323, %v7313
    %v8284 = vpack.c.b16 %v7324, %v7314
    %v8285 = vpack.c.b16 %v7325, %v7315
    %v8286 = vpack.c.b16 %v7326, %v7316
    %v8287 = vpack.c.b16 %v7327, %v7317
    %v8288 = vpack.c.b16 %v7328, %v7318
    %v8289 = vpack.c.b16 %v7329, %v7319
    %v8290 = vpack.c.b16 %v7330, %v7320
    %v8291 = vpack.c.b16 %v7331, %v7321
    %v8292 = vpack.c.b16 %v7342, %v7332
    %v8293 = vpack.c.b16 %v7343, %v7333
    %v8294 = vpack.c.b16 %v7344, %v7334
    %v8295 = vpack.c.b16 %v7345, %v7335
    %v8296 = vpack.c.b16 %v7346, %v7336
    %v8297 = vpack.c.b16 %v7347, %v7337
    %v8298 = vpack.c.b16 %v7348, %v7338
    %v8299 = vpack.c.b16 %v7349, %v7339
    %v8300 = vpack.c.b16 %v7350, %v7340
    %v8301 = vpack.c.b16 %v7351, %v7341
    %v8302 = vpack.c.b16 %v7362, %v7352
    %v8303 = vpack.c.b16 %v7363, %v7353
    %v8304 = vpack.c.b16 %v7364, %v7354
    %v8305 = vpack.c.b16 %v7365, %v7355
    %v8306 = vpack.c.b16 %v7366, %v7356
    %v8307 = vpack.c.b16 %v7367, %v7357
    %v8308 = vpack.c.b16 %v7368, %v7358
    %v8309 = vpack.c.b16 %v7369, %v7359
    %v8310 = vpack.c.b16 %v7370, %v7360
    %v8311 = vpack.c.b16 %v7371, %v7361
    %v8312 = vpack.c.b16 %v7382, %v7372
    %v8313 = vpack.c.b16 %v7383, %v7373
    %v8314 = vpack.c.b16 %v7384, %v7374
    %v8315 = vpack.c.b16 %v7385, %v7375
    %v8316 = vpack.c.b16 %v7386, %v7376
    %v8317 = vpack.c.b16 %v7387, %v7377
    %v8318 = vpack.c.b16 %v7388, %v7378
    %v8319 = vpack.c.b16 %v7389, %v7379
    %v8320 = vpack.c.b16 %v7390, %v7380
    %v8321 = vpack.c.b16 %v7391, %v7381
    %v8322 = vpack.c.b16 %v7402, %v7392
    %v8323 = vpack.c.b16 %v7403, %v7393
    %v8324 = vpack.c.b16 %v7404, %v7394
    %v8325 = vpack.c.b16 %v7405, %v7395
    %v8326 = vpack.c.b16 %v7406, %v7396
    %v8327 = vpack.c.b16 %v7407, %v7397
    %v8328 = vpack.c.b16 %v7408, %v7398
    %v8329 = vpack.c.b16 %v7409, %v7399
    %v8330 = vpack.c.b16 %v7410, %v7400
    %v8331 = vpack.c.b16 %v7411, %v7401
    %v8332 = vpack.c.b16 %v7422, %v7412
    %v8333 = vpack.c.b16 %v7423, %v7413
    %v8334 = vpack.c.b16 %v7424, %v7414
    %v8335 = vpack.c.b16 %v7425, %v7415
    %v8336 = vpack.c.b16 %v7426, %v7416
    %v8337 = vpack.c.b16 %v7427, %v7417
    %v8338 = vpack.c.b16 %v7428, %v7418
    %v8339 = vpack.c.b16 %v7429, %v7419
    %v8340 = vpack.c.b16 %v7430, %v7420
    %v8341 = vpack.c.b16 %v7431, %v7421
    %v8342 = vpack.c.b16 %v7442, %v7432
    %v8343 = vpack.c.b16 %v7443, %v7433
    %v8344 = vpack.c.b16 %v7444, %v7434
    %v8345 = vpack.c.b16 %v7445, %v7435
    %v8346 = vpack.c.b16 %v7446, %v7436
    %v8347 = vpack.c.b16 %v7447, %v7437
    %v8348 = vpack.c.b16 %v7448, %v7438
    %v8349 = vpack.c.b16 %v7449, %v7439
    %v8350 = vpack.c.b16 %v7450, %v7440
    %v8351 = vpack.c.b16 %v7451, %v7441
    %v8352 = vpack.c.b16 %v7462, %v7452
    %v8353 = vpack.c.b16 %v7463, %v7453
    %v8354 = vpack.c.b16 %v7464, %v7454
    %v8355 = vpack.c.b16 %v7465, %v7455
    %v8356 = vpack.c.b16 %v7466, %v7456
    %v8357 = vpack.c.b16 %v7467, %v7457
    %v8358 = vpack.c.b16 %v7468, %v7458
    %v8359 = vpack.c.b16 %v7469, %v7459
    %v8360 = vpack.c.b16 %v7470, %v7460
    %v8361 = vpack.c.b16 %v7471, %v7461
    %v8362 = vpack.c.b16 %v7482, %v7472
    %v8363 = vpack.c.b16 %v7483, %v7473
    %v8364 = vpack.c.b16 %v7484, %v7474
    %v8365 = vpack.c.b16 %v7485, %v7475
    %v8366 = vpack.c.b16 %v7486, %v7476
    %v8367 = vpack.c.b16 %v7487, %v7477
    %v8368 = vpack.c.b16 %v7488, %v7478
    %v8369 = vpack.c.b16 %v7489, %v7479
    %v8370 = vpack.c.b16 %v7490, %v7480
    %v8371 = vpack.c.b16 %v7491, %v7481
    %v8372 = vpack.c.b16 %v7502, %v7492
    %v8373 = vpack.c.b16 %v7503, %v7493
    %v8374 = vpack.c.b16 %v7504, %v7494
    %v8375 = vpack.c.b16 %v7505, %v7495
    %v8376 = vpack.c.b16 %v7506, %v7496
    %v8377 = vpack.c.b16 %v7507, %v7497
    %v8378 = vpack.c.b16 %v7508, %v7498
    %v8379 = vpack.c.b16 %v7509, %v7499
    %v8380 = vpack.c.b16 %v7510, %v7500
    %v8381 = vpack.c.b16 %v7511, %v7501
    %v8382 = vpack.c.b16 %v7522, %v7512
    %v8383 = vpack.c.b16 %v7523, %v7513
    %v8384 = vpack.c.b16 %v7524, %v7514
    %v8385 = vpack.c.b16 %v7525, %v7515
    %v8386 = vpack.c.b16 %v7526, %v7516
    %v8387 = vpack.c.b16 %v7527, %v7517
    %v8388 = vpack.c.b16 %v7528, %v7518
    %v8389 = vpack.c.b16 %v7529, %v7519
    %v8390 = vpack.c.b16 %v7530, %v7520
    %v8391 = vpack.c.b16 %v7531, %v7521
    %v8392 = vpack.c.b16 %v7542, %v7532
    %v8393 = vpack.c.b16 %v7543, %v7533
    %v8394 = vpack.c.b16 %v7544, %v7534
    %v8395 = vpack.c.b16 %v7545, %v7535
    %v8396 = vpack.c.b16 %v7546, %v7536
    %v8397 = vpack.c.b16 %v7547, %v7537
    %v8398 = vpack.c.b16 %v7548, %v7538
    %v8399 = vpack.c.b16 %v7549, %v7539
    %v8400 = vpack.c.b16 %v7550, %v7540
    %v8401 = vpack.c.b16 %v7551, %v7541
    %v8402 = vpack.c.b16 %v7562, %v7552
    %v8403 = vpack.c.b16 %v7563, %v7553
    %v8404 = vpack.c.b16 %v7564, %v7554
    %v8405 = vpack.c.b16 %v7565, %v7555
    %v8406 = vpack.c.b16 %v7566, %v7556
    %v8407 = vpack.c.b16 %v7567, %v7557
    %v8408 = vpack.c.b16 %v7568, %v7558
    %v8409 = vpack.c.b16 %v7569, %v7559
    %v8410 = vpack.c.b16 %v7570, %v7560
    %v8411 = vpack.c.b16 %v7571, %v7561
    %v8412 = vpack.c.b16 %v7582, %v7572
    %v8413 = vpack.c.b16 %v7583, %v7573
    %v8414 = vpack.c.b16 %v7584, %v7574
    %v8415 = vpack.c.b16 %v7585, %v7575
    %v8416 = vpack.c.b16 %v7586, %v7576
    %v8417 = vpack.c.b16 %v7587, %v7577
    %v8418 = vpack.c.b16 %v7588, %v7578
    %v8419 = vpack.c.b16 %v7589, %v7579
    %v8420 = vpack.c.b16 %v7590, %v7580
    %v8421 = vpack.c.b16 %v7591, %v7581
    %v8422 = vpack.c.b16 %v7602, %v7592
    %v8423 = vpack.c.b16 %v7603, %v7593
    %v8424 = vpack.c.b16 %v7604, %v7594
    %v8425 = vpack.c.b16 %v7605, %v7595
    %v8426 = vpack.c.b16 %v7606, %v7596
    %v8427 = vpack.c.b16 %v7607, %v7597
    %v8428 = vpack.c.b16 %v7608, %v7598
    %v8429 = vpack.c.b16 %v7609, %v7599
    %v8430 = vpack.c.b16 %v7610, %v7600
    %v8431 = vpack.c.b16 %v7611, %v7601
    %v8432 = vpack.c.b16 %v7622, %v7612
    %v8433 = vpack.c.b16 %v7623, %v7613
    %v8434 = vpack.c.b16 %v7624, %v7614
    %v8435 = vpack.c.b16 %v7625, %v7615
    %v8436 = vpack.c.b16 %v7626, %v7616
    %v8437 = vpack.c.b16 %v7627, %v7617
    %v8438 = vpack.c.b16 %v7628, %v7618
    %v8439 = vpack.c.b16 %v7629, %v7619
    %v8440 = vpack.c.b16 %v7630, %v7620
    %v8441 = vpack.c.b16 %v7631, %v7621
    %v8442 = vpack.c.b16 %v7642, %v7632
    %v8443 = vpack.c.b16 %v7643, %v7633
    %v8444 = vpack.c.b16 %v7644, %v7634
    %v8445 = vpack.c.b16 %v7645, %v7635
    %v8446 = vpack.c.b16 %v7646, %v7636
    %v8447 = vpack.c.b16 %v7647, %v7637
    %v8448 = vpack.c.b16 %v7648, %v7638
    %v8449 = vpack.c.b16 %v7649, %v7639
    %v8450 = vpack.c.b16 %v7650, %v7640
    %v8451 = vpack.c.b16 %v7651, %v7641
    %9252 = vmatprep.subr.bf16.mxu0 %v7653
    %9253 = vmatpush1.bf16.msra.mxu0 %v7652
    %9254 = vmatprep.subr.bf16.mxu0 %v7663
    %9255 = vmatpush1.bf16.msra.mxu0 %v7662
    %9256 = vmatprep.subr.bf16.mxu0 %v7673
    %9257 = vmatpush1.bf16.msra.mxu0 %v7672
    %9258 = vmatprep.subr.bf16.mxu0 %v7683
    %9259 = vmatpush1.bf16.msra.mxu0 %v7682
    %9260 = vmatprep.subr.bf16.mxu0 %v7693
    %9261 = vmatpush1.bf16.msra.mxu0 %v7692
    %9262 = vmatprep.subr.bf16.mxu0 %v7703
    %9263 = vmatpush1.bf16.msra.mxu0 %v7702
    %9264 = vmatprep.subr.bf16.mxu0 %v7713
    %9265 = vmatpush1.bf16.msra.mxu0 %v7712
    %9266 = vmatprep.subr.bf16.mxu0 %v7723
    %9267 = vmatpush1.bf16.msra.mxu0 %v7722
    %9268 = vmatprep.subr.bf16.mxu0 %v7733
    %9269 = vmatpush1.bf16.msra.mxu0 %v7732
    %9270 = vmatprep.subr.bf16.mxu0 %v7743
    %9271 = vmatpush1.bf16.msra.mxu0 %v7742
    %9272 = vmatprep.subr.bf16.mxu0 %v7753
    %9273 = vmatpush1.bf16.msra.mxu0 %v7752
    %9274 = vmatprep.subr.bf16.mxu0 %v7763
    %9275 = vmatpush1.bf16.msra.mxu0 %v7762
    %9276 = vmatprep.subr.bf16.mxu0 %v7773
    %9277 = vmatpush1.bf16.msra.mxu0 %v7772
    %9278 = vmatprep.subr.bf16.mxu0 %v7783
    %9279 = vmatpush1.bf16.msra.mxu0 %v7782
    %9280 = vmatprep.subr.bf16.mxu0 %v7793
    %9281 = vmatpush1.bf16.msra.mxu0 %v7792
    %9282 = vmatprep.subr.bf16.mxu0 %v7803
    %9283 = vmatpush1.bf16.msra.mxu0 %v7802
    %9284 = vmatprep.mubr.bf16.mxu0 %v4389
    %9285 = vmatmul.mubr.bf16.gmra.mrb[0].mxu0 %v4388
    %v9286 = vpop.f32.mrb[0].mxu0
    %v9287 = vadd.f32 %v5205, %v9286
    %v9288 = vpop.f32.mrb[0].mxu0
    %v9289 = vadd.f32 %v5209, %v9288
    %v9290 = vpop.f32.mrb[0].mxu0
    %v9291 = vpop.f32.mrb[0].mxu0
    %9292 = vdwg.mxu0
    %9293 = vmatprep.subr.bf16.mxu0 %v7813
    %9294 = vmatpush1.bf16.msra.mxu0 %v7812
    %9295 = vmatprep.subr.bf16.mxu0 %v7823
    %9296 = vmatpush1.bf16.msra.mxu0 %v7822
    %9297 = vmatprep.subr.bf16.mxu0 %v7833
    %9298 = vmatpush1.bf16.msra.mxu0 %v7832
    %9299 = vmatprep.subr.bf16.mxu0 %v7843
    %9300 = vmatpush1.bf16.msra.mxu0 %v7842
    %9301 = vmatprep.subr.bf16.mxu0 %v7853
    %9302 = vmatpush1.bf16.msra.mxu0 %v7852
    %9303 = vmatprep.subr.bf16.mxu0 %v7863
    %9304 = vmatpush1.bf16.msra.mxu0 %v7862
    %9305 = vmatprep.subr.bf16.mxu0 %v7873
    %9306 = vmatpush1.bf16.msra.mxu0 %v7872
    %9307 = vmatprep.subr.bf16.mxu0 %v7883
    %9308 = vmatpush1.bf16.msra.mxu0 %v7882
    %9309 = vmatprep.subr.bf16.mxu0 %v7893
    %9310 = vmatpush1.bf16.msra.mxu0 %v7892
    %9311 = vmatprep.subr.bf16.mxu0 %v7903
    %9312 = vmatpush1.bf16.msra.mxu0 %v7902
    %9313 = vmatprep.subr.bf16.mxu0 %v7913
    %9314 = vmatpush1.bf16.msra.mxu0 %v7912
    %9315 = vmatprep.subr.bf16.mxu0 %v7923
    %9316 = vmatpush1.bf16.msra.mxu0 %v7922
    %9317 = vmatprep.subr.bf16.mxu0 %v7933
    %9318 = vmatpush1.bf16.msra.mxu0 %v7932
    %9319 = vmatprep.subr.bf16.mxu0 %v7943
    %9320 = vmatpush1.bf16.msra.mxu0 %v7942
    %9321 = vmatprep.subr.bf16.mxu0 %v7953
    %9322 = vmatpush1.bf16.msra.mxu0 %v7952
    %9323 = vmatprep.subr.bf16.mxu0 %v7963
    %9324 = vmatpush1.bf16.msra.mxu0 %v7962
    %9325 = vmatprep.mubr.bf16.mxu0 %v4391
    %9326 = vmatmul.mubr.bf16.gmra.mrb[0].mxu0 %v4390
    %v9327 = vpop.f32.mrb[0].mxu0
    %v9328 = vadd.f32 %v9287, %v9327
    %v9329 = vpop.f32.mrb[0].mxu0
    %v9330 = vadd.f32 %v9289, %v9329
    %v9331 = vpop.f32.mrb[0].mxu0
    %v9332 = vpop.f32.mrb[0].mxu0
    %9333 = vdwg.mxu0
    %9334 = vmatprep.subr.bf16.mxu0 %v7973
    %9335 = vmatpush1.bf16.msra.mxu0 %v7972
    %9336 = vmatprep.subr.bf16.mxu0 %v7983
    %9337 = vmatpush1.bf16.msra.mxu0 %v7982
    %9338 = vmatprep.subr.bf16.mxu0 %v7993
    %9339 = vmatpush1.bf16.msra.mxu0 %v7992
    %9340 = vmatprep.subr.bf16.mxu0 %v8003
    %9341 = vmatpush1.bf16.msra.mxu0 %v8002
    %9342 = vmatprep.subr.bf16.mxu0 %v8013
    %9343 = vmatpush1.bf16.msra.mxu0 %v8012
    %9344 = vmatprep.subr.bf16.mxu0 %v8023
    %9345 = vmatpush1.bf16.msra.mxu0 %v8022
    %9346 = vmatprep.subr.bf16.mxu0 %v8033
    %9347 = vmatpush1.bf16.msra.mxu0 %v8032
    %9348 = vmatprep.subr.bf16.mxu0 %v8043
    %9349 = vmatpush1.bf16.msra.mxu0 %v8042
    %9350 = vmatprep.subr.bf16.mxu0 %v8053
    %9351 = vmatpush1.bf16.msra.mxu0 %v8052
    %9352 = vmatprep.subr.bf16.mxu0 %v8063
    %9353 = vmatpush1.bf16.msra.mxu0 %v8062
    %9354 = vmatprep.subr.bf16.mxu0 %v8073
    %9355 = vmatpush1.bf16.msra.mxu0 %v8072
    %9356 = vmatprep.subr.bf16.mxu0 %v8083
    %9357 = vmatpush1.bf16.msra.mxu0 %v8082
    %9358 = vmatprep.subr.bf16.mxu0 %v8093
    %9359 = vmatpush1.bf16.msra.mxu0 %v8092
    %9360 = vmatprep.subr.bf16.mxu0 %v8103
    %9361 = vmatpush1.bf16.msra.mxu0 %v8102
    %9362 = vmatprep.subr.bf16.mxu0 %v8113
    %9363 = vmatpush1.bf16.msra.mxu0 %v8112
    %9364 = vmatprep.subr.bf16.mxu0 %v8123
    %9365 = vmatpush1.bf16.msra.mxu0 %v8122
    %9366 = vmatprep.mubr.bf16.mxu0 %v4393
    %9367 = vmatmul.mubr.bf16.gmra.mrb[0].mxu0 %v4392
    %v9368 = vpop.f32.mrb[0].mxu0
    %v9369 = vadd.f32 %v9328, %v9368
    %v9370 = vpop.f32.mrb[0].mxu0
    %v9371 = vadd.f32 %v9330, %v9370
    %v9372 = vpop.f32.mrb[0].mxu0
    %v9373 = vpop.f32.mrb[0].mxu0
    %9374 = vdwg.mxu0
    %9375 = vmatprep.subr.bf16.mxu0 %v8133
    %9376 = vmatpush1.bf16.msra.mxu0 %v8132
    %9377 = vmatprep.subr.bf16.mxu0 %v8143
    %9378 = vmatpush1.bf16.msra.mxu0 %v8142
    %9379 = vmatprep.subr.bf16.mxu0 %v8153
    %9380 = vmatpush1.bf16.msra.mxu0 %v8152
    %9381 = vmatprep.subr.bf16.mxu0 %v8163
    %9382 = vmatpush1.bf16.msra.mxu0 %v8162
    %9383 = vmatprep.subr.bf16.mxu0 %v8173
    %9384 = vmatpush1.bf16.msra.mxu0 %v8172
    %9385 = vmatprep.subr.bf16.mxu0 %v8183
    %9386 = vmatpush1.bf16.msra.mxu0 %v8182
    %9387 = vmatprep.subr.bf16.mxu0 %v8193
    %9388 = vmatpush1.bf16.msra.mxu0 %v8192
    %9389 = vmatprep.subr.bf16.mxu0 %v8203
    %9390 = vmatpush1.bf16.msra.mxu0 %v8202
    %9391 = vmatprep.subr.bf16.mxu0 %v8213
    %9392 = vmatpush1.bf16.msra.mxu0 %v8212
    %9393 = vmatprep.subr.bf16.mxu0 %v8223
    %9394 = vmatpush1.bf16.msra.mxu0 %v8222
    %9395 = vmatprep.subr.bf16.mxu0 %v8233
    %9396 = vmatpush1.bf16.msra.mxu0 %v8232
    %9397 = vmatprep.subr.bf16.mxu0 %v8243
    %9398 = vmatpush1.bf16.msra.mxu0 %v8242
    %9399 = vmatprep.subr.bf16.mxu0 %v8253
    %9400 = vmatpush1.bf16.msra.mxu0 %v8252
    %9401 = vmatprep.subr.bf16.mxu0 %v8263
    %9402 = vmatpush1.bf16.msra.mxu0 %v8262
    %9403 = vmatprep.subr.bf16.mxu0 %v8273
    %9404 = vmatpush1.bf16.msra.mxu0 %v8272
    %9405 = vmatprep.subr.bf16.mxu0 %v8283
    %9406 = vmatpush1.bf16.msra.mxu0 %v8282
    %9407 = vmatprep.mubr.bf16.mxu0 %v4395
    %9408 = vmatmul.mubr.bf16.gmra.mrb[0].mxu0 %v4394
    %v9409 = vpop.f32.mrb[0].mxu0
    %v9410 = vadd.f32 %v9369, %v9409
    %v9411 = vpop.f32.mrb[0].mxu0
    %v9412 = vadd.f32 %v9371, %v9411
    %v9413 = vpop.f32.mrb[0].mxu0
    %v9414 = vpop.f32.mrb[0].mxu0
    %9415 = vdwg.mxu0
    %9416 = vmatprep.subr.bf16.mxu0 %v8293
    %9417 = vmatpush1.bf16.msra.mxu0 %v8292
    %9418 = vmatprep.subr.bf16.mxu0 %v8303
    %9419 = vmatpush1.bf16.msra.mxu0 %v8302
    %9420 = vmatprep.subr.bf16.mxu0 %v8313
    %9421 = vmatpush1.bf16.msra.mxu0 %v8312
    %9422 = vmatprep.subr.bf16.mxu0 %v8323
    %9423 = vmatpush1.bf16.msra.mxu0 %v8322
    %9424 = vmatprep.subr.bf16.mxu0 %v8333
    %9425 = vmatpush1.bf16.msra.mxu0 %v8332
    %9426 = vmatprep.subr.bf16.mxu0 %v8343
    %9427 = vmatpush1.bf16.msra.mxu0 %v8342
    %9428 = vmatprep.subr.bf16.mxu0 %v8353
    %9429 = vmatpush1.bf16.msra.mxu0 %v8352
    %9430 = vmatprep.subr.bf16.mxu0 %v8363
    %9431 = vmatpush1.bf16.msra.mxu0 %v8362
    %9432 = vmatprep.subr.bf16.mxu0 %v8373
    %9433 = vmatpush1.bf16.msra.mxu0 %v8372
    %9434 = vmatprep.subr.bf16.mxu0 %v8383
    %9435 = vmatpush1.bf16.msra.mxu0 %v8382
    %9436 = vmatprep.subr.bf16.mxu0 %v8393
    %9437 = vmatpush1.bf16.msra.mxu0 %v8392
    %9438 = vmatprep.subr.bf16.mxu0 %v8403
    %9439 = vmatpush1.bf16.msra.mxu0 %v8402
    %9440 = vmatprep.subr.bf16.mxu0 %v8413
    %9441 = vmatpush1.bf16.msra.mxu0 %v8412
    %9442 = vmatprep.subr.bf16.mxu0 %v8423
    %9443 = vmatpush1.bf16.msra.mxu0 %v8422
    %9444 = vmatprep.subr.bf16.mxu0 %v8433
    %9445 = vmatpush1.bf16.msra.mxu0 %v8432
    %9446 = vmatprep.subr.bf16.mxu0 %v8443
    %9447 = vmatpush1.bf16.msra.mxu0 %v8442
    %9448 = vmatprep.mubr.bf16.mxu0 %v4397
    %9449 = vmatmul.mubr.bf16.gmra.mrb[0].mxu0 %v4396
    %v9450 = vpop.f32.mrb[0].mxu0
    %v9451 = vadd.f32 %v9410, %v9450
    %v9452 = vpop.f32.mrb[0].mxu0
    %v9453 = vadd.f32 %v9412, %v9452
    %v9454 = vpop.f32.mrb[0].mxu0
    %v9455 = vpop.f32.mrb[0].mxu0
    %9456 = vdwg.mxu0
    %9457 = vmatprep.subr.bf16.mxu0 %v7655
    %9458 = vmatpush1.bf16.msra.mxu0 %v7654
    %9459 = vmatprep.subr.bf16.mxu0 %v7665
    %9460 = vmatpush1.bf16.msra.mxu0 %v7664
    %9461 = vmatprep.subr.bf16.mxu0 %v7675
    %9462 = vmatpush1.bf16.msra.mxu0 %v7674
    %9463 = vmatprep.subr.bf16.mxu0 %v7685
    %9464 = vmatpush1.bf16.msra.mxu0 %v7684
    %9465 = vmatprep.subr.bf16.mxu0 %v7695
    %9466 = vmatpush1.bf16.msra.mxu0 %v7694
    %9467 = vmatprep.subr.bf16.mxu0 %v7705
    %9468 = vmatpush1.bf16.msra.mxu0 %v7704
    %9469 = vmatprep.subr.bf16.mxu0 %v7715
    %9470 = vmatpush1.bf16.msra.mxu0 %v7714
    %9471 = vmatprep.subr.bf16.mxu0 %v7725
    %9472 = vmatpush1.bf16.msra.mxu0 %v7724
    %9473 = vmatprep.subr.bf16.mxu0 %v7735
    %9474 = vmatpush1.bf16.msra.mxu0 %v7734
    %9475 = vmatprep.subr.bf16.mxu0 %v7745
    %9476 = vmatpush1.bf16.msra.mxu0 %v7744
    %9477 = vmatprep.subr.bf16.mxu0 %v7755
    %9478 = vmatpush1.bf16.msra.mxu0 %v7754
    %9479 = vmatprep.subr.bf16.mxu0 %v7765
    %9480 = vmatpush1.bf16.msra.mxu0 %v7764
    %9481 = vmatprep.subr.bf16.mxu0 %v7775
    %9482 = vmatpush1.bf16.msra.mxu0 %v7774
    %9483 = vmatprep.subr.bf16.mxu0 %v7785
    %9484 = vmatpush1.bf16.msra.mxu0 %v7784
    %9485 = vmatprep.subr.bf16.mxu0 %v7795
    %9486 = vmatpush1.bf16.msra.mxu0 %v7794
    %9487 = vmatprep.subr.bf16.mxu0 %v7805
    %9488 = vmatpush1.bf16.msra.mxu0 %v7804
    %9489 = vmatprep.mubr.bf16.mxu0 %v4389
    %9490 = vmatmul.mubr.bf16.gmra.mrb[0].mxu0 %v4388
    %v9491 = vpop.f32.mrb[0].mxu0
    %v9492 = vadd.f32 %v5213, %v9491
    %v9493 = vpop.f32.mrb[0].mxu0
    %v9494 = vadd.f32 %v5217, %v9493
    %v9495 = vpop.f32.mrb[0].mxu0
    %v9496 = vpop.f32.mrb[0].mxu0
    %9497 = vdwg.mxu0
    %9498 = vmatprep.subr.bf16.mxu0 %v7815
    %9499 = vmatpush1.bf16.msra.mxu0 %v7814
    %9500 = vmatprep.subr.bf16.mxu0 %v7825
    %9501 = vmatpush1.bf16.msra.mxu0 %v7824
    %9502 = vmatprep.subr.bf16.mxu0 %v7835
    %9503 = vmatpush1.bf16.msra.mxu0 %v7834
    %9504 = vmatprep.subr.bf16.mxu0 %v7845
    %9505 = vmatpush1.bf16.msra.mxu0 %v7844
    %9506 = vmatprep.subr.bf16.mxu0 %v7855
    %9507 = vmatpush1.bf16.msra.mxu0 %v7854
    %9508 = vmatprep.subr.bf16.mxu0 %v7865
    %9509 = vmatpush1.bf16.msra.mxu0 %v7864
    %9510 = vmatprep.subr.bf16.mxu0 %v7875
    %9511 = vmatpush1.bf16.msra.mxu0 %v7874
    %9512 = vmatprep.subr.bf16.mxu0 %v7885
    %9513 = vmatpush1.bf16.msra.mxu0 %v7884
    %9514 = vmatprep.subr.bf16.mxu0 %v7895
    %9515 = vmatpush1.bf16.msra.mxu0 %v7894
    %9516 = vmatprep.subr.bf16.mxu0 %v7905
    %9517 = vmatpush1.bf16.msra.mxu0 %v7904
    %9518 = vmatprep.subr.bf16.mxu0 %v7915
    %9519 = vmatpush1.bf16.msra.mxu0 %v7914
    %9520 = vmatprep.subr.bf16.mxu0 %v7925
    %9521 = vmatpush1.bf16.msra.mxu0 %v7924
    %9522 = vmatprep.subr.bf16.mxu0 %v7935
    %9523 = vmatpush1.bf16.msra.mxu0 %v7934
    %9524 = vmatprep.subr.bf16.mxu0 %v7945
    %9525 = vmatpush1.bf16.msra.mxu0 %v7944
    %9526 = vmatprep.subr.bf16.mxu0 %v7955
    %9527 = vmatpush1.bf16.msra.mxu0 %v7954
    %9528 = vmatprep.subr.bf16.mxu0 %v7965
    %9529 = vmatpush1.bf16.msra.mxu0 %v7964
    %9530 = vmatprep.mubr.bf16.mxu0 %v4391
    %9531 = vmatmul.mubr.bf16.gmra.mrb[0].mxu0 %v4390
    %v9532 = vpop.f32.mrb[0].mxu0
    %v9533 = vadd.f32 %v9492, %v9532
    %v9534 = vpop.f32.mrb[0].mxu0
    %v9535 = vadd.f32 %v9494, %v9534
    %v9536 = vpop.f32.mrb[0].mxu0
    %v9537 = vpop.f32.mrb[0].mxu0
    %9538 = vdwg.mxu0
    %9539 = vmatprep.subr.bf16.mxu0 %v7975
    %9540 = vmatpush1.bf16.msra.mxu0 %v7974
    %9541 = vmatprep.subr.bf16.mxu0 %v7985
    %9542 = vmatpush1.bf16.msra.mxu0 %v7984
    %9543 = vmatprep.subr.bf16.mxu0 %v7995
    %9544 = vmatpush1.bf16.msra.mxu0 %v7994
    %9545 = vmatprep.subr.bf16.mxu0 %v8005
    %9546 = vmatpush1.bf16.msra.mxu0 %v8004
    %9547 = vmatprep.subr.bf16.mxu0 %v8015
    %9548 = vmatpush1.bf16.msra.mxu0 %v8014
    %9549 = vmatprep.subr.bf16.mxu0 %v8025
    %9550 = vmatpush1.bf16.msra.mxu0 %v8024
    %9551 = vmatprep.subr.bf16.mxu0 %v8035
    %9552 = vmatpush1.bf16.msra.mxu0 %v8034
    %9553 = vmatprep.subr.bf16.mxu0 %v8045
    %9554 = vmatpush1.bf16.msra.mxu0 %v8044
    %9555 = vmatprep.subr.bf16.mxu0 %v8055
    %9556 = vmatpush1.bf16.msra.mxu0 %v8054
    %9557 = vmatprep.subr.bf16.mxu0 %v8065
    %9558 = vmatpush1.bf16.msra.mxu0 %v8064
    %9559 = vmatprep.subr.bf16.mxu0 %v8075
    %9560 = vmatpush1.bf16.msra.mxu0 %v8074
    %9561 = vmatprep.subr.bf16.mxu0 %v8085
    %9562 = vmatpush1.bf16.msra.mxu0 %v8084
    %9563 = vmatprep.subr.bf16.mxu0 %v8095
    %9564 = vmatpush1.bf16.msra.mxu0 %v8094
    %9565 = vmatprep.subr.bf16.mxu0 %v8105
    %9566 = vmatpush1.bf16.msra.mxu0 %v8104
    %9567 = vmatprep.subr.bf16.mxu0 %v8115
    %9568 = vmatpush1.bf16.msra.mxu0 %v8114
    %9569 = vmatprep.subr.bf16.mxu0 %v8125
    %9570 = vmatpush1.bf16.msra.mxu0 %v8124
    %9571 = vmatprep.mubr.bf16.mxu0 %v4393
    %9572 = vmatmul.mubr.bf16.gmra.mrb[0].mxu0 %v4392
    %v9573 = vpop.f32.mrb[0].mxu0
    %v9574 = vadd.f32 %v9533, %v9573
    %v9575 = vpop.f32.mrb[0].mxu0
    %v9576 = vadd.f32 %v9535, %v9575
    %v9577 = vpop.f32.mrb[0].mxu0
    %v9578 = vpop.f32.mrb[0].mxu0
    %9579 = vdwg.mxu0
    %9580 = vmatprep.subr.bf16.mxu0 %v8135
    %9581 = vmatpush1.bf16.msra.mxu0 %v8134
    %9582 = vmatprep.subr.bf16.mxu0 %v8145
    %9583 = vmatpush1.bf16.msra.mxu0 %v8144
    %9584 = vmatprep.subr.bf16.mxu0 %v8155
    %9585 = vmatpush1.bf16.msra.mxu0 %v8154
    %9586 = vmatprep.subr.bf16.mxu0 %v8165
    %9587 = vmatpush1.bf16.msra.mxu0 %v8164
    %9588 = vmatprep.subr.bf16.mxu0 %v8175
    %9589 = vmatpush1.bf16.msra.mxu0 %v8174
    %9590 = vmatprep.subr.bf16.mxu0 %v8185
    %9591 = vmatpush1.bf16.msra.mxu0 %v8184
    %9592 = vmatprep.subr.bf16.mxu0 %v8195
    %9593 = vmatpush1.bf16.msra.mxu0 %v8194
    %9594 = vmatprep.subr.bf16.mxu0 %v8205
    %9595 = vmatpush1.bf16.msra.mxu0 %v8204
    %9596 = vmatprep.subr.bf16.mxu0 %v8215
    %9597 = vmatpush1.bf16.msra.mxu0 %v8214
    %9598 = vmatprep.subr.bf16.mxu0 %v8225
    %9599 = vmatpush1.bf16.msra.mxu0 %v8224
    %9600 = vmatprep.subr.bf16.mxu0 %v8235
    %9601 = vmatpush1.bf16.msra.mxu0 %v8234
    %9602 = vmatprep.subr.bf16.mxu0 %v8245
    %9603 = vmatpush1.bf16.msra.mxu0 %v8244
    %9604 = vmatprep.subr.bf16.mxu0 %v8255
    %9605 = vmatpush1.bf16.msra.mxu0 %v8254
    %9606 = vmatprep.subr.bf16.mxu0 %v8265
    %9607 = vmatpush1.bf16.msra.mxu0 %v8264
    %9608 = vmatprep.subr.bf16.mxu0 %v8275
    %9609 = vmatpush1.bf16.msra.mxu0 %v8274
    %9610 = vmatprep.subr.bf16.mxu0 %v8285
    %9611 = vmatpush1.bf16.msra.mxu0 %v8284
    %9612 = vmatprep.mubr.bf16.mxu0 %v4395
    %9613 = vmatmul.mubr.bf16.gmra.mrb[0].mxu0 %v4394
    %v9614 = vpop.f32.mrb[0].mxu0
    %v9615 = vadd.f32 %v9574, %v9614
    %v9616 = vpop.f32.mrb[0].mxu0
    %v9617 = vadd.f32 %v9576, %v9616
    %v9618 = vpop.f32.mrb[0].mxu0
    %v9619 = vpop.f32.mrb[0].mxu0
    %9620 = vdwg.mxu0
    %9621 = vmatprep.subr.bf16.mxu0 %v8295
    %9622 = vmatpush1.bf16.msra.mxu0 %v8294
    %9623 = vmatprep.subr.bf16.mxu0 %v8305
    %9624 = vmatpush1.bf16.msra.mxu0 %v8304
    %9625 = vmatprep.subr.bf16.mxu0 %v8315
    %9626 = vmatpush1.bf16.msra.mxu0 %v8314
    %9627 = vmatprep.subr.bf16.mxu0 %v8325
    %9628 = vmatpush1.bf16.msra.mxu0 %v8324
    %9629 = vmatprep.subr.bf16.mxu0 %v8335
    %9630 = vmatpush1.bf16.msra.mxu0 %v8334
    %9631 = vmatprep.subr.bf16.mxu0 %v8345
    %9632 = vmatpush1.bf16.msra.mxu0 %v8344
    %9633 = vmatprep.subr.bf16.mxu0 %v8355
    %9634 = vmatpush1.bf16.msra.mxu0 %v8354
    %9635 = vmatprep.subr.bf16.mxu0 %v8365
    %9636 = vmatpush1.bf16.msra.mxu0 %v8364
    %9637 = vmatprep.subr.bf16.mxu0 %v8375
    %9638 = vmatpush1.bf16.msra.mxu0 %v8374
    %9639 = vmatprep.subr.bf16.mxu0 %v8385
    %9640 = vmatpush1.bf16.msra.mxu0 %v8384
    %9641 = vmatprep.subr.bf16.mxu0 %v8395
    %9642 = vmatpush1.bf16.msra.mxu0 %v8394
    %9643 = vmatprep.subr.bf16.mxu0 %v8405
    %9644 = vmatpush1.bf16.msra.mxu0 %v8404
    %9645 = vmatprep.subr.bf16.mxu0 %v8415
    %9646 = vmatpush1.bf16.msra.mxu0 %v8414
    %9647 = vmatprep.subr.bf16.mxu0 %v8425
    %9648 = vmatpush1.bf16.msra.mxu0 %v8424
    %9649 = vmatprep.subr.bf16.mxu0 %v8435
    %9650 = vmatpush1.bf16.msra.mxu0 %v8434
    %9651 = vmatprep.subr.bf16.mxu0 %v8445
    %9652 = vmatpush1.bf16.msra.mxu0 %v8444
    %9653 = vmatprep.mubr.bf16.mxu0 %v4397
    %9654 = vmatmul.mubr.bf16.gmra.mrb[0].mxu0 %v4396
    %v9655 = vpop.f32.mrb[0].mxu0
    %v9656 = vadd.f32 %v9615, %v9655
    %v9657 = vpop.f32.mrb[0].mxu0
    %v9658 = vadd.f32 %v9617, %v9657
    %v9659 = vpop.f32.mrb[0].mxu0
    %v9660 = vpop.f32.mrb[0].mxu0
    %9661 = vdwg.mxu0
    %9662 = vmatprep.subr.bf16.mxu0 %v7657
    %9663 = vmatpush1.bf16.msra.mxu0 %v7656
    %9664 = vmatprep.subr.bf16.mxu0 %v7667
    %9665 = vmatpush1.bf16.msra.mxu0 %v7666
    %9666 = vmatprep.subr.bf16.mxu0 %v7677
    %9667 = vmatpush1.bf16.msra.mxu0 %v7676
    %9668 = vmatprep.subr.bf16.mxu0 %v7687
    %9669 = vmatpush1.bf16.msra.mxu0 %v7686
    %9670 = vmatprep.subr.bf16.mxu0 %v7697
    %9671 = vmatpush1.bf16.msra.mxu0 %v7696
    %9672 = vmatprep.subr.bf16.mxu0 %v7707
    %9673 = vmatpush1.bf16.msra.mxu0 %v7706
    %9674 = vmatprep.subr.bf16.mxu0 %v7717
    %9675 = vmatpush1.bf16.msra.mxu0 %v7716
    %9676 = vmatprep.subr.bf16.mxu0 %v7727
    %9677 = vmatpush1.bf16.msra.mxu0 %v7726
    %9678 = vmatprep.subr.bf16.mxu0 %v7737
    %9679 = vmatpush1.bf16.msra.mxu0 %v7736
    %9680 = vmatprep.subr.bf16.mxu0 %v7747
    %9681 = vmatpush1.bf16.msra.mxu0 %v7746
    %9682 = vmatprep.subr.bf16.mxu0 %v7757
    %9683 = vmatpush1.bf16.msra.mxu0 %v7756
    %9684 = vmatprep.subr.bf16.mxu0 %v7767
    %9685 = vmatpush1.bf16.msra.mxu0 %v7766
    %9686 = vmatprep.subr.bf16.mxu0 %v7777
    %9687 = vmatpush1.bf16.msra.mxu0 %v7776
    %9688 = vmatprep.subr.bf16.mxu0 %v7787
    %9689 = vmatpush1.bf16.msra.mxu0 %v7786
    %9690 = vmatprep.subr.bf16.mxu0 %v7797
    %9691 = vmatpush1.bf16.msra.mxu0 %v7796
    %9692 = vmatprep.subr.bf16.mxu0 %v7807
    %9693 = vmatpush1.bf16.msra.mxu0 %v7806
    %9694 = vmatprep.mubr.bf16.mxu0 %v4389
    %9695 = vmatmul.mubr.bf16.gmra.mrb[0].mxu0 %v4388
    %v9696 = vpop.f32.mrb[0].mxu0
    %v9697 = vadd.f32 %v5221, %v9696
    %v9698 = vpop.f32.mrb[0].mxu0
    %v9699 = vadd.f32 %v5225, %v9698
    %v9700 = vpop.f32.mrb[0].mxu0
    %v9701 = vpop.f32.mrb[0].mxu0
    %9702 = vdwg.mxu0
    %9703 = vmatprep.subr.bf16.mxu0 %v7817
    %9704 = vmatpush1.bf16.msra.mxu0 %v7816
    %9705 = vmatprep.subr.bf16.mxu0 %v7827
    %9706 = vmatpush1.bf16.msra.mxu0 %v7826
    %9707 = vmatprep.subr.bf16.mxu0 %v7837
    %9708 = vmatpush1.bf16.msra.mxu0 %v7836
    %9709 = vmatprep.subr.bf16.mxu0 %v7847
    %9710 = vmatpush1.bf16.msra.mxu0 %v7846
    %9711 = vmatprep.subr.bf16.mxu0 %v7857
    %9712 = vmatpush1.bf16.msra.mxu0 %v7856
    %9713 = vmatprep.subr.bf16.mxu0 %v7867
    %9714 = vmatpush1.bf16.msra.mxu0 %v7866
    %9715 = vmatprep.subr.bf16.mxu0 %v7877
    %9716 = vmatpush1.bf16.msra.mxu0 %v7876
    %9717 = vmatprep.subr.bf16.mxu0 %v7887
    %9718 = vmatpush1.bf16.msra.mxu0 %v7886
    %9719 = vmatprep.subr.bf16.mxu0 %v7897
    %9720 = vmatpush1.bf16.msra.mxu0 %v7896
    %9721 = vmatprep.subr.bf16.mxu0 %v7907
    %9722 = vmatpush1.bf16.msra.mxu0 %v7906
    %9723 = vmatprep.subr.bf16.mxu0 %v7917
    %9724 = vmatpush1.bf16.msra.mxu0 %v7916
    %9725 = vmatprep.subr.bf16.mxu0 %v7927
    %9726 = vmatpush1.bf16.msra.mxu0 %v7926
    %9727 = vmatprep.subr.bf16.mxu0 %v7937
    %9728 = vmatpush1.bf16.msra.mxu0 %v7936
    %9729 = vmatprep.subr.bf16.mxu0 %v7947
    %9730 = vmatpush1.bf16.msra.mxu0 %v7946
    %9731 = vmatprep.subr.bf16.mxu0 %v7957
    %9732 = vmatpush1.bf16.msra.mxu0 %v7956
    %9733 = vmatprep.subr.bf16.mxu0 %v7967
    %9734 = vmatpush1.bf16.msra.mxu0 %v7966
    %9735 = vmatprep.mubr.bf16.mxu0 %v4391
    %9736 = vmatmul.mubr.bf16.gmra.mrb[0].mxu0 %v4390
    %v9737 = vpop.f32.mrb[0].mxu0
    %v9738 = vadd.f32 %v9697, %v9737
    %v9739 = vpop.f32.mrb[0].mxu0
    %v9740 = vadd.f32 %v9699, %v9739
    %v9741 = vpop.f32.mrb[0].mxu0
    %v9742 = vpop.f32.mrb[0].mxu0
    %9743 = vdwg.mxu0
    %9744 = vmatprep.subr.bf16.mxu0 %v7977
    %9745 = vmatpush1.bf16.msra.mxu0 %v7976
    %9746 = vmatprep.subr.bf16.mxu0 %v7987
    %9747 = vmatpush1.bf16.msra.mxu0 %v7986
    %9748 = vmatprep.subr.bf16.mxu0 %v7997
    %9749 = vmatpush1.bf16.msra.mxu0 %v7996
    %9750 = vmatprep.subr.bf16.mxu0 %v8007
    %9751 = vmatpush1.bf16.msra.mxu0 %v8006
    %9752 = vmatprep.subr.bf16.mxu0 %v8017
    %9753 = vmatpush1.bf16.msra.mxu0 %v8016
    %9754 = vmatprep.subr.bf16.mxu0 %v8027
    %9755 = vmatpush1.bf16.msra.mxu0 %v8026
    %9756 = vmatprep.subr.bf16.mxu0 %v8037
    %9757 = vmatpush1.bf16.msra.mxu0 %v8036
    %9758 = vmatprep.subr.bf16.mxu0 %v8047
    %9759 = vmatpush1.bf16.msra.mxu0 %v8046
    %9760 = vmatprep.subr.bf16.mxu0 %v8057
    %9761 = vmatpush1.bf16.msra.mxu0 %v8056
    %9762 = vmatprep.subr.bf16.mxu0 %v8067
    %9763 = vmatpush1.bf16.msra.mxu0 %v8066
    %9764 = vmatprep.subr.bf16.mxu0 %v8077
    %9765 = vmatpush1.bf16.msra.mxu0 %v8076
    %9766 = vmatprep.subr.bf16.mxu0 %v8087
    %9767 = vmatpush1.bf16.msra.mxu0 %v8086
    %9768 = vmatprep.subr.bf16.mxu0 %v8097
    %9769 = vmatpush1.bf16.msra.mxu0 %v8096
    %9770 = vmatprep.subr.bf16.mxu0 %v8107
    %9771 = vmatpush1.bf16.msra.mxu0 %v8106
    %9772 = vmatprep.subr.bf16.mxu0 %v8117
    %9773 = vmatpush1.bf16.msra.mxu0 %v8116
    %9774 = vmatprep.subr.bf16.mxu0 %v8127
    %9775 = vmatpush1.bf16.msra.mxu0 %v8126
    %9776 = vmatprep.mubr.bf16.mxu0 %v4393
    %9777 = vmatmul.mubr.bf16.gmra.mrb[0].mxu0 %v4392
    %v9778 = vpop.f32.mrb[0].mxu0
    %v9779 = vadd.f32 %v9738, %v9778
    %v9780 = vpop.f32.mrb[0].mxu0
    %v9781 = vadd.f32 %v9740, %v9780
    %v9782 = vpop.f32.mrb[0].mxu0
    %v9783 = vpop.f32.mrb[0].mxu0
    %9784 = vdwg.mxu0
    %9785 = vmatprep.subr.bf16.mxu0 %v8137
    %9786 = vmatpush1.bf16.msra.mxu0 %v8136
    %9787 = vmatprep.subr.bf16.mxu0 %v8147
    %9788 = vmatpush1.bf16.msra.mxu0 %v8146
    %9789 = vmatprep.subr.bf16.mxu0 %v8157
    %9790 = vmatpush1.bf16.msra.mxu0 %v8156
    %9791 = vmatprep.subr.bf16.mxu0 %v8167
    %9792 = vmatpush1.bf16.msra.mxu0 %v8166
    %9793 = vmatprep.subr.bf16.mxu0 %v8177
    %9794 = vmatpush1.bf16.msra.mxu0 %v8176
    %9795 = vmatprep.subr.bf16.mxu0 %v8187
    %9796 = vmatpush1.bf16.msra.mxu0 %v8186
    %9797 = vmatprep.subr.bf16.mxu0 %v8197
    %9798 = vmatpush1.bf16.msra.mxu0 %v8196
    %9799 = vmatprep.subr.bf16.mxu0 %v8207
    %9800 = vmatpush1.bf16.msra.mxu0 %v8206
    %9801 = vmatprep.subr.bf16.mxu0 %v8217
    %9802 = vmatpush1.bf16.msra.mxu0 %v8216
    %9803 = vmatprep.subr.bf16.mxu0 %v8227
    %9804 = vmatpush1.bf16.msra.mxu0 %v8226
    %9805 = vmatprep.subr.bf16.mxu0 %v8237
    %9806 = vmatpush1.bf16.msra.mxu0 %v8236
    %9807 = vmatprep.subr.bf16.mxu0 %v8247
    %9808 = vmatpush1.bf16.msra.mxu0 %v8246
    %9809 = vmatprep.subr.bf16.mxu0 %v8257
    %9810 = vmatpush1.bf16.msra.mxu0 %v8256
    %9811 = vmatprep.subr.bf16.mxu0 %v8267
    %9812 = vmatpush1.bf16.msra.mxu0 %v8266
    %9813 = vmatprep.subr.bf16.mxu0 %v8277
    %9814 = vmatpush1.bf16.msra.mxu0 %v8276
    %9815 = vmatprep.subr.bf16.mxu0 %v8287
    %9816 = vmatpush1.bf16.msra.mxu0 %v8286
    %9817 = vmatprep.mubr.bf16.mxu0 %v4395
    %9818 = vmatmul.mubr.bf16.gmra.mrb[0].mxu0 %v4394
    %v9819 = vpop.f32.mrb[0].mxu0
    %v9820 = vadd.f32 %v9779, %v9819
    %v9821 = vpop.f32.mrb[0].mxu0
    %v9822 = vadd.f32 %v9781, %v9821
    %v9823 = vpop.f32.mrb[0].mxu0
    %v9824 = vpop.f32.mrb[0].mxu0
    %9825 = vdwg.mxu0
    %9826 = vmatprep.subr.bf16.mxu0 %v8297
    %9827 = vmatpush1.bf16.msra.mxu0 %v8296
    %9828 = vmatprep.subr.bf16.mxu0 %v8307
    %9829 = vmatpush1.bf16.msra.mxu0 %v8306
    %9830 = vmatprep.subr.bf16.mxu0 %v8317
    %9831 = vmatpush1.bf16.msra.mxu0 %v8316
    %9832 = vmatprep.subr.bf16.mxu0 %v8327
    %9833 = vmatpush1.bf16.msra.mxu0 %v8326
    %9834 = vmatprep.subr.bf16.mxu0 %v8337
    %9835 = vmatpush1.bf16.msra.mxu0 %v8336
    %9836 = vmatprep.subr.bf16.mxu0 %v8347
    %9837 = vmatpush1.bf16.msra.mxu0 %v8346
    %9838 = vmatprep.subr.bf16.mxu0 %v8357
    %9839 = vmatpush1.bf16.msra.mxu0 %v8356
    %9840 = vmatprep.subr.bf16.mxu0 %v8367
    %9841 = vmatpush1.bf16.msra.mxu0 %v8366
    %9842 = vmatprep.subr.bf16.mxu0 %v8377
    %9843 = vmatpush1.bf16.msra.mxu0 %v8376
    %9844 = vmatprep.subr.bf16.mxu0 %v8387
    %9845 = vmatpush1.bf16.msra.mxu0 %v8386
    %9846 = vmatprep.subr.bf16.mxu0 %v8397
    %9847 = vmatpush1.bf16.msra.mxu0 %v8396
    %9848 = vmatprep.subr.bf16.mxu0 %v8407
    %9849 = vmatpush1.bf16.msra.mxu0 %v8406
    %9850 = vmatprep.subr.bf16.mxu0 %v8417
    %9851 = vmatpush1.bf16.msra.mxu0 %v8416
    %9852 = vmatprep.subr.bf16.mxu0 %v8427
    %9853 = vmatpush1.bf16.msra.mxu0 %v8426
    %9854 = vmatprep.subr.bf16.mxu0 %v8437
    %9855 = vmatpush1.bf16.msra.mxu0 %v8436
    %9856 = vmatprep.subr.bf16.mxu0 %v8447
    %9857 = vmatpush1.bf16.msra.mxu0 %v8446
    %9858 = vmatprep.mubr.bf16.mxu0 %v4397
    %9859 = vmatmul.mubr.bf16.gmra.mrb[0].mxu0 %v4396
    %v9860 = vpop.f32.mrb[0].mxu0
    %v9861 = vadd.f32 %v9820, %v9860
    %v9862 = vpop.f32.mrb[0].mxu0
    %v9863 = vadd.f32 %v9822, %v9862
    %v9864 = vpop.f32.mrb[0].mxu0
    %v9865 = vpop.f32.mrb[0].mxu0
    %9866 = vdwg.mxu0
    %9867 = vmatprep.subr.bf16.mxu0 %v7659
    %9868 = vmatpush1.bf16.msra.mxu0 %v7658
    %9869 = vmatprep.subr.bf16.mxu0 %v7669
    %9870 = vmatpush1.bf16.msra.mxu0 %v7668
    %9871 = vmatprep.subr.bf16.mxu0 %v7679
    %9872 = vmatpush1.bf16.msra.mxu0 %v7678
    %9873 = vmatprep.subr.bf16.mxu0 %v7689
    %9874 = vmatpush1.bf16.msra.mxu0 %v7688
    %9875 = vmatprep.subr.bf16.mxu0 %v7699
    %9876 = vmatpush1.bf16.msra.mxu0 %v7698
    %9877 = vmatprep.subr.bf16.mxu0 %v7709
    %9878 = vmatpush1.bf16.msra.mxu0 %v7708
    %9879 = vmatprep.subr.bf16.mxu0 %v7719
    %9880 = vmatpush1.bf16.msra.mxu0 %v7718
    %9881 = vmatprep.subr.bf16.mxu0 %v7729
    %9882 = vmatpush1.bf16.msra.mxu0 %v7728
    %9883 = vmatprep.subr.bf16.mxu0 %v7739
    %9884 = vmatpush1.bf16.msra.mxu0 %v7738
    %9885 = vmatprep.subr.bf16.mxu0 %v7749
    %9886 = vmatpush1.bf16.msra.mxu0 %v7748
    %9887 = vmatprep.subr.bf16.mxu0 %v7759
    %9888 = vmatpush1.bf16.msra.mxu0 %v7758
    %9889 = vmatprep.subr.bf16.mxu0 %v7769
    %9890 = vmatpush1.bf16.msra.mxu0 %v7768
    %9891 = vmatprep.subr.bf16.mxu0 %v7779
    %9892 = vmatpush1.bf16.msra.mxu0 %v7778
    %9893 = vmatprep.subr.bf16.mxu0 %v7789
    %9894 = vmatpush1.bf16.msra.mxu0 %v7788
    %9895 = vmatprep.subr.bf16.mxu0 %v7799
    %9896 = vmatpush1.bf16.msra.mxu0 %v7798
    %9897 = vmatprep.subr.bf16.mxu0 %v7809
    %9898 = vmatpush1.bf16.msra.mxu0 %v7808
    %9899 = vmatprep.mubr.bf16.mxu0 %v4389
    %9900 = vmatmul.mubr.bf16.gmra.mrb[0].mxu0 %v4388
    %v9901 = vpop.f32.mrb[0].mxu0
    %v9902 = vadd.f32 %v5229, %v9901
    %v9903 = vpop.f32.mrb[0].mxu0
    %v9904 = vadd.f32 %v5233, %v9903
    %v9905 = vpop.f32.mrb[0].mxu0
    %v9906 = vpop.f32.mrb[0].mxu0
    %9907 = vdwg.mxu0
    %9908 = vmatprep.subr.bf16.mxu0 %v7819
    %9909 = vmatpush1.bf16.msra.mxu0 %v7818
    %9910 = vmatprep.subr.bf16.mxu0 %v7829
    %9911 = vmatpush1.bf16.msra.mxu0 %v7828
    %9912 = vmatprep.subr.bf16.mxu0 %v7839
    %9913 = vmatpush1.bf16.msra.mxu0 %v7838
    %9914 = vmatprep.subr.bf16.mxu0 %v7849
    %9915 = vmatpush1.bf16.msra.mxu0 %v7848
    %9916 = vmatprep.subr.bf16.mxu0 %v7859
    %9917 = vmatpush1.bf16.msra.mxu0 %v7858
    %9918 = vmatprep.subr.bf16.mxu0 %v7869
    %9919 = vmatpush1.bf16.msra.mxu0 %v7868
    %9920 = vmatprep.subr.bf16.mxu0 %v7879
    %9921 = vmatpush1.bf16.msra.mxu0 %v7878
    %9922 = vmatprep.subr.bf16.mxu0 %v7889
    %9923 = vmatpush1.bf16.msra.mxu0 %v7888
    %9924 = vmatprep.subr.bf16.mxu0 %v7899
    %9925 = vmatpush1.bf16.msra.mxu0 %v7898
    %9926 = vmatprep.subr.bf16.mxu0 %v7909
    %9927 = vmatpush1.bf16.msra.mxu0 %v7908
    %9928 = vmatprep.subr.bf16.mxu0 %v7919
    %9929 = vmatpush1.bf16.msra.mxu0 %v7918
    %9930 = vmatprep.subr.bf16.mxu0 %v7929
    %9931 = vmatpush1.bf16.msra.mxu0 %v7928
    %9932 = vmatprep.subr.bf16.mxu0 %v7939
    %9933 = vmatpush1.bf16.msra.mxu0 %v7938
    %9934 = vmatprep.subr.bf16.mxu0 %v7949
    %9935 = vmatpush1.bf16.msra.mxu0 %v7948
    %9936 = vmatprep.subr.bf16.mxu0 %v7959
    %9937 = vmatpush1.bf16.msra.mxu0 %v7958
    %9938 = vmatprep.subr.bf16.mxu0 %v7969
    %9939 = vmatpush1.bf16.msra.mxu0 %v7968
    %9940 = vmatprep.mubr.bf16.mxu0 %v4391
    %9941 = vmatmul.mubr.bf16.gmra.mrb[0].mxu0 %v4390
    %v9942 = vpop.f32.mrb[0].mxu0
    %v9943 = vadd.f32 %v9902, %v9942
    %v9944 = vpop.f32.mrb[0].mxu0
    %v9945 = vadd.f32 %v9904, %v9944
    %v9946 = vpop.f32.mrb[0].mxu0
    %v9947 = vpop.f32.mrb[0].mxu0
    %9948 = vdwg.mxu0
    %9949 = vmatprep.subr.bf16.mxu0 %v7979
    %9950 = vmatpush1.bf16.msra.mxu0 %v7978
    %9951 = vmatprep.subr.bf16.mxu0 %v7989
    %9952 = vmatpush1.bf16.msra.mxu0 %v7988
    %9953 = vmatprep.subr.bf16.mxu0 %v7999
    %9954 = vmatpush1.bf16.msra.mxu0 %v7998
    %9955 = vmatprep.subr.bf16.mxu0 %v8009
    %9956 = vmatpush1.bf16.msra.mxu0 %v8008
    %9957 = vmatprep.subr.bf16.mxu0 %v8019
    %9958 = vmatpush1.bf16.msra.mxu0 %v8018
    %9959 = vmatprep.subr.bf16.mxu0 %v8029
    %9960 = vmatpush1.bf16.msra.mxu0 %v8028
    %9961 = vmatprep.subr.bf16.mxu0 %v8039
    %9962 = vmatpush1.bf16.msra.mxu0 %v8038
    %9963 = vmatprep.subr.bf16.mxu0 %v8049
    %9964 = vmatpush1.bf16.msra.mxu0 %v8048
    %9965 = vmatprep.subr.bf16.mxu0 %v8059
    %9966 = vmatpush1.bf16.msra.mxu0 %v8058
    %9967 = vmatprep.subr.bf16.mxu0 %v8069
    %9968 = vmatpush1.bf16.msra.mxu0 %v8068
    %9969 = vmatprep.subr.bf16.mxu0 %v8079
    %9970 = vmatpush1.bf16.msra.mxu0 %v8078
    %9971 = vmatprep.subr.bf16.mxu0 %v8089
    %9972 = vmatpush1.bf16.msra.mxu0 %v8088
    %9973 = vmatprep.subr.bf16.mxu0 %v8099
    %9974 = vmatpush1.bf16.msra.mxu0 %v8098
    %9975 = vmatprep.subr.bf16.mxu0 %v8109
    %9976 = vmatpush1.bf16.msra.mxu0 %v8108
    %9977 = vmatprep.subr.bf16.mxu0 %v8119
    %9978 = vmatpush1.bf16.msra.mxu0 %v8118
    %9979 = vmatprep.subr.bf16.mxu0 %v8129
    %9980 = vmatpush1.bf16.msra.mxu0 %v8128
    %9981 = vmatprep.mubr.bf16.mxu0 %v4393
    %9982 = vmatmul.mubr.bf16.gmra.mrb[0].mxu0 %v4392
    %v9983 = vpop.f32.mrb[0].mxu0
    %v9984 = vadd.f32 %v9943, %v9983
    %v9985 = vpop.f32.mrb[0].mxu0
    %v9986 = vadd.f32 %v9945, %v9985
    %v9987 = vpop.f32.mrb[0].mxu0
    %v9988 = vpop.f32.mrb[0].mxu0
    %9989 = vdwg.mxu0
    %9990 = vmatprep.subr.bf16.mxu0 %v8139
    %9991 = vmatpush1.bf16.msra.mxu0 %v8138
    %9992 = vmatprep.subr.bf16.mxu0 %v8149
    %9993 = vmatpush1.bf16.msra.mxu0 %v8148
    %9994 = vmatprep.subr.bf16.mxu0 %v8159
    %9995 = vmatpush1.bf16.msra.mxu0 %v8158
    %9996 = vmatprep.subr.bf16.mxu0 %v8169
    %9997 = vmatpush1.bf16.msra.mxu0 %v8168
    %9998 = vmatprep.subr.bf16.mxu0 %v8179
    %9999 = vmatpush1.bf16.msra.mxu0 %v8178
    %10000 = vmatprep.subr.bf16.mxu0 %v8189
    %10001 = vmatpush1.bf16.msra.mxu0 %v8188
    %10002 = vmatprep.subr.bf16.mxu0 %v8199
    %10003 = vmatpush1.bf16.msra.mxu0 %v8198
    %10004 = vmatprep.subr.bf16.mxu0 %v8209
    %10005 = vmatpush1.bf16.msra.mxu0 %v8208
    %10006 = vmatprep.subr.bf16.mxu0 %v8219
    %10007 = vmatpush1.bf16.msra.mxu0 %v8218
    %10008 = vmatprep.subr.bf16.mxu0 %v8229
    %10009 = vmatpush1.bf16.msra.mxu0 %v8228
    %10010 = vmatprep.subr.bf16.mxu0 %v8239
    %10011 = vmatpush1.bf16.msra.mxu0 %v8238
    %10012 = vmatprep.subr.bf16.mxu0 %v8249
    %10013 = vmatpush1.bf16.msra.mxu0 %v8248
    %10014 = vmatprep.subr.bf16.mxu0 %v8259
    %10015 = vmatpush1.bf16.msra.mxu0 %v8258
    %10016 = vmatprep.subr.bf16.mxu0 %v8269
    %10017 = vmatpush1.bf16.msra.mxu0 %v8268
    %10018 = vmatprep.subr.bf16.mxu0 %v8279
    %10019 = vmatpush1.bf16.msra.mxu0 %v8278
    %10020 = vmatprep.subr.bf16.mxu0 %v8289
    %10021 = vmatpush1.bf16.msra.mxu0 %v8288
    %10022 = vmatprep.mubr.bf16.mxu0 %v4395
    %10023 = vmatmul.mubr.bf16.gmra.mrb[0].mxu0 %v4394
    %v10024 = vpop.f32.mrb[0].mxu0
    %v10025 = vadd.f32 %v9984, %v10024
    %v10026 = vpop.f32.mrb[0].mxu0
    %v10027 = vadd.f32 %v9986, %v10026
    %v10028 = vpop.f32.mrb[0].mxu0
    %v10029 = vpop.f32.mrb[0].mxu0
    %10030 = vdwg.mxu0
    %10031 = vmatprep.subr.bf16.mxu0 %v8299
    %10032 = vmatpush1.bf16.msra.mxu0 %v8298
    %10033 = vmatprep.subr.bf16.mxu0 %v8309
    %10034 = vmatpush1.bf16.msra.mxu0 %v8308
    %10035 = vmatprep.subr.bf16.mxu0 %v8319
    %10036 = vmatpush1.bf16.msra.mxu0 %v8318
    %10037 = vmatprep.subr.bf16.mxu0 %v8329
    %10038 = vmatpush1.bf16.msra.mxu0 %v8328
    %10039 = vmatprep.subr.bf16.mxu0 %v8339
    %10040 = vmatpush1.bf16.msra.mxu0 %v8338
    %10041 = vmatprep.subr.bf16.mxu0 %v8349
    %10042 = vmatpush1.bf16.msra.mxu0 %v8348
    %10043 = vmatprep.subr.bf16.mxu0 %v8359
    %10044 = vmatpush1.bf16.msra.mxu0 %v8358
    %10045 = vmatprep.subr.bf16.mxu0 %v8369
    %10046 = vmatpush1.bf16.msra.mxu0 %v8368
    %10047 = vmatprep.subr.bf16.mxu0 %v8379
    %10048 = vmatpush1.bf16.msra.mxu0 %v8378
    %10049 = vmatprep.subr.bf16.mxu0 %v8389
    %10050 = vmatpush1.bf16.msra.mxu0 %v8388
    %10051 = vmatprep.subr.bf16.mxu0 %v8399
    %10052 = vmatpush1.bf16.msra.mxu0 %v8398
    %10053 = vmatprep.subr.bf16.mxu0 %v8409
    %10054 = vmatpush1.bf16.msra.mxu0 %v8408
    %10055 = vmatprep.subr.bf16.mxu0 %v8419
    %10056 = vmatpush1.bf16.msra.mxu0 %v8418
    %10057 = vmatprep.subr.bf16.mxu0 %v8429
    %10058 = vmatpush1.bf16.msra.mxu0 %v8428
    %10059 = vmatprep.subr.bf16.mxu0 %v8439
    %10060 = vmatpush1.bf16.msra.mxu0 %v8438
    %10061 = vmatprep.subr.bf16.mxu0 %v8449
    %10062 = vmatpush1.bf16.msra.mxu0 %v8448
    %10063 = vmatprep.mubr.bf16.mxu0 %v4397
    %10064 = vmatmul.mubr.bf16.gmra.mrb[0].mxu0 %v4396
    %v10065 = vpop.f32.mrb[0].mxu0
    %v10066 = vadd.f32 %v10025, %v10065
    %v10067 = vpop.f32.mrb[0].mxu0
    %v10068 = vadd.f32 %v10027, %v10067
    %v10069 = vpop.f32.mrb[0].mxu0
    %v10070 = vpop.f32.mrb[0].mxu0
    %10071 = vdwg.mxu0
    %10072 = vmatprep.subr.bf16.mxu0 %v7661
    %10073 = vmatpush1.bf16.msra.mxu0 %v7660
    %10074 = vmatprep.subr.bf16.mxu0 %v7671
    %10075 = vmatpush1.bf16.msra.mxu0 %v7670
    %10076 = vmatprep.subr.bf16.mxu0 %v7681
    %10077 = vmatpush1.bf16.msra.mxu0 %v7680
    %10078 = vmatprep.subr.bf16.mxu0 %v7691
    %10079 = vmatpush1.bf16.msra.mxu0 %v7690
    %10080 = vmatprep.subr.bf16.mxu0 %v7701
    %10081 = vmatpush1.bf16.msra.mxu0 %v7700
    %10082 = vmatprep.subr.bf16.mxu0 %v7711
    %10083 = vmatpush1.bf16.msra.mxu0 %v7710
    %10084 = vmatprep.subr.bf16.mxu0 %v7721
    %10085 = vmatpush1.bf16.msra.mxu0 %v7720
    %10086 = vmatprep.subr.bf16.mxu0 %v7731
    %10087 = vmatpush1.bf16.msra.mxu0 %v7730
    %10088 = vmatprep.subr.bf16.mxu0 %v7741
    %10089 = vmatpush1.bf16.msra.mxu0 %v7740
    %10090 = vmatprep.subr.bf16.mxu0 %v7751
    %10091 = vmatpush1.bf16.msra.mxu0 %v7750
    %10092 = vmatprep.subr.bf16.mxu0 %v7761
    %10093 = vmatpush1.bf16.msra.mxu0 %v7760
    %10094 = vmatprep.subr.bf16.mxu0 %v7771
    %10095 = vmatpush1.bf16.msra.mxu0 %v7770
    %10096 = vmatprep.subr.bf16.mxu0 %v7781
    %10097 = vmatpush1.bf16.msra.mxu0 %v7780
    %10098 = vmatprep.subr.bf16.mxu0 %v7791
    %10099 = vmatpush1.bf16.msra.mxu0 %v7790
    %10100 = vmatprep.subr.bf16.mxu0 %v7801
    %10101 = vmatpush1.bf16.msra.mxu0 %v7800
    %10102 = vmatprep.subr.bf16.mxu0 %v7811
    %10103 = vmatpush1.bf16.msra.mxu0 %v7810
    %10104 = vmatprep.mubr.bf16.mxu0 %v4389
    %10105 = vmatmul.mubr.bf16.gmra.mrb[0].mxu0 %v4388
    %v10106 = vpop.f32.mrb[0].mxu0
    %v10107 = vadd.f32 %v5237, %v10106
    %v10108 = vpop.f32.mrb[0].mxu0
    %v10109 = vadd.f32 %v5241, %v10108
    %v10110 = vpop.f32.mrb[0].mxu0
    %v10111 = vpop.f32.mrb[0].mxu0
    %10112 = vdwg.mxu0
    %10113 = vmatprep.subr.bf16.mxu0 %v7821
    %10114 = vmatpush1.bf16.msra.mxu0 %v7820
    %10115 = vmatprep.subr.bf16.mxu0 %v7831
    %10116 = vmatpush1.bf16.msra.mxu0 %v7830
    %10117 = vmatprep.subr.bf16.mxu0 %v7841
    %10118 = vmatpush1.bf16.msra.mxu0 %v7840
    %10119 = vmatprep.subr.bf16.mxu0 %v7851
    %10120 = vmatpush1.bf16.msra.mxu0 %v7850
    %10121 = vmatprep.subr.bf16.mxu0 %v7861
    %10122 = vmatpush1.bf16.msra.mxu0 %v7860
    %10123 = vmatprep.subr.bf16.mxu0 %v7871
    %10124 = vmatpush1.bf16.msra.mxu0 %v7870
    %10125 = vmatprep.subr.bf16.mxu0 %v7881
    %10126 = vmatpush1.bf16.msra.mxu0 %v7880
    %10127 = vmatprep.subr.bf16.mxu0 %v7891
    %10128 = vmatpush1.bf16.msra.mxu0 %v7890
    %10129 = vmatprep.subr.bf16.mxu0 %v7901
    %10130 = vmatpush1.bf16.msra.mxu0 %v7900
    %10131 = vmatprep.subr.bf16.mxu0 %v7911
    %10132 = vmatpush1.bf16.msra.mxu0 %v7910
    %10133 = vmatprep.subr.bf16.mxu0 %v7921
    %10134 = vmatpush1.bf16.msra.mxu0 %v7920
    %10135 = vmatprep.subr.bf16.mxu0 %v7931
    %10136 = vmatpush1.bf16.msra.mxu0 %v7930
    %10137 = vmatprep.subr.bf16.mxu0 %v7941
    %10138 = vmatpush1.bf16.msra.mxu0 %v7940
    %10139 = vmatprep.subr.bf16.mxu0 %v7951
    %10140 = vmatpush1.bf16.msra.mxu0 %v7950
    %10141 = vmatprep.subr.bf16.mxu0 %v7961
    %10142 = vmatpush1.bf16.msra.mxu0 %v7960
    %10143 = vmatprep.subr.bf16.mxu0 %v7971
    %10144 = vmatpush1.bf16.msra.mxu0 %v7970
    %10145 = vmatprep.mubr.bf16.mxu0 %v4391
    %10146 = vmatmul.mubr.bf16.gmra.mrb[0].mxu0 %v4390
    %v10147 = vpop.f32.mrb[0].mxu0
    %v10148 = vadd.f32 %v10107, %v10147
    %v10149 = vpop.f32.mrb[0].mxu0
    %v10150 = vadd.f32 %v10109, %v10149
    %v10151 = vpop.f32.mrb[0].mxu0
    %v10152 = vpop.f32.mrb[0].mxu0
    %10153 = vdwg.mxu0
    %10154 = vmatprep.subr.bf16.mxu0 %v7981
    %10155 = vmatpush1.bf16.msra.mxu0 %v7980
    %10156 = vmatprep.subr.bf16.mxu0 %v7991
    %10157 = vmatpush1.bf16.msra.mxu0 %v7990
    %10158 = vmatprep.subr.bf16.mxu0 %v8001
    %10159 = vmatpush1.bf16.msra.mxu0 %v8000
    %10160 = vmatprep.subr.bf16.mxu0 %v8011
    %10161 = vmatpush1.bf16.msra.mxu0 %v8010
    %10162 = vmatprep.subr.bf16.mxu0 %v8021
    %10163 = vmatpush1.bf16.msra.mxu0 %v8020
    %10164 = vmatprep.subr.bf16.mxu0 %v8031
    %10165 = vmatpush1.bf16.msra.mxu0 %v8030
    %10166 = vmatprep.subr.bf16.mxu0 %v8041
    %10167 = vmatpush1.bf16.msra.mxu0 %v8040
    %10168 = vmatprep.subr.bf16.mxu0 %v8051
    %10169 = vmatpush1.bf16.msra.mxu0 %v8050
    %10170 = vmatprep.subr.bf16.mxu0 %v8061
    %10171 = vmatpush1.bf16.msra.mxu0 %v8060
    %10172 = vmatprep.subr.bf16.mxu0 %v8071
    %10173 = vmatpush1.bf16.msra.mxu0 %v8070
    %10174 = vmatprep.subr.bf16.mxu0 %v8081
    %10175 = vmatpush1.bf16.msra.mxu0 %v8080
    %10176 = vmatprep.subr.bf16.mxu0 %v8091
    %10177 = vmatpush1.bf16.msra.mxu0 %v8090
    %10178 = vmatprep.subr.bf16.mxu0 %v8101
    %10179 = vmatpush1.bf16.msra.mxu0 %v8100
    %10180 = vmatprep.subr.bf16.mxu0 %v8111
    %10181 = vmatpush1.bf16.msra.mxu0 %v8110
    %10182 = vmatprep.subr.bf16.mxu0 %v8121
    %10183 = vmatpush1.bf16.msra.mxu0 %v8120
    %10184 = vmatprep.subr.bf16.mxu0 %v8131
    %10185 = vmatpush1.bf16.msra.mxu0 %v8130
    %10186 = vmatprep.mubr.bf16.mxu0 %v4393
    %10187 = vmatmul.mubr.bf16.gmra.mrb[0].mxu0 %v4392
    %v10188 = vpop.f32.mrb[0].mxu0
    %v10189 = vadd.f32 %v10148, %v10188
    %v10190 = vpop.f32.mrb[0].mxu0
    %v10191 = vadd.f32 %v10150, %v10190
    %v10192 = vpop.f32.mrb[0].mxu0
    %v10193 = vpop.f32.mrb[0].mxu0
    %10194 = vdwg.mxu0
    %10195 = vmatprep.subr.bf16.mxu0 %v8141
    %10196 = vmatpush1.bf16.msra.mxu0 %v8140
    %10197 = vmatprep.subr.bf16.mxu0 %v8151
    %10198 = vmatpush1.bf16.msra.mxu0 %v8150
    %10199 = vmatprep.subr.bf16.mxu0 %v8161
    %10200 = vmatpush1.bf16.msra.mxu0 %v8160
    %10201 = vmatprep.subr.bf16.mxu0 %v8171
    %10202 = vmatpush1.bf16.msra.mxu0 %v8170
    %10203 = vmatprep.subr.bf16.mxu0 %v8181
    %10204 = vmatpush1.bf16.msra.mxu0 %v8180
    %10205 = vmatprep.subr.bf16.mxu0 %v8191
    %10206 = vmatpush1.bf16.msra.mxu0 %v8190
    %10207 = vmatprep.subr.bf16.mxu0 %v8201
    %10208 = vmatpush1.bf16.msra.mxu0 %v8200
    %10209 = vmatprep.subr.bf16.mxu0 %v8211
    %10210 = vmatpush1.bf16.msra.mxu0 %v8210
    %10211 = vmatprep.subr.bf16.mxu0 %v8221
    %10212 = vmatpush1.bf16.msra.mxu0 %v8220
    %10213 = vmatprep.subr.bf16.mxu0 %v8231
    %10214 = vmatpush1.bf16.msra.mxu0 %v8230
    %10215 = vmatprep.subr.bf16.mxu0 %v8241
    %10216 = vmatpush1.bf16.msra.mxu0 %v8240
    %10217 = vmatprep.subr.bf16.mxu0 %v8251
    %10218 = vmatpush1.bf16.msra.mxu0 %v8250
    %10219 = vmatprep.subr.bf16.mxu0 %v8261
    %10220 = vmatpush1.bf16.msra.mxu0 %v8260
    %10221 = vmatprep.subr.bf16.mxu0 %v8271
    %10222 = vmatpush1.bf16.msra.mxu0 %v8270
    %10223 = vmatprep.subr.bf16.mxu0 %v8281
    %10224 = vmatpush1.bf16.msra.mxu0 %v8280
    %10225 = vmatprep.subr.bf16.mxu0 %v8291
    %10226 = vmatpush1.bf16.msra.mxu0 %v8290
    %10227 = vmatprep.mubr.bf16.mxu0 %v4395
    %10228 = vmatmul.mubr.bf16.gmra.mrb[0].mxu0 %v4394
    %v10229 = vpop.f32.mrb[0].mxu0
    %v10230 = vadd.f32 %v10189, %v10229
    %v10231 = vpop.f32.mrb[0].mxu0
    %v10232 = vadd.f32 %v10191, %v10231
    %v10233 = vpop.f32.mrb[0].mxu0
    %v10234 = vpop.f32.mrb[0].mxu0
    %10235 = vdwg.mxu0
    %10236 = vmatprep.subr.bf16.mxu0 %v8301
    %10237 = vmatpush1.bf16.msra.mxu0 %v8300
    %10238 = vmatprep.subr.bf16.mxu0 %v8311
    %10239 = vmatpush1.bf16.msra.mxu0 %v8310
    %10240 = vmatprep.subr.bf16.mxu0 %v8321
    %10241 = vmatpush1.bf16.msra.mxu0 %v8320
    %10242 = vmatprep.subr.bf16.mxu0 %v8331
    %10243 = vmatpush1.bf16.msra.mxu0 %v8330
    %10244 = vmatprep.subr.bf16.mxu0 %v8341
    %10245 = vmatpush1.bf16.msra.mxu0 %v8340
    %10246 = vmatprep.subr.bf16.mxu0 %v8351
    %10247 = vmatpush1.bf16.msra.mxu0 %v8350
    %10248 = vmatprep.subr.bf16.mxu0 %v8361
    %10249 = vmatpush1.bf16.msra.mxu0 %v8360
    %10250 = vmatprep.subr.bf16.mxu0 %v8371
    %10251 = vmatpush1.bf16.msra.mxu0 %v8370
    %10252 = vmatprep.subr.bf16.mxu0 %v8381
    %10253 = vmatpush1.bf16.msra.mxu0 %v8380
    %10254 = vmatprep.subr.bf16.mxu0 %v8391
    %10255 = vmatpush1.bf16.msra.mxu0 %v8390
    %10256 = vmatprep.subr.bf16.mxu0 %v8401
    %10257 = vmatpush1.bf16.msra.mxu0 %v8400
    %10258 = vmatprep.subr.bf16.mxu0 %v8411
    %10259 = vmatpush1.bf16.msra.mxu0 %v8410
    %10260 = vmatprep.subr.bf16.mxu0 %v8421
    %10261 = vmatpush1.bf16.msra.mxu0 %v8420
    %10262 = vmatprep.subr.bf16.mxu0 %v8431
    %10263 = vmatpush1.bf16.msra.mxu0 %v8430
    %10264 = vmatprep.subr.bf16.mxu0 %v8441
    %10265 = vmatpush1.bf16.msra.mxu0 %v8440
    %10266 = vmatprep.subr.bf16.mxu0 %v8451
    %10267 = vmatpush1.bf16.msra.mxu0 %v8450
    %10268 = vmatprep.mubr.bf16.mxu0 %v4397
    %10269 = vmatmul.mubr.bf16.gmra.mrb[0].mxu0 %v4396
    %v10270 = vpop.f32.mrb[0].mxu0
    %v10271 = vadd.f32 %v10230, %v10270
    %v10272 = vpop.f32.mrb[0].mxu0
    %v10273 = vadd.f32 %v10232, %v10272
    %v10274 = vpop.f32.mrb[0].mxu0
    %v10275 = vpop.f32.mrb[0].mxu0
    %10276 = vdwg.mxu0
    %v10277 = vmax.f32 %v9451, 0.0
    %v10278 = vmax.f32 %v9453, 0.0
    %v10279 = vmax.f32 %v9656, 0.0
    %v10280 = vmax.f32 %v9658, 0.0
    %v10281 = vmax.f32 %v9861, 0.0
    %v10282 = vmax.f32 %v9863, 0.0
    %v10283 = vmax.f32 %v10066, 0.0
    %v10284 = vmax.f32 %v10068, 0.0
    %v10285 = vmax.f32 %v10271, 0.0
    %v10286 = vmax.f32 %v10273, 0.0
    %v10287 = vpack.c.bf16 %v10277, %v10277
    %v10288 = vpack.c.bf16 %v10278, %v10278
    %v10289 = vpack.c.bf16 %v10279, %v10279
    %v10290 = vpack.c.bf16 %v10280, %v10280
    %v10291 = vpack.c.bf16 %v10281, %v10281
    %v10292 = vpack.c.bf16 %v10282, %v10282
    %v10293 = vpack.c.bf16 %v10283, %v10283
    %v10294 = vpack.c.bf16 %v10284, %v10284
    %v10295 = vpack.c.bf16 %v10285, %v10285
    %v10296 = vpack.c.bf16 %v10286, %v10286
    %v10297 = vld [vmem:[#allocation11] sm:$0xf]
    %v10298 = vld [vmem:[#allocation11 + $0x4] sm:$0xf]
    %v10299 = vld [vmem:[#allocation11 + $0x8] sm:$0xf]
    %v10300 = vld [vmem:[#allocation11 + $0xc] sm:$0xf]
    %v10301 = vld [vmem:[#allocation11 + $0x10] sm:$0xf]
    %v10302 = vld [vmem:[#allocation11 + $0x14] sm:$0xf]
    %v10303 = vld [vmem:[#allocation11 + $0x18] sm:$0xf]
    %v10304 = vld [vmem:[#allocation11 + $0x1c] sm:$0xf]
    %v10305 = vld [vmem:[#allocation11 + $0x20] sm:$0xf]
    %v10306 = vld [vmem:[#allocation11 + $0x24] sm:$0xf]
    %v10307 = vld [vmem:[#allocation11 + $0x28] sm:$0xf]
    %v10308 = vld [vmem:[#allocation11 + $0x2c] sm:$0xf]
    %v10309 = vld [vmem:[#allocation11 + $0x30] sm:$0xf]
    %v10310 = vld [vmem:[#allocation11 + $0x34] sm:$0xf]
    %v10311 = vld [vmem:[#allocation11 + $0x38] sm:$0xf]
    %v10312 = vld [vmem:[#allocation11 + $0x3c] sm:$0xf]
    %v10313 = vld [vmem:[#allocation11 + $0x40] sm:$0xf]
    %v10314 = vld [vmem:[#allocation11 + $0x44] sm:$0xf]
    %v10315 = vld [vmem:[#allocation11 + $0x48] sm:$0xf]
    %v10316 = vld [vmem:[#allocation11 + $0x4c] sm:$0xf]
    %v10317 = vld [vmem:[#allocation11 + $0x50] sm:$0xf]
    %v10318 = vld [vmem:[#allocation11 + $0x54] sm:$0xf]
    %v10319 = vld [vmem:[#allocation11 + $0x58] sm:$0xf]
    %v10320 = vld [vmem:[#allocation11 + $0x5c] sm:$0xf]
    %v10321 = vld [vmem:[#allocation11 + $0x60] sm:$0xf]
    %v10322 = vld [vmem:[#allocation11 + $0x64] sm:$0xf]
    %v10323 = vld [vmem:[#allocation11 + $0x68] sm:$0xf]
    %v10324 = vld [vmem:[#allocation11 + $0x6c] sm:$0xf]
    %v10325 = vld [vmem:[#allocation11 + $0x70] sm:$0xf]
    %v10326 = vld [vmem:[#allocation11 + $0x74] sm:$0xf]
    %v10327 = vld [vmem:[#allocation11 + $0x78] sm:$0xf]
    %v10328 = vld [vmem:[#allocation11 + $0x7c] sm:$0xf]
    %v10329 = vld [vmem:[#allocation11 + $0x80] sm:$0xf]
    %v10330 = vld [vmem:[#allocation11 + $0x84] sm:$0xf]
    %v10331 = vld [vmem:[#allocation11 + $0x88] sm:$0xf]
    %v10332 = vld [vmem:[#allocation11 + $0x8c] sm:$0xf]
    %v10333 = vld [vmem:[#allocation11 + $0x90] sm:$0xf]
    %v10334 = vld [vmem:[#allocation11 + $0x94] sm:$0xf]
    %v10335 = vld [vmem:[#allocation11 + $0x98] sm:$0xf]
    %v10336 = vld [vmem:[#allocation11 + $0x9c] sm:$0xf]
    %v10337 = vld [vmem:[#allocation11 + $0xa0] sm:$0xf]
    %v10338 = vld [vmem:[#allocation11 + $0xa4] sm:$0xf]
    %v10339 = vld [vmem:[#allocation11 + $0xa8] sm:$0xf]
    %v10340 = vld [vmem:[#allocation11 + $0xac] sm:$0xf]
    %v10341 = vld [vmem:[#allocation11 + $0xb0] sm:$0xf]
    %v10342 = vld [vmem:[#allocation11 + $0xb4] sm:$0xf]
    %v10343 = vld [vmem:[#allocation11 + $0xb8] sm:$0xf]
    %v10344 = vld [vmem:[#allocation11 + $0xbc] sm:$0xf]
    %v10345 = vld [vmem:[#allocation11 + $0xc0] sm:$0xf]
    %v10346 = vld [vmem:[#allocation11 + $0xc4] sm:$0xf]
    %v10347 = vld [vmem:[#allocation11 + $0xc8] sm:$0xf]
    %v10348 = vld [vmem:[#allocation11 + $0xcc] sm:$0xf]
    %v10349 = vld [vmem:[#allocation11 + $0xd0] sm:$0xf]
    %v10350 = vld [vmem:[#allocation11 + $0xd4] sm:$0xf]
    %v10351 = vld [vmem:[#allocation11 + $0xd8] sm:$0xf]
    %v10352 = vld [vmem:[#allocation11 + $0xdc] sm:$0xf]
    %v10353 = vld [vmem:[#allocation11 + $0xe0] sm:$0xf]
    %v10354 = vld [vmem:[#allocation11 + $0xe4] sm:$0xf]
    %v10355 = vld [vmem:[#allocation11 + $0xe8] sm:$0xf]
    %v10356 = vld [vmem:[#allocation11 + $0xec] sm:$0xf]
    %v10357 = vld [vmem:[#allocation11 + $0xf0] sm:$0xf]
    %v10358 = vld [vmem:[#allocation11 + $0xf4] sm:$0xf]
    %v10359 = vld [vmem:[#allocation11 + $0xf8] sm:$0xf]
    %v10360 = vld [vmem:[#allocation11 + $0xfc] sm:$0xf]
    %v10361 = vld [vmem:[#allocation11 + $0x100] sm:$0xf]
    %v10362 = vld [vmem:[#allocation11 + $0x104] sm:$0xf]
    %v10363 = vld [vmem:[#allocation11 + $0x108] sm:$0xf]
    %v10364 = vld [vmem:[#allocation11 + $0x10c] sm:$0xf]
    %v10365 = vld [vmem:[#allocation11 + $0x110] sm:$0xf]
    %v10366 = vld [vmem:[#allocation11 + $0x114] sm:$0xf]
    %v10367 = vld [vmem:[#allocation11 + $0x118] sm:$0xf]
    %v10368 = vld [vmem:[#allocation11 + $0x11c] sm:$0xf]
    %v10369 = vld [vmem:[#allocation11 + $0x120] sm:$0xf]
    %v10370 = vld [vmem:[#allocation11 + $0x124] sm:$0xf]
    %v10371 = vld [vmem:[#allocation11 + $0x128] sm:$0xf]
    %v10372 = vld [vmem:[#allocation11 + $0x12c] sm:$0xf]
    %v10373 = vld [vmem:[#allocation11 + $0x130] sm:$0xf]
    %v10374 = vld [vmem:[#allocation11 + $0x134] sm:$0xf]
    %v10375 = vld [vmem:[#allocation11 + $0x138] sm:$0xf]
    %v10376 = vld [vmem:[#allocation11 + $0x13c] sm:$0xf]
    %v10377 = vld [vmem:[#allocation11 + $0x140] sm:$0xf]
    %v10378 = vld [vmem:[#allocation11 + $0x144] sm:$0xf]
    %v10379 = vld [vmem:[#allocation11 + $0x148] sm:$0xf]
    %v10380 = vld [vmem:[#allocation11 + $0x14c] sm:$0xf]
    %v10381 = vld [vmem:[#allocation11 + $0x150] sm:$0xf]
    %v10382 = vld [vmem:[#allocation11 + $0x154] sm:$0xf]
    %v10383 = vld [vmem:[#allocation11 + $0x158] sm:$0xf]
    %v10384 = vld [vmem:[#allocation11 + $0x15c] sm:$0xf]
    %v10385 = vld [vmem:[#allocation11 + $0x160] sm:$0xf]
    %v10386 = vld [vmem:[#allocation11 + $0x164] sm:$0xf]
    %v10387 = vld [vmem:[#allocation11 + $0x168] sm:$0xf]
    %v10388 = vld [vmem:[#allocation11 + $0x16c] sm:$0xf]
    %v10389 = vld [vmem:[#allocation11 + $0x170] sm:$0xf]
    %v10390 = vld [vmem:[#allocation11 + $0x174] sm:$0xf]
    %v10391 = vld [vmem:[#allocation11 + $0x178] sm:$0xf]
    %v10392 = vld [vmem:[#allocation11 + $0x17c] sm:$0xf]
    %v10393 = vld [vmem:[#allocation11 + $0x180] sm:$0xf]
    %v10394 = vld [vmem:[#allocation11 + $0x184] sm:$0xf]
    %v10395 = vld [vmem:[#allocation11 + $0x188] sm:$0xf]
    %v10396 = vld [vmem:[#allocation11 + $0x18c] sm:$0xf]
    %v10397 = vld [vmem:[#allocation11 + $0x190] sm:$0xf]
    %v10398 = vld [vmem:[#allocation11 + $0x194] sm:$0xf]
    %v10399 = vld [vmem:[#allocation11 + $0x198] sm:$0xf]
    %v10400 = vld [vmem:[#allocation11 + $0x19c] sm:$0xf]
    %v10401 = vld [vmem:[#allocation11 + $0x1a0] sm:$0xf]
    %v10402 = vld [vmem:[#allocation11 + $0x1a4] sm:$0xf]
    %v10403 = vld [vmem:[#allocation11 + $0x1a8] sm:$0xf]
    %v10404 = vld [vmem:[#allocation11 + $0x1ac] sm:$0xf]
    %v10405 = vld [vmem:[#allocation11 + $0x1b0] sm:$0xf]
    %v10406 = vld [vmem:[#allocation11 + $0x1b4] sm:$0xf]
    %v10407 = vld [vmem:[#allocation11 + $0x1b8] sm:$0xf]
    %v10408 = vld [vmem:[#allocation11 + $0x1bc] sm:$0xf]
    %v10409 = vld [vmem:[#allocation11 + $0x1c0] sm:$0xf]
    %v10410 = vld [vmem:[#allocation11 + $0x1c4] sm:$0xf]
    %v10411 = vld [vmem:[#allocation11 + $0x1c8] sm:$0xf]
    %v10412 = vld [vmem:[#allocation11 + $0x1cc] sm:$0xf]
    %v10413 = vld [vmem:[#allocation11 + $0x1d0] sm:$0xf]
    %v10414 = vld [vmem:[#allocation11 + $0x1d4] sm:$0xf]
    %v10415 = vld [vmem:[#allocation11 + $0x1d8] sm:$0xf]
    %v10416 = vld [vmem:[#allocation11 + $0x1dc] sm:$0xf]
    %v10417 = vld [vmem:[#allocation11 + $0x1e0] sm:$0xf]
    %v10418 = vld [vmem:[#allocation11 + $0x1e4] sm:$0xf]
    %v10419 = vld [vmem:[#allocation11 + $0x1e8] sm:$0xf]
    %v10420 = vld [vmem:[#allocation11 + $0x1ec] sm:$0xf]
    %v10421 = vld [vmem:[#allocation11 + $0x1f0] sm:$0xf]
    %v10422 = vld [vmem:[#allocation11 + $0x1f4] sm:$0xf]
    %v10423 = vld [vmem:[#allocation11 + $0x1f8] sm:$0xf]
    %v10424 = vld [vmem:[#allocation11 + $0x1fc] sm:$0xf]
    %v10425 = vld [vmem:[#allocation11 + $0x200] sm:$0xf]
    %v10426 = vld [vmem:[#allocation11 + $0x204] sm:$0xf]
    %v10427 = vld [vmem:[#allocation11 + $0x208] sm:$0xf]
    %v10428 = vld [vmem:[#allocation11 + $0x20c] sm:$0xf]
    %v10429 = vld [vmem:[#allocation11 + $0x210] sm:$0xf]
    %v10430 = vld [vmem:[#allocation11 + $0x214] sm:$0xf]
    %v10431 = vld [vmem:[#allocation11 + $0x218] sm:$0xf]
    %v10432 = vld [vmem:[#allocation11 + $0x21c] sm:$0xf]
    %v10433 = vld [vmem:[#allocation11 + $0x220] sm:$0xf]
    %v10434 = vld [vmem:[#allocation11 + $0x224] sm:$0xf]
    %v10435 = vld [vmem:[#allocation11 + $0x228] sm:$0xf]
    %v10436 = vld [vmem:[#allocation11 + $0x22c] sm:$0xf]
    %v10437 = vld [vmem:[#allocation11 + $0x230] sm:$0xf]
    %v10438 = vld [vmem:[#allocation11 + $0x234] sm:$0xf]
    %v10439 = vld [vmem:[#allocation11 + $0x238] sm:$0xf]
    %v10440 = vld [vmem:[#allocation11 + $0x23c] sm:$0xf]
    %v10441 = vld [vmem:[#allocation11 + $0x240] sm:$0xf]
    %v10442 = vld [vmem:[#allocation11 + $0x244] sm:$0xf]
    %v10443 = vld [vmem:[#allocation11 + $0x248] sm:$0xf]
    %v10444 = vld [vmem:[#allocation11 + $0x24c] sm:$0xf]
    %v10445 = vld [vmem:[#allocation11 + $0x250] sm:$0xf]
    %v10446 = vld [vmem:[#allocation11 + $0x254] sm:$0xf]
    %v10447 = vld [vmem:[#allocation11 + $0x258] sm:$0xf]
    %v10448 = vld [vmem:[#allocation11 + $0x25c] sm:$0xf]
    %v10449 = vld [vmem:[#allocation11 + $0x260] sm:$0xf]
    %v10450 = vld [vmem:[#allocation11 + $0x264] sm:$0xf]
    %v10451 = vld [vmem:[#allocation11 + $0x268] sm:$0xf]
    %v10452 = vld [vmem:[#allocation11 + $0x26c] sm:$0xf]
    %v10453 = vld [vmem:[#allocation11 + $0x270] sm:$0xf]
    %v10454 = vld [vmem:[#allocation11 + $0x274] sm:$0xf]
    %v10455 = vld [vmem:[#allocation11 + $0x278] sm:$0xf]
    %v10456 = vld [vmem:[#allocation11 + $0x27c] sm:$0xf]
    %v10457 = vld [vmem:[#allocation13] sm:$0x1]
    %v10459 = vlaneseq
    %v10460 = vshrl.u32 %v10459, 7
    %v10461 = vsub.s32 0, %v10460
    %v10462 = vrot.slane %v10457, %v10461
    %v10624 = vunpack.c.l.b16 %v10297
    %v10625 = vunpack.c.l.b16 %v10298
    %v10626 = vunpack.c.l.b16 %v10299
    %v10627 = vunpack.c.l.b16 %v10300
    %v10628 = vunpack.c.l.b16 %v10301
    %v10629 = vunpack.c.l.b16 %v10302
    %v10630 = vunpack.c.l.b16 %v10303
    %v10631 = vunpack.c.l.b16 %v10304
    %v10632 = vunpack.c.l.b16 %v10305
    %v10633 = vunpack.c.l.b16 %v10306
    %v10634 = vunpack.c.l.b16 %v10307
    %v10635 = vunpack.c.l.b16 %v10308
    %v10636 = vunpack.c.l.b16 %v10309
    %v10637 = vunpack.c.l.b16 %v10310
    %v10638 = vunpack.c.l.b16 %v10311
    %v10639 = vunpack.c.l.b16 %v10312
    %v10640 = vunpack.c.l.b16 %v10313
    %v10641 = vunpack.c.l.b16 %v10314
    %v10642 = vunpack.c.l.b16 %v10315
    %v10643 = vunpack.c.l.b16 %v10316
    %v10644 = vunpack.c.l.b16 %v10317
    %v10645 = vunpack.c.l.b16 %v10318
    %v10646 = vunpack.c.l.b16 %v10319
    %v10647 = vunpack.c.l.b16 %v10320
    %v10648 = vunpack.c.l.b16 %v10321
    %v10649 = vunpack.c.l.b16 %v10322
    %v10650 = vunpack.c.l.b16 %v10323
    %v10651 = vunpack.c.l.b16 %v10324
    %v10652 = vunpack.c.l.b16 %v10325
    %v10653 = vunpack.c.l.b16 %v10326
    %v10654 = vunpack.c.l.b16 %v10327
    %v10655 = vunpack.c.l.b16 %v10328
    %v10656 = vunpack.c.l.b16 %v10329
    %v10657 = vunpack.c.l.b16 %v10330
    %v10658 = vunpack.c.l.b16 %v10331
    %v10659 = vunpack.c.l.b16 %v10332
    %v10660 = vunpack.c.l.b16 %v10333
    %v10661 = vunpack.c.l.b16 %v10334
    %v10662 = vunpack.c.l.b16 %v10335
    %v10663 = vunpack.c.l.b16 %v10336
    %v10664 = vunpack.c.l.b16 %v10337
    %v10665 = vunpack.c.l.b16 %v10338
    %v10666 = vunpack.c.l.b16 %v10339
    %v10667 = vunpack.c.l.b16 %v10340
    %v10668 = vunpack.c.l.b16 %v10341
    %v10669 = vunpack.c.l.b16 %v10342
    %v10670 = vunpack.c.l.b16 %v10343
    %v10671 = vunpack.c.l.b16 %v10344
    %v10672 = vunpack.c.l.b16 %v10345
    %v10673 = vunpack.c.l.b16 %v10346
    %v10674 = vunpack.c.l.b16 %v10347
    %v10675 = vunpack.c.l.b16 %v10348
    %v10676 = vunpack.c.l.b16 %v10349
    %v10677 = vunpack.c.l.b16 %v10350
    %v10678 = vunpack.c.l.b16 %v10351
    %v10679 = vunpack.c.l.b16 %v10352
    %v10680 = vunpack.c.l.b16 %v10353
    %v10681 = vunpack.c.l.b16 %v10354
    %v10682 = vunpack.c.l.b16 %v10355
    %v10683 = vunpack.c.l.b16 %v10356
    %v10684 = vunpack.c.l.b16 %v10357
    %v10685 = vunpack.c.l.b16 %v10358
    %v10686 = vunpack.c.l.b16 %v10359
    %v10687 = vunpack.c.l.b16 %v10360
    %v10688 = vunpack.c.l.b16 %v10361
    %v10689 = vunpack.c.l.b16 %v10362
    %v10690 = vunpack.c.l.b16 %v10363
    %v10691 = vunpack.c.l.b16 %v10364
    %v10692 = vunpack.c.l.b16 %v10365
    %v10693 = vunpack.c.l.b16 %v10366
    %v10694 = vunpack.c.l.b16 %v10367
    %v10695 = vunpack.c.l.b16 %v10368
    %v10696 = vunpack.c.l.b16 %v10369
    %v10697 = vunpack.c.l.b16 %v10370
    %v10698 = vunpack.c.l.b16 %v10371
    %v10699 = vunpack.c.l.b16 %v10372
    %v10700 = vunpack.c.l.b16 %v10373
    %v10701 = vunpack.c.l.b16 %v10374
    %v10702 = vunpack.c.l.b16 %v10375
    %v10703 = vunpack.c.l.b16 %v10376
    %v10704 = vunpack.c.l.b16 %v10377
    %v10705 = vunpack.c.l.b16 %v10378
    %v10706 = vunpack.c.l.b16 %v10379
    %v10707 = vunpack.c.l.b16 %v10380
    %v10708 = vunpack.c.l.b16 %v10381
    %v10709 = vunpack.c.l.b16 %v10382
    %v10710 = vunpack.c.l.b16 %v10383
    %v10711 = vunpack.c.l.b16 %v10384
    %v10712 = vunpack.c.l.b16 %v10385
    %v10713 = vunpack.c.l.b16 %v10386
    %v10714 = vunpack.c.l.b16 %v10387
    %v10715 = vunpack.c.l.b16 %v10388
    %v10716 = vunpack.c.l.b16 %v10389
    %v10717 = vunpack.c.l.b16 %v10390
    %v10718 = vunpack.c.l.b16 %v10391
    %v10719 = vunpack.c.l.b16 %v10392
    %v10720 = vunpack.c.l.b16 %v10393
    %v10721 = vunpack.c.l.b16 %v10394
    %v10722 = vunpack.c.l.b16 %v10395
    %v10723 = vunpack.c.l.b16 %v10396
    %v10724 = vunpack.c.l.b16 %v10397
    %v10725 = vunpack.c.l.b16 %v10398
    %v10726 = vunpack.c.l.b16 %v10399
    %v10727 = vunpack.c.l.b16 %v10400
    %v10728 = vunpack.c.l.b16 %v10401
    %v10729 = vunpack.c.l.b16 %v10402
    %v10730 = vunpack.c.l.b16 %v10403
    %v10731 = vunpack.c.l.b16 %v10404
    %v10732 = vunpack.c.l.b16 %v10405
    %v10733 = vunpack.c.l.b16 %v10406
    %v10734 = vunpack.c.l.b16 %v10407
    %v10735 = vunpack.c.l.b16 %v10408
    %v10736 = vunpack.c.l.b16 %v10409
    %v10737 = vunpack.c.l.b16 %v10410
    %v10738 = vunpack.c.l.b16 %v10411
    %v10739 = vunpack.c.l.b16 %v10412
    %v10740 = vunpack.c.l.b16 %v10413
    %v10741 = vunpack.c.l.b16 %v10414
    %v10742 = vunpack.c.l.b16 %v10415
    %v10743 = vunpack.c.l.b16 %v10416
    %v10744 = vunpack.c.l.b16 %v10417
    %v10745 = vunpack.c.l.b16 %v10418
    %v10746 = vunpack.c.l.b16 %v10419
    %v10747 = vunpack.c.l.b16 %v10420
    %v10748 = vunpack.c.l.b16 %v10421
    %v10749 = vunpack.c.l.b16 %v10422
    %v10750 = vunpack.c.l.b16 %v10423
    %v10751 = vunpack.c.l.b16 %v10424
    %v10752 = vunpack.c.l.b16 %v10425
    %v10753 = vunpack.c.l.b16 %v10426
    %v10754 = vunpack.c.l.b16 %v10427
    %v10755 = vunpack.c.l.b16 %v10428
    %v10756 = vunpack.c.l.b16 %v10429
    %v10757 = vunpack.c.l.b16 %v10430
    %v10758 = vunpack.c.l.b16 %v10431
    %v10759 = vunpack.c.l.b16 %v10432
    %v10760 = vunpack.c.l.b16 %v10433
    %v10761 = vunpack.c.l.b16 %v10434
    %v10762 = vunpack.c.l.b16 %v10435
    %v10763 = vunpack.c.l.b16 %v10436
    %v10764 = vunpack.c.l.b16 %v10437
    %v10765 = vunpack.c.l.b16 %v10438
    %v10766 = vunpack.c.l.b16 %v10439
    %v10767 = vunpack.c.l.b16 %v10440
    %v10768 = vunpack.c.l.b16 %v10441
    %v10769 = vunpack.c.l.b16 %v10442
    %v10770 = vunpack.c.l.b16 %v10443
    %v10771 = vunpack.c.l.b16 %v10444
    %v10772 = vunpack.c.l.b16 %v10445
    %v10773 = vunpack.c.l.b16 %v10446
    %v10774 = vunpack.c.l.b16 %v10447
    %v10775 = vunpack.c.l.b16 %v10448
    %v10776 = vunpack.c.l.b16 %v10449
    %v10777 = vunpack.c.l.b16 %v10450
    %v10778 = vunpack.c.l.b16 %v10451
    %v10779 = vunpack.c.l.b16 %v10452
    %v10780 = vunpack.c.l.b16 %v10453
    %v10781 = vunpack.c.l.b16 %v10454
    %v10782 = vunpack.c.l.b16 %v10455
    %v10783 = vunpack.c.l.b16 %v10456
    %v10784 = vpack.c.b16 %v10625, %v10624
    %v10785 = vpack.c.b16 %v10627, %v10626
    %v10786 = vpack.c.b16 %v10629, %v10628
    %v10787 = vpack.c.b16 %v10631, %v10630
    %v10788 = vpack.c.b16 %v10633, %v10632
    %v10789 = vpack.c.b16 %v10635, %v10634
    %v10790 = vpack.c.b16 %v10637, %v10636
    %v10791 = vpack.c.b16 %v10639, %v10638
    %v10792 = vpack.c.b16 %v10641, %v10640
    %v10793 = vpack.c.b16 %v10643, %v10642
    %v10794 = vpack.c.b16 %v10645, %v10644
    %v10795 = vpack.c.b16 %v10647, %v10646
    %v10796 = vpack.c.b16 %v10649, %v10648
    %v10797 = vpack.c.b16 %v10651, %v10650
    %v10798 = vpack.c.b16 %v10653, %v10652
    %v10799 = vpack.c.b16 %v10655, %v10654
    %v10800 = vpack.c.b16 %v10657, %v10656
    %v10801 = vpack.c.b16 %v10659, %v10658
    %v10802 = vpack.c.b16 %v10661, %v10660
    %v10803 = vpack.c.b16 %v10663, %v10662
    %v10804 = vpack.c.b16 %v10665, %v10664
    %v10805 = vpack.c.b16 %v10667, %v10666
    %v10806 = vpack.c.b16 %v10669, %v10668
    %v10807 = vpack.c.b16 %v10671, %v10670
    %v10808 = vpack.c.b16 %v10673, %v10672
    %v10809 = vpack.c.b16 %v10675, %v10674
    %v10810 = vpack.c.b16 %v10677, %v10676
    %v10811 = vpack.c.b16 %v10679, %v10678
    %v10812 = vpack.c.b16 %v10681, %v10680
    %v10813 = vpack.c.b16 %v10683, %v10682
    %v10814 = vpack.c.b16 %v10685, %v10684
    %v10815 = vpack.c.b16 %v10687, %v10686
    %v10816 = vpack.c.b16 %v10689, %v10688
    %v10817 = vpack.c.b16 %v10691, %v10690
    %v10818 = vpack.c.b16 %v10693, %v10692
    %v10819 = vpack.c.b16 %v10695, %v10694
    %v10820 = vpack.c.b16 %v10697, %v10696
    %v10821 = vpack.c.b16 %v10699, %v10698
    %v10822 = vpack.c.b16 %v10701, %v10700
    %v10823 = vpack.c.b16 %v10703, %v10702
    %v10824 = vpack.c.b16 %v10705, %v10704
    %v10825 = vpack.c.b16 %v10707, %v10706
    %v10826 = vpack.c.b16 %v10709, %v10708
    %v10827 = vpack.c.b16 %v10711, %v10710
    %v10828 = vpack.c.b16 %v10713, %v10712
    %v10829 = vpack.c.b16 %v10715, %v10714
    %v10830 = vpack.c.b16 %v10717, %v10716
    %v10831 = vpack.c.b16 %v10719, %v10718
    %v10832 = vpack.c.b16 %v10721, %v10720
    %v10833 = vpack.c.b16 %v10723, %v10722
    %v10834 = vpack.c.b16 %v10725, %v10724
    %v10835 = vpack.c.b16 %v10727, %v10726
    %v10836 = vpack.c.b16 %v10729, %v10728
    %v10837 = vpack.c.b16 %v10731, %v10730
    %v10838 = vpack.c.b16 %v10733, %v10732
    %v10839 = vpack.c.b16 %v10735, %v10734
    %v10840 = vpack.c.b16 %v10737, %v10736
    %v10841 = vpack.c.b16 %v10739, %v10738
    %v10842 = vpack.c.b16 %v10741, %v10740
    %v10843 = vpack.c.b16 %v10743, %v10742
    %v10844 = vpack.c.b16 %v10745, %v10744
    %v10845 = vpack.c.b16 %v10747, %v10746
    %v10846 = vpack.c.b16 %v10749, %v10748
    %v10847 = vpack.c.b16 %v10751, %v10750
    %v10848 = vpack.c.b16 %v10753, %v10752
    %v10849 = vpack.c.b16 %v10755, %v10754
    %v10850 = vpack.c.b16 %v10757, %v10756
    %v10851 = vpack.c.b16 %v10759, %v10758
    %v10852 = vpack.c.b16 %v10761, %v10760
    %v10853 = vpack.c.b16 %v10763, %v10762
    %v10854 = vpack.c.b16 %v10765, %v10764
    %v10855 = vpack.c.b16 %v10767, %v10766
    %v10856 = vpack.c.b16 %v10769, %v10768
    %v10857 = vpack.c.b16 %v10771, %v10770
    %v10858 = vpack.c.b16 %v10773, %v10772
    %v10859 = vpack.c.b16 %v10775, %v10774
    %v10860 = vpack.c.b16 %v10777, %v10776
    %v10861 = vpack.c.b16 %v10779, %v10778
    %v10862 = vpack.c.b16 %v10781, %v10780
    %v10863 = vpack.c.b16 %v10783, %v10782
    %10944 = vmatprep.subr.bf16.mxu0 0
    %10945 = vmatpush1.bf16.msra.mxu0 %v10784
    %10946 = vmatprep.subr.bf16.mxu0 0
    %10947 = vmatpush1.bf16.msra.mxu0 %v10785
    %10948 = vmatprep.subr.bf16.mxu0 0
    %10949 = vmatpush1.bf16.msra.mxu0 %v10786
    %10950 = vmatprep.subr.bf16.mxu0 0
    %10951 = vmatpush1.bf16.msra.mxu0 %v10787
    %10952 = vmatprep.subr.bf16.mxu0 0
    %10953 = vmatpush1.bf16.msra.mxu0 %v10788
    %10954 = vmatprep.subr.bf16.mxu0 0
    %10955 = vmatpush1.bf16.msra.mxu0 %v10789
    %10956 = vmatprep.subr.bf16.mxu0 0
    %10957 = vmatpush1.bf16.msra.mxu0 %v10790
    %10958 = vmatprep.subr.bf16.mxu0 0
    %10959 = vmatpush1.bf16.msra.mxu0 %v10791
    %10960 = vmatprep.subr.bf16.mxu0 0
    %10961 = vmatpush1.bf16.msra.mxu0 %v10792
    %10962 = vmatprep.subr.bf16.mxu0 0
    %10963 = vmatpush1.bf16.msra.mxu0 %v10793
    %10964 = vmatprep.subr.bf16.mxu0 0
    %10965 = vmatpush1.bf16.msra.mxu0 %v10794
    %10966 = vmatprep.subr.bf16.mxu0 0
    %10967 = vmatpush1.bf16.msra.mxu0 %v10795
    %10968 = vmatprep.subr.bf16.mxu0 0
    %10969 = vmatpush1.bf16.msra.mxu0 %v10796
    %10970 = vmatprep.subr.bf16.mxu0 0
    %10971 = vmatpush1.bf16.msra.mxu0 %v10797
    %10972 = vmatprep.subr.bf16.mxu0 0
    %10973 = vmatpush1.bf16.msra.mxu0 %v10798
    %10974 = vmatprep.subr.bf16.mxu0 0
    %10975 = vmatpush1.bf16.msra.mxu0 %v10799
    %10976 = vmatprep.mubr.bf16.mxu0 %v10288
    %10977 = vmatmul.mubr.bf16.gmra.mrb[0].mxu0 %v10287
    %v10978 = vpop.f32.mrb[0].mxu0
    %v10979 = vadd.f32 %v10462, %v10978
    %v10980 = vpop.f32.mrb[0].mxu0
    %v10981 = vpop.f32.mrb[0].mxu0
    %v10982 = vpop.f32.mrb[0].mxu0
    %10983 = vdwg.mxu0
    %10984 = vmatprep.subr.bf16.mxu0 0
    %10985 = vmatpush1.bf16.msra.mxu0 %v10800
    %10986 = vmatprep.subr.bf16.mxu0 0
    %10987 = vmatpush1.bf16.msra.mxu0 %v10801
    %10988 = vmatprep.subr.bf16.mxu0 0
    %10989 = vmatpush1.bf16.msra.mxu0 %v10802
    %10990 = vmatprep.subr.bf16.mxu0 0
    %10991 = vmatpush1.bf16.msra.mxu0 %v10803
    %10992 = vmatprep.subr.bf16.mxu0 0
    %10993 = vmatpush1.bf16.msra.mxu0 %v10804
    %10994 = vmatprep.subr.bf16.mxu0 0
    %10995 = vmatpush1.bf16.msra.mxu0 %v10805
    %10996 = vmatprep.subr.bf16.mxu0 0
    %10997 = vmatpush1.bf16.msra.mxu0 %v10806
    %10998 = vmatprep.subr.bf16.mxu0 0
    %10999 = vmatpush1.bf16.msra.mxu0 %v10807
    %11000 = vmatprep.subr.bf16.mxu0 0
    %11001 = vmatpush1.bf16.msra.mxu0 %v10808
    %11002 = vmatprep.subr.bf16.mxu0 0
    %11003 = vmatpush1.bf16.msra.mxu0 %v10809
    %11004 = vmatprep.subr.bf16.mxu0 0
    %11005 = vmatpush1.bf16.msra.mxu0 %v10810
    %11006 = vmatprep.subr.bf16.mxu0 0
    %11007 = vmatpush1.bf16.msra.mxu0 %v10811
    %11008 = vmatprep.subr.bf16.mxu0 0
    %11009 = vmatpush1.bf16.msra.mxu0 %v10812
    %11010 = vmatprep.subr.bf16.mxu0 0
    %11011 = vmatpush1.bf16.msra.mxu0 %v10813
    %11012 = vmatprep.subr.bf16.mxu0 0
    %11013 = vmatpush1.bf16.msra.mxu0 %v10814
    %11014 = vmatprep.subr.bf16.mxu0 0
    %11015 = vmatpush1.bf16.msra.mxu0 %v10815
    %11016 = vmatprep.mubr.bf16.mxu0 %v10290
    %11017 = vmatmul.mubr.bf16.gmra.mrb[0].mxu0 %v10289
    %v11018 = vpop.f32.mrb[0].mxu0
    %v11019 = vadd.f32 %v10979, %v11018
    %v11020 = vpop.f32.mrb[0].mxu0
    %v11021 = vpop.f32.mrb[0].mxu0
    %v11022 = vpop.f32.mrb[0].mxu0
    %11023 = vdwg.mxu0
    %11024 = vmatprep.subr.bf16.mxu0 0
    %11025 = vmatpush1.bf16.msra.mxu0 %v10816
    %11026 = vmatprep.subr.bf16.mxu0 0
    %11027 = vmatpush1.bf16.msra.mxu0 %v10817
    %11028 = vmatprep.subr.bf16.mxu0 0
    %11029 = vmatpush1.bf16.msra.mxu0 %v10818
    %11030 = vmatprep.subr.bf16.mxu0 0
    %11031 = vmatpush1.bf16.msra.mxu0 %v10819
    %11032 = vmatprep.subr.bf16.mxu0 0
    %11033 = vmatpush1.bf16.msra.mxu0 %v10820
    %11034 = vmatprep.subr.bf16.mxu0 0
    %11035 = vmatpush1.bf16.msra.mxu0 %v10821
    %11036 = vmatprep.subr.bf16.mxu0 0
    %11037 = vmatpush1.bf16.msra.mxu0 %v10822
    %11038 = vmatprep.subr.bf16.mxu0 0
    %11039 = vmatpush1.bf16.msra.mxu0 %v10823
    %11040 = vmatprep.subr.bf16.mxu0 0
    %11041 = vmatpush1.bf16.msra.mxu0 %v10824
    %11042 = vmatprep.subr.bf16.mxu0 0
    %11043 = vmatpush1.bf16.msra.mxu0 %v10825
    %11044 = vmatprep.subr.bf16.mxu0 0
    %11045 = vmatpush1.bf16.msra.mxu0 %v10826
    %11046 = vmatprep.subr.bf16.mxu0 0
    %11047 = vmatpush1.bf16.msra.mxu0 %v10827
    %11048 = vmatprep.subr.bf16.mxu0 0
    %11049 = vmatpush1.bf16.msra.mxu0 %v10828
    %11050 = vmatprep.subr.bf16.mxu0 0
    %11051 = vmatpush1.bf16.msra.mxu0 %v10829
    %11052 = vmatprep.subr.bf16.mxu0 0
    %11053 = vmatpush1.bf16.msra.mxu0 %v10830
    %11054 = vmatprep.subr.bf16.mxu0 0
    %11055 = vmatpush1.bf16.msra.mxu0 %v10831
    %11056 = vmatprep.mubr.bf16.mxu0 %v10292
    %11057 = vmatmul.mubr.bf16.gmra.mrb[0].mxu0 %v10291
    %v11058 = vpop.f32.mrb[0].mxu0
    %v11059 = vadd.f32 %v11019, %v11058
    %v11060 = vpop.f32.mrb[0].mxu0
    %v11061 = vpop.f32.mrb[0].mxu0
    %v11062 = vpop.f32.mrb[0].mxu0
    %11063 = vdwg.mxu0
    %11064 = vmatprep.subr.bf16.mxu0 0
    %11065 = vmatpush1.bf16.msra.mxu0 %v10832
    %11066 = vmatprep.subr.bf16.mxu0 0
    %11067 = vmatpush1.bf16.msra.mxu0 %v10833
    %11068 = vmatprep.subr.bf16.mxu0 0
    %11069 = vmatpush1.bf16.msra.mxu0 %v10834
    %11070 = vmatprep.subr.bf16.mxu0 0
    %11071 = vmatpush1.bf16.msra.mxu0 %v10835
    %11072 = vmatprep.subr.bf16.mxu0 0
    %11073 = vmatpush1.bf16.msra.mxu0 %v10836
    %11074 = vmatprep.subr.bf16.mxu0 0
    %11075 = vmatpush1.bf16.msra.mxu0 %v10837
    %11076 = vmatprep.subr.bf16.mxu0 0
    %11077 = vmatpush1.bf16.msra.mxu0 %v10838
    %11078 = vmatprep.subr.bf16.mxu0 0
    %11079 = vmatpush1.bf16.msra.mxu0 %v10839
    %11080 = vmatprep.subr.bf16.mxu0 0
    %11081 = vmatpush1.bf16.msra.mxu0 %v10840
    %11082 = vmatprep.subr.bf16.mxu0 0
    %11083 = vmatpush1.bf16.msra.mxu0 %v10841
    %11084 = vmatprep.subr.bf16.mxu0 0
    %11085 = vmatpush1.bf16.msra.mxu0 %v10842
    %11086 = vmatprep.subr.bf16.mxu0 0
    %11087 = vmatpush1.bf16.msra.mxu0 %v10843
    %11088 = vmatprep.subr.bf16.mxu0 0
    %11089 = vmatpush1.bf16.msra.mxu0 %v10844
    %11090 = vmatprep.subr.bf16.mxu0 0
    %11091 = vmatpush1.bf16.msra.mxu0 %v10845
    %11092 = vmatprep.subr.bf16.mxu0 0
    %11093 = vmatpush1.bf16.msra.mxu0 %v10846
    %11094 = vmatprep.subr.bf16.mxu0 0
    %11095 = vmatpush1.bf16.msra.mxu0 %v10847
    %11096 = vmatprep.mubr.bf16.mxu0 %v10294
    %11097 = vmatmul.mubr.bf16.gmra.mrb[0].mxu0 %v10293
    %v11098 = vpop.f32.mrb[0].mxu0
    %v11099 = vadd.f32 %v11059, %v11098
    %v11100 = vpop.f32.mrb[0].mxu0
    %v11101 = vpop.f32.mrb[0].mxu0
    %v11102 = vpop.f32.mrb[0].mxu0
    %11103 = vdwg.mxu0
    %11104 = vmatprep.subr.bf16.mxu0 0
    %11105 = vmatpush1.bf16.msra.mxu0 %v10848
    %11106 = vmatprep.subr.bf16.mxu0 0
    %11107 = vmatpush1.bf16.msra.mxu0 %v10849
    %11108 = vmatprep.subr.bf16.mxu0 0
    %11109 = vmatpush1.bf16.msra.mxu0 %v10850
    %11110 = vmatprep.subr.bf16.mxu0 0
    %11111 = vmatpush1.bf16.msra.mxu0 %v10851
    %11112 = vmatprep.subr.bf16.mxu0 0
    %11113 = vmatpush1.bf16.msra.mxu0 %v10852
    %11114 = vmatprep.subr.bf16.mxu0 0
    %11115 = vmatpush1.bf16.msra.mxu0 %v10853
    %11116 = vmatprep.subr.bf16.mxu0 0
    %11117 = vmatpush1.bf16.msra.mxu0 %v10854
    %11118 = vmatprep.subr.bf16.mxu0 0
    %11119 = vmatpush1.bf16.msra.mxu0 %v10855
    %11120 = vmatprep.subr.bf16.mxu0 0
    %11121 = vmatpush1.bf16.msra.mxu0 %v10856
    %11122 = vmatprep.subr.bf16.mxu0 0
    %11123 = vmatpush1.bf16.msra.mxu0 %v10857
    %11124 = vmatprep.subr.bf16.mxu0 0
    %11125 = vmatpush1.bf16.msra.mxu0 %v10858
    %11126 = vmatprep.subr.bf16.mxu0 0
    %11127 = vmatpush1.bf16.msra.mxu0 %v10859
    %11128 = vmatprep.subr.bf16.mxu0 0
    %11129 = vmatpush1.bf16.msra.mxu0 %v10860
    %11130 = vmatprep.subr.bf16.mxu0 0
    %11131 = vmatpush1.bf16.msra.mxu0 %v10861
    %11132 = vmatprep.subr.bf16.mxu0 0
    %11133 = vmatpush1.bf16.msra.mxu0 %v10862
    %11134 = vmatprep.subr.bf16.mxu0 0
    %11135 = vmatpush1.bf16.msra.mxu0 %v10863
    %11136 = vmatprep.mubr.bf16.mxu0 %v10296
    %11137 = vmatmul.mubr.bf16.gmra.mrb[0].mxu0 %v10295
    %v11138 = vpop.f32.mrb[0].mxu0
    %v11139 = vadd.f32 %v11099, %v11138
    %v11140 = vpop.f32.mrb[0].mxu0
    %v11141 = vpop.f32.mrb[0].mxu0
    %v11142 = vpop.f32.mrb[0].mxu0
    %11143 = vdwg.mxu0
    %11144 = vst [vmem:[#allocation14] sm:$0xff] %v11139
    // Predicated region
    $region58: #{tpu_custom_call.1} parent=1 // pred_check
      _
    $region59: #{tpu_custom_call.1} parent=1 // pred_check_branch
      %11146 = sbr.rel (0) target = $region61
    $region60: #{tpu_custom_call.1} parent=1 // pred_region
      %s11148 = ssub.s32 128, 128
      %11149 = vsyncadd [#allocation4], %s11148
      %s11151 = sshll.u32 [#allocation14], 4
      %s11152 = int_to_ptr.vmem [resolvable:$true] %s11151
      %11154 = dma.vmem_to_hbm [thread:$0]  %s11152, 128, %s7, [#allocation4]
    $region61: #{tpu_custom_call.1} parent=1 // pred_fallthru
      _
    // Predicated region
    $region62: #{tpu_custom_call.1} parent=1 // pred_check
      _
    $region63: #{tpu_custom_call.1} parent=1 // pred_check_branch
      %11156 = sbr.rel (0) target = $region65
    $region64: #{tpu_custom_call.1} parent=1 // pred_region
      %11157 = dma.done [#allocation4], 128
    $region65: #{tpu_custom_call.1} parent=1 // pred_fallthru
      _
    %11158 = vsyncpa [#allocation3], 1
    %11159 = vsyncpa [#allocation6], 1
    %11160 = vsyncpa [#allocation9], 1
    %11161 = vsyncpa [#allocation12], 1
    %11162 = vsyncpa [#allocation4], 1

</llo_original>
